<compile_context>
chip_gen: v7x
topology: tpu7x:2x2x1
jax: 0.10.0
libtpu: 0.0.40
codegen_flags: <defaults>
</compile_context>

<pallas_src>
import functools

import jax
import jax.numpy as jnp
from jax.experimental import pallas as pl
from jax.experimental.pallas import tpu as pltpu


_VMEM_LIMIT = 48 * 1024 * 1024   # explicit scoped-VMEM budget (fits all gens)


def _round_up(x, m):
    return (x + m - 1) // m * m


# ----------------------------------------------------------------------------
# In-kernel helpers (traced inside the Pallas kernels)
# ----------------------------------------------------------------------------

def _gn_lrelu(x, gamma, beta, gmat, mask, eps, neg_slope):
    """GroupNorm + LeakyReLU on a padded-flat (Np, C) f32 value.

    Relies on the pad ring of `x` being exactly zero, so the per-channel sums
    over all Np rows equal the sums over the H*W interior pixels; `gmat` bakes
    the 1/(Cg*H*W) divisor and the within-group broadcast into one tiny
    (1,C)@(C,C) matmul (channels stay on the lane axis).
    """
    s = jnp.sum(x, axis=0, keepdims=True)                    # (1, C)
    sq = jnp.sum(x * x, axis=0, keepdims=True)               # (1, C)
    mean = jnp.dot(s, gmat, preferred_element_type=jnp.float32)
    msq = jnp.dot(sq, gmat, preferred_element_type=jnp.float32)
    # NOTE: E[x^2] - mean^2 in f32; fine at activation scale (see review).
    var = msq - mean * mean
    rstd = jax.lax.rsqrt(var + eps)
    scale = rstd * gamma
    shift = beta - mean * scale
    z = x * scale + shift
    z = jnp.where(z >= 0.0, z, neg_slope * z)                # LeakyReLU
    return z * mask                                          # re-zero pad ring


def _stage_padded(z_ref, z, Np, PAD):
    """Write the normalized activation into a zero-extended VMEM scratch so
    every shifted tap read below stays in bounds and all starts/lengths are
    sublane-friendly (PAD and Np are multiples of 8)."""
    zero = jnp.zeros((PAD, z.shape[-1]), z_ref.dtype)
    z_ref[pl.ds(0, PAD), :] = zero
    z_ref[pl.ds(PAD + Np, PAD), :] = zero
    z_ref[pl.ds(PAD, Np), :] = z.astype(z_ref.dtype)


# ----------------------------------------------------------------------------
# Pallas kernels
# ----------------------------------------------------------------------------

def _residual_block_kernel(mask_ref, x_ref, gamma_ref, beta_ref, gmat_ref,
                           w_ref, o_ref, z_ref, *, H, W, Wp, eps, neg_slope):
    """Fused GroupNorm -> LeakyReLU -> Conv3x3 -> residual add (one sample).

    mask_ref : (Np, 1)   f32   1 inside the image, 0 on the pad ring.
    x_ref    : (1, Np, C) bf16 padded-flat activation (zero pad ring).
    gamma_ref, beta_ref : (1, C) f32 GroupNorm affine.
    gmat_ref : (C, C)    f32 group-mean matrix.
    w_ref    : (9*C, C)  bf16 conv weight, rows tap-major (tap = di*3 + dj).
    o_ref    : (1, Np, C) bf16 output = x + conv(lrelu(gn(x))), zero ring.
    z_ref    : (Np + 2*PAD, C) bf16 scratch (normalized activation, zero pads).
    """
    C = x_ref.shape[-1]
    Np = (H + 2) * Wp
    PAD = Wp + 8

    x = x_ref[0].astype(jnp.float32)                         # (Np, C)
    mask = mask_ref[...]                                     # (Np, 1)

    z = _gn_lrelu(x, gamma_ref[...], beta_ref[...], gmat_ref[...], mask,
                  eps, neg_slope)
    _stage_padded(z_ref, z, Np, PAD)

    # 3x3 conv as ONE (Np, 9C) @ (9C, C) MXU matmul: im2col is built in VMEM
    # from 9 row-shifted slices of the staged activation (contraction = 9C).
    slabs = [z_ref[pl.ds(PAD + (di - 1) * Wp + (dj - 1), Np), :]
             for di in range(3) for dj in range(3)]
    im2col = jnp.concatenate(slabs, axis=1)                  # (Np, 9C) bf16
    acc = jnp.dot(im2col, w_ref[...], preferred_element_type=jnp.float32)

    # Mask conv results on the pad ring, fuse residual add, store bf16.
    o_ref[0] = (acc * mask + x).astype(o_ref.dtype)


def _upsample_block_kernel(mask_ref, x_ref, gamma_ref, beta_ref, gmat_ref,
                           wq_ref, o_ref, z_ref, *, H, W, Wp, eps, neg_slope):
    """Fused GroupNorm -> LeakyReLU -> nearest-2x upsample -> Conv3x3.

    The upsample is folded into the conv by parity decomposition: output pixel
    (2r+pr, 2c+pc) only reads source pixels rows {r-1+pr, r+pr} and cols
    {c-1+pc, c+pc}; the 3x3 taps that land on the same (duplicated) source
    pixel are pre-summed into a 2x2 weight per parity (wq_ref).

    wq_ref : (4, 4*Cin, Cout) bf16, parity p = 2*pr + pc, rows (a,b)-major.
    o_ref  : (1, Np, 4*Cout) bf16; lane block p of row (rp*Wp + cp) holds
             y(2*(rp-1)+pr, 2*(cp-1)+pc).  Values on pad-ring rows are junk
             and are sliced away by the caller.
    """
    Cin = x_ref.shape[-1]
    Np = (H + 2) * Wp
    PAD = Wp + 8

    x = x_ref[0].astype(jnp.float32)
    mask = mask_ref[...]

    z = _gn_lrelu(x, gamma_ref[...], beta_ref[...], gmat_ref[...], mask,
                  eps, neg_slope)
    _stage_padded(z_ref, z, Np, PAD)

    outs = []
    for pr in (0, 1):
        for pc in (0, 1):
            slabs = [
                z_ref[pl.ds(PAD + (pr - 1 + a) * Wp + (pc - 1 + b), Np), :]
                for a in (0, 1) for b in (0, 1)]
            im2col = jnp.concatenate(slabs, axis=1)          # (Np, 4*Cin)
            outs.append(jnp.dot(im2col, wq_ref[2 * pr + pc],
                                preferred_element_type=jnp.float32))
    # Lane-dense (Np, 4*Cout) store (128 lanes at Cout=32).
    o_ref[0] = jnp.concatenate(outs, axis=1).astype(o_ref.dtype)


# ----------------------------------------------------------------------------
# Host-side weight / mask preparation
# ----------------------------------------------------------------------------

def _gn_mean_matrix(C, num_groups, HW):
    cg = C // num_groups
    ch = jnp.arange(C)
    same_group = (ch[:, None] // cg) == (ch[None, :] // cg)
    return same_group.astype(jnp.float32) / float(cg * HW)


def _pad_mask(H, W, Wp):
    r = jnp.arange(H + 2)
    c = jnp.arange(Wp)
    inside = ((r >= 1) & (r <= H))[:, None] & ((c >= 1) & (c <= W))[None, :]
    return inside.astype(jnp.float32).reshape((H + 2) * Wp, 1)


def _collapse_upsample_weights(w9):
    """(9, Cin, Cout) tap weights -> (4, 4*Cin, Cout) parity-collapsed 2x2
    weights for the fused nearest-2x-upsample + conv3x3."""
    Cin, Cout = w9.shape[1], w9.shape[2]
    w = w9.reshape(3, 3, Cin, Cout)
    groups = {0: ((0,), (1, 2)), 1: ((0, 1), (2,))}   # parity -> tap groups
    blocks = []
    for pr in (0, 1):
        for pc in (0, 1):
            taps = []
            for a in (0, 1):
                for b in (0, 1):
                    t = jnp.zeros((Cin, Cout), jnp.float32)
                    for di in groups[pr][a]:
                        for dj in groups[pc][b]:
                            t = t + w[di, dj]
                    taps.append(t)
            blocks.append(jnp.concatenate(taps, axis=0))      # (4*Cin, Cout)
    return jnp.stack(blocks, axis=0).astype(jnp.bfloat16)     # (4,4*Cin,Cout)


# ----------------------------------------------------------------------------
# Pallas wrappers (one pallas_call per module block)
# ----------------------------------------------------------------------------

def residual_block(xf, p, mask, *, H, W, Wp, eps=1e-5):
    B, Np, C = xf.shape
    PAD = Wp + 8
    gmat = _gn_mean_matrix(C, min(C, 32), H * W)
    w_cat = p["conv_w"].reshape(9 * C, C).astype(jnp.bfloat16)
    gamma = p["gn_w"].reshape(1, C).astype(jnp.float32)
    beta = p["gn_b"].reshape(1, C).astype(jnp.float32)

    kernel = functools.partial(_residual_block_kernel, H=H, W=W, Wp=Wp,
                               eps=eps, neg_slope=0.01)
    cost = pl.CostEstimate(
        flops=2 * B * Np * 9 * C * C,
        transcendentals=B * C,
        bytes_accessed=2 * B * Np * C * 2 + 9 * C * C * 2 + Np * 4)
    return pl.pallas_call(
        kernel,
        out_shape=jax.ShapeDtypeStruct((B, Np, C), jnp.bfloat16),
        grid=(B,),
        in_specs=[
            pl.BlockSpec((Np, 1), lambda b: (0, 0)),        # pad-ring mask
            pl.BlockSpec((1, Np, C), lambda b: (b, 0, 0)),  # activation
            pl.BlockSpec((1, C), lambda b: (0, 0)),         # GN gamma
            pl.BlockSpec((1, C), lambda b: (0, 0)),         # GN beta
            pl.BlockSpec((C, C), lambda b: (0, 0)),         # group-mean matrix
            pl.BlockSpec((9 * C, C), lambda b: (0, 0)),     # conv weight
        ],
        out_specs=pl.BlockSpec((1, Np, C), lambda b: (b, 0, 0)),
        scratch_shapes=[pltpu.VMEM((Np + 2 * PAD, C), jnp.bfloat16)],
        compiler_params=pltpu.CompilerParams(
            dimension_semantics=("parallel",),
            vmem_limit_bytes=_VMEM_LIMIT),
        cost_estimate=cost,
    )(mask, xf, gamma, beta, gmat, w_cat)


def upsample_block(xf, p, mask, *, H, W, Wp, eps=1e-5):
    B, Np, Cin = xf.shape
    Cout = p["conv_w"].shape[-1]
    PAD = Wp + 8
    gmat = _gn_mean_matrix(Cin, min(Cin, 32), H * W)
    wq = _collapse_upsample_weights(p["conv_w"])             # (4, 4*Cin, Cout)
    gamma = p["gn_w"].reshape(1, Cin).astype(jnp.float32)
    beta = p["gn_b"].reshape(1, Cin).astype(jnp.float32)

    kernel = functools.partial(_upsample_block_kernel, H=H, W=W, Wp=Wp,
                               eps=eps, neg_slope=0.01)
    cost = pl.CostEstimate(
        flops=2 * B * Np * 16 * Cin * Cout,
        transcendentals=B * Cin,
        bytes_accessed=B * Np * (Cin + 4 * Cout) * 2
        + 16 * Cin * Cout * 2 + Np * 4)
    return pl.pallas_call(
        kernel,
        out_shape=jax.ShapeDtypeStruct((B, Np, 4 * Cout), jnp.bfloat16),
        grid=(B,),
        in_specs=[
            pl.BlockSpec((Np, 1), lambda b: (0, 0)),
            pl.BlockSpec((1, Np, Cin), lambda b: (b, 0, 0)),
            pl.BlockSpec((1, Cin), lambda b: (0, 0)),
            pl.BlockSpec((1, Cin), lambda b: (0, 0)),
            pl.BlockSpec((Cin, Cin), lambda b: (0, 0)),
            pl.BlockSpec((4, 4 * Cin, Cout), lambda b: (0, 0, 0)),
        ],
        out_specs=pl.BlockSpec((1, Np, 4 * Cout), lambda b: (b, 0, 0)),
        scratch_shapes=[pltpu.VMEM((Np + 2 * PAD, Cin), jnp.bfloat16)],
        compiler_params=pltpu.CompilerParams(
            dimension_semantics=("parallel",),
            vmem_limit_bytes=_VMEM_LIMIT),
        cost_estimate=cost,
    )(mask, xf, gamma, beta, gmat, wq)


# ----------------------------------------------------------------------------
# Layout helpers (XLA glue) + UpBlock forward
# ----------------------------------------------------------------------------

def to_padded_flat(x_nhwc, Wp):
    """NHWC -> padded-flat (B, (H+2)*Wp, C) with a zero pad ring; Wp >= W+2 is
    a multiple of 8 so the +-Wp row shifts stay sublane-aligned."""
    B, H, W, C = x_nhwc.shape
    xp = jnp.pad(x_nhwc, ((0, 0), (1, 1), (1, Wp - W - 1), (0, 0)))
    return xp.reshape(B, (H + 2) * Wp, C)


def up_block_forward(params, x_nchw):
    """UpBlock: ResNetBlock(cin) -> UpsampleBlock(cin -> cout)."""
    B, C, H, W = x_nchw.shape
    Wp = _round_up(W + 2, 8)
    Cout = params["up"]["conv_w"].shape[-1]

    x = jnp.transpose(x_nchw, (0, 2, 3, 1))                  # NCHW -> NHWC
    xf = to_padded_flat(x, Wp).astype(jnp.bfloat16)          # (B, Np, C) bf16
    mask = _pad_mask(H, W, Wp)                               # (Np, 1) f32

    # ResNetBlock = 2 fully fused residual blocks (one pallas_call each).
    xf = residual_block(xf, params["rb1"], mask, H=H, W=W, Wp=Wp)
    xf = residual_block(xf, params["rb2"], mask, H=H, W=W, Wp=Wp)

    # UpsampleBlock = one pallas_call (GN + LReLU + fused 2x-upsample conv).
    yq = upsample_block(xf, params["up"], mask, H=H, W=W, Wp=Wp)

    # Un-interleave the 4 parity outputs; this slice+transpose is the same
    # single copy that the NHWC->NCHW conversion needs anyway.
    y = yq.reshape(B, H + 2, Wp, 2, 2, Cout)[:, 1:H + 1, 1:W + 1]
    y = jnp.transpose(y, (0, 5, 1, 3, 2, 4)).reshape(B, Cout, 2 * H, 2 * W)
    return y.astype(jnp.float32)


# ----------------------------------------------------------------------------
# Plain-JAX reference (for a correctness check against the kernels)
# ----------------------------------------------------------------------------

def _reference_up_block(params, x_nchw, eps=1e-5):
    x = jnp.transpose(x_nchw, (0, 2, 3, 1)).astype(jnp.float32)

    def gn_lrelu(h, gamma, beta, groups):
        B, H, W, C = h.shape
        cg = C // groups
        hg = h.reshape(B, H, W, groups, cg)
        mean = jnp.mean(hg, axis=(1, 2, 4), keepdims=True)
        var = jnp.mean((hg - mean) ** 2, axis=(1, 2, 4), keepdims=True)
        y = ((hg - mean) * jax.lax.rsqrt(var + eps)).reshape(B, H, W, C)
        y = y * gamma + beta
        return jnp.where(y >= 0, y, 0.01 * y)

    def conv(h, w9):
        w = w9.reshape(3, 3, w9.shape[1], w9.shape[2])       # HWIO
        return jax.lax.conv_general_dilated(
            h, w, window_strides=(1, 1), padding=((1, 1), (1, 1)),
            dimension_numbers=("NHWC", "HWIO", "NHWC"))

    C = x.shape[-1]
    for name in ("rb1", "rb2"):
        p = params[name]
        z = gn_lrelu(x, p["gn_w"], p["gn_b"], min(C, 32))
        x = x + conv(z, p["conv_w"])
    p = params["up"]
    z = gn_lrelu(x, p["gn_w"], p["gn_b"], min(C, 32))
    z = jnp.repeat(jnp.repeat(z, 2, axis=1), 2, axis=2)      # nearest 2x
    y = conv(z, p["conv_w"])
    return jnp.transpose(y, (0, 3, 1, 2))


# ----------------------------------------------------------------------------
# Parameter init (deterministic synthetic weights)
# ----------------------------------------------------------------------------

def init_params(key, cin, cout):
    keys = jax.random.split(key, 9)

    def conv_w(k, ci, co):
        # (3,3,Cin,Cout) HWIO flattened to (9, Cin, Cout); tap t = di*3 + dj.
        return ((9 * ci) ** -0.5) * jax.random.normal(k, (9, ci, co),
                                                      jnp.float32)

    def gn(kw, kb, c):
        w = 1.0 + 0.1 * jax.random.normal(kw, (c,), jnp.float32)
        b = 0.1 * jax.random.normal(kb, (c,), jnp.float32)
        return w, b

    g1, b1 = gn(keys[0], keys[1], cin)
    g2, b2 = gn(keys[2], keys[3], cin)
    g3, b3 = gn(keys[4], keys[5], cin)
    return {
        "rb1": {"gn_w": g1, "gn_b": b1, "conv_w": conv_w(keys[6], cin, cin)},
        "rb2": {"gn_w": g2, "gn_b": b2, "conv_w": conv_w(keys[7], cin, cin)},
        "up":  {"gn_w": g3, "gn_b": b3, "conv_w": conv_w(keys[8], cin, cout)},
    }


# ----------------------------------------------------------------------------
# Main
# ----------------------------------------------------------------------------

if __name__ == "__main__":
    B, Cin, Cout, H, W = 2, 64, 32, 16, 16

    key = jax.random.PRNGKey(0)
    kp, kx = jax.random.split(key)
    params = init_params(kp, Cin, Cout)
    x = jax.random.normal(kx, (B, Cin, H, W), jnp.float32)

    fwd = jax.jit(up_block_forward)
    y = fwd(params, x)
    jax.block_until_ready(y)
    assert y.shape == (B, Cout, 2 * H, 2 * W), y.shape
    assert bool(jnp.all(jnp.isfinite(y)))

    # Correctness check vs. plain-JAX f32 reference.  bf16 activation chain +
    # bf16 MXU operands -> loose absolute tolerance; the relative check would
    # still catch tap-/offset-indexing bugs (those produce O(1) errors).
    y_ref = jax.jit(_reference_up_block)(params, x)
    jax.block_until_ready(y_ref)
    max_err = float(jnp.max(jnp.abs(y - y_ref)))
    rel_err = float(jnp.linalg.norm(y - y_ref) /
                    (jnp.linalg.norm(y_ref) + 1e-12))
    assert max_err < 2.5e-1, f"max abs error vs reference: {max_err}"
    assert rel_err < 3e-2, f"relative error vs reference: {rel_err}"

    print("KERNEL_OK")
</pallas_src>

<mosaic_0001>
module attributes {stable_mosaic.version = 11 : i64} {
  func.func @_residual_block_kernel(%arg0: i32, %arg1: memref<432x1xf32, #tpu.memory_space<vmem>>, %arg2: memref<1x432x64xbf16, #tpu.memory_space<vmem>>, %arg3: memref<1x64xf32, #tpu.memory_space<vmem>>, %arg4: memref<1x64xf32, #tpu.memory_space<vmem>>, %arg5: memref<64x64xf32, #tpu.memory_space<vmem>>, %arg6: memref<576x64xbf16, #tpu.memory_space<vmem>>, %arg7: memref<1x432x64xbf16, #tpu.memory_space<vmem>>, %arg8: memref<496x64xbf16, #tpu.memory_space<vmem>>) attributes {dimension_semantics = [#tpu.dimension_semantics<parallel>], iteration_bounds = array<i64: 2>, scalar_prefetch = 0 : i64, scratch_operands = 1 : i64, tpu.core_type = #tpu.core_type<tc>, window_params = [{pipeline_mode = #tpu.pipeline_mode<synchronous>, transform_indices = @transform_0, window_bounds = array<i64: 432, 1>}, {transform_indices = @transform_1, window_bounds = array<i64: 1, 432, 64>}, {pipeline_mode = #tpu.pipeline_mode<synchronous>, transform_indices = @transform_2, window_bounds = array<i64: 1, 64>}, {pipeline_mode = #tpu.pipeline_mode<synchronous>, transform_indices = @transform_3, window_bounds = array<i64: 1, 64>}, {pipeline_mode = #tpu.pipeline_mode<synchronous>, transform_indices = @transform_4, window_bounds = array<i64: 64, 64>}, {pipeline_mode = #tpu.pipeline_mode<synchronous>, transform_indices = @transform_5, window_bounds = array<i64: 576, 64>}, {transform_indices = @transform_6, window_bounds = array<i64: 1, 432, 64>}]} {
    %c0 = arith.constant 0 : index
    %c0_0 = arith.constant 0 : index
    %c0_1 = arith.constant 0 : index
    %0 = vector.load %arg2[%c0, %c0_0, %c0_1] : memref<1x432x64xbf16, #tpu.memory_space<vmem>>, vector<1x432x64xbf16>
    %1 = vector.shape_cast %0 : vector<1x432x64xbf16> to vector<432x64xbf16>
    %2 = arith.extf %1 : vector<432x64xbf16> to vector<432x64xf32>
    %c0_2 = arith.constant 0 : index
    %c0_3 = arith.constant 0 : index
    %3 = vector.load %arg1[%c0_2, %c0_3] : memref<432x1xf32, #tpu.memory_space<vmem>>, vector<432x1xf32>
    %c0_4 = arith.constant 0 : index
    %c0_5 = arith.constant 0 : index
    %4 = vector.load %arg3[%c0_4, %c0_5] : memref<1x64xf32, #tpu.memory_space<vmem>>, vector<1x64xf32>
    %c0_6 = arith.constant 0 : index
    %c0_7 = arith.constant 0 : index
    %5 = vector.load %arg4[%c0_6, %c0_7] : memref<1x64xf32, #tpu.memory_space<vmem>>, vector<1x64xf32>
    %c0_8 = arith.constant 0 : index
    %c0_9 = arith.constant 0 : index
    %6 = vector.load %arg5[%c0_8, %c0_9] : memref<64x64xf32, #tpu.memory_space<vmem>>, vector<64x64xf32>
    %cst = arith.constant dense<0.000000e+00> : vector<64xf32>
    %7 = vector.multi_reduction <add>, %2, %cst [0] : vector<432x64xf32> to vector<64xf32>
    %8 = vector.shape_cast %7 : vector<64xf32> to vector<1x64xf32>
    %9 = arith.mulf %2, %2 : vector<432x64xf32>
    %cst_10 = arith.constant dense<0.000000e+00> : vector<64xf32>
    %10 = vector.multi_reduction <add>, %9, %cst_10 [0] : vector<432x64xf32> to vector<64xf32>
    %11 = vector.shape_cast %10 : vector<64xf32> to vector<1x64xf32>
    %cst_11 = arith.constant dense<0.000000e+00> : vector<1x64xf32>
    %12 = tpu.matmul %8, %6, %cst_11 {dimension_numbers = #tpu.dot_dimension_numbers<[1], [0], [0], [1], [0, 0, 1, 1], [], []>} : vector<1x64xf32>, vector<64x64xf32>, vector<1x64xf32> -> vector<1x64xf32>
    %cst_12 = arith.constant dense<0.000000e+00> : vector<1x64xf32>
    %13 = tpu.matmul %11, %6, %cst_12 {dimension_numbers = #tpu.dot_dimension_numbers<[1], [0], [0], [1], [0, 0, 1, 1], [], []>} : vector<1x64xf32>, vector<64x64xf32>, vector<1x64xf32> -> vector<1x64xf32>
    %14 = arith.mulf %12, %12 : vector<1x64xf32>
    %15 = arith.subf %13, %14 : vector<1x64xf32>
    %cst_13 = arith.constant 9.99999974E-6 : f32
    %16 = vector.broadcast %cst_13 : f32 to vector<1x64xf32>
    %17 = arith.addf %15, %16 : vector<1x64xf32>
    %18 = math.rsqrt %17 : vector<1x64xf32>
    %19 = arith.mulf %18, %4 : vector<1x64xf32>
    %20 = arith.mulf %12, %19 : vector<1x64xf32>
    %21 = arith.subf %5, %20 : vector<1x64xf32>
    %22 = vector.broadcast %19 : vector<1x64xf32> to vector<432x64xf32>
    %23 = arith.mulf %2, %22 : vector<432x64xf32>
    %24 = vector.broadcast %21 : vector<1x64xf32> to vector<432x64xf32>
    %25 = arith.addf %23, %24 : vector<432x64xf32>
    %cst_14 = arith.constant 0.000000e+00 : f32
    %26 = vector.broadcast %cst_14 : f32 to vector<432x64xf32>
    %27 = arith.cmpf oge, %25, %26 : vector<432x64xf32>
    %cst_15 = arith.constant 0.00999999977 : f32
    %28 = vector.broadcast %cst_15 : f32 to vector<432x64xf32>
    %29 = arith.mulf %28, %25 : vector<432x64xf32>
    %30 = arith.select %27, %25, %29 : vector<432x64xi1>, vector<432x64xf32>
    %31 = vector.broadcast %3 : vector<432x1xf32> to vector<432x64xf32>
    %32 = arith.mulf %30, %31 : vector<432x64xf32>
    %cst_16 = arith.constant 0.000000e+00 : bf16
    %33 = vector.broadcast %cst_16 : bf16 to vector<32x64xbf16>
    %c0_17 = arith.constant 0 : index
    %c0_18 = arith.constant 0 : index
    %34 = vector.load %arg8[%c0_17, %c0_18] : memref<496x64xbf16, #tpu.memory_space<vmem>>, vector<32x64xbf16>
    tpu.vector_store %arg8[%c0_17, %c0_18], %33 {strides = array<i32>} : memref<496x64xbf16, #tpu.memory_space<vmem>>, vector<32x64xbf16>,
    %c464 = arith.constant 464 : index
    %c0_19 = arith.constant 0 : index
    %35 = vector.load %arg8[%c464, %c0_19] : memref<496x64xbf16, #tpu.memory_space<vmem>>, vector<32x64xbf16>
    tpu.vector_store %arg8[%c464, %c0_19], %33 {strides = array<i32>} : memref<496x64xbf16, #tpu.memory_space<vmem>>, vector<32x64xbf16>,
    %36 = arith.truncf %32 : vector<432x64xf32> to vector<432x64xbf16>
    %c32 = arith.constant 32 : index
    %c0_20 = arith.constant 0 : index
    %37 = vector.load %arg8[%c32, %c0_20] : memref<496x64xbf16, #tpu.memory_space<vmem>>, vector<432x64xbf16>
    tpu.vector_store %arg8[%c32, %c0_20], %36 {strides = array<i32>} : memref<496x64xbf16, #tpu.memory_space<vmem>>, vector<432x64xbf16>,
    %c7 = arith.constant 7 : index
    %c0_21 = arith.constant 0 : index
    %38 = vector.load %arg8[%c7, %c0_21] : memref<496x64xbf16, #tpu.memory_space<vmem>>, vector<432x64xbf16>
    %c8 = arith.constant 8 : index
    %c0_22 = arith.constant 0 : index
    %39 = vector.load %arg8[%c8, %c0_22] : memref<496x64xbf16, #tpu.memory_space<vmem>>, vector<432x64xbf16>
    %c9 = arith.constant 9 : index
    %c0_23 = arith.constant 0 : index
    %40 = vector.load %arg8[%c9, %c0_23] : memref<496x64xbf16, #tpu.memory_space<vmem>>, vector<432x64xbf16>
    %c31 = arith.constant 31 : index
    %c0_24 = arith.constant 0 : index
    %41 = vector.load %arg8[%c31, %c0_24] : memref<496x64xbf16, #tpu.memory_space<vmem>>, vector<432x64xbf16>
    %c32_25 = arith.constant 32 : index
    %c0_26 = arith.constant 0 : index
    %42 = vector.load %arg8[%c32_25, %c0_26] : memref<496x64xbf16, #tpu.memory_space<vmem>>, vector<432x64xbf16>
    %c33 = arith.constant 33 : index
    %c0_27 = arith.constant 0 : index
    %43 = vector.load %arg8[%c33, %c0_27] : memref<496x64xbf16, #tpu.memory_space<vmem>>, vector<432x64xbf16>
    %c55 = arith.constant 55 : index
    %c0_28 = arith.constant 0 : index
    %44 = vector.load %arg8[%c55, %c0_28] : memref<496x64xbf16, #tpu.memory_space<vmem>>, vector<432x64xbf16>
    %c56 = arith.constant 56 : index
    %c0_29 = arith.constant 0 : index
    %45 = vector.load %arg8[%c56, %c0_29] : memref<496x64xbf16, #tpu.memory_space<vmem>>, vector<432x64xbf16>
    %c57 = arith.constant 57 : index
    %c0_30 = arith.constant 0 : index
    %46 = vector.load %arg8[%c57, %c0_30] : memref<496x64xbf16, #tpu.memory_space<vmem>>, vector<432x64xbf16>
    %47 = tpu.concatenate %38, %39, %40, %41, %42, %43, %44, %45, %46 in 1 : vector<432x64xbf16>, vector<432x64xbf16>, vector<432x64xbf16>, vector<432x64xbf16>, vector<432x64xbf16>, vector<432x64xbf16>, vector<432x64xbf16>, vector<432x64xbf16>, vector<432x64xbf16> -> vector<432x576xbf16>
    %c0_31 = arith.constant 0 : index
    %c0_32 = arith.constant 0 : index
    %48 = vector.load %arg6[%c0_31, %c0_32] : memref<576x64xbf16, #tpu.memory_space<vmem>>, vector<576x64xbf16>
    %cst_33 = arith.constant dense<0.000000e+00> : vector<432x64xf32>
    %49 = tpu.matmul %47, %48, %cst_33 {dimension_numbers = #tpu.dot_dimension_numbers<[1], [0], [0], [1], [0, 0, 1, 1], [], []>} : vector<432x576xbf16>, vector<576x64xbf16>, vector<432x64xf32> -> vector<432x64xf32>
    %50 = vector.broadcast %3 : vector<432x1xf32> to vector<432x64xf32>
    %51 = arith.mulf %49, %50 : vector<432x64xf32>
    %52 = arith.addf %51, %2 : vector<432x64xf32>
    %53 = arith.truncf %52 : vector<432x64xf32> to vector<432x64xbf16>
    %c0_34 = arith.constant 0 : index
    %c0_35 = arith.constant 0 : index
    %c0_36 = arith.constant 0 : index
    %54 = vector.load %arg7[%c0_34, %c0_35, %c0_36] : memref<1x432x64xbf16, #tpu.memory_space<vmem>>, vector<1x432x64xbf16>
    %55 = vector.shape_cast %54 : vector<1x432x64xbf16> to vector<432x64xbf16>
    %56 = vector.shape_cast %53 : vector<432x64xbf16> to vector<1x432x64xbf16>
    tpu.vector_store %arg7[%c0_34, %c0_35, %c0_36], %56 {strides = array<i32>} : memref<1x432x64xbf16, #tpu.memory_space<vmem>>, vector<1x432x64xbf16>,
    return
  }
  func.func @transform_0(%arg0: i32) -> (i32, i32) {
    %c0_i32 = arith.constant 0 : i32
    %c0_i32_0 = arith.constant 0 : i32
    %c0_i32_1 = arith.constant 0 : i32
    return %c0_i32, %c0_i32_0 : i32, i32
  }
  func.func @transform_1(%arg0: i32) -> (i32, i32, i32) {
    %c0_i32 = arith.constant 0 : i32
    %c0_i32_0 = arith.constant 0 : i32
    %c0_i32_1 = arith.constant 0 : i32
    return %arg0, %c0_i32, %c0_i32_0 : i32, i32, i32
  }
  func.func @transform_2(%arg0: i32) -> (i32, i32) {
    %c0_i32 = arith.constant 0 : i32
    %c0_i32_0 = arith.constant 0 : i32
    %c0_i32_1 = arith.constant 0 : i32
    return %c0_i32, %c0_i32_0 : i32, i32
  }
  func.func @transform_3(%arg0: i32) -> (i32, i32) {
    %c0_i32 = arith.constant 0 : i32
    %c0_i32_0 = arith.constant 0 : i32
    %c0_i32_1 = arith.constant 0 : i32
    return %c0_i32, %c0_i32_0 : i32, i32
  }
  func.func @transform_4(%arg0: i32) -> (i32, i32) {
    %c0_i32 = arith.constant 0 : i32
    %c0_i32_0 = arith.constant 0 : i32
    %c0_i32_1 = arith.constant 0 : i32
    return %c0_i32, %c0_i32_0 : i32, i32
  }
  func.func @transform_5(%arg0: i32) -> (i32, i32) {
    %c0_i32 = arith.constant 0 : i32
    %c0_i32_0 = arith.constant 0 : i32
    %c0_i32_1 = arith.constant 0 : i32
    return %c0_i32, %c0_i32_0 : i32, i32
  }
  func.func @transform_6(%arg0: i32) -> (i32, i32, i32) {
    %c0_i32 = arith.constant 0 : i32
    %c0_i32_0 = arith.constant 0 : i32
    %c0_i32_1 = arith.constant 0 : i32
    return %arg0, %c0_i32, %c0_i32_0 : i32, i32, i32
  }
}

module attributes {stable_mosaic.version = 11 : i64} {
  func.func @_upsample_block_kernel(%arg0: i32, %arg1: memref<432x1xf32, #tpu.memory_space<vmem>>, %arg2: memref<1x432x64xbf16, #tpu.memory_space<vmem>>, %arg3: memref<1x64xf32, #tpu.memory_space<vmem>>, %arg4: memref<1x64xf32, #tpu.memory_space<vmem>>, %arg5: memref<64x64xf32, #tpu.memory_space<vmem>>, %arg6: memref<4x256x32xbf16, #tpu.memory_space<vmem>>, %arg7: memref<1x432x128xbf16, #tpu.memory_space<vmem>>, %arg8: memref<496x64xbf16, #tpu.memory_space<vmem>>) attributes {dimension_semantics = [#tpu.dimension_semantics<parallel>], iteration_bounds = array<i64: 2>, scalar_prefetch = 0 : i64, scratch_operands = 1 : i64, tpu.core_type = #tpu.core_type<tc>, window_params = [{pipeline_mode = #tpu.pipeline_mode<synchronous>, transform_indices = @transform_0, window_bounds = array<i64: 432, 1>}, {transform_indices = @transform_1, window_bounds = array<i64: 1, 432, 64>}, {pipeline_mode = #tpu.pipeline_mode<synchronous>, transform_indices = @transform_2, window_bounds = array<i64: 1, 64>}, {pipeline_mode = #tpu.pipeline_mode<synchronous>, transform_indices = @transform_3, window_bounds = array<i64: 1, 64>}, {pipeline_mode = #tpu.pipeline_mode<synchronous>, transform_indices = @transform_4, window_bounds = array<i64: 64, 64>}, {pipeline_mode = #tpu.pipeline_mode<synchronous>, transform_indices = @transform_5, window_bounds = array<i64: 4, 256, 32>}, {transform_indices = @transform_6, window_bounds = array<i64: 1, 432, 128>}]} {
    %c0 = arith.constant 0 : index
    %c0_0 = arith.constant 0 : index
    %c0_1 = arith.constant 0 : index
    %0 = vector.load %arg2[%c0, %c0_0, %c0_1] : memref<1x432x64xbf16, #tpu.memory_space<vmem>>, vector<1x432x64xbf16>
    %1 = vector.shape_cast %0 : vector<1x432x64xbf16> to vector<432x64xbf16>
    %2 = arith.extf %1 : vector<432x64xbf16> to vector<432x64xf32>
    %c0_2 = arith.constant 0 : index
    %c0_3 = arith.constant 0 : index
    %3 = vector.load %arg1[%c0_2, %c0_3] : memref<432x1xf32, #tpu.memory_space<vmem>>, vector<432x1xf32>
    %c0_4 = arith.constant 0 : index
    %c0_5 = arith.constant 0 : index
    %4 = vector.load %arg3[%c0_4, %c0_5] : memref<1x64xf32, #tpu.memory_space<vmem>>, vector<1x64xf32>
    %c0_6 = arith.constant 0 : index
    %c0_7 = arith.constant 0 : index
    %5 = vector.load %arg4[%c0_6, %c0_7] : memref<1x64xf32, #tpu.memory_space<vmem>>, vector<1x64xf32>
    %c0_8 = arith.constant 0 : index
    %c0_9 = arith.constant 0 : index
    %6 = vector.load %arg5[%c0_8, %c0_9] : memref<64x64xf32, #tpu.memory_space<vmem>>, vector<64x64xf32>
    %cst = arith.constant dense<0.000000e+00> : vector<64xf32>
    %7 = vector.multi_reduction <add>, %2, %cst [0] : vector<432x64xf32> to vector<64xf32>
    %8 = vector.shape_cast %7 : vector<64xf32> to vector<1x64xf32>
    %9 = arith.mulf %2, %2 : vector<432x64xf32>
    %cst_10 = arith.constant dense<0.000000e+00> : vector<64xf32>
    %10 = vector.multi_reduction <add>, %9, %cst_10 [0] : vector<432x64xf32> to vector<64xf32>
    %11 = vector.shape_cast %10 : vector<64xf32> to vector<1x64xf32>
    %cst_11 = arith.constant dense<0.000000e+00> : vector<1x64xf32>
    %12 = tpu.matmul %8, %6, %cst_11 {dimension_numbers = #tpu.dot_dimension_numbers<[1], [0], [0], [1], [0, 0, 1, 1], [], []>} : vector<1x64xf32>, vector<64x64xf32>, vector<1x64xf32> -> vector<1x64xf32>
    %cst_12 = arith.constant dense<0.000000e+00> : vector<1x64xf32>
    %13 = tpu.matmul %11, %6, %cst_12 {dimension_numbers = #tpu.dot_dimension_numbers<[1], [0], [0], [1], [0, 0, 1, 1], [], []>} : vector<1x64xf32>, vector<64x64xf32>, vector<1x64xf32> -> vector<1x64xf32>
    %14 = arith.mulf %12, %12 : vector<1x64xf32>
    %15 = arith.subf %13, %14 : vector<1x64xf32>
    %cst_13 = arith.constant 9.99999974E-6 : f32
    %16 = vector.broadcast %cst_13 : f32 to vector<1x64xf32>
    %17 = arith.addf %15, %16 : vector<1x64xf32>
    %18 = math.rsqrt %17 : vector<1x64xf32>
    %19 = arith.mulf %18, %4 : vector<1x64xf32>
    %20 = arith.mulf %12, %19 : vector<1x64xf32>
    %21 = arith.subf %5, %20 : vector<1x64xf32>
    %22 = vector.broadcast %19 : vector<1x64xf32> to vector<432x64xf32>
    %23 = arith.mulf %2, %22 : vector<432x64xf32>
    %24 = vector.broadcast %21 : vector<1x64xf32> to vector<432x64xf32>
    %25 = arith.addf %23, %24 : vector<432x64xf32>
    %cst_14 = arith.constant 0.000000e+00 : f32
    %26 = vector.broadcast %cst_14 : f32 to vector<432x64xf32>
    %27 = arith.cmpf oge, %25, %26 : vector<432x64xf32>
    %cst_15 = arith.constant 0.00999999977 : f32
    %28 = vector.broadcast %cst_15 : f32 to vector<432x64xf32>
    %29 = arith.mulf %28, %25 : vector<432x64xf32>
    %30 = arith.select %27, %25, %29 : vector<432x64xi1>, vector<432x64xf32>
    %31 = vector.broadcast %3 : vector<432x1xf32> to vector<432x64xf32>
    %32 = arith.mulf %30, %31 : vector<432x64xf32>
    %cst_16 = arith.constant 0.000000e+00 : bf16
    %33 = vector.broadcast %cst_16 : bf16 to vector<32x64xbf16>
    %c0_17 = arith.constant 0 : index
    %c0_18 = arith.constant 0 : index
    %34 = vector.load %arg8[%c0_17, %c0_18] : memref<496x64xbf16, #tpu.memory_space<vmem>>, vector<32x64xbf16>
    tpu.vector_store %arg8[%c0_17, %c0_18], %33 {strides = array<i32>} : memref<496x64xbf16, #tpu.memory_space<vmem>>, vector<32x64xbf16>,
    %c464 = arith.constant 464 : index
    %c0_19 = arith.constant 0 : index
    %35 = vector.load %arg8[%c464, %c0_19] : memref<496x64xbf16, #tpu.memory_space<vmem>>, vector<32x64xbf16>
    tpu.vector_store %arg8[%c464, %c0_19], %33 {strides = array<i32>} : memref<496x64xbf16, #tpu.memory_space<vmem>>, vector<32x64xbf16>,
    %36 = arith.truncf %32 : vector<432x64xf32> to vector<432x64xbf16>
    %c32 = arith.constant 32 : index
    %c0_20 = arith.constant 0 : index
    %37 = vector.load %arg8[%c32, %c0_20] : memref<496x64xbf16, #tpu.memory_space<vmem>>, vector<432x64xbf16>
    tpu.vector_store %arg8[%c32, %c0_20], %36 {strides = array<i32>} : memref<496x64xbf16, #tpu.memory_space<vmem>>, vector<432x64xbf16>,
    %c7 = arith.constant 7 : index
    %c0_21 = arith.constant 0 : index
    %38 = vector.load %arg8[%c7, %c0_21] : memref<496x64xbf16, #tpu.memory_space<vmem>>, vector<432x64xbf16>
    %c8 = arith.constant 8 : index
    %c0_22 = arith.constant 0 : index
    %39 = vector.load %arg8[%c8, %c0_22] : memref<496x64xbf16, #tpu.memory_space<vmem>>, vector<432x64xbf16>
    %c31 = arith.constant 31 : index
    %c0_23 = arith.constant 0 : index
    %40 = vector.load %arg8[%c31, %c0_23] : memref<496x64xbf16, #tpu.memory_space<vmem>>, vector<432x64xbf16>
    %c32_24 = arith.constant 32 : index
    %c0_25 = arith.constant 0 : index
    %41 = vector.load %arg8[%c32_24, %c0_25] : memref<496x64xbf16, #tpu.memory_space<vmem>>, vector<432x64xbf16>
    %42 = tpu.concatenate %38, %39, %40, %41 in 1 : vector<432x64xbf16>, vector<432x64xbf16>, vector<432x64xbf16>, vector<432x64xbf16> -> vector<432x256xbf16>
    %c0_26 = arith.constant 0 : index
    %c0_27 = arith.constant 0 : index
    %c0_28 = arith.constant 0 : index
    %43 = vector.load %arg6[%c0_26, %c0_27, %c0_28] : memref<4x256x32xbf16, #tpu.memory_space<vmem>>, vector<1x256x32xbf16>
    %44 = vector.shape_cast %43 : vector<1x256x32xbf16> to vector<256x32xbf16>
    %cst_29 = arith.constant dense<0.000000e+00> : vector<432x32xf32>
    %45 = tpu.matmul %42, %44, %cst_29 {dimension_numbers = #tpu.dot_dimension_numbers<[1], [0], [0], [1], [0, 0, 1, 1], [], []>} : vector<432x256xbf16>, vector<256x32xbf16>, vector<432x32xf32> -> vector<432x32xf32>
    %c8_30 = arith.constant 8 : index
    %c0_31 = arith.constant 0 : index
    %46 = vector.load %arg8[%c8_30, %c0_31] : memref<496x64xbf16, #tpu.memory_space<vmem>>, vector<432x64xbf16>
    %c9 = arith.constant 9 : index
    %c0_32 = arith.constant 0 : index
    %47 = vector.load %arg8[%c9, %c0_32] : memref<496x64xbf16, #tpu.memory_space<vmem>>, vector<432x64xbf16>
    %c32_33 = arith.constant 32 : index
    %c0_34 = arith.constant 0 : index
    %48 = vector.load %arg8[%c32_33, %c0_34] : memref<496x64xbf16, #tpu.memory_space<vmem>>, vector<432x64xbf16>
    %c33 = arith.constant 33 : index
    %c0_35 = arith.constant 0 : index
    %49 = vector.load %arg8[%c33, %c0_35] : memref<496x64xbf16, #tpu.memory_space<vmem>>, vector<432x64xbf16>
    %50 = tpu.concatenate %46, %47, %48, %49 in 1 : vector<432x64xbf16>, vector<432x64xbf16>, vector<432x64xbf16>, vector<432x64xbf16> -> vector<432x256xbf16>
    %c1 = arith.constant 1 : index
    %c0_36 = arith.constant 0 : index
    %c0_37 = arith.constant 0 : index
    %51 = vector.load %arg6[%c1, %c0_36, %c0_37] : memref<4x256x32xbf16, #tpu.memory_space<vmem>>, vector<1x256x32xbf16>
    %52 = vector.shape_cast %51 : vector<1x256x32xbf16> to vector<256x32xbf16>
    %cst_38 = arith.constant dense<0.000000e+00> : vector<432x32xf32>
    %53 = tpu.matmul %50, %52, %cst_38 {dimension_numbers = #tpu.dot_dimension_numbers<[1], [0], [0], [1], [0, 0, 1, 1], [], []>} : vector<432x256xbf16>, vector<256x32xbf16>, vector<432x32xf32> -> vector<432x32xf32>
    %c31_39 = arith.constant 31 : index
    %c0_40 = arith.constant 0 : index
    %54 = vector.load %arg8[%c31_39, %c0_40] : memref<496x64xbf16, #tpu.memory_space<vmem>>, vector<432x64xbf16>
    %c32_41 = arith.constant 32 : index
    %c0_42 = arith.constant 0 : index
    %55 = vector.load %arg8[%c32_41, %c0_42] : memref<496x64xbf16, #tpu.memory_space<vmem>>, vector<432x64xbf16>
    %c55 = arith.constant 55 : index
    %c0_43 = arith.constant 0 : index
    %56 = vector.load %arg8[%c55, %c0_43] : memref<496x64xbf16, #tpu.memory_space<vmem>>, vector<432x64xbf16>
    %c56 = arith.constant 56 : index
    %c0_44 = arith.constant 0 : index
    %57 = vector.load %arg8[%c56, %c0_44] : memref<496x64xbf16, #tpu.memory_space<vmem>>, vector<432x64xbf16>
    %58 = tpu.concatenate %54, %55, %56, %57 in 1 : vector<432x64xbf16>, vector<432x64xbf16>, vector<432x64xbf16>, vector<432x64xbf16> -> vector<432x256xbf16>
    %c2 = arith.constant 2 : index
    %c0_45 = arith.constant 0 : index
    %c0_46 = arith.constant 0 : index
    %59 = vector.load %arg6[%c2, %c0_45, %c0_46] : memref<4x256x32xbf16, #tpu.memory_space<vmem>>, vector<1x256x32xbf16>
    %60 = vector.shape_cast %59 : vector<1x256x32xbf16> to vector<256x32xbf16>
    %cst_47 = arith.constant dense<0.000000e+00> : vector<432x32xf32>
    %61 = tpu.matmul %58, %60, %cst_47 {dimension_numbers = #tpu.dot_dimension_numbers<[1], [0], [0], [1], [0, 0, 1, 1], [], []>} : vector<432x256xbf16>, vector<256x32xbf16>, vector<432x32xf32> -> vector<432x32xf32>
    %c32_48 = arith.constant 32 : index
    %c0_49 = arith.constant 0 : index
    %62 = vector.load %arg8[%c32_48, %c0_49] : memref<496x64xbf16, #tpu.memory_space<vmem>>, vector<432x64xbf16>
    %c33_50 = arith.constant 33 : index
    %c0_51 = arith.constant 0 : index
    %63 = vector.load %arg8[%c33_50, %c0_51] : memref<496x64xbf16, #tpu.memory_space<vmem>>, vector<432x64xbf16>
    %c56_52 = arith.constant 56 : index
    %c0_53 = arith.constant 0 : index
    %64 = vector.load %arg8[%c56_52, %c0_53] : memref<496x64xbf16, #tpu.memory_space<vmem>>, vector<432x64xbf16>
    %c57 = arith.constant 57 : index
    %c0_54 = arith.constant 0 : index
    %65 = vector.load %arg8[%c57, %c0_54] : memref<496x64xbf16, #tpu.memory_space<vmem>>, vector<432x64xbf16>
    %66 = tpu.concatenate %62, %63, %64, %65 in 1 : vector<432x64xbf16>, vector<432x64xbf16>, vector<432x64xbf16>, vector<432x64xbf16> -> vector<432x256xbf16>
    %c3 = arith.constant 3 : index
    %c0_55 = arith.constant 0 : index
    %c0_56 = arith.constant 0 : index
    %67 = vector.load %arg6[%c3, %c0_55, %c0_56] : memref<4x256x32xbf16, #tpu.memory_space<vmem>>, vector<1x256x32xbf16>
    %68 = vector.shape_cast %67 : vector<1x256x32xbf16> to vector<256x32xbf16>
    %cst_57 = arith.constant dense<0.000000e+00> : vector<432x32xf32>
    %69 = tpu.matmul %66, %68, %cst_57 {dimension_numbers = #tpu.dot_dimension_numbers<[1], [0], [0], [1], [0, 0, 1, 1], [], []>} : vector<432x256xbf16>, vector<256x32xbf16>, vector<432x32xf32> -> vector<432x32xf32>
    %70 = tpu.concatenate %45, %53, %61, %69 in 1 : vector<432x32xf32>, vector<432x32xf32>, vector<432x32xf32>, vector<432x32xf32> -> vector<432x128xf32>
    %71 = arith.truncf %70 : vector<432x128xf32> to vector<432x128xbf16>
    %c0_58 = arith.constant 0 : index
    %c0_59 = arith.constant 0 : index
    %c0_60 = arith.constant 0 : index
    %72 = vector.load %arg7[%c0_58, %c0_59, %c0_60] : memref<1x432x128xbf16, #tpu.memory_space<vmem>>, vector<1x432x128xbf16>
    %73 = vector.shape_cast %72 : vector<1x432x128xbf16> to vector<432x128xbf16>
    %74 = vector.shape_cast %71 : vector<432x128xbf16> to vector<1x432x128xbf16>
    tpu.vector_store %arg7[%c0_58, %c0_59, %c0_60], %74 {strides = array<i32>} : memref<1x432x128xbf16, #tpu.memory_space<vmem>>, vector<1x432x128xbf16>,
    return
  }
  func.func @transform_0(%arg0: i32) -> (i32, i32) {
    %c0_i32 = arith.constant 0 : i32
    %c0_i32_0 = arith.constant 0 : i32
    %c0_i32_1 = arith.constant 0 : i32
    return %c0_i32, %c0_i32_0 : i32, i32
  }
  func.func @transform_1(%arg0: i32) -> (i32, i32, i32) {
    %c0_i32 = arith.constant 0 : i32
    %c0_i32_0 = arith.constant 0 : i32
    %c0_i32_1 = arith.constant 0 : i32
    return %arg0, %c0_i32, %c0_i32_0 : i32, i32, i32
  }
  func.func @transform_2(%arg0: i32) -> (i32, i32) {
    %c0_i32 = arith.constant 0 : i32
    %c0_i32_0 = arith.constant 0 : i32
    %c0_i32_1 = arith.constant 0 : i32
    return %c0_i32, %c0_i32_0 : i32, i32
  }
  func.func @transform_3(%arg0: i32) -> (i32, i32) {
    %c0_i32 = arith.constant 0 : i32
    %c0_i32_0 = arith.constant 0 : i32
    %c0_i32_1 = arith.constant 0 : i32
    return %c0_i32, %c0_i32_0 : i32, i32
  }
  func.func @transform_4(%arg0: i32) -> (i32, i32) {
    %c0_i32 = arith.constant 0 : i32
    %c0_i32_0 = arith.constant 0 : i32
    %c0_i32_1 = arith.constant 0 : i32
    return %c0_i32, %c0_i32_0 : i32, i32
  }
  func.func @transform_5(%arg0: i32) -> (i32, i32, i32) {
    %c0_i32 = arith.constant 0 : i32
    %c0_i32_0 = arith.constant 0 : i32
    %c0_i32_1 = arith.constant 0 : i32
    %c0_i32_2 = arith.constant 0 : i32
    return %c0_i32, %c0_i32_0, %c0_i32_1 : i32, i32, i32
  }
  func.func @transform_6(%arg0: i32) -> (i32, i32, i32) {
    %c0_i32 = arith.constant 0 : i32
    %c0_i32_0 = arith.constant 0 : i32
    %c0_i32_1 = arith.constant 0 : i32
    return %arg0, %c0_i32, %c0_i32_0 : i32, i32, i32
  }
}

</mosaic_0001>

<llo_original>
// kernel: up_block_forward.3
$region0: #{up_block_forward.3}
  #allocation0 [shape = 'u32[]', space=smem, size = 0x4, offset = 0x4, fixed_abs, tag = 'smem constant byte address 0x4 - core index']
  #allocation1 [shape = 'u32[144,128]{1,0:T(1,128)}', space=vmem, size = 0x12000, scoped, tag = 'internal scratch']
  #allocation2 [shape = 'bf16[496,64]{1,0:T(16,128)(2,1)}', space=vmem, size = 0x1f000, scoped, tag = 'scratch operand']
  %s0 = inlined_call_operand.vmem [shape: f32[432,1], index: 0, kind: input, shape index: {}]
  %s1 = inlined_call_operand.vmem [shape: bf16[2,432,64], index: 1, kind: input, shape index: {}]
  %s2 = inlined_call_operand.vmem [shape: f32[1,64], index: 2, kind: input, shape index: {}]
  %s3 = inlined_call_operand.vmem [shape: f32[1,64], index: 3, kind: input, shape index: {}]
  %s4 = inlined_call_operand.vmem [shape: f32[64,64], index: 4, kind: input, shape index: {}]
  %s5 = inlined_call_operand.vmem [shape: bf16[576,64], index: 5, kind: input, shape index: {}]
  %s6 = inlined_call_operand.vmem [shape: bf16[2,432,64], index: 6, kind: output, shape index: {}]
  %s7 = sld [smem:[#allocation0]]
  $region57: #{up_block_forward.3} parent=0
    _
  %s9 = ssub.s32 1, %s7
  %s10 = scalar_select 0, %s9, %s7
  loop: start=0, step=1, limit=4
  $region2: #{up_block_forward.3} parent=0 // loop_pre_header
    _
  $region3: #{up_block_forward.3} parent=0 // loop_header
    %s12 = sphi 0, %s16
    %p13 = scmp.ge.s32.totalorder %s12, 4
    %s20 = sphi 0, %s20
    %s22 = sphi 0, %s20
    %s23 = sphi 0, %s22
    %s37 = sphi 0, %s23
    %s43 = sphi 0, %s45
    %s46 = sphi 0, %s43
    %s47 = sphi 0, %s46
    %s63 = sphi 0, %s47
    %s67 = sphi 0, %s67
    %s69 = sphi 0, %s67
    %s70 = sphi 0, %s69
    %s84 = sphi 0, %s70
    %s88 = sphi 0, %s88
    %s90 = sphi 0, %s88
    %s91 = sphi 0, %s90
    %s105 = sphi 0, %s91
    %s109 = sphi 0, %s109
    %s111 = sphi 0, %s109
    %s112 = sphi 0, %s111
    %s126 = sphi 0, %s112
    %s130 = sphi 0, %s130
    %s132 = sphi 0, %s130
    %s133 = sphi 0, %s132
    %s147 = sphi 0, %s133
    %s153 = sphi 0, %s155
    %s156 = sphi 0, %s153
    %s157 = sphi 0, %s156
    %s173 = sphi 0, %s157
  $region4: #{up_block_forward.3} parent=0 // loop_header_branch
    %15 = sbr.rel (%p13) target = $region8
  $region5: #{up_block_forward.3} parent=0 // loop_body
    %s17 = ssub.s32 %s12, 1
    %s18 = ssub.s32 %s12, 2
    %s19 = sadd.s32 %s12, 1
    %s21 = sadd.s32 %s20, 1
    %p24 = scmp.eq.s32.totalorder %s12, 1
    %p25 = scmp.ne.s32.totalorder %s20, %s22
    %p26 = scmp.eq.s32.totalorder %s12, 0
    %p27 = por %p25, %p26
    %p28 = scmp.ne.s32.totalorder %s20, %s22
    %p29 = scmp.eq.s32.totalorder %s17, 1
    %p30 = por %p28, %p29
    %p31 = scmp.ne.s32.totalorder %s22, %s23
    %p32 = scmp.eq.s32.totalorder %s17, 0
    %p33 = por %p31, %p32
    %p34 = scmp.ne.s32.totalorder %s22, %s23
    %p35 = scmp.eq.s32.totalorder %s18, 1
    %p36 = por %p34, %p35
    %p38 = scmp.ne.s32.totalorder %s23, %s37
    %p39 = scmp.eq.s32.totalorder %s18, 0
    %p40 = por %p38, %p39
    %s41 = ssub.s32 %s12, %s19
    %p42 = scmp.eq.s32.totalorder %s41, 0
    %s44 = sadd.s32 %s43, 1
    %s45 = scalar_select %p42, %s43, %s44
    %p48 = pneg %p42
    %p49 = scmp.eq.s32.totalorder %s12, 1
    %p50 = por %p48, %p49
    %p51 = scmp.ne.s32.totalorder %s43, %s46
    %p52 = scmp.eq.s32.totalorder %s12, 0
    %p53 = por %p51, %p52
    %p54 = scmp.ne.s32.totalorder %s43, %s46
    %p55 = scmp.eq.s32.totalorder %s17, 1
    %p56 = por %p54, %p55
    %p57 = scmp.ne.s32.totalorder %s46, %s47
    %p58 = scmp.eq.s32.totalorder %s17, 0
    %p59 = por %p57, %p58
    %p60 = scmp.ne.s32.totalorder %s46, %s47
    %p61 = scmp.eq.s32.totalorder %s18, 1
    %p62 = por %p60, %p61
    %p64 = scmp.ne.s32.totalorder %s47, %s63
    %p65 = scmp.eq.s32.totalorder %s18, 0
    %p66 = por %p64, %p65
    %s68 = sadd.s32 %s67, 1
    %p71 = scmp.eq.s32.totalorder %s12, 1
    %p72 = scmp.ne.s32.totalorder %s67, %s69
    %p73 = scmp.eq.s32.totalorder %s12, 0
    %p74 = por %p72, %p73
    %p75 = scmp.ne.s32.totalorder %s67, %s69
    %p76 = scmp.eq.s32.totalorder %s17, 1
    %p77 = por %p75, %p76
    %p78 = scmp.ne.s32.totalorder %s69, %s70
    %p79 = scmp.eq.s32.totalorder %s17, 0
    %p80 = por %p78, %p79
    %p81 = scmp.ne.s32.totalorder %s69, %s70
    %p82 = scmp.eq.s32.totalorder %s18, 1
    %p83 = por %p81, %p82
    %p85 = scmp.ne.s32.totalorder %s70, %s84
    %p86 = scmp.eq.s32.totalorder %s18, 0
    %p87 = por %p85, %p86
    %s89 = sadd.s32 %s88, 1
    %p92 = scmp.eq.s32.totalorder %s12, 1
    %p93 = scmp.ne.s32.totalorder %s88, %s90
    %p94 = scmp.eq.s32.totalorder %s12, 0
    %p95 = por %p93, %p94
    %p96 = scmp.ne.s32.totalorder %s88, %s90
    %p97 = scmp.eq.s32.totalorder %s17, 1
    %p98 = por %p96, %p97
    %p99 = scmp.ne.s32.totalorder %s90, %s91
    %p100 = scmp.eq.s32.totalorder %s17, 0
    %p101 = por %p99, %p100
    %p102 = scmp.ne.s32.totalorder %s90, %s91
    %p103 = scmp.eq.s32.totalorder %s18, 1
    %p104 = por %p102, %p103
    %p106 = scmp.ne.s32.totalorder %s91, %s105
    %p107 = scmp.eq.s32.totalorder %s18, 0
    %p108 = por %p106, %p107
    %s110 = sadd.s32 %s109, 1
    %p113 = scmp.eq.s32.totalorder %s12, 1
    %p114 = scmp.ne.s32.totalorder %s109, %s111
    %p115 = scmp.eq.s32.totalorder %s12, 0
    %p116 = por %p114, %p115
    %p117 = scmp.ne.s32.totalorder %s109, %s111
    %p118 = scmp.eq.s32.totalorder %s17, 1
    %p119 = por %p117, %p118
    %p120 = scmp.ne.s32.totalorder %s111, %s112
    %p121 = scmp.eq.s32.totalorder %s17, 0
    %p122 = por %p120, %p121
    %p123 = scmp.ne.s32.totalorder %s111, %s112
    %p124 = scmp.eq.s32.totalorder %s18, 1
    %p125 = por %p123, %p124
    %p127 = scmp.ne.s32.totalorder %s112, %s126
    %p128 = scmp.eq.s32.totalorder %s18, 0
    %p129 = por %p127, %p128
    %s131 = sadd.s32 %s130, 1
    %p134 = scmp.eq.s32.totalorder %s12, 1
    %p135 = scmp.ne.s32.totalorder %s130, %s132
    %p136 = scmp.eq.s32.totalorder %s12, 0
    %p137 = por %p135, %p136
    %p138 = scmp.ne.s32.totalorder %s130, %s132
    %p139 = scmp.eq.s32.totalorder %s17, 1
    %p140 = por %p138, %p139
    %p141 = scmp.ne.s32.totalorder %s132, %s133
    %p142 = scmp.eq.s32.totalorder %s17, 0
    %p143 = por %p141, %p142
    %p144 = scmp.ne.s32.totalorder %s132, %s133
    %p145 = scmp.eq.s32.totalorder %s18, 1
    %p146 = por %p144, %p145
    %p148 = scmp.ne.s32.totalorder %s133, %s147
    %p149 = scmp.eq.s32.totalorder %s18, 0
    %p150 = por %p148, %p149
    %s151 = ssub.s32 %s12, %s19
    %p152 = scmp.eq.s32.totalorder %s151, 0
    %s154 = sadd.s32 %s153, 1
    %s155 = scalar_select %p152, %s153, %s154
    %p158 = pneg %p152
    %p159 = scmp.eq.s32.totalorder %s12, 1
    %p160 = por %p158, %p159
    %p161 = scmp.ne.s32.totalorder %s153, %s156
    %p162 = scmp.eq.s32.totalorder %s12, 0
    %p163 = por %p161, %p162
    %p164 = scmp.ne.s32.totalorder %s153, %s156
    %p165 = scmp.eq.s32.totalorder %s17, 1
    %p166 = por %p164, %p165
    %p167 = scmp.ne.s32.totalorder %s156, %s157
    %p168 = scmp.eq.s32.totalorder %s17, 0
    %p169 = por %p167, %p168
    %p170 = scmp.ne.s32.totalorder %s156, %s157
    %p171 = scmp.eq.s32.totalorder %s18, 1
    %p172 = por %p170, %p171
    %p174 = scmp.ne.s32.totalorder %s157, %s173
    %p175 = scmp.eq.s32.totalorder %s18, 0
    %p176 = por %p174, %p175
    %p177 = scmp.le.s32.totalorder 1, %s12
    %p178 = scmp.lt.s32.totalorder %s12, 3
    %p179 = pnand %p177, %p178
    %p180 = pneg %p179
    // Predicated region
    $region9: #{up_block_forward.3} parent=5 // pred_check
      _
    $region10: #{up_block_forward.3} parent=5 // pred_check_branch
      %182 = sbr.rel (%p179) target = $region12
    $region11: #{up_block_forward.3} parent=5 // pred_region
      %s183 = ssub.s32 %s12, 1
      // Predicated region
      $region13: #{up_block_forward.3} parent=11 // pred_check
        %p184 = pneg %p33
      $region14: #{up_block_forward.3} parent=11 // pred_check_branch
        %186 = sbr.rel (%p184) target = $region16
      $region15: #{up_block_forward.3} parent=11 // pred_region
        _
      $region16: #{up_block_forward.3} parent=11 // pred_fallthru
        _
      // Predicated region
      $region17: #{up_block_forward.3} parent=11 // pred_check
        %p187 = pneg %p80
      $region18: #{up_block_forward.3} parent=11 // pred_check_branch
        %189 = sbr.rel (%p187) target = $region20
      $region19: #{up_block_forward.3} parent=11 // pred_region
        _
      $region20: #{up_block_forward.3} parent=11 // pred_fallthru
        _
      // Predicated region
      $region21: #{up_block_forward.3} parent=11 // pred_check
        %p190 = pneg %p101
      $region22: #{up_block_forward.3} parent=11 // pred_check_branch
        %192 = sbr.rel (%p190) target = $region24
      $region23: #{up_block_forward.3} parent=11 // pred_region
        _
      $region24: #{up_block_forward.3} parent=11 // pred_fallthru
        _
      // Predicated region
      $region25: #{up_block_forward.3} parent=11 // pred_check
        %p193 = pneg %p122
      $region26: #{up_block_forward.3} parent=11 // pred_check_branch
        %195 = sbr.rel (%p193) target = $region28
      $region27: #{up_block_forward.3} parent=11 // pred_region
        _
      $region28: #{up_block_forward.3} parent=11 // pred_fallthru
        _
      // Predicated region
      $region29: #{up_block_forward.3} parent=11 // pred_check
        %p196 = pneg %p143
      $region30: #{up_block_forward.3} parent=11 // pred_check_branch
        %198 = sbr.rel (%p196) target = $region32
      $region31: #{up_block_forward.3} parent=11 // pred_region
        _
      $region32: #{up_block_forward.3} parent=11 // pred_fallthru
        _
    $region12: #{up_block_forward.3} parent=5 // pred_fallthru
      _
    %p199 = scmp.lt.s32.totalorder %s12, 2
    // Predicated region
    $region33: #{up_block_forward.3} parent=5 // pred_check
      %p200 = pneg %p199
    $region34: #{up_block_forward.3} parent=5 // pred_check_branch
      %202 = sbr.rel (%p200) target = $region36
    $region35: #{up_block_forward.3} parent=5 // pred_region
      // Predicated region
      $region37: #{up_block_forward.3} parent=35 // pred_check
        %p203 = pneg %p53
      $region38: #{up_block_forward.3} parent=35 // pred_check_branch
        %205 = sbr.rel (%p203) target = $region40
      $region39: #{up_block_forward.3} parent=35 // pred_region
        %p206 = scmp.lt.s32.totalorder %s12, 1
        %s207 = scalar_select %p206, %s12, 1
        %s208 = smul.addr %s207, 54
        %s209 = smul.addr %s208, 4
        %s210 = scalar_lea.vmem %s1, %s209
      $region40: #{up_block_forward.3} parent=35 // pred_fallthru
        _
    $region36: #{up_block_forward.3} parent=5 // pred_fallthru
      _
    %p211 = scmp.le.s32.totalorder 1, %s12
    %p212 = scmp.lt.s32.totalorder %s12, 3
    %p213 = pnand %p211, %p212
    %p214 = pneg %p213
    // Predicated region
    $region41: #{up_block_forward.3} parent=5 // pred_check
      _
    $region42: #{up_block_forward.3} parent=5 // pred_check_branch
      %216 = sbr.rel (%p213) target = $region44
    $region43: #{up_block_forward.3} parent=5 // pred_region
      %s217 = ssub.s32 %s12, 1
      %p218 = pneg %p33
      %p219 = pneg %p30
      %p220 = scmp.lt.s32.totalorder %s17, 1
      %s221 = scalar_select %p220, %s17, 1
      %s222 = smul.addr %s221, 54
      %s223 = smul.addr %s222, 4
      %s224 = scalar_lea.vmem %s1, %s223
      %p225 = pneg %p59
      %p226 = pneg %p56
      %p227 = pneg %p80
      %p228 = pneg %p77
      %p229 = pneg %p101
      %p230 = pneg %p98
      %p231 = pneg %p122
      %p232 = pneg %p119
      %p233 = pneg %p143
      %p234 = pneg %p140
      %p235 = pneg %p169
      %p236 = pneg %p166
      %p237 = scmp.lt.s32.totalorder %s17, 1
      %s238 = scalar_select %p237, %s17, 1
      %s239 = smul.addr %s238, 54
      %s240 = smul.addr %s239, 4
      %s241 = scalar_lea.vmem %s6, %s240
      %p242 = scmp.lt.s32.totalorder %s17, 1
      %s243 = scalar_select %p242, %s17, 1
      %s244 = smul.addr %s243, 54
      %s245 = smul.addr %s244, 4
      %s246 = scalar_lea.vmem %s1, %s245
      %p247 = scmp.lt.s32.totalorder %s17, 1
      %s248 = scalar_select %p247, %s17, 1
      %s249 = smul.addr %s248, 54
      %s250 = smul.addr %s249, 4
      %s251 = scalar_lea.vmem %s6, %s250
      %v253 = vld [vmem:[%s246] sm:$0xf]
      %v254 = vld [vmem:[%s246 + $0x4] sm:$0xf]
      %v255 = vld [vmem:[%s246 + $0x8] sm:$0xf]
      %v256 = vld [vmem:[%s246 + $0xc] sm:$0xf]
      %v257 = vld [vmem:[%s246 + $0x10] sm:$0xf]
      %v258 = vld [vmem:[%s246 + $0x14] sm:$0xf]
      %v259 = vld [vmem:[%s246 + $0x18] sm:$0xf]
      %v260 = vld [vmem:[%s246 + $0x1c] sm:$0xf]
      %v261 = vld [vmem:[%s246 + $0x20] sm:$0xf]
      %v262 = vld [vmem:[%s246 + $0x24] sm:$0xf]
      %v263 = vld [vmem:[%s246 + $0x28] sm:$0xf]
      %v264 = vld [vmem:[%s246 + $0x2c] sm:$0xf]
      %v265 = vld [vmem:[%s246 + $0x30] sm:$0xf]
      %v266 = vld [vmem:[%s246 + $0x34] sm:$0xf]
      %v267 = vld [vmem:[%s246 + $0x38] sm:$0xf]
      %v268 = vld [vmem:[%s246 + $0x3c] sm:$0xf]
      %v269 = vld [vmem:[%s246 + $0x40] sm:$0xf]
      %v270 = vld [vmem:[%s246 + $0x44] sm:$0xf]
      %v271 = vld [vmem:[%s246 + $0x48] sm:$0xf]
      %v272 = vld [vmem:[%s246 + $0x4c] sm:$0xf]
      %v273 = vld [vmem:[%s246 + $0x50] sm:$0xf]
      %v274 = vld [vmem:[%s246 + $0x54] sm:$0xf]
      %v275 = vld [vmem:[%s246 + $0x58] sm:$0xf]
      %v276 = vld [vmem:[%s246 + $0x5c] sm:$0xf]
      %v277 = vld [vmem:[%s246 + $0x60] sm:$0xf]
      %v278 = vld [vmem:[%s246 + $0x64] sm:$0xf]
      %v279 = vld [vmem:[%s246 + $0x68] sm:$0xf]
      %v280 = vld [vmem:[%s246 + $0x6c] sm:$0xf]
      %v281 = vld [vmem:[%s246 + $0x70] sm:$0xf]
      %v282 = vld [vmem:[%s246 + $0x74] sm:$0xf]
      %v283 = vld [vmem:[%s246 + $0x78] sm:$0xf]
      %v284 = vld [vmem:[%s246 + $0x7c] sm:$0xf]
      %v285 = vld [vmem:[%s246 + $0x80] sm:$0xf]
      %v286 = vld [vmem:[%s246 + $0x84] sm:$0xf]
      %v287 = vld [vmem:[%s246 + $0x88] sm:$0xf]
      %v288 = vld [vmem:[%s246 + $0x8c] sm:$0xf]
      %v289 = vld [vmem:[%s246 + $0x90] sm:$0xf]
      %v290 = vld [vmem:[%s246 + $0x94] sm:$0xf]
      %v291 = vld [vmem:[%s246 + $0x98] sm:$0xf]
      %v292 = vld [vmem:[%s246 + $0x9c] sm:$0xf]
      %v293 = vld [vmem:[%s246 + $0xa0] sm:$0xf]
      %v294 = vld [vmem:[%s246 + $0xa4] sm:$0xf]
      %v295 = vld [vmem:[%s246 + $0xa8] sm:$0xf]
      %v296 = vld [vmem:[%s246 + $0xac] sm:$0xf]
      %v297 = vld [vmem:[%s246 + $0xb0] sm:$0xf]
      %v298 = vld [vmem:[%s246 + $0xb4] sm:$0xf]
      %v299 = vld [vmem:[%s246 + $0xb8] sm:$0xf]
      %v300 = vld [vmem:[%s246 + $0xbc] sm:$0xf]
      %v301 = vld [vmem:[%s246 + $0xc0] sm:$0xf]
      %v302 = vld [vmem:[%s246 + $0xc4] sm:$0xf]
      %v303 = vld [vmem:[%s246 + $0xc8] sm:$0xf]
      %v304 = vld [vmem:[%s246 + $0xcc] sm:$0xf]
      %v305 = vld [vmem:[%s246 + $0xd0] sm:$0xf]
      %v306 = vld [vmem:[%s246 + $0xd4] sm:$0xf]
      %v307 = vunpack.c.l.bf16 %v253
      %v308 = vunpack.c.l.bf16 %v254
      %v309 = vunpack.c.l.bf16 %v255
      %v310 = vunpack.c.l.bf16 %v256
      %v311 = vunpack.c.l.bf16 %v257
      %v312 = vunpack.c.l.bf16 %v258
      %v313 = vunpack.c.l.bf16 %v259
      %v314 = vunpack.c.l.bf16 %v260
      %v315 = vunpack.c.l.bf16 %v261
      %v316 = vunpack.c.l.bf16 %v262
      %v317 = vunpack.c.l.bf16 %v263
      %v318 = vunpack.c.l.bf16 %v264
      %v319 = vunpack.c.l.bf16 %v265
      %v320 = vunpack.c.l.bf16 %v266
      %v321 = vunpack.c.l.bf16 %v267
      %v322 = vunpack.c.l.bf16 %v268
      %v323 = vunpack.c.l.bf16 %v269
      %v324 = vunpack.c.l.bf16 %v270
      %v325 = vunpack.c.l.bf16 %v271
      %v326 = vunpack.c.l.bf16 %v272
      %v327 = vunpack.c.l.bf16 %v273
      %v328 = vunpack.c.l.bf16 %v274
      %v329 = vunpack.c.l.bf16 %v275
      %v330 = vunpack.c.l.bf16 %v276
      %v331 = vunpack.c.l.bf16 %v277
      %v332 = vunpack.c.l.bf16 %v278
      %v333 = vunpack.c.l.bf16 %v279
      %v334 = vunpack.c.l.bf16 %v280
      %v335 = vunpack.c.l.bf16 %v281
      %v336 = vunpack.c.l.bf16 %v282
      %v337 = vunpack.c.l.bf16 %v283
      %v338 = vunpack.c.l.bf16 %v284
      %v339 = vunpack.c.l.bf16 %v285
      %v340 = vunpack.c.l.bf16 %v286
      %v341 = vunpack.c.l.bf16 %v287
      %v342 = vunpack.c.l.bf16 %v288
      %v343 = vunpack.c.l.bf16 %v289
      %v344 = vunpack.c.l.bf16 %v290
      %v345 = vunpack.c.l.bf16 %v291
      %v346 = vunpack.c.l.bf16 %v292
      %v347 = vunpack.c.l.bf16 %v293
      %v348 = vunpack.c.l.bf16 %v294
      %v349 = vunpack.c.l.bf16 %v295
      %v350 = vunpack.c.l.bf16 %v296
      %v351 = vunpack.c.l.bf16 %v297
      %v352 = vunpack.c.l.bf16 %v298
      %v353 = vunpack.c.l.bf16 %v299
      %v354 = vunpack.c.l.bf16 %v300
      %v355 = vunpack.c.l.bf16 %v301
      %v356 = vunpack.c.l.bf16 %v302
      %v357 = vunpack.c.l.bf16 %v303
      %v358 = vunpack.c.l.bf16 %v304
      %v359 = vunpack.c.l.bf16 %v305
      %v360 = vunpack.c.l.bf16 %v306
      %v361 = vld [vmem:[%s0] sm:$0xff]
      %v362 = vld [vmem:[%s0 + $0x8] sm:$0xff]
      %v363 = vld [vmem:[%s0 + $0x10] sm:$0xff]
      %v364 = vld [vmem:[%s0 + $0x18] sm:$0xff]
      %v365 = vld [vmem:[%s0 + $0x20] sm:$0xff]
      %v366 = vld [vmem:[%s0 + $0x28] sm:$0xff]
      %v367 = vld [vmem:[%s0 + $0x30] sm:$0xff]
      %v368 = vld [vmem:[%s0 + $0x38] sm:$0xff]
      %v369 = vld [vmem:[%s0 + $0x40] sm:$0xff]
      %v370 = vld [vmem:[%s0 + $0x48] sm:$0xff]
      %v371 = vld [vmem:[%s0 + $0x50] sm:$0xff]
      %v372 = vld [vmem:[%s0 + $0x58] sm:$0xff]
      %v373 = vld [vmem:[%s0 + $0x60] sm:$0xff]
      %v374 = vld [vmem:[%s0 + $0x68] sm:$0xff]
      %v375 = vld [vmem:[%s0 + $0x70] sm:$0xff]
      %v376 = vld [vmem:[%s0 + $0x78] sm:$0xff]
      %v377 = vld [vmem:[%s0 + $0x80] sm:$0xff]
      %v378 = vld [vmem:[%s0 + $0x88] sm:$0xff]
      %v379 = vld [vmem:[%s0 + $0x90] sm:$0xff]
      %v380 = vld [vmem:[%s0 + $0x98] sm:$0xff]
      %v381 = vld [vmem:[%s0 + $0xa0] sm:$0xff]
      %v382 = vld [vmem:[%s0 + $0xa8] sm:$0xff]
      %v383 = vld [vmem:[%s0 + $0xb0] sm:$0xff]
      %v384 = vld [vmem:[%s0 + $0xb8] sm:$0xff]
      %v385 = vld [vmem:[%s0 + $0xc0] sm:$0xff]
      %v386 = vld [vmem:[%s0 + $0xc8] sm:$0xff]
      %v387 = vld [vmem:[%s0 + $0xd0] sm:$0xff]
      %v388 = vld [vmem:[%s0 + $0xd8] sm:$0xff]
      %v389 = vld [vmem:[%s0 + $0xe0] sm:$0xff]
      %v390 = vld [vmem:[%s0 + $0xe8] sm:$0xff]
      %v391 = vld [vmem:[%s0 + $0xf0] sm:$0xff]
      %v392 = vld [vmem:[%s0 + $0xf8] sm:$0xff]
      %v393 = vld [vmem:[%s0 + $0x100] sm:$0xff]
      %v394 = vld [vmem:[%s0 + $0x108] sm:$0xff]
      %v395 = vld [vmem:[%s0 + $0x110] sm:$0xff]
      %v396 = vld [vmem:[%s0 + $0x118] sm:$0xff]
      %v397 = vld [vmem:[%s0 + $0x120] sm:$0xff]
      %v398 = vld [vmem:[%s0 + $0x128] sm:$0xff]
      %v399 = vld [vmem:[%s0 + $0x130] sm:$0xff]
      %v400 = vld [vmem:[%s0 + $0x138] sm:$0xff]
      %v401 = vld [vmem:[%s0 + $0x140] sm:$0xff]
      %v402 = vld [vmem:[%s0 + $0x148] sm:$0xff]
      %v403 = vld [vmem:[%s0 + $0x150] sm:$0xff]
      %v404 = vld [vmem:[%s0 + $0x158] sm:$0xff]
      %v405 = vld [vmem:[%s0 + $0x160] sm:$0xff]
      %v406 = vld [vmem:[%s0 + $0x168] sm:$0xff]
      %v407 = vld [vmem:[%s0 + $0x170] sm:$0xff]
      %v408 = vld [vmem:[%s0 + $0x178] sm:$0xff]
      %v409 = vld [vmem:[%s0 + $0x180] sm:$0xff]
      %v410 = vld [vmem:[%s0 + $0x188] sm:$0xff]
      %v411 = vld [vmem:[%s0 + $0x190] sm:$0xff]
      %v412 = vld [vmem:[%s0 + $0x198] sm:$0xff]
      %v413 = vld [vmem:[%s0 + $0x1a0] sm:$0xff]
      %v414 = vld [vmem:[%s0 + $0x1a8] sm:$0xff]
      %v415 = vld [vmem:[%s2] sm:$0x1]
      %v416 = vld [vmem:[%s3] sm:$0x1]
      %v417 = vld [vmem:[%s4] sm:$0xff]
      %v418 = vld [vmem:[%s4 + $0x8] sm:$0xff]
      %v419 = vld [vmem:[%s4 + $0x10] sm:$0xff]
      %v420 = vld [vmem:[%s4 + $0x18] sm:$0xff]
      %v421 = vld [vmem:[%s4 + $0x20] sm:$0xff]
      %v422 = vld [vmem:[%s4 + $0x28] sm:$0xff]
      %v423 = vld [vmem:[%s4 + $0x30] sm:$0xff]
      %v424 = vld [vmem:[%s4 + $0x38] sm:$0xff]
      %vm425 = vcmask 523264
      %v426 = vsel %vm425, %v307, 0.0
      %v427 = vsel %vm425, %v308, 0.0
      %v428 = vadd.f32 %v426, %v427
      %v429 = vsel %vm425, %v309, 0.0
      %v430 = vadd.f32 %v428, %v429
      %v431 = vsel %vm425, %v310, 0.0
      %v432 = vadd.f32 %v430, %v431
      %v433 = vsel %vm425, %v311, 0.0
      %v434 = vadd.f32 %v432, %v433
      %v435 = vsel %vm425, %v312, 0.0
      %v436 = vadd.f32 %v434, %v435
      %v437 = vsel %vm425, %v313, 0.0
      %v438 = vadd.f32 %v436, %v437
      %v439 = vsel %vm425, %v314, 0.0
      %v440 = vadd.f32 %v438, %v439
      %v441 = vsel %vm425, %v315, 0.0
      %v442 = vadd.f32 %v440, %v441
      %v443 = vsel %vm425, %v316, 0.0
      %v444 = vadd.f32 %v442, %v443
      %v445 = vsel %vm425, %v317, 0.0
      %v446 = vadd.f32 %v444, %v445
      %v447 = vsel %vm425, %v318, 0.0
      %v448 = vadd.f32 %v446, %v447
      %v449 = vsel %vm425, %v319, 0.0
      %v450 = vadd.f32 %v448, %v449
      %v451 = vsel %vm425, %v320, 0.0
      %v452 = vadd.f32 %v450, %v451
      %v453 = vsel %vm425, %v321, 0.0
      %v454 = vadd.f32 %v452, %v453
      %v455 = vsel %vm425, %v322, 0.0
      %v456 = vadd.f32 %v454, %v455
      %v457 = vsel %vm425, %v323, 0.0
      %v458 = vadd.f32 %v456, %v457
      %v459 = vsel %vm425, %v324, 0.0
      %v460 = vadd.f32 %v458, %v459
      %v461 = vsel %vm425, %v325, 0.0
      %v462 = vadd.f32 %v460, %v461
      %v463 = vsel %vm425, %v326, 0.0
      %v464 = vadd.f32 %v462, %v463
      %v465 = vsel %vm425, %v327, 0.0
      %v466 = vadd.f32 %v464, %v465
      %v467 = vsel %vm425, %v328, 0.0
      %v468 = vadd.f32 %v466, %v467
      %v469 = vsel %vm425, %v329, 0.0
      %v470 = vadd.f32 %v468, %v469
      %v471 = vsel %vm425, %v330, 0.0
      %v472 = vadd.f32 %v470, %v471
      %v473 = vsel %vm425, %v331, 0.0
      %v474 = vadd.f32 %v472, %v473
      %v475 = vsel %vm425, %v332, 0.0
      %v476 = vadd.f32 %v474, %v475
      %v477 = vsel %vm425, %v333, 0.0
      %v478 = vadd.f32 %v476, %v477
      %v479 = vsel %vm425, %v334, 0.0
      %v480 = vadd.f32 %v478, %v479
      %v481 = vsel %vm425, %v335, 0.0
      %v482 = vadd.f32 %v480, %v481
      %v483 = vsel %vm425, %v336, 0.0
      %v484 = vadd.f32 %v482, %v483
      %v485 = vsel %vm425, %v337, 0.0
      %v486 = vadd.f32 %v484, %v485
      %v487 = vsel %vm425, %v338, 0.0
      %v488 = vadd.f32 %v486, %v487
      %v489 = vsel %vm425, %v339, 0.0
      %v490 = vadd.f32 %v488, %v489
      %v491 = vsel %vm425, %v340, 0.0
      %v492 = vadd.f32 %v490, %v491
      %v493 = vsel %vm425, %v341, 0.0
      %v494 = vadd.f32 %v492, %v493
      %v495 = vsel %vm425, %v342, 0.0
      %v496 = vadd.f32 %v494, %v495
      %v497 = vsel %vm425, %v343, 0.0
      %v498 = vadd.f32 %v496, %v497
      %v499 = vsel %vm425, %v344, 0.0
      %v500 = vadd.f32 %v498, %v499
      %v501 = vsel %vm425, %v345, 0.0
      %v502 = vadd.f32 %v500, %v501
      %v503 = vsel %vm425, %v346, 0.0
      %v504 = vadd.f32 %v502, %v503
      %v505 = vsel %vm425, %v347, 0.0
      %v506 = vadd.f32 %v504, %v505
      %v507 = vsel %vm425, %v348, 0.0
      %v508 = vadd.f32 %v506, %v507
      %v509 = vsel %vm425, %v349, 0.0
      %v510 = vadd.f32 %v508, %v509
      %v511 = vsel %vm425, %v350, 0.0
      %v512 = vadd.f32 %v510, %v511
      %v513 = vsel %vm425, %v351, 0.0
      %v514 = vadd.f32 %v512, %v513
      %v515 = vsel %vm425, %v352, 0.0
      %v516 = vadd.f32 %v514, %v515
      %v517 = vsel %vm425, %v353, 0.0
      %v518 = vadd.f32 %v516, %v517
      %v519 = vsel %vm425, %v354, 0.0
      %v520 = vadd.f32 %v518, %v519
      %v521 = vsel %vm425, %v355, 0.0
      %v522 = vadd.f32 %v520, %v521
      %v523 = vsel %vm425, %v356, 0.0
      %v524 = vadd.f32 %v522, %v523
      %v525 = vsel %vm425, %v357, 0.0
      %v526 = vadd.f32 %v524, %v525
      %v527 = vsel %vm425, %v358, 0.0
      %v528 = vadd.f32 %v526, %v527
      %v529 = vsel %vm425, %v359, 0.0
      %v530 = vadd.f32 %v528, %v529
      %v531 = vsel %vm425, %v360, 0.0
      %v532 = vadd.f32 %v530, %v531
      %v533 = vrot.slane %v532, 4
      %v534 = vadd.f32 %v532, %v533
      %v535 = vrot.slane %v534, 2
      %v536 = vadd.f32 %v534, %v535
      %v537 = vrot.slane %v536, 1
      %v538 = vadd.f32 %v536, %v537
      %v539 = vmul.f32 %v307, %v307
      %v540 = vmul.f32 %v308, %v308
      %v541 = vmul.f32 %v309, %v309
      %v542 = vmul.f32 %v310, %v310
      %v543 = vmul.f32 %v311, %v311
      %v544 = vmul.f32 %v312, %v312
      %v545 = vmul.f32 %v313, %v313
      %v546 = vmul.f32 %v314, %v314
      %v547 = vmul.f32 %v315, %v315
      %v548 = vmul.f32 %v316, %v316
      %v549 = vmul.f32 %v317, %v317
      %v550 = vmul.f32 %v318, %v318
      %v551 = vmul.f32 %v319, %v319
      %v552 = vmul.f32 %v320, %v320
      %v553 = vmul.f32 %v321, %v321
      %v554 = vmul.f32 %v322, %v322
      %v555 = vmul.f32 %v323, %v323
      %v556 = vmul.f32 %v324, %v324
      %v557 = vmul.f32 %v325, %v325
      %v558 = vmul.f32 %v326, %v326
      %v559 = vmul.f32 %v327, %v327
      %v560 = vmul.f32 %v328, %v328
      %v561 = vmul.f32 %v329, %v329
      %v562 = vmul.f32 %v330, %v330
      %v563 = vmul.f32 %v331, %v331
      %v564 = vmul.f32 %v332, %v332
      %v565 = vmul.f32 %v333, %v333
      %v566 = vmul.f32 %v334, %v334
      %v567 = vmul.f32 %v335, %v335
      %v568 = vmul.f32 %v336, %v336
      %v569 = vmul.f32 %v337, %v337
      %v570 = vmul.f32 %v338, %v338
      %v571 = vmul.f32 %v339, %v339
      %v572 = vmul.f32 %v340, %v340
      %v573 = vmul.f32 %v341, %v341
      %v574 = vmul.f32 %v342, %v342
      %v575 = vmul.f32 %v343, %v343
      %v576 = vmul.f32 %v344, %v344
      %v577 = vmul.f32 %v345, %v345
      %v578 = vmul.f32 %v346, %v346
      %v579 = vmul.f32 %v347, %v347
      %v580 = vmul.f32 %v348, %v348
      %v581 = vmul.f32 %v349, %v349
      %v582 = vmul.f32 %v350, %v350
      %v583 = vmul.f32 %v351, %v351
      %v584 = vmul.f32 %v352, %v352
      %v585 = vmul.f32 %v353, %v353
      %v586 = vmul.f32 %v354, %v354
      %v587 = vmul.f32 %v355, %v355
      %v588 = vmul.f32 %v356, %v356
      %v589 = vmul.f32 %v357, %v357
      %v590 = vmul.f32 %v358, %v358
      %v591 = vmul.f32 %v359, %v359
      %v592 = vmul.f32 %v360, %v360
      %v593 = vsel %vm425, %v539, 0.0
      %v594 = vsel %vm425, %v540, 0.0
      %v595 = vadd.f32 %v593, %v594
      %v596 = vsel %vm425, %v541, 0.0
      %v597 = vadd.f32 %v595, %v596
      %v598 = vsel %vm425, %v542, 0.0
      %v599 = vadd.f32 %v597, %v598
      %v600 = vsel %vm425, %v543, 0.0
      %v601 = vadd.f32 %v599, %v600
      %v602 = vsel %vm425, %v544, 0.0
      %v603 = vadd.f32 %v601, %v602
      %v604 = vsel %vm425, %v545, 0.0
      %v605 = vadd.f32 %v603, %v604
      %v606 = vsel %vm425, %v546, 0.0
      %v607 = vadd.f32 %v605, %v606
      %v608 = vsel %vm425, %v547, 0.0
      %v609 = vadd.f32 %v607, %v608
      %v610 = vsel %vm425, %v548, 0.0
      %v611 = vadd.f32 %v609, %v610
      %v612 = vsel %vm425, %v549, 0.0
      %v613 = vadd.f32 %v611, %v612
      %v614 = vsel %vm425, %v550, 0.0
      %v615 = vadd.f32 %v613, %v614
      %v616 = vsel %vm425, %v551, 0.0
      %v617 = vadd.f32 %v615, %v616
      %v618 = vsel %vm425, %v552, 0.0
      %v619 = vadd.f32 %v617, %v618
      %v620 = vsel %vm425, %v553, 0.0
      %v621 = vadd.f32 %v619, %v620
      %v622 = vsel %vm425, %v554, 0.0
      %v623 = vadd.f32 %v621, %v622
      %v624 = vsel %vm425, %v555, 0.0
      %v625 = vadd.f32 %v623, %v624
      %v626 = vsel %vm425, %v556, 0.0
      %v627 = vadd.f32 %v625, %v626
      %v628 = vsel %vm425, %v557, 0.0
      %v629 = vadd.f32 %v627, %v628
      %v630 = vsel %vm425, %v558, 0.0
      %v631 = vadd.f32 %v629, %v630
      %v632 = vsel %vm425, %v559, 0.0
      %v633 = vadd.f32 %v631, %v632
      %v634 = vsel %vm425, %v560, 0.0
      %v635 = vadd.f32 %v633, %v634
      %v636 = vsel %vm425, %v561, 0.0
      %v637 = vadd.f32 %v635, %v636
      %v638 = vsel %vm425, %v562, 0.0
      %v639 = vadd.f32 %v637, %v638
      %v640 = vsel %vm425, %v563, 0.0
      %v641 = vadd.f32 %v639, %v640
      %v642 = vsel %vm425, %v564, 0.0
      %v643 = vadd.f32 %v641, %v642
      %v644 = vsel %vm425, %v565, 0.0
      %v645 = vadd.f32 %v643, %v644
      %v646 = vsel %vm425, %v566, 0.0
      %v647 = vadd.f32 %v645, %v646
      %v648 = vsel %vm425, %v567, 0.0
      %v649 = vadd.f32 %v647, %v648
      %v650 = vsel %vm425, %v568, 0.0
      %v651 = vadd.f32 %v649, %v650
      %v652 = vsel %vm425, %v569, 0.0
      %v653 = vadd.f32 %v651, %v652
      %v654 = vsel %vm425, %v570, 0.0
      %v655 = vadd.f32 %v653, %v654
      %v656 = vsel %vm425, %v571, 0.0
      %v657 = vadd.f32 %v655, %v656
      %v658 = vsel %vm425, %v572, 0.0
      %v659 = vadd.f32 %v657, %v658
      %v660 = vsel %vm425, %v573, 0.0
      %v661 = vadd.f32 %v659, %v660
      %v662 = vsel %vm425, %v574, 0.0
      %v663 = vadd.f32 %v661, %v662
      %v664 = vsel %vm425, %v575, 0.0
      %v665 = vadd.f32 %v663, %v664
      %v666 = vsel %vm425, %v576, 0.0
      %v667 = vadd.f32 %v665, %v666
      %v668 = vsel %vm425, %v577, 0.0
      %v669 = vadd.f32 %v667, %v668
      %v670 = vsel %vm425, %v578, 0.0
      %v671 = vadd.f32 %v669, %v670
      %v672 = vsel %vm425, %v579, 0.0
      %v673 = vadd.f32 %v671, %v672
      %v674 = vsel %vm425, %v580, 0.0
      %v675 = vadd.f32 %v673, %v674
      %v676 = vsel %vm425, %v581, 0.0
      %v677 = vadd.f32 %v675, %v676
      %v678 = vsel %vm425, %v582, 0.0
      %v679 = vadd.f32 %v677, %v678
      %v680 = vsel %vm425, %v583, 0.0
      %v681 = vadd.f32 %v679, %v680
      %v682 = vsel %vm425, %v584, 0.0
      %v683 = vadd.f32 %v681, %v682
      %v684 = vsel %vm425, %v585, 0.0
      %v685 = vadd.f32 %v683, %v684
      %v686 = vsel %vm425, %v586, 0.0
      %v687 = vadd.f32 %v685, %v686
      %v688 = vsel %vm425, %v587, 0.0
      %v689 = vadd.f32 %v687, %v688
      %v690 = vsel %vm425, %v588, 0.0
      %v691 = vadd.f32 %v689, %v690
      %v692 = vsel %vm425, %v589, 0.0
      %v693 = vadd.f32 %v691, %v692
      %v694 = vsel %vm425, %v590, 0.0
      %v695 = vadd.f32 %v693, %v694
      %v696 = vsel %vm425, %v591, 0.0
      %v697 = vadd.f32 %v695, %v696
      %v698 = vsel %vm425, %v592, 0.0
      %v699 = vadd.f32 %v697, %v698
      %v700 = vrot.slane %v699, 4
      %v701 = vadd.f32 %v699, %v700
      %v702 = vrot.slane %v701, 2
      %v703 = vadd.f32 %v701, %v702
      %v704 = vrot.slane %v703, 1
      %v705 = vadd.f32 %v703, %v704
      %v707 = vsel %vm425, %v538, 0
      %709 = vmatprep.subr.mxu0 0.0
      %710 = vmatpush1.msra.mxu0 %v417
      %711 = vmatprep.subr.mxu0 0.0
      %712 = vmatpush1.msra.mxu0 %v418
      %713 = vmatprep.subr.mxu0 0.0
      %714 = vmatpush1.msra.mxu0 %v419
      %715 = vmatprep.subr.mxu0 0.0
      %716 = vmatpush1.msra.mxu0 %v420
      %717 = vmatprep.subr.mxu0 0.0
      %718 = vmatpush1.msra.mxu0 %v421
      %719 = vmatprep.subr.mxu0 0.0
      %720 = vmatpush1.msra.mxu0 %v422
      %721 = vmatprep.subr.mxu0 0.0
      %722 = vmatpush1.msra.mxu0 %v423
      %723 = vmatprep.subr.mxu0 0.0
      %724 = vmatpush1.msra.mxu0 %v424
      %725 = vmatprep.subr.mxu0 0.0
      %726 = vmatpush1.msra.mxu0 0.0
      %727 = vmatprep.subr.mxu0 0.0
      %728 = vmatpush1.msra.mxu0 0.0
      %729 = vmatprep.subr.mxu0 0.0
      %730 = vmatpush1.msra.mxu0 0.0
      %731 = vmatprep.subr.mxu0 0.0
      %732 = vmatpush1.msra.mxu0 0.0
      %733 = vmatprep.subr.mxu0 0.0
      %734 = vmatpush1.msra.mxu0 0.0
      %735 = vmatprep.subr.mxu0 0.0
      %736 = vmatpush1.msra.mxu0 0.0
      %737 = vmatprep.subr.mxu0 0.0
      %738 = vmatpush1.msra.mxu0 0.0
      %739 = vmatprep.subr.mxu0 0.0
      %740 = vmatpush1.msra.mxu0 0.0
      %741 = vmatprep.subr.mxu0 0.0
      %742 = vmatpush1.msra.mxu0 0.0
      %743 = vmatprep.subr.mxu0 0.0
      %744 = vmatpush1.msra.mxu0 0.0
      %745 = vmatprep.subr.mxu0 0.0
      %746 = vmatpush1.msra.mxu0 0.0
      %747 = vmatprep.subr.mxu0 0.0
      %748 = vmatpush1.msra.mxu0 0.0
      %749 = vmatprep.subr.mxu0 0.0
      %750 = vmatpush1.msra.mxu0 0.0
      %751 = vmatprep.subr.mxu0 0.0
      %752 = vmatpush1.msra.mxu0 0.0
      %753 = vmatprep.subr.mxu0 0.0
      %754 = vmatpush1.msra.mxu0 0.0
      %755 = vmatprep.subr.mxu0 0.0
      %756 = vmatpush1.msra.mxu0 0.0
      %757 = vmatprep.subr.mxu0 0.0
      %758 = vmatpush1.msra.mxu0 0.0
      %759 = vmatprep.subr.mxu0 0.0
      %760 = vmatpush1.msra.mxu0 0.0
      %761 = vmatprep.subr.mxu0 0.0
      %762 = vmatpush1.msra.mxu0 0.0
      %763 = vmatprep.subr.mxu0 0.0
      %764 = vmatpush1.msra.mxu0 0.0
      %765 = vmatprep.subr.mxu0 0.0
      %766 = vmatpush1.msra.mxu0 0.0
      %767 = vmatprep.subr.mxu0 0.0
      %768 = vmatpush1.msra.mxu0 0.0
      %769 = vmatprep.subr.mxu0 0.0
      %770 = vmatpush1.msra.mxu0 0.0
      %771 = vmatprep.subr.mxu0 0.0
      %772 = vmatpush1.msra.mxu0 0.0
      %773 = vmatprep.mubr.f32.mxu0 0.0
      %774 = vmatmul.mubr.f32.gmra.mrb[0].mxu0 %v707
      %v775 = vpop.f32.mrb[0].mxu0
      %v776 = vadd.f32 0.0, %v775
      %v777 = vpop.f32.mrb[0].mxu0
      %778 = vdwg.mxu0
      %v780 = vsel %vm425, %v705, 0
      %782 = vmatprep.subr.mxu0 0.0
      %783 = vmatpush1.msra.mxu0 %v417
      %784 = vmatprep.subr.mxu0 0.0
      %785 = vmatpush1.msra.mxu0 %v418
      %786 = vmatprep.subr.mxu0 0.0
      %787 = vmatpush1.msra.mxu0 %v419
      %788 = vmatprep.subr.mxu0 0.0
      %789 = vmatpush1.msra.mxu0 %v420
      %790 = vmatprep.subr.mxu0 0.0
      %791 = vmatpush1.msra.mxu0 %v421
      %792 = vmatprep.subr.mxu0 0.0
      %793 = vmatpush1.msra.mxu0 %v422
      %794 = vmatprep.subr.mxu0 0.0
      %795 = vmatpush1.msra.mxu0 %v423
      %796 = vmatprep.subr.mxu0 0.0
      %797 = vmatpush1.msra.mxu0 %v424
      %798 = vmatprep.subr.mxu0 0.0
      %799 = vmatpush1.msra.mxu0 0.0
      %800 = vmatprep.subr.mxu0 0.0
      %801 = vmatpush1.msra.mxu0 0.0
      %802 = vmatprep.subr.mxu0 0.0
      %803 = vmatpush1.msra.mxu0 0.0
      %804 = vmatprep.subr.mxu0 0.0
      %805 = vmatpush1.msra.mxu0 0.0
      %806 = vmatprep.subr.mxu0 0.0
      %807 = vmatpush1.msra.mxu0 0.0
      %808 = vmatprep.subr.mxu0 0.0
      %809 = vmatpush1.msra.mxu0 0.0
      %810 = vmatprep.subr.mxu0 0.0
      %811 = vmatpush1.msra.mxu0 0.0
      %812 = vmatprep.subr.mxu0 0.0
      %813 = vmatpush1.msra.mxu0 0.0
      %814 = vmatprep.subr.mxu0 0.0
      %815 = vmatpush1.msra.mxu0 0.0
      %816 = vmatprep.subr.mxu0 0.0
      %817 = vmatpush1.msra.mxu0 0.0
      %818 = vmatprep.subr.mxu0 0.0
      %819 = vmatpush1.msra.mxu0 0.0
      %820 = vmatprep.subr.mxu0 0.0
      %821 = vmatpush1.msra.mxu0 0.0
      %822 = vmatprep.subr.mxu0 0.0
      %823 = vmatpush1.msra.mxu0 0.0
      %824 = vmatprep.subr.mxu0 0.0
      %825 = vmatpush1.msra.mxu0 0.0
      %826 = vmatprep.subr.mxu0 0.0
      %827 = vmatpush1.msra.mxu0 0.0
      %828 = vmatprep.subr.mxu0 0.0
      %829 = vmatpush1.msra.mxu0 0.0
      %830 = vmatprep.subr.mxu0 0.0
      %831 = vmatpush1.msra.mxu0 0.0
      %832 = vmatprep.subr.mxu0 0.0
      %833 = vmatpush1.msra.mxu0 0.0
      %834 = vmatprep.subr.mxu0 0.0
      %835 = vmatpush1.msra.mxu0 0.0
      %836 = vmatprep.subr.mxu0 0.0
      %837 = vmatpush1.msra.mxu0 0.0
      %838 = vmatprep.subr.mxu0 0.0
      %839 = vmatpush1.msra.mxu0 0.0
      %840 = vmatprep.subr.mxu0 0.0
      %841 = vmatpush1.msra.mxu0 0.0
      %842 = vmatprep.subr.mxu0 0.0
      %843 = vmatpush1.msra.mxu0 0.0
      %844 = vmatprep.subr.mxu0 0.0
      %845 = vmatpush1.msra.mxu0 0.0
      %846 = vmatprep.mubr.f32.mxu0 0.0
      %847 = vmatmul.mubr.f32.gmra.mrb[0].mxu0 %v780
      %v848 = vpop.f32.mrb[0].mxu0
      %v849 = vadd.f32 0.0, %v848
      %v850 = vpop.f32.mrb[0].mxu0
      %851 = vdwg.mxu0
      %v852 = vmul.f32 %v776, %v776
      %v853 = vsub.f32 %v849, %v852
      %v854 = vadd.f32 %v853, 1e-05
      %v855 = vrsqrt.pop %v854
      %v856 = vmul.f32 %v855, %v415
      %v857 = vmul.f32 %v776, %v856
      %v858 = vsub.f32 %v416, %v857
      %v859 = vlaneseq
      %v860 = vshrl.u32 %v859, 7
      %v861 = vsub.s32 0, %v860
      %v862 = vrot.slane %v856, %v861
      %v863 = vmul.f32 %v307, %v862
      %v864 = vmul.f32 %v308, %v862
      %v865 = vmul.f32 %v309, %v862
      %v866 = vmul.f32 %v310, %v862
      %v867 = vmul.f32 %v311, %v862
      %v868 = vmul.f32 %v312, %v862
      %v869 = vmul.f32 %v313, %v862
      %v870 = vmul.f32 %v314, %v862
      %v871 = vmul.f32 %v315, %v862
      %v872 = vmul.f32 %v316, %v862
      %v873 = vmul.f32 %v317, %v862
      %v874 = vmul.f32 %v318, %v862
      %v875 = vmul.f32 %v319, %v862
      %v876 = vmul.f32 %v320, %v862
      %v877 = vmul.f32 %v321, %v862
      %v878 = vmul.f32 %v322, %v862
      %v879 = vmul.f32 %v323, %v862
      %v880 = vmul.f32 %v324, %v862
      %v881 = vmul.f32 %v325, %v862
      %v882 = vmul.f32 %v326, %v862
      %v883 = vmul.f32 %v327, %v862
      %v884 = vmul.f32 %v328, %v862
      %v885 = vmul.f32 %v329, %v862
      %v886 = vmul.f32 %v330, %v862
      %v887 = vmul.f32 %v331, %v862
      %v888 = vmul.f32 %v332, %v862
      %v889 = vmul.f32 %v333, %v862
      %v890 = vmul.f32 %v334, %v862
      %v891 = vmul.f32 %v335, %v862
      %v892 = vmul.f32 %v336, %v862
      %v893 = vmul.f32 %v337, %v862
      %v894 = vmul.f32 %v338, %v862
      %v895 = vmul.f32 %v339, %v862
      %v896 = vmul.f32 %v340, %v862
      %v897 = vmul.f32 %v341, %v862
      %v898 = vmul.f32 %v342, %v862
      %v899 = vmul.f32 %v343, %v862
      %v900 = vmul.f32 %v344, %v862
      %v901 = vmul.f32 %v345, %v862
      %v902 = vmul.f32 %v346, %v862
      %v903 = vmul.f32 %v347, %v862
      %v904 = vmul.f32 %v348, %v862
      %v905 = vmul.f32 %v349, %v862
      %v906 = vmul.f32 %v350, %v862
      %v907 = vmul.f32 %v351, %v862
      %v908 = vmul.f32 %v352, %v862
      %v909 = vmul.f32 %v353, %v862
      %v910 = vmul.f32 %v354, %v862
      %v911 = vmul.f32 %v355, %v862
      %v912 = vmul.f32 %v356, %v862
      %v913 = vmul.f32 %v357, %v862
      %v914 = vmul.f32 %v358, %v862
      %v915 = vmul.f32 %v359, %v862
      %v916 = vmul.f32 %v360, %v862
      %v918 = vlaneseq
      %v919 = vshrl.u32 %v918, 7
      %v920 = vsub.s32 0, %v919
      %v921 = vrot.slane %v858, %v920
      %v923 = vadd.f32 %v863, %v921
      %v924 = vadd.f32 %v864, %v921
      %v925 = vadd.f32 %v865, %v921
      %v926 = vadd.f32 %v866, %v921
      %v927 = vadd.f32 %v867, %v921
      %v928 = vadd.f32 %v868, %v921
      %v929 = vadd.f32 %v869, %v921
      %v930 = vadd.f32 %v870, %v921
      %v931 = vadd.f32 %v871, %v921
      %v932 = vadd.f32 %v872, %v921
      %v933 = vadd.f32 %v873, %v921
      %v934 = vadd.f32 %v874, %v921
      %v935 = vadd.f32 %v875, %v921
      %v936 = vadd.f32 %v876, %v921
      %v937 = vadd.f32 %v877, %v921
      %v938 = vadd.f32 %v878, %v921
      %v939 = vadd.f32 %v879, %v921
      %v940 = vadd.f32 %v880, %v921
      %v941 = vadd.f32 %v881, %v921
      %v942 = vadd.f32 %v882, %v921
      %v943 = vadd.f32 %v883, %v921
      %v944 = vadd.f32 %v884, %v921
      %v945 = vadd.f32 %v885, %v921
      %v946 = vadd.f32 %v886, %v921
      %v947 = vadd.f32 %v887, %v921
      %v948 = vadd.f32 %v888, %v921
      %v949 = vadd.f32 %v889, %v921
      %v950 = vadd.f32 %v890, %v921
      %v951 = vadd.f32 %v891, %v921
      %v952 = vadd.f32 %v892, %v921
      %v953 = vadd.f32 %v893, %v921
      %v954 = vadd.f32 %v894, %v921
      %v955 = vadd.f32 %v895, %v921
      %v956 = vadd.f32 %v896, %v921
      %v957 = vadd.f32 %v897, %v921
      %v958 = vadd.f32 %v898, %v921
      %v959 = vadd.f32 %v899, %v921
      %v960 = vadd.f32 %v900, %v921
      %v961 = vadd.f32 %v901, %v921
      %v962 = vadd.f32 %v902, %v921
      %v963 = vadd.f32 %v903, %v921
      %v964 = vadd.f32 %v904, %v921
      %v965 = vadd.f32 %v905, %v921
      %v966 = vadd.f32 %v906, %v921
      %v967 = vadd.f32 %v907, %v921
      %v968 = vadd.f32 %v908, %v921
      %v969 = vadd.f32 %v909, %v921
      %v970 = vadd.f32 %v910, %v921
      %v971 = vadd.f32 %v911, %v921
      %v972 = vadd.f32 %v912, %v921
      %v973 = vadd.f32 %v913, %v921
      %v974 = vadd.f32 %v914, %v921
      %v975 = vadd.f32 %v915, %v921
      %v976 = vadd.f32 %v916, %v921
      %vm977 = vcmp.ge.f32.partialorder %v923, 0.0
      %vm978 = vcmp.ge.f32.partialorder %v924, 0.0
      %vm979 = vcmp.ge.f32.partialorder %v925, 0.0
      %vm980 = vcmp.ge.f32.partialorder %v926, 0.0
      %vm981 = vcmp.ge.f32.partialorder %v927, 0.0
      %vm982 = vcmp.ge.f32.partialorder %v928, 0.0
      %vm983 = vcmp.ge.f32.partialorder %v929, 0.0
      %vm984 = vcmp.ge.f32.partialorder %v930, 0.0
      %vm985 = vcmp.ge.f32.partialorder %v931, 0.0
      %vm986 = vcmp.ge.f32.partialorder %v932, 0.0
      %vm987 = vcmp.ge.f32.partialorder %v933, 0.0
      %vm988 = vcmp.ge.f32.partialorder %v934, 0.0
      %vm989 = vcmp.ge.f32.partialorder %v935, 0.0
      %vm990 = vcmp.ge.f32.partialorder %v936, 0.0
      %vm991 = vcmp.ge.f32.partialorder %v937, 0.0
      %vm992 = vcmp.ge.f32.partialorder %v938, 0.0
      %vm993 = vcmp.ge.f32.partialorder %v939, 0.0
      %vm994 = vcmp.ge.f32.partialorder %v940, 0.0
      %vm995 = vcmp.ge.f32.partialorder %v941, 0.0
      %vm996 = vcmp.ge.f32.partialorder %v942, 0.0
      %vm997 = vcmp.ge.f32.partialorder %v943, 0.0
      %vm998 = vcmp.ge.f32.partialorder %v944, 0.0
      %vm999 = vcmp.ge.f32.partialorder %v945, 0.0
      %vm1000 = vcmp.ge.f32.partialorder %v946, 0.0
      %vm1001 = vcmp.ge.f32.partialorder %v947, 0.0
      %vm1002 = vcmp.ge.f32.partialorder %v948, 0.0
      %vm1003 = vcmp.ge.f32.partialorder %v949, 0.0
      %vm1004 = vcmp.ge.f32.partialorder %v950, 0.0
      %vm1005 = vcmp.ge.f32.partialorder %v951, 0.0
      %vm1006 = vcmp.ge.f32.partialorder %v952, 0.0
      %vm1007 = vcmp.ge.f32.partialorder %v953, 0.0
      %vm1008 = vcmp.ge.f32.partialorder %v954, 0.0
      %vm1009 = vcmp.ge.f32.partialorder %v955, 0.0
      %vm1010 = vcmp.ge.f32.partialorder %v956, 0.0
      %vm1011 = vcmp.ge.f32.partialorder %v957, 0.0
      %vm1012 = vcmp.ge.f32.partialorder %v958, 0.0
      %vm1013 = vcmp.ge.f32.partialorder %v959, 0.0
      %vm1014 = vcmp.ge.f32.partialorder %v960, 0.0
      %vm1015 = vcmp.ge.f32.partialorder %v961, 0.0
      %vm1016 = vcmp.ge.f32.partialorder %v962, 0.0
      %vm1017 = vcmp.ge.f32.partialorder %v963, 0.0
      %vm1018 = vcmp.ge.f32.partialorder %v964, 0.0
      %vm1019 = vcmp.ge.f32.partialorder %v965, 0.0
      %vm1020 = vcmp.ge.f32.partialorder %v966, 0.0
      %vm1021 = vcmp.ge.f32.partialorder %v967, 0.0
      %vm1022 = vcmp.ge.f32.partialorder %v968, 0.0
      %vm1023 = vcmp.ge.f32.partialorder %v969, 0.0
      %vm1024 = vcmp.ge.f32.partialorder %v970, 0.0
      %vm1025 = vcmp.ge.f32.partialorder %v971, 0.0
      %vm1026 = vcmp.ge.f32.partialorder %v972, 0.0
      %vm1027 = vcmp.ge.f32.partialorder %v973, 0.0
      %vm1028 = vcmp.ge.f32.partialorder %v974, 0.0
      %vm1029 = vcmp.ge.f32.partialorder %v975, 0.0
      %vm1030 = vcmp.ge.f32.partialorder %v976, 0.0
      %v1031 = vmul.f32 %v923, 0.01
      %v1032 = vmul.f32 %v924, 0.01
      %v1033 = vmul.f32 %v925, 0.01
      %v1034 = vmul.f32 %v926, 0.01
      %v1035 = vmul.f32 %v927, 0.01
      %v1036 = vmul.f32 %v928, 0.01
      %v1037 = vmul.f32 %v929, 0.01
      %v1038 = vmul.f32 %v930, 0.01
      %v1039 = vmul.f32 %v931, 0.01
      %v1040 = vmul.f32 %v932, 0.01
      %v1041 = vmul.f32 %v933, 0.01
      %v1042 = vmul.f32 %v934, 0.01
      %v1043 = vmul.f32 %v935, 0.01
      %v1044 = vmul.f32 %v936, 0.01
      %v1045 = vmul.f32 %v937, 0.01
      %v1046 = vmul.f32 %v938, 0.01
      %v1047 = vmul.f32 %v939, 0.01
      %v1048 = vmul.f32 %v940, 0.01
      %v1049 = vmul.f32 %v941, 0.01
      %v1050 = vmul.f32 %v942, 0.01
      %v1051 = vmul.f32 %v943, 0.01
      %v1052 = vmul.f32 %v944, 0.01
      %v1053 = vmul.f32 %v945, 0.01
      %v1054 = vmul.f32 %v946, 0.01
      %v1055 = vmul.f32 %v947, 0.01
      %v1056 = vmul.f32 %v948, 0.01
      %v1057 = vmul.f32 %v949, 0.01
      %v1058 = vmul.f32 %v950, 0.01
      %v1059 = vmul.f32 %v951, 0.01
      %v1060 = vmul.f32 %v952, 0.01
      %v1061 = vmul.f32 %v953, 0.01
      %v1062 = vmul.f32 %v954, 0.01
      %v1063 = vmul.f32 %v955, 0.01
      %v1064 = vmul.f32 %v956, 0.01
      %v1065 = vmul.f32 %v957, 0.01
      %v1066 = vmul.f32 %v958, 0.01
      %v1067 = vmul.f32 %v959, 0.01
      %v1068 = vmul.f32 %v960, 0.01
      %v1069 = vmul.f32 %v961, 0.01
      %v1070 = vmul.f32 %v962, 0.01
      %v1071 = vmul.f32 %v963, 0.01
      %v1072 = vmul.f32 %v964, 0.01
      %v1073 = vmul.f32 %v965, 0.01
      %v1074 = vmul.f32 %v966, 0.01
      %v1075 = vmul.f32 %v967, 0.01
      %v1076 = vmul.f32 %v968, 0.01
      %v1077 = vmul.f32 %v969, 0.01
      %v1078 = vmul.f32 %v970, 0.01
      %v1079 = vmul.f32 %v971, 0.01
      %v1080 = vmul.f32 %v972, 0.01
      %v1081 = vmul.f32 %v973, 0.01
      %v1082 = vmul.f32 %v974, 0.01
      %v1083 = vmul.f32 %v975, 0.01
      %v1084 = vmul.f32 %v976, 0.01
      %v1085 = vsel %vm977, %v923, %v1031
      %v1086 = vsel %vm978, %v924, %v1032
      %v1087 = vsel %vm979, %v925, %v1033
      %v1088 = vsel %vm980, %v926, %v1034
      %v1089 = vsel %vm981, %v927, %v1035
      %v1090 = vsel %vm982, %v928, %v1036
      %v1091 = vsel %vm983, %v929, %v1037
      %v1092 = vsel %vm984, %v930, %v1038
      %v1093 = vsel %vm985, %v931, %v1039
      %v1094 = vsel %vm986, %v932, %v1040
      %v1095 = vsel %vm987, %v933, %v1041
      %v1096 = vsel %vm988, %v934, %v1042
      %v1097 = vsel %vm989, %v935, %v1043
      %v1098 = vsel %vm990, %v936, %v1044
      %v1099 = vsel %vm991, %v937, %v1045
      %v1100 = vsel %vm992, %v938, %v1046
      %v1101 = vsel %vm993, %v939, %v1047
      %v1102 = vsel %vm994, %v940, %v1048
      %v1103 = vsel %vm995, %v941, %v1049
      %v1104 = vsel %vm996, %v942, %v1050
      %v1105 = vsel %vm997, %v943, %v1051
      %v1106 = vsel %vm998, %v944, %v1052
      %v1107 = vsel %vm999, %v945, %v1053
      %v1108 = vsel %vm1000, %v946, %v1054
      %v1109 = vsel %vm1001, %v947, %v1055
      %v1110 = vsel %vm1002, %v948, %v1056
      %v1111 = vsel %vm1003, %v949, %v1057
      %v1112 = vsel %vm1004, %v950, %v1058
      %v1113 = vsel %vm1005, %v951, %v1059
      %v1114 = vsel %vm1006, %v952, %v1060
      %v1115 = vsel %vm1007, %v953, %v1061
      %v1116 = vsel %vm1008, %v954, %v1062
      %v1117 = vsel %vm1009, %v955, %v1063
      %v1118 = vsel %vm1010, %v956, %v1064
      %v1119 = vsel %vm1011, %v957, %v1065
      %v1120 = vsel %vm1012, %v958, %v1066
      %v1121 = vsel %vm1013, %v959, %v1067
      %v1122 = vsel %vm1014, %v960, %v1068
      %v1123 = vsel %vm1015, %v961, %v1069
      %v1124 = vsel %vm1016, %v962, %v1070
      %v1125 = vsel %vm1017, %v963, %v1071
      %v1126 = vsel %vm1018, %v964, %v1072
      %v1127 = vsel %vm1019, %v965, %v1073
      %v1128 = vsel %vm1020, %v966, %v1074
      %v1129 = vsel %vm1021, %v967, %v1075
      %v1130 = vsel %vm1022, %v968, %v1076
      %v1131 = vsel %vm1023, %v969, %v1077
      %v1132 = vsel %vm1024, %v970, %v1078
      %v1133 = vsel %vm1025, %v971, %v1079
      %v1134 = vsel %vm1026, %v972, %v1080
      %v1135 = vsel %vm1027, %v973, %v1081
      %v1136 = vsel %vm1028, %v974, %v1082
      %v1137 = vsel %vm1029, %v975, %v1083
      %v1138 = vsel %vm1030, %v976, %v1084
      %1140 = vset.pattern.permute.xlu0 0
      %1141 = vperm.xlu0 %1140, %v361
      %v1142 = vpop.permute.xlu0 %1141
      %1145 = vset.pattern.permute.xlu0 0
      %1146 = vperm.xlu0 %1145, %v362
      %v1147 = vpop.permute.xlu0 %1146
      %1150 = vset.pattern.permute.xlu0 0
      %1151 = vperm.xlu0 %1150, %v363
      %v1152 = vpop.permute.xlu0 %1151
      %1155 = vset.pattern.permute.xlu0 0
      %1156 = vperm.xlu0 %1155, %v364
      %v1157 = vpop.permute.xlu0 %1156
      %1160 = vset.pattern.permute.xlu0 0
      %1161 = vperm.xlu0 %1160, %v365
      %v1162 = vpop.permute.xlu0 %1161
      %1165 = vset.pattern.permute.xlu0 0
      %1166 = vperm.xlu0 %1165, %v366
      %v1167 = vpop.permute.xlu0 %1166
      %1170 = vset.pattern.permute.xlu0 0
      %1171 = vperm.xlu0 %1170, %v367
      %v1172 = vpop.permute.xlu0 %1171
      %1175 = vset.pattern.permute.xlu0 0
      %1176 = vperm.xlu0 %1175, %v368
      %v1177 = vpop.permute.xlu0 %1176
      %1180 = vset.pattern.permute.xlu0 0
      %1181 = vperm.xlu0 %1180, %v369
      %v1182 = vpop.permute.xlu0 %1181
      %1185 = vset.pattern.permute.xlu0 0
      %1186 = vperm.xlu0 %1185, %v370
      %v1187 = vpop.permute.xlu0 %1186
      %1190 = vset.pattern.permute.xlu0 0
      %1191 = vperm.xlu0 %1190, %v371
      %v1192 = vpop.permute.xlu0 %1191
      %1195 = vset.pattern.permute.xlu0 0
      %1196 = vperm.xlu0 %1195, %v372
      %v1197 = vpop.permute.xlu0 %1196
      %1200 = vset.pattern.permute.xlu0 0
      %1201 = vperm.xlu0 %1200, %v373
      %v1202 = vpop.permute.xlu0 %1201
      %1205 = vset.pattern.permute.xlu0 0
      %1206 = vperm.xlu0 %1205, %v374
      %v1207 = vpop.permute.xlu0 %1206
      %1210 = vset.pattern.permute.xlu0 0
      %1211 = vperm.xlu0 %1210, %v375
      %v1212 = vpop.permute.xlu0 %1211
      %1215 = vset.pattern.permute.xlu0 0
      %1216 = vperm.xlu0 %1215, %v376
      %v1217 = vpop.permute.xlu0 %1216
      %1220 = vset.pattern.permute.xlu0 0
      %1221 = vperm.xlu0 %1220, %v377
      %v1222 = vpop.permute.xlu0 %1221
      %1225 = vset.pattern.permute.xlu0 0
      %1226 = vperm.xlu0 %1225, %v378
      %v1227 = vpop.permute.xlu0 %1226
      %1230 = vset.pattern.permute.xlu0 0
      %1231 = vperm.xlu0 %1230, %v379
      %v1232 = vpop.permute.xlu0 %1231
      %1235 = vset.pattern.permute.xlu0 0
      %1236 = vperm.xlu0 %1235, %v380
      %v1237 = vpop.permute.xlu0 %1236
      %1240 = vset.pattern.permute.xlu0 0
      %1241 = vperm.xlu0 %1240, %v381
      %v1242 = vpop.permute.xlu0 %1241
      %1245 = vset.pattern.permute.xlu0 0
      %1246 = vperm.xlu0 %1245, %v382
      %v1247 = vpop.permute.xlu0 %1246
      %1250 = vset.pattern.permute.xlu0 0
      %1251 = vperm.xlu0 %1250, %v383
      %v1252 = vpop.permute.xlu0 %1251
      %1255 = vset.pattern.permute.xlu0 0
      %1256 = vperm.xlu0 %1255, %v384
      %v1257 = vpop.permute.xlu0 %1256
      %1260 = vset.pattern.permute.xlu0 0
      %1261 = vperm.xlu0 %1260, %v385
      %v1262 = vpop.permute.xlu0 %1261
      %1265 = vset.pattern.permute.xlu0 0
      %1266 = vperm.xlu0 %1265, %v386
      %v1267 = vpop.permute.xlu0 %1266
      %1270 = vset.pattern.permute.xlu0 0
      %1271 = vperm.xlu0 %1270, %v387
      %v1272 = vpop.permute.xlu0 %1271
      %1275 = vset.pattern.permute.xlu0 0
      %1276 = vperm.xlu0 %1275, %v388
      %v1277 = vpop.permute.xlu0 %1276
      %1280 = vset.pattern.permute.xlu0 0
      %1281 = vperm.xlu0 %1280, %v389
      %v1282 = vpop.permute.xlu0 %1281
      %1285 = vset.pattern.permute.xlu0 0
      %1286 = vperm.xlu0 %1285, %v390
      %v1287 = vpop.permute.xlu0 %1286
      %1290 = vset.pattern.permute.xlu0 0
      %1291 = vperm.xlu0 %1290, %v391
      %v1292 = vpop.permute.xlu0 %1291
      %1295 = vset.pattern.permute.xlu0 0
      %1296 = vperm.xlu0 %1295, %v392
      %v1297 = vpop.permute.xlu0 %1296
      %1300 = vset.pattern.permute.xlu0 0
      %1301 = vperm.xlu0 %1300, %v393
      %v1302 = vpop.permute.xlu0 %1301
      %1305 = vset.pattern.permute.xlu0 0
      %1306 = vperm.xlu0 %1305, %v394
      %v1307 = vpop.permute.xlu0 %1306
      %1310 = vset.pattern.permute.xlu0 0
      %1311 = vperm.xlu0 %1310, %v395
      %v1312 = vpop.permute.xlu0 %1311
      %1315 = vset.pattern.permute.xlu0 0
      %1316 = vperm.xlu0 %1315, %v396
      %v1317 = vpop.permute.xlu0 %1316
      %1320 = vset.pattern.permute.xlu0 0
      %1321 = vperm.xlu0 %1320, %v397
      %v1322 = vpop.permute.xlu0 %1321
      %1325 = vset.pattern.permute.xlu0 0
      %1326 = vperm.xlu0 %1325, %v398
      %v1327 = vpop.permute.xlu0 %1326
      %1330 = vset.pattern.permute.xlu0 0
      %1331 = vperm.xlu0 %1330, %v399
      %v1332 = vpop.permute.xlu0 %1331
      %1335 = vset.pattern.permute.xlu0 0
      %1336 = vperm.xlu0 %1335, %v400
      %v1337 = vpop.permute.xlu0 %1336
      %1340 = vset.pattern.permute.xlu0 0
      %1341 = vperm.xlu0 %1340, %v401
      %v1342 = vpop.permute.xlu0 %1341
      %1345 = vset.pattern.permute.xlu0 0
      %1346 = vperm.xlu0 %1345, %v402
      %v1347 = vpop.permute.xlu0 %1346
      %1350 = vset.pattern.permute.xlu0 0
      %1351 = vperm.xlu0 %1350, %v403
      %v1352 = vpop.permute.xlu0 %1351
      %1355 = vset.pattern.permute.xlu0 0
      %1356 = vperm.xlu0 %1355, %v404
      %v1357 = vpop.permute.xlu0 %1356
      %1360 = vset.pattern.permute.xlu0 0
      %1361 = vperm.xlu0 %1360, %v405
      %v1362 = vpop.permute.xlu0 %1361
      %1365 = vset.pattern.permute.xlu0 0
      %1366 = vperm.xlu0 %1365, %v406
      %v1367 = vpop.permute.xlu0 %1366
      %1370 = vset.pattern.permute.xlu0 0
      %1371 = vperm.xlu0 %1370, %v407
      %v1372 = vpop.permute.xlu0 %1371
      %1375 = vset.pattern.permute.xlu0 0
      %1376 = vperm.xlu0 %1375, %v408
      %v1377 = vpop.permute.xlu0 %1376
      %1380 = vset.pattern.permute.xlu0 0
      %1381 = vperm.xlu0 %1380, %v409
      %v1382 = vpop.permute.xlu0 %1381
      %1385 = vset.pattern.permute.xlu0 0
      %1386 = vperm.xlu0 %1385, %v410
      %v1387 = vpop.permute.xlu0 %1386
      %1390 = vset.pattern.permute.xlu0 0
      %1391 = vperm.xlu0 %1390, %v411
      %v1392 = vpop.permute.xlu0 %1391
      %1395 = vset.pattern.permute.xlu0 0
      %1396 = vperm.xlu0 %1395, %v412
      %v1397 = vpop.permute.xlu0 %1396
      %1400 = vset.pattern.permute.xlu0 0
      %1401 = vperm.xlu0 %1400, %v413
      %v1402 = vpop.permute.xlu0 %1401
      %1405 = vset.pattern.permute.xlu0 0
      %1406 = vperm.xlu0 %1405, %v414
      %v1407 = vpop.permute.xlu0 %1406
      %v1409 = vmul.f32 %v1085, %v1142
      %v1410 = vmul.f32 %v1086, %v1147
      %v1411 = vmul.f32 %v1087, %v1152
      %v1412 = vmul.f32 %v1088, %v1157
      %v1413 = vmul.f32 %v1089, %v1162
      %v1414 = vmul.f32 %v1090, %v1167
      %v1415 = vmul.f32 %v1091, %v1172
      %v1416 = vmul.f32 %v1092, %v1177
      %v1417 = vmul.f32 %v1093, %v1182
      %v1418 = vmul.f32 %v1094, %v1187
      %v1419 = vmul.f32 %v1095, %v1192
      %v1420 = vmul.f32 %v1096, %v1197
      %v1421 = vmul.f32 %v1097, %v1202
      %v1422 = vmul.f32 %v1098, %v1207
      %v1423 = vmul.f32 %v1099, %v1212
      %v1424 = vmul.f32 %v1100, %v1217
      %v1425 = vmul.f32 %v1101, %v1222
      %v1426 = vmul.f32 %v1102, %v1227
      %v1427 = vmul.f32 %v1103, %v1232
      %v1428 = vmul.f32 %v1104, %v1237
      %v1429 = vmul.f32 %v1105, %v1242
      %v1430 = vmul.f32 %v1106, %v1247
      %v1431 = vmul.f32 %v1107, %v1252
      %v1432 = vmul.f32 %v1108, %v1257
      %v1433 = vmul.f32 %v1109, %v1262
      %v1434 = vmul.f32 %v1110, %v1267
      %v1435 = vmul.f32 %v1111, %v1272
      %v1436 = vmul.f32 %v1112, %v1277
      %v1437 = vmul.f32 %v1113, %v1282
      %v1438 = vmul.f32 %v1114, %v1287
      %v1439 = vmul.f32 %v1115, %v1292
      %v1440 = vmul.f32 %v1116, %v1297
      %v1441 = vmul.f32 %v1117, %v1302
      %v1442 = vmul.f32 %v1118, %v1307
      %v1443 = vmul.f32 %v1119, %v1312
      %v1444 = vmul.f32 %v1120, %v1317
      %v1445 = vmul.f32 %v1121, %v1322
      %v1446 = vmul.f32 %v1122, %v1327
      %v1447 = vmul.f32 %v1123, %v1332
      %v1448 = vmul.f32 %v1124, %v1337
      %v1449 = vmul.f32 %v1125, %v1342
      %v1450 = vmul.f32 %v1126, %v1347
      %v1451 = vmul.f32 %v1127, %v1352
      %v1452 = vmul.f32 %v1128, %v1357
      %v1453 = vmul.f32 %v1129, %v1362
      %v1454 = vmul.f32 %v1130, %v1367
      %v1455 = vmul.f32 %v1131, %v1372
      %v1456 = vmul.f32 %v1132, %v1377
      %v1457 = vmul.f32 %v1133, %v1382
      %v1458 = vmul.f32 %v1134, %v1387
      %v1459 = vmul.f32 %v1135, %v1392
      %v1460 = vmul.f32 %v1136, %v1397
      %v1461 = vmul.f32 %v1137, %v1402
      %v1462 = vmul.f32 %v1138, %v1407
      %1463 = vst.msk [vmem:[#allocation2] sm:$0xff] %vm425, 0
      %1464 = vst.msk [vmem:[#allocation2 + $0x8] sm:$0xff] %vm425, 0
      %1465 = vst.msk [vmem:[#allocation2 + $0xe8] sm:$0xff] %vm425, 0
      %1466 = vst.msk [vmem:[#allocation2 + $0xf0] sm:$0xff] %vm425, 0
      %v1467 = vpack.c.bf16 %v1410, %v1409
      %v1468 = vpack.c.bf16 %v1412, %v1411
      %v1469 = vpack.c.bf16 %v1414, %v1413
      %v1470 = vpack.c.bf16 %v1416, %v1415
      %v1471 = vpack.c.bf16 %v1418, %v1417
      %v1472 = vpack.c.bf16 %v1420, %v1419
      %v1473 = vpack.c.bf16 %v1422, %v1421
      %v1474 = vpack.c.bf16 %v1424, %v1423
      %v1475 = vpack.c.bf16 %v1426, %v1425
      %v1476 = vpack.c.bf16 %v1428, %v1427
      %v1477 = vpack.c.bf16 %v1430, %v1429
      %v1478 = vpack.c.bf16 %v1432, %v1431
      %v1479 = vpack.c.bf16 %v1434, %v1433
      %v1480 = vpack.c.bf16 %v1436, %v1435
      %v1481 = vpack.c.bf16 %v1438, %v1437
      %v1482 = vpack.c.bf16 %v1440, %v1439
      %v1483 = vpack.c.bf16 %v1442, %v1441
      %v1484 = vpack.c.bf16 %v1444, %v1443
      %v1485 = vpack.c.bf16 %v1446, %v1445
      %v1486 = vpack.c.bf16 %v1448, %v1447
      %v1487 = vpack.c.bf16 %v1450, %v1449
      %v1488 = vpack.c.bf16 %v1452, %v1451
      %v1489 = vpack.c.bf16 %v1454, %v1453
      %v1490 = vpack.c.bf16 %v1456, %v1455
      %v1491 = vpack.c.bf16 %v1458, %v1457
      %v1492 = vpack.c.bf16 %v1460, %v1459
      %v1493 = vpack.c.bf16 %v1462, %v1461
      %1494 = vst.msk [vmem:[#allocation2 + $0x10] sm:$0xff] %vm425, %v1467
      %1495 = vst.msk [vmem:[#allocation2 + $0x18] sm:$0xff] %vm425, %v1468
      %1496 = vst.msk [vmem:[#allocation2 + $0x20] sm:$0xff] %vm425, %v1469
      %1497 = vst.msk [vmem:[#allocation2 + $0x28] sm:$0xff] %vm425, %v1470
      %1498 = vst.msk [vmem:[#allocation2 + $0x30] sm:$0xff] %vm425, %v1471
      %1499 = vst.msk [vmem:[#allocation2 + $0x38] sm:$0xff] %vm425, %v1472
      %1500 = vst.msk [vmem:[#allocation2 + $0x40] sm:$0xff] %vm425, %v1473
      %1501 = vst.msk [vmem:[#allocation2 + $0x48] sm:$0xff] %vm425, %v1474
      %1502 = vst.msk [vmem:[#allocation2 + $0x50] sm:$0xff] %vm425, %v1475
      %1503 = vst.msk [vmem:[#allocation2 + $0x58] sm:$0xff] %vm425, %v1476
      %1504 = vst.msk [vmem:[#allocation2 + $0x60] sm:$0xff] %vm425, %v1477
      %1505 = vst.msk [vmem:[#allocation2 + $0x68] sm:$0xff] %vm425, %v1478
      %1506 = vst.msk [vmem:[#allocation2 + $0x70] sm:$0xff] %vm425, %v1479
      %1507 = vst.msk [vmem:[#allocation2 + $0x78] sm:$0xff] %vm425, %v1480
      %1508 = vst.msk [vmem:[#allocation2 + $0x80] sm:$0xff] %vm425, %v1481
      %1509 = vst.msk [vmem:[#allocation2 + $0x88] sm:$0xff] %vm425, %v1482
      %1510 = vst.msk [vmem:[#allocation2 + $0x90] sm:$0xff] %vm425, %v1483
      %1511 = vst.msk [vmem:[#allocation2 + $0x98] sm:$0xff] %vm425, %v1484
      %1512 = vst.msk [vmem:[#allocation2 + $0xa0] sm:$0xff] %vm425, %v1485
      %1513 = vst.msk [vmem:[#allocation2 + $0xa8] sm:$0xff] %vm425, %v1486
      %1514 = vst.msk [vmem:[#allocation2 + $0xb0] sm:$0xff] %vm425, %v1487
      %1515 = vst.msk [vmem:[#allocation2 + $0xb8] sm:$0xff] %vm425, %v1488
      %1516 = vst.msk [vmem:[#allocation2 + $0xc0] sm:$0xff] %vm425, %v1489
      %1517 = vst.msk [vmem:[#allocation2 + $0xc8] sm:$0xff] %vm425, %v1490
      %1518 = vst.msk [vmem:[#allocation2 + $0xd0] sm:$0xff] %vm425, %v1491
      %1519 = vst.msk [vmem:[#allocation2 + $0xd8] sm:$0xff] %vm425, %v1492
      %1520 = vst.msk [vmem:[#allocation2 + $0xe0] sm:$0xff] %vm425, %v1493
      %v1521 = vld [vmem:[#allocation2] sm:$0xf8]
      %v1522 = vld [vmem:[#allocation2 + $0x8] sm:$0xff]
      %v1523 = vld [vmem:[#allocation2 + $0x10] sm:$0xff]
      %v1524 = vld [vmem:[#allocation2 + $0x18] sm:$0xff]
      %v1525 = vld [vmem:[#allocation2 + $0x20] sm:$0xff]
      %v1526 = vld [vmem:[#allocation2 + $0x28] sm:$0xff]
      %v1527 = vld [vmem:[#allocation2 + $0x30] sm:$0xff]
      %v1528 = vld [vmem:[#allocation2 + $0x38] sm:$0xff]
      %v1529 = vld [vmem:[#allocation2 + $0x40] sm:$0xff]
      %v1530 = vld [vmem:[#allocation2 + $0x48] sm:$0xff]
      %v1531 = vld [vmem:[#allocation2 + $0x50] sm:$0xff]
      %v1532 = vld [vmem:[#allocation2 + $0x58] sm:$0xff]
      %v1533 = vld [vmem:[#allocation2 + $0x60] sm:$0xff]
      %v1534 = vld [vmem:[#allocation2 + $0x68] sm:$0xff]
      %v1535 = vld [vmem:[#allocation2 + $0x70] sm:$0xff]
      %v1536 = vld [vmem:[#allocation2 + $0x78] sm:$0xff]
      %v1537 = vld [vmem:[#allocation2 + $0x80] sm:$0xff]
      %v1538 = vld [vmem:[#allocation2 + $0x88] sm:$0xff]
      %v1539 = vld [vmem:[#allocation2 + $0x90] sm:$0xff]
      %v1540 = vld [vmem:[#allocation2 + $0x98] sm:$0xff]
      %v1541 = vld [vmem:[#allocation2 + $0xa0] sm:$0xff]
      %v1542 = vld [vmem:[#allocation2 + $0xa8] sm:$0xff]
      %v1543 = vld [vmem:[#allocation2 + $0xb0] sm:$0xff]
      %v1544 = vld [vmem:[#allocation2 + $0xb8] sm:$0xff]
      %v1545 = vld [vmem:[#allocation2 + $0xc0] sm:$0xff]
      %v1546 = vld [vmem:[#allocation2 + $0xc8] sm:$0xff]
      %v1547 = vld [vmem:[#allocation2 + $0xd0] sm:$0xff]
      %v1548 = vld [vmem:[#allocation2 + $0xd8] sm:$0xf]
      %v1549 = vld [vmem:[#allocation2] sm:$0xf0]
      %v1550 = vld [vmem:[#allocation2 + $0xd8] sm:$0x1f]
      %v1551 = vld [vmem:[#allocation2 + $0x8] sm:$0x80]
      %v1552 = vld [vmem:[#allocation2 + $0xd8] sm:$0xff]
      %v1553 = vld [vmem:[#allocation2 + $0xe0] sm:$0xff]
      %v1554 = vld [vmem:[#allocation2 + $0xe8] sm:$0x1]
      %v1555 = vld [vmem:[#allocation2 + $0x18] sm:$0xf8]
      %v1556 = vld [vmem:[#allocation2 + $0xe8] sm:$0xff]
      %v1557 = vld [vmem:[#allocation2 + $0xf0] sm:$0xf]
      %v1558 = vld [vmem:[#allocation2 + $0x18] sm:$0xf0]
      %v1559 = vld [vmem:[#allocation2 + $0xf0] sm:$0x1f]
      %vm1560 = vsmask.f32 7424
      %v1562 = vshrl.u32 %v1549, 16
      %v1564 = vshll.u32 %v1549, 16
      %v1566 = vrot.slane %v1564, 1
      %v1567 = vor.u32 %v1562, %v1566
      %v1569 = vshll.u32 %v1522, 16
      %v1571 = vrot.slane %v1569, 1
      %v1572 = vsel %vm1560, %v1567, %v1571
      %v1573 = vshrl.u32 %v1522, 16
      %v1575 = vor.u32 %v1573, %v1571
      %v1577 = vshll.u32 %v1523, 16
      %v1579 = vrot.slane %v1577, 1
      %v1580 = vsel %vm1560, %v1575, %v1579
      %v1581 = vshrl.u32 %v1523, 16
      %v1583 = vor.u32 %v1581, %v1579
      %v1585 = vshll.u32 %v1524, 16
      %v1587 = vrot.slane %v1585, 1
      %v1588 = vsel %vm1560, %v1583, %v1587
      %v1589 = vshrl.u32 %v1524, 16
      %v1591 = vor.u32 %v1589, %v1587
      %v1593 = vshll.u32 %v1525, 16
      %v1595 = vrot.slane %v1593, 1
      %v1596 = vsel %vm1560, %v1591, %v1595
      %v1597 = vshrl.u32 %v1525, 16
      %v1599 = vor.u32 %v1597, %v1595
      %v1601 = vshll.u32 %v1526, 16
      %v1603 = vrot.slane %v1601, 1
      %v1604 = vsel %vm1560, %v1599, %v1603
      %v1605 = vshrl.u32 %v1526, 16
      %v1607 = vor.u32 %v1605, %v1603
      %v1609 = vshll.u32 %v1527, 16
      %v1611 = vrot.slane %v1609, 1
      %v1612 = vsel %vm1560, %v1607, %v1611
      %v1613 = vshrl.u32 %v1527, 16
      %v1615 = vor.u32 %v1613, %v1611
      %v1617 = vshll.u32 %v1528, 16
      %v1619 = vrot.slane %v1617, 1
      %v1620 = vsel %vm1560, %v1615, %v1619
      %v1621 = vshrl.u32 %v1528, 16
      %v1623 = vor.u32 %v1621, %v1619
      %v1625 = vshll.u32 %v1529, 16
      %v1627 = vrot.slane %v1625, 1
      %v1628 = vsel %vm1560, %v1623, %v1627
      %v1629 = vshrl.u32 %v1529, 16
      %v1631 = vor.u32 %v1629, %v1627
      %v1633 = vshll.u32 %v1530, 16
      %v1635 = vrot.slane %v1633, 1
      %v1636 = vsel %vm1560, %v1631, %v1635
      %v1637 = vshrl.u32 %v1530, 16
      %v1639 = vor.u32 %v1637, %v1635
      %v1641 = vshll.u32 %v1531, 16
      %v1643 = vrot.slane %v1641, 1
      %v1644 = vsel %vm1560, %v1639, %v1643
      %v1645 = vshrl.u32 %v1531, 16
      %v1647 = vor.u32 %v1645, %v1643
      %v1649 = vshll.u32 %v1532, 16
      %v1651 = vrot.slane %v1649, 1
      %v1652 = vsel %vm1560, %v1647, %v1651
      %v1653 = vshrl.u32 %v1532, 16
      %v1655 = vor.u32 %v1653, %v1651
      %v1657 = vshll.u32 %v1533, 16
      %v1659 = vrot.slane %v1657, 1
      %v1660 = vsel %vm1560, %v1655, %v1659
      %v1661 = vshrl.u32 %v1533, 16
      %v1663 = vor.u32 %v1661, %v1659
      %v1665 = vshll.u32 %v1534, 16
      %v1667 = vrot.slane %v1665, 1
      %v1668 = vsel %vm1560, %v1663, %v1667
      %v1669 = vshrl.u32 %v1534, 16
      %v1671 = vor.u32 %v1669, %v1667
      %v1673 = vshll.u32 %v1535, 16
      %v1675 = vrot.slane %v1673, 1
      %v1676 = vsel %vm1560, %v1671, %v1675
      %v1677 = vshrl.u32 %v1535, 16
      %v1679 = vor.u32 %v1677, %v1675
      %v1681 = vshll.u32 %v1536, 16
      %v1683 = vrot.slane %v1681, 1
      %v1684 = vsel %vm1560, %v1679, %v1683
      %v1685 = vshrl.u32 %v1536, 16
      %v1687 = vor.u32 %v1685, %v1683
      %v1689 = vshll.u32 %v1537, 16
      %v1691 = vrot.slane %v1689, 1
      %v1692 = vsel %vm1560, %v1687, %v1691
      %v1693 = vshrl.u32 %v1537, 16
      %v1695 = vor.u32 %v1693, %v1691
      %v1697 = vshll.u32 %v1538, 16
      %v1699 = vrot.slane %v1697, 1
      %v1700 = vsel %vm1560, %v1695, %v1699
      %v1701 = vshrl.u32 %v1538, 16
      %v1703 = vor.u32 %v1701, %v1699
      %v1705 = vshll.u32 %v1539, 16
      %v1707 = vrot.slane %v1705, 1
      %v1708 = vsel %vm1560, %v1703, %v1707
      %v1709 = vshrl.u32 %v1539, 16
      %v1711 = vor.u32 %v1709, %v1707
      %v1713 = vshll.u32 %v1540, 16
      %v1715 = vrot.slane %v1713, 1
      %v1716 = vsel %vm1560, %v1711, %v1715
      %v1717 = vshrl.u32 %v1540, 16
      %v1719 = vor.u32 %v1717, %v1715
      %v1721 = vshll.u32 %v1541, 16
      %v1723 = vrot.slane %v1721, 1
      %v1724 = vsel %vm1560, %v1719, %v1723
      %v1725 = vshrl.u32 %v1541, 16
      %v1727 = vor.u32 %v1725, %v1723
      %v1729 = vshll.u32 %v1542, 16
      %v1731 = vrot.slane %v1729, 1
      %v1732 = vsel %vm1560, %v1727, %v1731
      %v1733 = vshrl.u32 %v1542, 16
      %v1735 = vor.u32 %v1733, %v1731
      %v1737 = vshll.u32 %v1543, 16
      %v1739 = vrot.slane %v1737, 1
      %v1740 = vsel %vm1560, %v1735, %v1739
      %v1741 = vshrl.u32 %v1543, 16
      %v1743 = vor.u32 %v1741, %v1739
      %v1745 = vshll.u32 %v1544, 16
      %v1747 = vrot.slane %v1745, 1
      %v1748 = vsel %vm1560, %v1743, %v1747
      %v1749 = vshrl.u32 %v1544, 16
      %v1751 = vor.u32 %v1749, %v1747
      %v1753 = vshll.u32 %v1545, 16
      %v1755 = vrot.slane %v1753, 1
      %v1756 = vsel %vm1560, %v1751, %v1755
      %v1757 = vshrl.u32 %v1545, 16
      %v1759 = vor.u32 %v1757, %v1755
      %v1761 = vshll.u32 %v1546, 16
      %v1763 = vrot.slane %v1761, 1
      %v1764 = vsel %vm1560, %v1759, %v1763
      %v1765 = vshrl.u32 %v1546, 16
      %v1767 = vor.u32 %v1765, %v1763
      %v1769 = vshll.u32 %v1547, 16
      %v1771 = vrot.slane %v1769, 1
      %v1772 = vsel %vm1560, %v1767, %v1771
      %v1773 = vshrl.u32 %v1547, 16
      %v1775 = vor.u32 %v1773, %v1771
      %v1777 = vshll.u32 %v1548, 16
      %v1779 = vrot.slane %v1777, 1
      %v1780 = vsel %vm1560, %v1775, %v1779
      %v1781 = vshrl.u32 %v1548, 16
      %v1783 = vor.u32 %v1781, %v1779
      %1784 = vrot.lane.b32.xlu0 %v1572, 64
      %v1785 = vpop.permute.xlu0 %1784
      %1786 = vrot.lane.b32.xlu0 %v1580, 64
      %v1787 = vpop.permute.xlu0 %1786
      %1788 = vrot.lane.b32.xlu0 %v1588, 64
      %v1789 = vpop.permute.xlu0 %1788
      %1790 = vrot.lane.b32.xlu0 %v1596, 64
      %v1791 = vpop.permute.xlu0 %1790
      %1792 = vrot.lane.b32.xlu0 %v1604, 64
      %v1793 = vpop.permute.xlu0 %1792
      %1794 = vrot.lane.b32.xlu0 %v1612, 64
      %v1795 = vpop.permute.xlu0 %1794
      %1796 = vrot.lane.b32.xlu0 %v1620, 64
      %v1797 = vpop.permute.xlu0 %1796
      %1798 = vrot.lane.b32.xlu0 %v1628, 64
      %v1799 = vpop.permute.xlu0 %1798
      %1800 = vrot.lane.b32.xlu0 %v1636, 64
      %v1801 = vpop.permute.xlu0 %1800
      %1802 = vrot.lane.b32.xlu0 %v1644, 64
      %v1803 = vpop.permute.xlu0 %1802
      %1804 = vrot.lane.b32.xlu0 %v1652, 64
      %v1805 = vpop.permute.xlu0 %1804
      %1806 = vrot.lane.b32.xlu0 %v1660, 64
      %v1807 = vpop.permute.xlu0 %1806
      %1808 = vrot.lane.b32.xlu0 %v1668, 64
      %v1809 = vpop.permute.xlu0 %1808
      %1810 = vrot.lane.b32.xlu0 %v1676, 64
      %v1811 = vpop.permute.xlu0 %1810
      %1812 = vrot.lane.b32.xlu0 %v1684, 64
      %v1813 = vpop.permute.xlu0 %1812
      %1814 = vrot.lane.b32.xlu0 %v1692, 64
      %v1815 = vpop.permute.xlu0 %1814
      %1816 = vrot.lane.b32.xlu0 %v1700, 64
      %v1817 = vpop.permute.xlu0 %1816
      %1818 = vrot.lane.b32.xlu0 %v1708, 64
      %v1819 = vpop.permute.xlu0 %1818
      %1820 = vrot.lane.b32.xlu0 %v1716, 64
      %v1821 = vpop.permute.xlu0 %1820
      %1822 = vrot.lane.b32.xlu0 %v1724, 64
      %v1823 = vpop.permute.xlu0 %1822
      %1824 = vrot.lane.b32.xlu0 %v1732, 64
      %v1825 = vpop.permute.xlu0 %1824
      %1826 = vrot.lane.b32.xlu0 %v1740, 64
      %v1827 = vpop.permute.xlu0 %1826
      %1828 = vrot.lane.b32.xlu0 %v1748, 64
      %v1829 = vpop.permute.xlu0 %1828
      %1830 = vrot.lane.b32.xlu0 %v1756, 64
      %v1831 = vpop.permute.xlu0 %1830
      %1832 = vrot.lane.b32.xlu0 %v1764, 64
      %v1833 = vpop.permute.xlu0 %1832
      %1834 = vrot.lane.b32.xlu0 %v1772, 64
      %v1835 = vpop.permute.xlu0 %1834
      %1836 = vrot.lane.b32.xlu0 %v1780, 64
      %v1837 = vpop.permute.xlu0 %1836
      %1838 = vrot.lane.b32.xlu0 %v1783, 64
      %v1839 = vpop.permute.xlu0 %1838
      %vm1868 = vcmask 1046528
      %v1869 = vrot.slane %v1549, 1
      %v1870 = vrot.slane %v1522, 1
      %v1871 = vsel %vm1868, %v1869, %v1870
      %v1872 = vrot.slane %v1523, 1
      %v1873 = vsel %vm1868, %v1870, %v1872
      %v1874 = vrot.slane %v1524, 1
      %v1875 = vsel %vm1868, %v1872, %v1874
      %v1876 = vrot.slane %v1525, 1
      %v1877 = vsel %vm1868, %v1874, %v1876
      %v1878 = vrot.slane %v1526, 1
      %v1879 = vsel %vm1868, %v1876, %v1878
      %v1880 = vrot.slane %v1527, 1
      %v1881 = vsel %vm1868, %v1878, %v1880
      %v1882 = vrot.slane %v1528, 1
      %v1883 = vsel %vm1868, %v1880, %v1882
      %v1884 = vrot.slane %v1529, 1
      %v1885 = vsel %vm1868, %v1882, %v1884
      %v1886 = vrot.slane %v1530, 1
      %v1887 = vsel %vm1868, %v1884, %v1886
      %v1888 = vrot.slane %v1531, 1
      %v1889 = vsel %vm1868, %v1886, %v1888
      %v1890 = vrot.slane %v1532, 1
      %v1891 = vsel %vm1868, %v1888, %v1890
      %v1892 = vrot.slane %v1533, 1
      %v1893 = vsel %vm1868, %v1890, %v1892
      %v1894 = vrot.slane %v1534, 1
      %v1895 = vsel %vm1868, %v1892, %v1894
      %v1896 = vrot.slane %v1535, 1
      %v1897 = vsel %vm1868, %v1894, %v1896
      %v1898 = vrot.slane %v1536, 1
      %v1899 = vsel %vm1868, %v1896, %v1898
      %v1900 = vrot.slane %v1537, 1
      %v1901 = vsel %vm1868, %v1898, %v1900
      %v1902 = vrot.slane %v1538, 1
      %v1903 = vsel %vm1868, %v1900, %v1902
      %v1904 = vrot.slane %v1539, 1
      %v1905 = vsel %vm1868, %v1902, %v1904
      %v1906 = vrot.slane %v1540, 1
      %v1907 = vsel %vm1868, %v1904, %v1906
      %v1908 = vrot.slane %v1541, 1
      %v1909 = vsel %vm1868, %v1906, %v1908
      %v1910 = vrot.slane %v1542, 1
      %v1911 = vsel %vm1868, %v1908, %v1910
      %v1912 = vrot.slane %v1543, 1
      %v1913 = vsel %vm1868, %v1910, %v1912
      %v1914 = vrot.slane %v1544, 1
      %v1915 = vsel %vm1868, %v1912, %v1914
      %v1916 = vrot.slane %v1545, 1
      %v1917 = vsel %vm1868, %v1914, %v1916
      %v1918 = vrot.slane %v1546, 1
      %v1919 = vsel %vm1868, %v1916, %v1918
      %v1920 = vrot.slane %v1547, 1
      %v1921 = vsel %vm1868, %v1918, %v1920
      %v1922 = vrot.slane %v1550, 1
      %v1923 = vsel %vm1868, %v1920, %v1922
      %vm1927 = vcmask 1043456
      %v1928 = vrot.slane %v1551, 4
      %v1929 = vrot.slane %v1523, 4
      %v1930 = vsel %vm1927, %v1928, %v1929
      %v1931 = vrot.slane %v1524, 4
      %v1932 = vsel %vm1927, %v1929, %v1931
      %v1933 = vrot.slane %v1525, 4
      %v1934 = vsel %vm1927, %v1931, %v1933
      %v1935 = vrot.slane %v1526, 4
      %v1936 = vsel %vm1927, %v1933, %v1935
      %v1937 = vrot.slane %v1527, 4
      %v1938 = vsel %vm1927, %v1935, %v1937
      %v1939 = vrot.slane %v1528, 4
      %v1940 = vsel %vm1927, %v1937, %v1939
      %v1941 = vrot.slane %v1529, 4
      %v1942 = vsel %vm1927, %v1939, %v1941
      %v1943 = vrot.slane %v1530, 4
      %v1944 = vsel %vm1927, %v1941, %v1943
      %v1945 = vrot.slane %v1531, 4
      %v1946 = vsel %vm1927, %v1943, %v1945
      %v1947 = vrot.slane %v1532, 4
      %v1948 = vsel %vm1927, %v1945, %v1947
      %v1949 = vrot.slane %v1533, 4
      %v1950 = vsel %vm1927, %v1947, %v1949
      %v1951 = vrot.slane %v1534, 4
      %v1952 = vsel %vm1927, %v1949, %v1951
      %v1953 = vrot.slane %v1535, 4
      %v1954 = vsel %vm1927, %v1951, %v1953
      %v1955 = vrot.slane %v1536, 4
      %v1956 = vsel %vm1927, %v1953, %v1955
      %v1957 = vrot.slane %v1537, 4
      %v1958 = vsel %vm1927, %v1955, %v1957
      %v1959 = vrot.slane %v1538, 4
      %v1960 = vsel %vm1927, %v1957, %v1959
      %v1961 = vrot.slane %v1539, 4
      %v1962 = vsel %vm1927, %v1959, %v1961
      %v1963 = vrot.slane %v1540, 4
      %v1964 = vsel %vm1927, %v1961, %v1963
      %v1965 = vrot.slane %v1541, 4
      %v1966 = vsel %vm1927, %v1963, %v1965
      %v1967 = vrot.slane %v1542, 4
      %v1968 = vsel %vm1927, %v1965, %v1967
      %v1969 = vrot.slane %v1543, 4
      %v1970 = vsel %vm1927, %v1967, %v1969
      %v1971 = vrot.slane %v1544, 4
      %v1972 = vsel %vm1927, %v1969, %v1971
      %v1973 = vrot.slane %v1545, 4
      %v1974 = vsel %vm1927, %v1971, %v1973
      %v1975 = vrot.slane %v1546, 4
      %v1976 = vsel %vm1927, %v1973, %v1975
      %v1977 = vrot.slane %v1547, 4
      %v1978 = vsel %vm1927, %v1975, %v1977
      %v1979 = vrot.slane %v1552, 4
      %v1980 = vsel %vm1927, %v1977, %v1979
      %v1981 = vrot.slane %v1553, 4
      %v1982 = vsel %vm1927, %v1979, %v1981
      %1983 = vrot.lane.b32.xlu0 %v1930, 64
      %v1984 = vpop.permute.xlu0 %1983
      %1985 = vrot.lane.b32.xlu0 %v1932, 64
      %v1986 = vpop.permute.xlu0 %1985
      %1987 = vrot.lane.b32.xlu0 %v1934, 64
      %v1988 = vpop.permute.xlu0 %1987
      %1989 = vrot.lane.b32.xlu0 %v1936, 64
      %v1990 = vpop.permute.xlu0 %1989
      %1991 = vrot.lane.b32.xlu0 %v1938, 64
      %v1992 = vpop.permute.xlu0 %1991
      %1993 = vrot.lane.b32.xlu0 %v1940, 64
      %v1994 = vpop.permute.xlu0 %1993
      %1995 = vrot.lane.b32.xlu0 %v1942, 64
      %v1996 = vpop.permute.xlu0 %1995
      %1997 = vrot.lane.b32.xlu0 %v1944, 64
      %v1998 = vpop.permute.xlu0 %1997
      %1999 = vrot.lane.b32.xlu0 %v1946, 64
      %v2000 = vpop.permute.xlu0 %1999
      %2001 = vrot.lane.b32.xlu0 %v1948, 64
      %v2002 = vpop.permute.xlu0 %2001
      %2003 = vrot.lane.b32.xlu0 %v1950, 64
      %v2004 = vpop.permute.xlu0 %2003
      %2005 = vrot.lane.b32.xlu0 %v1952, 64
      %v2006 = vpop.permute.xlu0 %2005
      %2007 = vrot.lane.b32.xlu0 %v1954, 64
      %v2008 = vpop.permute.xlu0 %2007
      %2009 = vrot.lane.b32.xlu0 %v1956, 64
      %v2010 = vpop.permute.xlu0 %2009
      %2011 = vrot.lane.b32.xlu0 %v1958, 64
      %v2012 = vpop.permute.xlu0 %2011
      %2013 = vrot.lane.b32.xlu0 %v1960, 64
      %v2014 = vpop.permute.xlu0 %2013
      %2015 = vrot.lane.b32.xlu0 %v1962, 64
      %v2016 = vpop.permute.xlu0 %2015
      %2017 = vrot.lane.b32.xlu0 %v1964, 64
      %v2018 = vpop.permute.xlu0 %2017
      %2019 = vrot.lane.b32.xlu0 %v1966, 64
      %v2020 = vpop.permute.xlu0 %2019
      %2021 = vrot.lane.b32.xlu0 %v1968, 64
      %v2022 = vpop.permute.xlu0 %2021
      %2023 = vrot.lane.b32.xlu0 %v1970, 64
      %v2024 = vpop.permute.xlu0 %2023
      %2025 = vrot.lane.b32.xlu0 %v1972, 64
      %v2026 = vpop.permute.xlu0 %2025
      %2027 = vrot.lane.b32.xlu0 %v1974, 64
      %v2028 = vpop.permute.xlu0 %2027
      %2029 = vrot.lane.b32.xlu0 %v1976, 64
      %v2030 = vpop.permute.xlu0 %2029
      %2031 = vrot.lane.b32.xlu0 %v1978, 64
      %v2032 = vpop.permute.xlu0 %2031
      %2033 = vrot.lane.b32.xlu0 %v1980, 64
      %v2034 = vpop.permute.xlu0 %2033
      %2035 = vrot.lane.b32.xlu0 %v1982, 64
      %v2036 = vpop.permute.xlu0 %2035
      %2037 = vrot.lane.b32.xlu0 %v1981, 64
      %v2038 = vpop.permute.xlu0 %2037
      %vm2039 = vsmask.f32 3328
      %v2040 = vrot.slane %v1581, 4
      %v2041 = vrot.slane %v1577, 5
      %v2042 = vor.u32 %v2040, %v2041
      %v2043 = vrot.slane %v1589, 4
      %v2044 = vrot.slane %v1585, 5
      %v2045 = vor.u32 %v2043, %v2044
      %v2046 = vsel %vm2039, %v2042, %v2045
      %v2047 = vrot.slane %v1597, 4
      %v2048 = vrot.slane %v1593, 5
      %v2049 = vor.u32 %v2047, %v2048
      %v2050 = vsel %vm2039, %v2045, %v2049
      %v2051 = vrot.slane %v1605, 4
      %v2052 = vrot.slane %v1601, 5
      %v2053 = vor.u32 %v2051, %v2052
      %v2054 = vsel %vm2039, %v2049, %v2053
      %v2055 = vrot.slane %v1613, 4
      %v2056 = vrot.slane %v1609, 5
      %v2057 = vor.u32 %v2055, %v2056
      %v2058 = vsel %vm2039, %v2053, %v2057
      %v2059 = vrot.slane %v1621, 4
      %v2060 = vrot.slane %v1617, 5
      %v2061 = vor.u32 %v2059, %v2060
      %v2062 = vsel %vm2039, %v2057, %v2061
      %v2063 = vrot.slane %v1629, 4
      %v2064 = vrot.slane %v1625, 5
      %v2065 = vor.u32 %v2063, %v2064
      %v2066 = vsel %vm2039, %v2061, %v2065
      %v2067 = vrot.slane %v1637, 4
      %v2068 = vrot.slane %v1633, 5
      %v2069 = vor.u32 %v2067, %v2068
      %v2070 = vsel %vm2039, %v2065, %v2069
      %v2071 = vrot.slane %v1645, 4
      %v2072 = vrot.slane %v1641, 5
      %v2073 = vor.u32 %v2071, %v2072
      %v2074 = vsel %vm2039, %v2069, %v2073
      %v2075 = vrot.slane %v1653, 4
      %v2076 = vrot.slane %v1649, 5
      %v2077 = vor.u32 %v2075, %v2076
      %v2078 = vsel %vm2039, %v2073, %v2077
      %v2079 = vrot.slane %v1661, 4
      %v2080 = vrot.slane %v1657, 5
      %v2081 = vor.u32 %v2079, %v2080
      %v2082 = vsel %vm2039, %v2077, %v2081
      %v2083 = vrot.slane %v1669, 4
      %v2084 = vrot.slane %v1665, 5
      %v2085 = vor.u32 %v2083, %v2084
      %v2086 = vsel %vm2039, %v2081, %v2085
      %v2087 = vrot.slane %v1677, 4
      %v2088 = vrot.slane %v1673, 5
      %v2089 = vor.u32 %v2087, %v2088
      %v2090 = vsel %vm2039, %v2085, %v2089
      %v2091 = vrot.slane %v1685, 4
      %v2092 = vrot.slane %v1681, 5
      %v2093 = vor.u32 %v2091, %v2092
      %v2094 = vsel %vm2039, %v2089, %v2093
      %v2095 = vrot.slane %v1693, 4
      %v2096 = vrot.slane %v1689, 5
      %v2097 = vor.u32 %v2095, %v2096
      %v2098 = vsel %vm2039, %v2093, %v2097
      %v2099 = vrot.slane %v1701, 4
      %v2100 = vrot.slane %v1697, 5
      %v2101 = vor.u32 %v2099, %v2100
      %v2102 = vsel %vm2039, %v2097, %v2101
      %v2103 = vrot.slane %v1709, 4
      %v2104 = vrot.slane %v1705, 5
      %v2105 = vor.u32 %v2103, %v2104
      %v2106 = vsel %vm2039, %v2101, %v2105
      %v2107 = vrot.slane %v1717, 4
      %v2108 = vrot.slane %v1713, 5
      %v2109 = vor.u32 %v2107, %v2108
      %v2110 = vsel %vm2039, %v2105, %v2109
      %v2111 = vrot.slane %v1725, 4
      %v2112 = vrot.slane %v1721, 5
      %v2113 = vor.u32 %v2111, %v2112
      %v2114 = vsel %vm2039, %v2109, %v2113
      %v2115 = vrot.slane %v1733, 4
      %v2116 = vrot.slane %v1729, 5
      %v2117 = vor.u32 %v2115, %v2116
      %v2118 = vsel %vm2039, %v2113, %v2117
      %v2119 = vrot.slane %v1741, 4
      %v2120 = vrot.slane %v1737, 5
      %v2121 = vor.u32 %v2119, %v2120
      %v2122 = vsel %vm2039, %v2117, %v2121
      %v2123 = vrot.slane %v1749, 4
      %v2124 = vrot.slane %v1745, 5
      %v2125 = vor.u32 %v2123, %v2124
      %v2126 = vsel %vm2039, %v2121, %v2125
      %v2127 = vrot.slane %v1757, 4
      %v2128 = vrot.slane %v1753, 5
      %v2129 = vor.u32 %v2127, %v2128
      %v2130 = vsel %vm2039, %v2125, %v2129
      %v2131 = vrot.slane %v1765, 4
      %v2132 = vrot.slane %v1761, 5
      %v2133 = vor.u32 %v2131, %v2132
      %v2134 = vsel %vm2039, %v2129, %v2133
      %v2135 = vrot.slane %v1773, 4
      %v2136 = vrot.slane %v1769, 5
      %v2137 = vor.u32 %v2135, %v2136
      %v2138 = vsel %vm2039, %v2133, %v2137
      %v2140 = vshrl.u32 %v1552, 16
      %v2142 = vrot.slane %v2140, 4
      %v2143 = vshll.u32 %v1552, 16
      %v2145 = vrot.slane %v2143, 5
      %v2146 = vor.u32 %v2142, %v2145
      %v2147 = vsel %vm2039, %v2137, %v2146
      %v2149 = vshrl.u32 %v1553, 16
      %v2151 = vrot.slane %v2149, 4
      %v2152 = vshll.u32 %v1553, 16
      %v2154 = vrot.slane %v2152, 5
      %v2155 = vor.u32 %v2151, %v2154
      %v2156 = vsel %vm2039, %v2146, %v2155
      %vm2158 = vcmask 1042432
      %v2159 = vrot.slane %v1523, 5
      %v2160 = vrot.slane %v1524, 5
      %v2161 = vsel %vm2158, %v2159, %v2160
      %v2162 = vrot.slane %v1525, 5
      %v2163 = vsel %vm2158, %v2160, %v2162
      %v2164 = vrot.slane %v1526, 5
      %v2165 = vsel %vm2158, %v2162, %v2164
      %v2166 = vrot.slane %v1527, 5
      %v2167 = vsel %vm2158, %v2164, %v2166
      %v2168 = vrot.slane %v1528, 5
      %v2169 = vsel %vm2158, %v2166, %v2168
      %v2170 = vrot.slane %v1529, 5
      %v2171 = vsel %vm2158, %v2168, %v2170
      %v2172 = vrot.slane %v1530, 5
      %v2173 = vsel %vm2158, %v2170, %v2172
      %v2174 = vrot.slane %v1531, 5
      %v2175 = vsel %vm2158, %v2172, %v2174
      %v2176 = vrot.slane %v1532, 5
      %v2177 = vsel %vm2158, %v2174, %v2176
      %v2178 = vrot.slane %v1533, 5
      %v2179 = vsel %vm2158, %v2176, %v2178
      %v2180 = vrot.slane %v1534, 5
      %v2181 = vsel %vm2158, %v2178, %v2180
      %v2182 = vrot.slane %v1535, 5
      %v2183 = vsel %vm2158, %v2180, %v2182
      %v2184 = vrot.slane %v1536, 5
      %v2185 = vsel %vm2158, %v2182, %v2184
      %v2186 = vrot.slane %v1537, 5
      %v2187 = vsel %vm2158, %v2184, %v2186
      %v2188 = vrot.slane %v1538, 5
      %v2189 = vsel %vm2158, %v2186, %v2188
      %v2190 = vrot.slane %v1539, 5
      %v2191 = vsel %vm2158, %v2188, %v2190
      %v2192 = vrot.slane %v1540, 5
      %v2193 = vsel %vm2158, %v2190, %v2192
      %v2194 = vrot.slane %v1541, 5
      %v2195 = vsel %vm2158, %v2192, %v2194
      %v2196 = vrot.slane %v1542, 5
      %v2197 = vsel %vm2158, %v2194, %v2196
      %v2198 = vrot.slane %v1543, 5
      %v2199 = vsel %vm2158, %v2196, %v2198
      %v2200 = vrot.slane %v1544, 5
      %v2201 = vsel %vm2158, %v2198, %v2200
      %v2202 = vrot.slane %v1545, 5
      %v2203 = vsel %vm2158, %v2200, %v2202
      %v2204 = vrot.slane %v1546, 5
      %v2205 = vsel %vm2158, %v2202, %v2204
      %v2206 = vrot.slane %v1547, 5
      %v2207 = vsel %vm2158, %v2204, %v2206
      %v2208 = vrot.slane %v1552, 5
      %v2209 = vsel %vm2158, %v2206, %v2208
      %v2210 = vrot.slane %v1553, 5
      %v2211 = vsel %vm2158, %v2208, %v2210
      %v2212 = vrot.slane %v1554, 5
      %v2213 = vsel %vm2158, %v2210, %v2212
      %2214 = vrot.lane.b32.xlu0 %v2159, 64
      %v2215 = vpop.permute.xlu0 %2214
      %2216 = vrot.lane.b32.xlu0 %v2161, 64
      %v2217 = vpop.permute.xlu0 %2216
      %2218 = vrot.lane.b32.xlu0 %v2163, 64
      %v2219 = vpop.permute.xlu0 %2218
      %2220 = vrot.lane.b32.xlu0 %v2165, 64
      %v2221 = vpop.permute.xlu0 %2220
      %2222 = vrot.lane.b32.xlu0 %v2167, 64
      %v2223 = vpop.permute.xlu0 %2222
      %2224 = vrot.lane.b32.xlu0 %v2169, 64
      %v2225 = vpop.permute.xlu0 %2224
      %2226 = vrot.lane.b32.xlu0 %v2171, 64
      %v2227 = vpop.permute.xlu0 %2226
      %2228 = vrot.lane.b32.xlu0 %v2173, 64
      %v2229 = vpop.permute.xlu0 %2228
      %2230 = vrot.lane.b32.xlu0 %v2175, 64
      %v2231 = vpop.permute.xlu0 %2230
      %2232 = vrot.lane.b32.xlu0 %v2177, 64
      %v2233 = vpop.permute.xlu0 %2232
      %2234 = vrot.lane.b32.xlu0 %v2179, 64
      %v2235 = vpop.permute.xlu0 %2234
      %2236 = vrot.lane.b32.xlu0 %v2181, 64
      %v2237 = vpop.permute.xlu0 %2236
      %2238 = vrot.lane.b32.xlu0 %v2183, 64
      %v2239 = vpop.permute.xlu0 %2238
      %2240 = vrot.lane.b32.xlu0 %v2185, 64
      %v2241 = vpop.permute.xlu0 %2240
      %2242 = vrot.lane.b32.xlu0 %v2187, 64
      %v2243 = vpop.permute.xlu0 %2242
      %2244 = vrot.lane.b32.xlu0 %v2189, 64
      %v2245 = vpop.permute.xlu0 %2244
      %2246 = vrot.lane.b32.xlu0 %v2191, 64
      %v2247 = vpop.permute.xlu0 %2246
      %2248 = vrot.lane.b32.xlu0 %v2193, 64
      %v2249 = vpop.permute.xlu0 %2248
      %2250 = vrot.lane.b32.xlu0 %v2195, 64
      %v2251 = vpop.permute.xlu0 %2250
      %2252 = vrot.lane.b32.xlu0 %v2197, 64
      %v2253 = vpop.permute.xlu0 %2252
      %2254 = vrot.lane.b32.xlu0 %v2199, 64
      %v2255 = vpop.permute.xlu0 %2254
      %2256 = vrot.lane.b32.xlu0 %v2201, 64
      %v2257 = vpop.permute.xlu0 %2256
      %2258 = vrot.lane.b32.xlu0 %v2203, 64
      %v2259 = vpop.permute.xlu0 %2258
      %2260 = vrot.lane.b32.xlu0 %v2205, 64
      %v2261 = vpop.permute.xlu0 %2260
      %2262 = vrot.lane.b32.xlu0 %v2207, 64
      %v2263 = vpop.permute.xlu0 %2262
      %2264 = vrot.lane.b32.xlu0 %v2209, 64
      %v2265 = vpop.permute.xlu0 %2264
      %2266 = vrot.lane.b32.xlu0 %v2211, 64
      %v2267 = vpop.permute.xlu0 %2266
      %2268 = vrot.lane.b32.xlu0 %v2213, 64
      %v2269 = vpop.permute.xlu0 %2268
      %v2271 = vshrl.u32 %v1558, 16
      %v2273 = vshll.u32 %v1558, 16
      %v2275 = vrot.slane %v2273, 1
      %v2276 = vor.u32 %v2271, %v2275
      %v2277 = vsel %vm1560, %v2276, %v1595
      %v2278 = vrot.slane %v2143, 1
      %v2279 = vsel %vm1560, %v1775, %v2278
      %v2280 = vor.u32 %v2140, %v2278
      %v2281 = vrot.slane %v2152, 1
      %v2282 = vsel %vm1560, %v2280, %v2281
      %v2283 = vor.u32 %v2149, %v2281
      %v2285 = vshll.u32 %v1556, 16
      %v2287 = vrot.slane %v2285, 1
      %v2288 = vsel %vm1560, %v2283, %v2287
      %v2289 = vshrl.u32 %v1556, 16
      %v2291 = vor.u32 %v2289, %v2287
      %v2293 = vshll.u32 %v1557, 16
      %v2295 = vrot.slane %v2293, 1
      %v2296 = vsel %vm1560, %v2291, %v2295
      %v2297 = vshrl.u32 %v1557, 16
      %v2299 = vor.u32 %v2297, %v2295
      %2300 = vrot.lane.b32.xlu0 %v2277, 64
      %v2301 = vpop.permute.xlu0 %2300
      %2302 = vrot.lane.b32.xlu0 %v2279, 64
      %v2303 = vpop.permute.xlu0 %2302
      %2304 = vrot.lane.b32.xlu0 %v2282, 64
      %v2305 = vpop.permute.xlu0 %2304
      %2306 = vrot.lane.b32.xlu0 %v2288, 64
      %v2307 = vpop.permute.xlu0 %2306
      %2308 = vrot.lane.b32.xlu0 %v2296, 64
      %v2309 = vpop.permute.xlu0 %2308
      %2310 = vrot.lane.b32.xlu0 %v2299, 64
      %v2311 = vpop.permute.xlu0 %2310
      %v2315 = vrot.slane %v1558, 1
      %v2316 = vsel %vm1868, %v2315, %v1876
      %v2317 = vrot.slane %v1552, 1
      %v2318 = vsel %vm1868, %v1920, %v2317
      %v2319 = vrot.slane %v1553, 1
      %v2320 = vsel %vm1868, %v2317, %v2319
      %v2321 = vrot.slane %v1556, 1
      %v2322 = vsel %vm1868, %v2319, %v2321
      %v2323 = vrot.slane %v1559, 1
      %v2324 = vsel %vm1868, %v2321, %v2323
      %v2327 = vsel %vm425, %v1521, %v1785
      %v2329 = vsel %vm425, %v1522, %v1787
      %v2331 = vsel %vm425, %v1523, %v1789
      %v2333 = vsel %vm425, %v1524, %v1791
      %v2335 = vsel %vm425, %v1525, %v1793
      %v2337 = vsel %vm425, %v1526, %v1795
      %v2339 = vsel %vm425, %v1527, %v1797
      %v2341 = vsel %vm425, %v1528, %v1799
      %v2343 = vsel %vm425, %v1529, %v1801
      %v2345 = vsel %vm425, %v1530, %v1803
      %v2347 = vsel %vm425, %v1531, %v1805
      %v2349 = vsel %vm425, %v1532, %v1807
      %v2351 = vsel %vm425, %v1533, %v1809
      %v2353 = vsel %vm425, %v1534, %v1811
      %v2355 = vsel %vm425, %v1535, %v1813
      %v2357 = vsel %vm425, %v1536, %v1815
      %v2359 = vsel %vm425, %v1537, %v1817
      %v2361 = vsel %vm425, %v1538, %v1819
      %v2363 = vsel %vm425, %v1539, %v1821
      %v2365 = vsel %vm425, %v1540, %v1823
      %v2367 = vsel %vm425, %v1541, %v1825
      %v2369 = vsel %vm425, %v1542, %v1827
      %v2371 = vsel %vm425, %v1543, %v1829
      %v2373 = vsel %vm425, %v1544, %v1831
      %v2375 = vsel %vm425, %v1545, %v1833
      %v2377 = vsel %vm425, %v1546, %v1835
      %v2379 = vsel %vm425, %v1547, %v1837
      %v2381 = vsel %vm425, %v1548, %v1839
      %v2384 = vsel %vm425, %v1871, %v1984
      %v2387 = vsel %vm425, %v1873, %v1986
      %v2390 = vsel %vm425, %v1875, %v1988
      %v2393 = vsel %vm425, %v1877, %v1990
      %v2396 = vsel %vm425, %v1879, %v1992
      %v2399 = vsel %vm425, %v1881, %v1994
      %v2402 = vsel %vm425, %v1883, %v1996
      %v2405 = vsel %vm425, %v1885, %v1998
      %v2408 = vsel %vm425, %v1887, %v2000
      %v2411 = vsel %vm425, %v1889, %v2002
      %v2414 = vsel %vm425, %v1891, %v2004
      %v2417 = vsel %vm425, %v1893, %v2006
      %v2420 = vsel %vm425, %v1895, %v2008
      %v2423 = vsel %vm425, %v1897, %v2010
      %v2426 = vsel %vm425, %v1899, %v2012
      %v2429 = vsel %vm425, %v1901, %v2014
      %v2432 = vsel %vm425, %v1903, %v2016
      %v2435 = vsel %vm425, %v1905, %v2018
      %v2438 = vsel %vm425, %v1907, %v2020
      %v2441 = vsel %vm425, %v1909, %v2022
      %v2444 = vsel %vm425, %v1911, %v2024
      %v2447 = vsel %vm425, %v1913, %v2026
      %v2450 = vsel %vm425, %v1915, %v2028
      %v2453 = vsel %vm425, %v1917, %v2030
      %v2456 = vsel %vm425, %v1919, %v2032
      %v2459 = vsel %vm425, %v1921, %v2034
      %v2462 = vsel %vm425, %v1923, %v2036
      %v2465 = vsel %vm425, %v1922, %v2038
      %v2468 = vsel %vm425, %v2042, %v2215
      %v2471 = vsel %vm425, %v2046, %v2217
      %v2474 = vsel %vm425, %v2050, %v2219
      %v2477 = vsel %vm425, %v2054, %v2221
      %v2480 = vsel %vm425, %v2058, %v2223
      %v2483 = vsel %vm425, %v2062, %v2225
      %v2486 = vsel %vm425, %v2066, %v2227
      %v2489 = vsel %vm425, %v2070, %v2229
      %v2492 = vsel %vm425, %v2074, %v2231
      %v2495 = vsel %vm425, %v2078, %v2233
      %v2498 = vsel %vm425, %v2082, %v2235
      %v2501 = vsel %vm425, %v2086, %v2237
      %v2504 = vsel %vm425, %v2090, %v2239
      %v2507 = vsel %vm425, %v2094, %v2241
      %v2510 = vsel %vm425, %v2098, %v2243
      %v2513 = vsel %vm425, %v2102, %v2245
      %v2516 = vsel %vm425, %v2106, %v2247
      %v2519 = vsel %vm425, %v2110, %v2249
      %v2522 = vsel %vm425, %v2114, %v2251
      %v2525 = vsel %vm425, %v2118, %v2253
      %v2528 = vsel %vm425, %v2122, %v2255
      %v2531 = vsel %vm425, %v2126, %v2257
      %v2534 = vsel %vm425, %v2130, %v2259
      %v2537 = vsel %vm425, %v2134, %v2261
      %v2540 = vsel %vm425, %v2138, %v2263
      %v2543 = vsel %vm425, %v2147, %v2265
      %v2546 = vsel %vm425, %v2156, %v2267
      %v2549 = vsel %vm425, %v2155, %v2269
      %v2552 = vsel %vm425, %v1555, %v2301
      %v2554 = vsel %vm425, %v1547, %v2303
      %v2556 = vsel %vm425, %v1552, %v2305
      %v2558 = vsel %vm425, %v1553, %v2307
      %v2560 = vsel %vm425, %v1556, %v2309
      %v2562 = vsel %vm425, %v1557, %v2311
      %v2563 = vld [vmem:[%s5] sm:$0xf]
      %v2564 = vld [vmem:[%s5 + $0x4] sm:$0xf]
      %v2565 = vld [vmem:[%s5 + $0x8] sm:$0xf]
      %v2566 = vld [vmem:[%s5 + $0xc] sm:$0xf]
      %v2567 = vld [vmem:[%s5 + $0x10] sm:$0xf]
      %v2568 = vld [vmem:[%s5 + $0x14] sm:$0xf]
      %v2569 = vld [vmem:[%s5 + $0x18] sm:$0xf]
      %v2570 = vld [vmem:[%s5 + $0x1c] sm:$0xf]
      %v2571 = vld [vmem:[%s5 + $0x20] sm:$0xf]
      %v2572 = vld [vmem:[%s5 + $0x24] sm:$0xf]
      %v2573 = vld [vmem:[%s5 + $0x28] sm:$0xf]
      %v2574 = vld [vmem:[%s5 + $0x2c] sm:$0xf]
      %v2575 = vld [vmem:[%s5 + $0x30] sm:$0xf]
      %v2576 = vld [vmem:[%s5 + $0x34] sm:$0xf]
      %v2577 = vld [vmem:[%s5 + $0x38] sm:$0xf]
      %v2578 = vld [vmem:[%s5 + $0x3c] sm:$0xf]
      %v2579 = vld [vmem:[%s5 + $0x40] sm:$0xf]
      %v2580 = vld [vmem:[%s5 + $0x44] sm:$0xf]
      %v2581 = vld [vmem:[%s5 + $0x48] sm:$0xf]
      %v2582 = vld [vmem:[%s5 + $0x4c] sm:$0xf]
      %v2583 = vld [vmem:[%s5 + $0x50] sm:$0xf]
      %v2584 = vld [vmem:[%s5 + $0x54] sm:$0xf]
      %v2585 = vld [vmem:[%s5 + $0x58] sm:$0xf]
      %v2586 = vld [vmem:[%s5 + $0x5c] sm:$0xf]
      %v2587 = vld [vmem:[%s5 + $0x60] sm:$0xf]
      %v2588 = vld [vmem:[%s5 + $0x64] sm:$0xf]
      %v2589 = vld [vmem:[%s5 + $0x68] sm:$0xf]
      %v2590 = vld [vmem:[%s5 + $0x6c] sm:$0xf]
      %v2591 = vld [vmem:[%s5 + $0x70] sm:$0xf]
      %v2592 = vld [vmem:[%s5 + $0x74] sm:$0xf]
      %v2593 = vld [vmem:[%s5 + $0x78] sm:$0xf]
      %v2594 = vld [vmem:[%s5 + $0x7c] sm:$0xf]
      %v2595 = vld [vmem:[%s5 + $0x80] sm:$0xf]
      %v2596 = vld [vmem:[%s5 + $0x84] sm:$0xf]
      %v2597 = vld [vmem:[%s5 + $0x88] sm:$0xf]
      %v2598 = vld [vmem:[%s5 + $0x8c] sm:$0xf]
      %v2599 = vld [vmem:[%s5 + $0x90] sm:$0xf]
      %v2600 = vld [vmem:[%s5 + $0x94] sm:$0xf]
      %v2601 = vld [vmem:[%s5 + $0x98] sm:$0xf]
      %v2602 = vld [vmem:[%s5 + $0x9c] sm:$0xf]
      %v2603 = vld [vmem:[%s5 + $0xa0] sm:$0xf]
      %v2604 = vld [vmem:[%s5 + $0xa4] sm:$0xf]
      %v2605 = vld [vmem:[%s5 + $0xa8] sm:$0xf]
      %v2606 = vld [vmem:[%s5 + $0xac] sm:$0xf]
      %v2607 = vld [vmem:[%s5 + $0xb0] sm:$0xf]
      %v2608 = vld [vmem:[%s5 + $0xb4] sm:$0xf]
      %v2609 = vld [vmem:[%s5 + $0xb8] sm:$0xf]
      %v2610 = vld [vmem:[%s5 + $0xbc] sm:$0xf]
      %v2611 = vld [vmem:[%s5 + $0xc0] sm:$0xf]
      %v2612 = vld [vmem:[%s5 + $0xc4] sm:$0xf]
      %v2613 = vld [vmem:[%s5 + $0xc8] sm:$0xf]
      %v2614 = vld [vmem:[%s5 + $0xcc] sm:$0xf]
      %v2615 = vld [vmem:[%s5 + $0xd0] sm:$0xf]
      %v2616 = vld [vmem:[%s5 + $0xd4] sm:$0xf]
      %v2617 = vld [vmem:[%s5 + $0xd8] sm:$0xf]
      %v2618 = vld [vmem:[%s5 + $0xdc] sm:$0xf]
      %v2619 = vld [vmem:[%s5 + $0xe0] sm:$0xf]
      %v2620 = vld [vmem:[%s5 + $0xe4] sm:$0xf]
      %v2621 = vld [vmem:[%s5 + $0xe8] sm:$0xf]
      %v2622 = vld [vmem:[%s5 + $0xec] sm:$0xf]
      %v2623 = vld [vmem:[%s5 + $0xf0] sm:$0xf]
      %v2624 = vld [vmem:[%s5 + $0xf4] sm:$0xf]
      %v2625 = vld [vmem:[%s5 + $0xf8] sm:$0xf]
      %v2626 = vld [vmem:[%s5 + $0xfc] sm:$0xf]
      %v2627 = vld [vmem:[%s5 + $0x100] sm:$0xf]
      %v2628 = vld [vmem:[%s5 + $0x104] sm:$0xf]
      %v2629 = vld [vmem:[%s5 + $0x108] sm:$0xf]
      %v2630 = vld [vmem:[%s5 + $0x10c] sm:$0xf]
      %v2631 = vld [vmem:[%s5 + $0x110] sm:$0xf]
      %v2632 = vld [vmem:[%s5 + $0x114] sm:$0xf]
      %v2633 = vld [vmem:[%s5 + $0x118] sm:$0xf]
      %v2634 = vld [vmem:[%s5 + $0x11c] sm:$0xf]
      %vm2635 = vsmask.f32 4352
      %v2636 = vshrl.u32 %v2327, 16
      %v2638 = vrot.slane %v2636, 3
      %v2639 = vshll.u32 %v2327, 16
      %v2641 = vrot.slane %v2639, 4
      %v2642 = vor.u32 %v2638, %v2641
      %v2643 = vshrl.u32 %v2329, 16
      %v2645 = vrot.slane %v2643, 3
      %v2646 = vshll.u32 %v2329, 16
      %v2648 = vrot.slane %v2646, 4
      %v2649 = vor.u32 %v2645, %v2648
      %v2650 = vsel %vm2635, %v2642, %v2649
      %v2651 = vshrl.u32 %v2384, 16
      %v2653 = vrot.slane %v2651, 3
      %v2654 = vshll.u32 %v2384, 16
      %v2656 = vrot.slane %v2654, 4
      %v2657 = vor.u32 %v2653, %v2656
      %v2658 = vshrl.u32 %v2387, 16
      %v2660 = vrot.slane %v2658, 3
      %v2661 = vshll.u32 %v2387, 16
      %v2663 = vrot.slane %v2661, 4
      %v2664 = vor.u32 %v2660, %v2663
      %v2665 = vsel %vm2635, %v2657, %v2664
      %v2666 = vshrl.u32 %v2468, 16
      %v2668 = vrot.slane %v2666, 3
      %v2669 = vshll.u32 %v2468, 16
      %v2671 = vrot.slane %v2669, 4
      %v2672 = vor.u32 %v2668, %v2671
      %v2673 = vshrl.u32 %v2471, 16
      %v2675 = vrot.slane %v2673, 3
      %v2676 = vshll.u32 %v2471, 16
      %v2678 = vrot.slane %v2676, 4
      %v2679 = vor.u32 %v2675, %v2678
      %v2680 = vsel %vm2635, %v2672, %v2679
      %v2681 = vshrl.u32 %v2552, 16
      %v2683 = vrot.slane %v2681, 3
      %v2684 = vshll.u32 %v2552, 16
      %v2686 = vrot.slane %v2684, 4
      %v2687 = vor.u32 %v2683, %v2686
      %v2688 = vshrl.u32 %v2335, 16
      %v2690 = vrot.slane %v2688, 3
      %v2691 = vshll.u32 %v2335, 16
      %v2693 = vrot.slane %v2691, 4
      %v2694 = vor.u32 %v2690, %v2693
      %v2695 = vsel %vm2635, %v2687, %v2694
      %v2697 = vshrl.u32 %v2316, 16
      %v2699 = vrot.slane %v2697, 3
      %v2700 = vshll.u32 %v2316, 16
      %v2702 = vrot.slane %v2700, 4
      %v2703 = vor.u32 %v2699, %v2702
      %v2704 = vshrl.u32 %v1879, 16
      %v2706 = vrot.slane %v2704, 3
      %v2707 = vshll.u32 %v1879, 16
      %v2709 = vrot.slane %v2707, 4
      %v2710 = vor.u32 %v2706, %v2709
      %v2711 = vsel %vm2635, %v2703, %v2710
      %v2712 = vshrl.u32 %v2331, 16
      %v2714 = vrot.slane %v2712, 3
      %v2715 = vshll.u32 %v2331, 16
      %v2717 = vrot.slane %v2715, 4
      %v2718 = vor.u32 %v2714, %v2717
      %v2719 = vsel %vm2635, %v2649, %v2718
      %v2720 = vshrl.u32 %v2390, 16
      %v2722 = vrot.slane %v2720, 3
      %v2723 = vshll.u32 %v2390, 16
      %v2725 = vrot.slane %v2723, 4
      %v2726 = vor.u32 %v2722, %v2725
      %v2727 = vsel %vm2635, %v2664, %v2726
      %v2728 = vshrl.u32 %v2474, 16
      %v2730 = vrot.slane %v2728, 3
      %v2731 = vshll.u32 %v2474, 16
      %v2733 = vrot.slane %v2731, 4
      %v2734 = vor.u32 %v2730, %v2733
      %v2735 = vsel %vm2635, %v2679, %v2734
      %v2736 = vshrl.u32 %v2337, 16
      %v2738 = vrot.slane %v2736, 3
      %v2739 = vshll.u32 %v2337, 16
      %v2741 = vrot.slane %v2739, 4
      %v2742 = vor.u32 %v2738, %v2741
      %v2743 = vsel %vm2635, %v2694, %v2742
      %v2744 = vshrl.u32 %v1881, 16
      %v2746 = vrot.slane %v2744, 3
      %v2747 = vshll.u32 %v1881, 16
      %v2749 = vrot.slane %v2747, 4
      %v2750 = vor.u32 %v2746, %v2749
      %v2751 = vsel %vm2635, %v2710, %v2750
      %v2752 = vshrl.u32 %v2333, 16
      %v2754 = vrot.slane %v2752, 3
      %v2755 = vshll.u32 %v2333, 16
      %v2757 = vrot.slane %v2755, 4
      %v2758 = vor.u32 %v2754, %v2757
      %v2759 = vsel %vm2635, %v2718, %v2758
      %v2760 = vshrl.u32 %v2393, 16
      %v2762 = vrot.slane %v2760, 3
      %v2763 = vshll.u32 %v2393, 16
      %v2765 = vrot.slane %v2763, 4
      %v2766 = vor.u32 %v2762, %v2765
      %v2767 = vsel %vm2635, %v2726, %v2766
      %v2768 = vshrl.u32 %v2477, 16
      %v2770 = vrot.slane %v2768, 3
      %v2771 = vshll.u32 %v2477, 16
      %v2773 = vrot.slane %v2771, 4
      %v2774 = vor.u32 %v2770, %v2773
      %v2775 = vsel %vm2635, %v2734, %v2774
      %v2776 = vshrl.u32 %v2339, 16
      %v2778 = vrot.slane %v2776, 3
      %v2779 = vshll.u32 %v2339, 16
      %v2781 = vrot.slane %v2779, 4
      %v2782 = vor.u32 %v2778, %v2781
      %v2783 = vsel %vm2635, %v2742, %v2782
      %v2784 = vshrl.u32 %v1883, 16
      %v2786 = vrot.slane %v2784, 3
      %v2787 = vshll.u32 %v1883, 16
      %v2789 = vrot.slane %v2787, 4
      %v2790 = vor.u32 %v2786, %v2789
      %v2791 = vsel %vm2635, %v2750, %v2790
      %v2792 = vsel %vm2635, %v2758, %v2694
      %v2793 = vshrl.u32 %v2396, 16
      %v2795 = vrot.slane %v2793, 3
      %v2796 = vshll.u32 %v2396, 16
      %v2798 = vrot.slane %v2796, 4
      %v2799 = vor.u32 %v2795, %v2798
      %v2800 = vsel %vm2635, %v2766, %v2799
      %v2801 = vshrl.u32 %v2480, 16
      %v2803 = vrot.slane %v2801, 3
      %v2804 = vshll.u32 %v2480, 16
      %v2806 = vrot.slane %v2804, 4
      %v2807 = vor.u32 %v2803, %v2806
      %v2808 = vsel %vm2635, %v2774, %v2807
      %v2809 = vshrl.u32 %v2341, 16
      %v2811 = vrot.slane %v2809, 3
      %v2812 = vshll.u32 %v2341, 16
      %v2814 = vrot.slane %v2812, 4
      %v2815 = vor.u32 %v2811, %v2814
      %v2816 = vsel %vm2635, %v2782, %v2815
      %v2817 = vshrl.u32 %v1885, 16
      %v2819 = vrot.slane %v2817, 3
      %v2820 = vshll.u32 %v1885, 16
      %v2822 = vrot.slane %v2820, 4
      %v2823 = vor.u32 %v2819, %v2822
      %v2824 = vsel %vm2635, %v2790, %v2823
      %v2825 = vshrl.u32 %v2399, 16
      %v2827 = vrot.slane %v2825, 3
      %v2828 = vshll.u32 %v2399, 16
      %v2830 = vrot.slane %v2828, 4
      %v2831 = vor.u32 %v2827, %v2830
      %v2832 = vsel %vm2635, %v2799, %v2831
      %v2833 = vshrl.u32 %v2483, 16
      %v2835 = vrot.slane %v2833, 3
      %v2836 = vshll.u32 %v2483, 16
      %v2838 = vrot.slane %v2836, 4
      %v2839 = vor.u32 %v2835, %v2838
      %v2840 = vsel %vm2635, %v2807, %v2839
      %v2841 = vshrl.u32 %v2343, 16
      %v2843 = vrot.slane %v2841, 3
      %v2844 = vshll.u32 %v2343, 16
      %v2846 = vrot.slane %v2844, 4
      %v2847 = vor.u32 %v2843, %v2846
      %v2848 = vsel %vm2635, %v2815, %v2847
      %v2849 = vshrl.u32 %v1887, 16
      %v2851 = vrot.slane %v2849, 3
      %v2852 = vshll.u32 %v1887, 16
      %v2854 = vrot.slane %v2852, 4
      %v2855 = vor.u32 %v2851, %v2854
      %v2856 = vsel %vm2635, %v2823, %v2855
      %v2857 = vshrl.u32 %v2402, 16
      %v2859 = vrot.slane %v2857, 3
      %v2860 = vshll.u32 %v2402, 16
      %v2862 = vrot.slane %v2860, 4
      %v2863 = vor.u32 %v2859, %v2862
      %v2864 = vsel %vm2635, %v2831, %v2863
      %v2865 = vshrl.u32 %v2486, 16
      %v2867 = vrot.slane %v2865, 3
      %v2868 = vshll.u32 %v2486, 16
      %v2870 = vrot.slane %v2868, 4
      %v2871 = vor.u32 %v2867, %v2870
      %v2872 = vsel %vm2635, %v2839, %v2871
      %v2873 = vshrl.u32 %v2345, 16
      %v2875 = vrot.slane %v2873, 3
      %v2876 = vshll.u32 %v2345, 16
      %v2878 = vrot.slane %v2876, 4
      %v2879 = vor.u32 %v2875, %v2878
      %v2880 = vsel %vm2635, %v2847, %v2879
      %v2881 = vshrl.u32 %v1889, 16
      %v2883 = vrot.slane %v2881, 3
      %v2884 = vshll.u32 %v1889, 16
      %v2886 = vrot.slane %v2884, 4
      %v2887 = vor.u32 %v2883, %v2886
      %v2888 = vsel %vm2635, %v2855, %v2887
      %v2889 = vshrl.u32 %v2405, 16
      %v2891 = vrot.slane %v2889, 3
      %v2892 = vshll.u32 %v2405, 16
      %v2894 = vrot.slane %v2892, 4
      %v2895 = vor.u32 %v2891, %v2894
      %v2896 = vsel %vm2635, %v2863, %v2895
      %v2897 = vshrl.u32 %v2489, 16
      %v2899 = vrot.slane %v2897, 3
      %v2900 = vshll.u32 %v2489, 16
      %v2902 = vrot.slane %v2900, 4
      %v2903 = vor.u32 %v2899, %v2902
      %v2904 = vsel %vm2635, %v2871, %v2903
      %v2905 = vshrl.u32 %v2347, 16
      %v2907 = vrot.slane %v2905, 3
      %v2908 = vshll.u32 %v2347, 16
      %v2910 = vrot.slane %v2908, 4
      %v2911 = vor.u32 %v2907, %v2910
      %v2912 = vsel %vm2635, %v2879, %v2911
      %v2913 = vshrl.u32 %v1891, 16
      %v2915 = vrot.slane %v2913, 3
      %v2916 = vshll.u32 %v1891, 16
      %v2918 = vrot.slane %v2916, 4
      %v2919 = vor.u32 %v2915, %v2918
      %v2920 = vsel %vm2635, %v2887, %v2919
      %v2921 = vshrl.u32 %v2408, 16
      %v2923 = vrot.slane %v2921, 3
      %v2924 = vshll.u32 %v2408, 16
      %v2926 = vrot.slane %v2924, 4
      %v2927 = vor.u32 %v2923, %v2926
      %v2928 = vsel %vm2635, %v2895, %v2927
      %v2929 = vshrl.u32 %v2492, 16
      %v2931 = vrot.slane %v2929, 3
      %v2932 = vshll.u32 %v2492, 16
      %v2934 = vrot.slane %v2932, 4
      %v2935 = vor.u32 %v2931, %v2934
      %v2936 = vsel %vm2635, %v2903, %v2935
      %v2937 = vshrl.u32 %v2349, 16
      %v2939 = vrot.slane %v2937, 3
      %v2940 = vshll.u32 %v2349, 16
      %v2942 = vrot.slane %v2940, 4
      %v2943 = vor.u32 %v2939, %v2942
      %v2944 = vsel %vm2635, %v2911, %v2943
      %v2945 = vshrl.u32 %v1893, 16
      %v2947 = vrot.slane %v2945, 3
      %v2948 = vshll.u32 %v1893, 16
      %v2950 = vrot.slane %v2948, 4
      %v2951 = vor.u32 %v2947, %v2950
      %v2952 = vsel %vm2635, %v2919, %v2951
      %v2953 = vshrl.u32 %v2411, 16
      %v2955 = vrot.slane %v2953, 3
      %v2956 = vshll.u32 %v2411, 16
      %v2958 = vrot.slane %v2956, 4
      %v2959 = vor.u32 %v2955, %v2958
      %v2960 = vsel %vm2635, %v2927, %v2959
      %v2961 = vshrl.u32 %v2495, 16
      %v2963 = vrot.slane %v2961, 3
      %v2964 = vshll.u32 %v2495, 16
      %v2966 = vrot.slane %v2964, 4
      %v2967 = vor.u32 %v2963, %v2966
      %v2968 = vsel %vm2635, %v2935, %v2967
      %v2969 = vshrl.u32 %v2351, 16
      %v2971 = vrot.slane %v2969, 3
      %v2972 = vshll.u32 %v2351, 16
      %v2974 = vrot.slane %v2972, 4
      %v2975 = vor.u32 %v2971, %v2974
      %v2976 = vsel %vm2635, %v2943, %v2975
      %v2977 = vshrl.u32 %v1895, 16
      %v2979 = vrot.slane %v2977, 3
      %v2980 = vshll.u32 %v1895, 16
      %v2982 = vrot.slane %v2980, 4
      %v2983 = vor.u32 %v2979, %v2982
      %v2984 = vsel %vm2635, %v2951, %v2983
      %v2985 = vshrl.u32 %v2414, 16
      %v2987 = vrot.slane %v2985, 3
      %v2988 = vshll.u32 %v2414, 16
      %v2990 = vrot.slane %v2988, 4
      %v2991 = vor.u32 %v2987, %v2990
      %v2992 = vsel %vm2635, %v2959, %v2991
      %v2993 = vshrl.u32 %v2498, 16
      %v2995 = vrot.slane %v2993, 3
      %v2996 = vshll.u32 %v2498, 16
      %v2998 = vrot.slane %v2996, 4
      %v2999 = vor.u32 %v2995, %v2998
      %v3000 = vsel %vm2635, %v2967, %v2999
      %v3001 = vshrl.u32 %v2353, 16
      %v3003 = vrot.slane %v3001, 3
      %v3004 = vshll.u32 %v2353, 16
      %v3006 = vrot.slane %v3004, 4
      %v3007 = vor.u32 %v3003, %v3006
      %v3008 = vsel %vm2635, %v2975, %v3007
      %v3009 = vshrl.u32 %v1897, 16
      %v3011 = vrot.slane %v3009, 3
      %v3012 = vshll.u32 %v1897, 16
      %v3014 = vrot.slane %v3012, 4
      %v3015 = vor.u32 %v3011, %v3014
      %v3016 = vsel %vm2635, %v2983, %v3015
      %v3017 = vshrl.u32 %v2417, 16
      %v3019 = vrot.slane %v3017, 3
      %v3020 = vshll.u32 %v2417, 16
      %v3022 = vrot.slane %v3020, 4
      %v3023 = vor.u32 %v3019, %v3022
      %v3024 = vsel %vm2635, %v2991, %v3023
      %v3025 = vshrl.u32 %v2501, 16
      %v3027 = vrot.slane %v3025, 3
      %v3028 = vshll.u32 %v2501, 16
      %v3030 = vrot.slane %v3028, 4
      %v3031 = vor.u32 %v3027, %v3030
      %v3032 = vsel %vm2635, %v2999, %v3031
      %v3033 = vshrl.u32 %v2355, 16
      %v3035 = vrot.slane %v3033, 3
      %v3036 = vshll.u32 %v2355, 16
      %v3038 = vrot.slane %v3036, 4
      %v3039 = vor.u32 %v3035, %v3038
      %v3040 = vsel %vm2635, %v3007, %v3039
      %v3041 = vshrl.u32 %v1899, 16
      %v3043 = vrot.slane %v3041, 3
      %v3044 = vshll.u32 %v1899, 16
      %v3046 = vrot.slane %v3044, 4
      %v3047 = vor.u32 %v3043, %v3046
      %v3048 = vsel %vm2635, %v3015, %v3047
      %v3049 = vshrl.u32 %v2420, 16
      %v3051 = vrot.slane %v3049, 3
      %v3052 = vshll.u32 %v2420, 16
      %v3054 = vrot.slane %v3052, 4
      %v3055 = vor.u32 %v3051, %v3054
      %v3056 = vsel %vm2635, %v3023, %v3055
      %v3057 = vshrl.u32 %v2504, 16
      %v3059 = vrot.slane %v3057, 3
      %v3060 = vshll.u32 %v2504, 16
      %v3062 = vrot.slane %v3060, 4
      %v3063 = vor.u32 %v3059, %v3062
      %v3064 = vsel %vm2635, %v3031, %v3063
      %v3065 = vshrl.u32 %v2357, 16
      %v3067 = vrot.slane %v3065, 3
      %v3068 = vshll.u32 %v2357, 16
      %v3070 = vrot.slane %v3068, 4
      %v3071 = vor.u32 %v3067, %v3070
      %v3072 = vsel %vm2635, %v3039, %v3071
      %v3073 = vshrl.u32 %v1901, 16
      %v3075 = vrot.slane %v3073, 3
      %v3076 = vshll.u32 %v1901, 16
      %v3078 = vrot.slane %v3076, 4
      %v3079 = vor.u32 %v3075, %v3078
      %v3080 = vsel %vm2635, %v3047, %v3079
      %v3081 = vshrl.u32 %v2423, 16
      %v3083 = vrot.slane %v3081, 3
      %v3084 = vshll.u32 %v2423, 16
      %v3086 = vrot.slane %v3084, 4
      %v3087 = vor.u32 %v3083, %v3086
      %v3088 = vsel %vm2635, %v3055, %v3087
      %v3089 = vshrl.u32 %v2507, 16
      %v3091 = vrot.slane %v3089, 3
      %v3092 = vshll.u32 %v2507, 16
      %v3094 = vrot.slane %v3092, 4
      %v3095 = vor.u32 %v3091, %v3094
      %v3096 = vsel %vm2635, %v3063, %v3095
      %v3097 = vshrl.u32 %v2359, 16
      %v3099 = vrot.slane %v3097, 3
      %v3100 = vshll.u32 %v2359, 16
      %v3102 = vrot.slane %v3100, 4
      %v3103 = vor.u32 %v3099, %v3102
      %v3104 = vsel %vm2635, %v3071, %v3103
      %v3105 = vshrl.u32 %v1903, 16
      %v3107 = vrot.slane %v3105, 3
      %v3108 = vshll.u32 %v1903, 16
      %v3110 = vrot.slane %v3108, 4
      %v3111 = vor.u32 %v3107, %v3110
      %v3112 = vsel %vm2635, %v3079, %v3111
      %v3113 = vshrl.u32 %v2426, 16
      %v3115 = vrot.slane %v3113, 3
      %v3116 = vshll.u32 %v2426, 16
      %v3118 = vrot.slane %v3116, 4
      %v3119 = vor.u32 %v3115, %v3118
      %v3120 = vsel %vm2635, %v3087, %v3119
      %v3121 = vshrl.u32 %v2510, 16
      %v3123 = vrot.slane %v3121, 3
      %v3124 = vshll.u32 %v2510, 16
      %v3126 = vrot.slane %v3124, 4
      %v3127 = vor.u32 %v3123, %v3126
      %v3128 = vsel %vm2635, %v3095, %v3127
      %v3129 = vshrl.u32 %v2361, 16
      %v3131 = vrot.slane %v3129, 3
      %v3132 = vshll.u32 %v2361, 16
      %v3134 = vrot.slane %v3132, 4
      %v3135 = vor.u32 %v3131, %v3134
      %v3136 = vsel %vm2635, %v3103, %v3135
      %v3137 = vshrl.u32 %v1905, 16
      %v3139 = vrot.slane %v3137, 3
      %v3140 = vshll.u32 %v1905, 16
      %v3142 = vrot.slane %v3140, 4
      %v3143 = vor.u32 %v3139, %v3142
      %v3144 = vsel %vm2635, %v3111, %v3143
      %v3145 = vshrl.u32 %v2429, 16
      %v3147 = vrot.slane %v3145, 3
      %v3148 = vshll.u32 %v2429, 16
      %v3150 = vrot.slane %v3148, 4
      %v3151 = vor.u32 %v3147, %v3150
      %v3152 = vsel %vm2635, %v3119, %v3151
      %v3153 = vshrl.u32 %v2513, 16
      %v3155 = vrot.slane %v3153, 3
      %v3156 = vshll.u32 %v2513, 16
      %v3158 = vrot.slane %v3156, 4
      %v3159 = vor.u32 %v3155, %v3158
      %v3160 = vsel %vm2635, %v3127, %v3159
      %v3161 = vshrl.u32 %v2363, 16
      %v3163 = vrot.slane %v3161, 3
      %v3164 = vshll.u32 %v2363, 16
      %v3166 = vrot.slane %v3164, 4
      %v3167 = vor.u32 %v3163, %v3166
      %v3168 = vsel %vm2635, %v3135, %v3167
      %v3169 = vshrl.u32 %v1907, 16
      %v3171 = vrot.slane %v3169, 3
      %v3172 = vshll.u32 %v1907, 16
      %v3174 = vrot.slane %v3172, 4
      %v3175 = vor.u32 %v3171, %v3174
      %v3176 = vsel %vm2635, %v3143, %v3175
      %v3177 = vshrl.u32 %v2432, 16
      %v3179 = vrot.slane %v3177, 3
      %v3180 = vshll.u32 %v2432, 16
      %v3182 = vrot.slane %v3180, 4
      %v3183 = vor.u32 %v3179, %v3182
      %v3184 = vsel %vm2635, %v3151, %v3183
      %v3185 = vshrl.u32 %v2516, 16
      %v3187 = vrot.slane %v3185, 3
      %v3188 = vshll.u32 %v2516, 16
      %v3190 = vrot.slane %v3188, 4
      %v3191 = vor.u32 %v3187, %v3190
      %v3192 = vsel %vm2635, %v3159, %v3191
      %v3193 = vshrl.u32 %v2365, 16
      %v3195 = vrot.slane %v3193, 3
      %v3196 = vshll.u32 %v2365, 16
      %v3198 = vrot.slane %v3196, 4
      %v3199 = vor.u32 %v3195, %v3198
      %v3200 = vsel %vm2635, %v3167, %v3199
      %v3201 = vshrl.u32 %v1909, 16
      %v3203 = vrot.slane %v3201, 3
      %v3204 = vshll.u32 %v1909, 16
      %v3206 = vrot.slane %v3204, 4
      %v3207 = vor.u32 %v3203, %v3206
      %v3208 = vsel %vm2635, %v3175, %v3207
      %v3209 = vshrl.u32 %v2435, 16
      %v3211 = vrot.slane %v3209, 3
      %v3212 = vshll.u32 %v2435, 16
      %v3214 = vrot.slane %v3212, 4
      %v3215 = vor.u32 %v3211, %v3214
      %v3216 = vsel %vm2635, %v3183, %v3215
      %v3217 = vshrl.u32 %v2519, 16
      %v3219 = vrot.slane %v3217, 3
      %v3220 = vshll.u32 %v2519, 16
      %v3222 = vrot.slane %v3220, 4
      %v3223 = vor.u32 %v3219, %v3222
      %v3224 = vsel %vm2635, %v3191, %v3223
      %v3225 = vshrl.u32 %v2367, 16
      %v3227 = vrot.slane %v3225, 3
      %v3228 = vshll.u32 %v2367, 16
      %v3230 = vrot.slane %v3228, 4
      %v3231 = vor.u32 %v3227, %v3230
      %v3232 = vsel %vm2635, %v3199, %v3231
      %v3233 = vshrl.u32 %v1911, 16
      %v3235 = vrot.slane %v3233, 3
      %v3236 = vshll.u32 %v1911, 16
      %v3238 = vrot.slane %v3236, 4
      %v3239 = vor.u32 %v3235, %v3238
      %v3240 = vsel %vm2635, %v3207, %v3239
      %v3241 = vshrl.u32 %v2438, 16
      %v3243 = vrot.slane %v3241, 3
      %v3244 = vshll.u32 %v2438, 16
      %v3246 = vrot.slane %v3244, 4
      %v3247 = vor.u32 %v3243, %v3246
      %v3248 = vsel %vm2635, %v3215, %v3247
      %v3249 = vshrl.u32 %v2522, 16
      %v3251 = vrot.slane %v3249, 3
      %v3252 = vshll.u32 %v2522, 16
      %v3254 = vrot.slane %v3252, 4
      %v3255 = vor.u32 %v3251, %v3254
      %v3256 = vsel %vm2635, %v3223, %v3255
      %v3257 = vshrl.u32 %v2369, 16
      %v3259 = vrot.slane %v3257, 3
      %v3260 = vshll.u32 %v2369, 16
      %v3262 = vrot.slane %v3260, 4
      %v3263 = vor.u32 %v3259, %v3262
      %v3264 = vsel %vm2635, %v3231, %v3263
      %v3265 = vshrl.u32 %v1913, 16
      %v3267 = vrot.slane %v3265, 3
      %v3268 = vshll.u32 %v1913, 16
      %v3270 = vrot.slane %v3268, 4
      %v3271 = vor.u32 %v3267, %v3270
      %v3272 = vsel %vm2635, %v3239, %v3271
      %v3273 = vshrl.u32 %v2441, 16
      %v3275 = vrot.slane %v3273, 3
      %v3276 = vshll.u32 %v2441, 16
      %v3278 = vrot.slane %v3276, 4
      %v3279 = vor.u32 %v3275, %v3278
      %v3280 = vsel %vm2635, %v3247, %v3279
      %v3281 = vshrl.u32 %v2525, 16
      %v3283 = vrot.slane %v3281, 3
      %v3284 = vshll.u32 %v2525, 16
      %v3286 = vrot.slane %v3284, 4
      %v3287 = vor.u32 %v3283, %v3286
      %v3288 = vsel %vm2635, %v3255, %v3287
      %v3289 = vshrl.u32 %v2371, 16
      %v3291 = vrot.slane %v3289, 3
      %v3292 = vshll.u32 %v2371, 16
      %v3294 = vrot.slane %v3292, 4
      %v3295 = vor.u32 %v3291, %v3294
      %v3296 = vsel %vm2635, %v3263, %v3295
      %v3297 = vshrl.u32 %v1915, 16
      %v3299 = vrot.slane %v3297, 3
      %v3300 = vshll.u32 %v1915, 16
      %v3302 = vrot.slane %v3300, 4
      %v3303 = vor.u32 %v3299, %v3302
      %v3304 = vsel %vm2635, %v3271, %v3303
      %v3305 = vshrl.u32 %v2444, 16
      %v3307 = vrot.slane %v3305, 3
      %v3308 = vshll.u32 %v2444, 16
      %v3310 = vrot.slane %v3308, 4
      %v3311 = vor.u32 %v3307, %v3310
      %v3312 = vsel %vm2635, %v3279, %v3311
      %v3313 = vshrl.u32 %v2528, 16
      %v3315 = vrot.slane %v3313, 3
      %v3316 = vshll.u32 %v2528, 16
      %v3318 = vrot.slane %v3316, 4
      %v3319 = vor.u32 %v3315, %v3318
      %v3320 = vsel %vm2635, %v3287, %v3319
      %v3321 = vshrl.u32 %v2373, 16
      %v3323 = vrot.slane %v3321, 3
      %v3324 = vshll.u32 %v2373, 16
      %v3326 = vrot.slane %v3324, 4
      %v3327 = vor.u32 %v3323, %v3326
      %v3328 = vsel %vm2635, %v3295, %v3327
      %v3329 = vshrl.u32 %v1917, 16
      %v3331 = vrot.slane %v3329, 3
      %v3332 = vshll.u32 %v1917, 16
      %v3334 = vrot.slane %v3332, 4
      %v3335 = vor.u32 %v3331, %v3334
      %v3336 = vsel %vm2635, %v3303, %v3335
      %v3337 = vshrl.u32 %v2447, 16
      %v3339 = vrot.slane %v3337, 3
      %v3340 = vshll.u32 %v2447, 16
      %v3342 = vrot.slane %v3340, 4
      %v3343 = vor.u32 %v3339, %v3342
      %v3344 = vsel %vm2635, %v3311, %v3343
      %v3345 = vshrl.u32 %v2531, 16
      %v3347 = vrot.slane %v3345, 3
      %v3348 = vshll.u32 %v2531, 16
      %v3350 = vrot.slane %v3348, 4
      %v3351 = vor.u32 %v3347, %v3350
      %v3352 = vsel %vm2635, %v3319, %v3351
      %v3353 = vshrl.u32 %v2375, 16
      %v3355 = vrot.slane %v3353, 3
      %v3356 = vshll.u32 %v2375, 16
      %v3358 = vrot.slane %v3356, 4
      %v3359 = vor.u32 %v3355, %v3358
      %v3360 = vsel %vm2635, %v3327, %v3359
      %v3361 = vshrl.u32 %v1919, 16
      %v3363 = vrot.slane %v3361, 3
      %v3364 = vshll.u32 %v1919, 16
      %v3366 = vrot.slane %v3364, 4
      %v3367 = vor.u32 %v3363, %v3366
      %v3368 = vsel %vm2635, %v3335, %v3367
      %v3369 = vshrl.u32 %v2450, 16
      %v3371 = vrot.slane %v3369, 3
      %v3372 = vshll.u32 %v2450, 16
      %v3374 = vrot.slane %v3372, 4
      %v3375 = vor.u32 %v3371, %v3374
      %v3376 = vsel %vm2635, %v3343, %v3375
      %v3377 = vshrl.u32 %v2534, 16
      %v3379 = vrot.slane %v3377, 3
      %v3380 = vshll.u32 %v2534, 16
      %v3382 = vrot.slane %v3380, 4
      %v3383 = vor.u32 %v3379, %v3382
      %v3384 = vsel %vm2635, %v3351, %v3383
      %v3385 = vshrl.u32 %v2377, 16
      %v3387 = vrot.slane %v3385, 3
      %v3388 = vshll.u32 %v2377, 16
      %v3390 = vrot.slane %v3388, 4
      %v3391 = vor.u32 %v3387, %v3390
      %v3392 = vsel %vm2635, %v3359, %v3391
      %v3393 = vshrl.u32 %v1921, 16
      %v3395 = vrot.slane %v3393, 3
      %v3396 = vshll.u32 %v1921, 16
      %v3398 = vrot.slane %v3396, 4
      %v3399 = vor.u32 %v3395, %v3398
      %v3400 = vsel %vm2635, %v3367, %v3399
      %v3401 = vshrl.u32 %v2453, 16
      %v3403 = vrot.slane %v3401, 3
      %v3404 = vshll.u32 %v2453, 16
      %v3406 = vrot.slane %v3404, 4
      %v3407 = vor.u32 %v3403, %v3406
      %v3408 = vsel %vm2635, %v3375, %v3407
      %v3409 = vshrl.u32 %v2537, 16
      %v3411 = vrot.slane %v3409, 3
      %v3412 = vshll.u32 %v2537, 16
      %v3414 = vrot.slane %v3412, 4
      %v3415 = vor.u32 %v3411, %v3414
      %v3416 = vsel %vm2635, %v3383, %v3415
      %v3417 = vshrl.u32 %v2554, 16
      %v3419 = vrot.slane %v3417, 3
      %v3420 = vshll.u32 %v2554, 16
      %v3422 = vrot.slane %v3420, 4
      %v3423 = vor.u32 %v3419, %v3422
      %v3424 = vsel %vm2635, %v3391, %v3423
      %v3426 = vshrl.u32 %v2318, 16
      %v3428 = vrot.slane %v3426, 3
      %v3429 = vshll.u32 %v2318, 16
      %v3431 = vrot.slane %v3429, 4
      %v3432 = vor.u32 %v3428, %v3431
      %v3433 = vsel %vm2635, %v3399, %v3432
      %v3434 = vshrl.u32 %v2456, 16
      %v3436 = vrot.slane %v3434, 3
      %v3437 = vshll.u32 %v2456, 16
      %v3439 = vrot.slane %v3437, 4
      %v3440 = vor.u32 %v3436, %v3439
      %v3441 = vsel %vm2635, %v3407, %v3440
      %v3442 = vshrl.u32 %v2540, 16
      %v3444 = vrot.slane %v3442, 3
      %v3445 = vshll.u32 %v2540, 16
      %v3447 = vrot.slane %v3445, 4
      %v3448 = vor.u32 %v3444, %v3447
      %v3449 = vsel %vm2635, %v3415, %v3448
      %v3450 = vshrl.u32 %v2556, 16
      %v3452 = vrot.slane %v3450, 3
      %v3453 = vshll.u32 %v2556, 16
      %v3455 = vrot.slane %v3453, 4
      %v3456 = vor.u32 %v3452, %v3455
      %v3457 = vsel %vm2635, %v3423, %v3456
      %v3459 = vshrl.u32 %v2320, 16
      %v3461 = vrot.slane %v3459, 3
      %v3462 = vshll.u32 %v2320, 16
      %v3464 = vrot.slane %v3462, 4
      %v3465 = vor.u32 %v3461, %v3464
      %v3466 = vsel %vm2635, %v3432, %v3465
      %v3467 = vshrl.u32 %v2459, 16
      %v3469 = vrot.slane %v3467, 3
      %v3470 = vshll.u32 %v2459, 16
      %v3472 = vrot.slane %v3470, 4
      %v3473 = vor.u32 %v3469, %v3472
      %v3474 = vsel %vm2635, %v3440, %v3473
      %v3475 = vshrl.u32 %v2543, 16
      %v3477 = vrot.slane %v3475, 3
      %v3478 = vshll.u32 %v2543, 16
      %v3480 = vrot.slane %v3478, 4
      %v3481 = vor.u32 %v3477, %v3480
      %v3482 = vsel %vm2635, %v3448, %v3481
      %v3483 = vshrl.u32 %v2558, 16
      %v3485 = vrot.slane %v3483, 3
      %v3486 = vshll.u32 %v2558, 16
      %v3488 = vrot.slane %v3486, 4
      %v3489 = vor.u32 %v3485, %v3488
      %v3490 = vsel %vm2635, %v3456, %v3489
      %v3492 = vshrl.u32 %v2322, 16
      %v3494 = vrot.slane %v3492, 3
      %v3495 = vshll.u32 %v2322, 16
      %v3497 = vrot.slane %v3495, 4
      %v3498 = vor.u32 %v3494, %v3497
      %v3499 = vsel %vm2635, %v3465, %v3498
      %v3500 = vshrl.u32 %v2379, 16
      %v3502 = vrot.slane %v3500, 3
      %v3503 = vshll.u32 %v2379, 16
      %v3505 = vrot.slane %v3503, 4
      %v3506 = vor.u32 %v3502, %v3505
      %v3507 = vsel %vm2635, %v3391, %v3506
      %v3508 = vshrl.u32 %v2462, 16
      %v3510 = vrot.slane %v3508, 3
      %v3511 = vshll.u32 %v2462, 16
      %v3513 = vrot.slane %v3511, 4
      %v3514 = vor.u32 %v3510, %v3513
      %v3515 = vsel %vm2635, %v3473, %v3514
      %v3516 = vshrl.u32 %v2546, 16
      %v3518 = vrot.slane %v3516, 3
      %v3519 = vshll.u32 %v2546, 16
      %v3521 = vrot.slane %v3519, 4
      %v3522 = vor.u32 %v3518, %v3521
      %v3523 = vsel %vm2635, %v3481, %v3522
      %v3524 = vshrl.u32 %v2560, 16
      %v3526 = vrot.slane %v3524, 3
      %v3527 = vshll.u32 %v2560, 16
      %v3529 = vrot.slane %v3527, 4
      %v3530 = vor.u32 %v3526, %v3529
      %v3531 = vsel %vm2635, %v3489, %v3530
      %v3533 = vshrl.u32 %v2324, 16
      %v3535 = vrot.slane %v3533, 3
      %v3536 = vshll.u32 %v2324, 16
      %v3538 = vrot.slane %v3536, 4
      %v3539 = vor.u32 %v3535, %v3538
      %v3540 = vsel %vm2635, %v3498, %v3539
      %v3541 = vshrl.u32 %v2381, 16
      %v3543 = vrot.slane %v3541, 3
      %v3544 = vshll.u32 %v2381, 16
      %v3546 = vrot.slane %v3544, 4
      %v3547 = vor.u32 %v3543, %v3546
      %v3548 = vsel %vm2635, %v3506, %v3547
      %v3549 = vshrl.u32 %v2465, 16
      %v3551 = vrot.slane %v3549, 3
      %v3552 = vshll.u32 %v2465, 16
      %v3554 = vrot.slane %v3552, 4
      %v3555 = vor.u32 %v3551, %v3554
      %v3556 = vsel %vm2635, %v3514, %v3555
      %v3557 = vshrl.u32 %v2549, 16
      %v3559 = vrot.slane %v3557, 3
      %v3560 = vshll.u32 %v2549, 16
      %v3562 = vrot.slane %v3560, 4
      %v3563 = vor.u32 %v3559, %v3562
      %v3564 = vsel %vm2635, %v3522, %v3563
      %v3565 = vshrl.u32 %v2562, 16
      %v3567 = vrot.slane %v3565, 3
      %v3568 = vshll.u32 %v2562, 16
      %v3570 = vrot.slane %v3568, 4
      %v3571 = vor.u32 %v3567, %v3570
      %v3572 = vsel %vm2635, %v3530, %v3571
      %v3574 = vshrl.u32 %v2323, 16
      %v3576 = vrot.slane %v3574, 3
      %v3577 = vshll.u32 %v2323, 16
      %v3579 = vrot.slane %v3577, 4
      %v3580 = vor.u32 %v3576, %v3579
      %v3581 = vsel %vm2635, %v3539, %v3580
      %v3741 = vunpack.c.l.b16 %v2563
      %v3742 = vunpack.c.l.b16 %v2564
      %v3743 = vunpack.c.l.b16 %v2565
      %v3744 = vunpack.c.l.b16 %v2566
      %v3745 = vunpack.c.l.b16 %v2567
      %v3746 = vunpack.c.l.b16 %v2568
      %v3747 = vunpack.c.l.b16 %v2569
      %v3748 = vunpack.c.l.b16 %v2570
      %v3749 = vunpack.c.l.b16 %v2571
      %v3750 = vunpack.c.l.b16 %v2572
      %v3751 = vunpack.c.l.b16 %v2573
      %v3752 = vunpack.c.l.b16 %v2574
      %v3753 = vunpack.c.l.b16 %v2575
      %v3754 = vunpack.c.l.b16 %v2576
      %v3755 = vunpack.c.l.b16 %v2577
      %v3756 = vunpack.c.l.b16 %v2578
      %v3757 = vunpack.c.l.b16 %v2579
      %v3758 = vunpack.c.l.b16 %v2580
      %v3759 = vunpack.c.l.b16 %v2581
      %v3760 = vunpack.c.l.b16 %v2582
      %v3761 = vunpack.c.l.b16 %v2583
      %v3762 = vunpack.c.l.b16 %v2584
      %v3763 = vunpack.c.l.b16 %v2585
      %v3764 = vunpack.c.l.b16 %v2586
      %v3765 = vunpack.c.l.b16 %v2587
      %v3766 = vunpack.c.l.b16 %v2588
      %v3767 = vunpack.c.l.b16 %v2589
      %v3768 = vunpack.c.l.b16 %v2590
      %v3769 = vunpack.c.l.b16 %v2591
      %v3770 = vunpack.c.l.b16 %v2592
      %v3771 = vunpack.c.l.b16 %v2593
      %v3772 = vunpack.c.l.b16 %v2594
      %v3773 = vunpack.c.l.b16 %v2595
      %v3774 = vunpack.c.l.b16 %v2596
      %v3775 = vunpack.c.l.b16 %v2597
      %v3776 = vunpack.c.l.b16 %v2598
      %v3777 = vunpack.c.l.b16 %v2599
      %v3778 = vunpack.c.l.b16 %v2600
      %v3779 = vunpack.c.l.b16 %v2601
      %v3780 = vunpack.c.l.b16 %v2602
      %v3781 = vunpack.c.l.b16 %v2603
      %v3782 = vunpack.c.l.b16 %v2604
      %v3783 = vunpack.c.l.b16 %v2605
      %v3784 = vunpack.c.l.b16 %v2606
      %v3785 = vunpack.c.l.b16 %v2607
      %v3786 = vunpack.c.l.b16 %v2608
      %v3787 = vunpack.c.l.b16 %v2609
      %v3788 = vunpack.c.l.b16 %v2610
      %v3789 = vunpack.c.l.b16 %v2611
      %v3790 = vunpack.c.l.b16 %v2612
      %v3791 = vunpack.c.l.b16 %v2613
      %v3792 = vunpack.c.l.b16 %v2614
      %v3793 = vunpack.c.l.b16 %v2615
      %v3794 = vunpack.c.l.b16 %v2616
      %v3795 = vunpack.c.l.b16 %v2617
      %v3796 = vunpack.c.l.b16 %v2618
      %v3797 = vunpack.c.l.b16 %v2619
      %v3798 = vunpack.c.l.b16 %v2620
      %v3799 = vunpack.c.l.b16 %v2621
      %v3800 = vunpack.c.l.b16 %v2622
      %v3801 = vunpack.c.l.b16 %v2623
      %v3802 = vunpack.c.l.b16 %v2624
      %v3803 = vunpack.c.l.b16 %v2625
      %v3804 = vunpack.c.l.b16 %v2626
      %v3805 = vunpack.c.l.b16 %v2627
      %v3806 = vunpack.c.l.b16 %v2628
      %v3807 = vunpack.c.l.b16 %v2629
      %v3808 = vunpack.c.l.b16 %v2630
      %v3809 = vunpack.c.l.b16 %v2631
      %v3810 = vunpack.c.l.b16 %v2632
      %v3811 = vunpack.c.l.b16 %v2633
      %v3812 = vunpack.c.l.b16 %v2634
      %v3813 = vpack.c.b16 %v3742, %v3741
      %v3814 = vpack.c.b16 %v3744, %v3743
      %v3815 = vpack.c.b16 %v3746, %v3745
      %v3816 = vpack.c.b16 %v3748, %v3747
      %v3817 = vpack.c.b16 %v3750, %v3749
      %v3818 = vpack.c.b16 %v3752, %v3751
      %v3819 = vpack.c.b16 %v3754, %v3753
      %v3820 = vpack.c.b16 %v3756, %v3755
      %v3821 = vpack.c.b16 %v3758, %v3757
      %v3822 = vpack.c.b16 %v3760, %v3759
      %v3823 = vpack.c.b16 %v3762, %v3761
      %v3824 = vpack.c.b16 %v3764, %v3763
      %v3825 = vpack.c.b16 %v3766, %v3765
      %v3826 = vpack.c.b16 %v3768, %v3767
      %v3827 = vpack.c.b16 %v3770, %v3769
      %v3828 = vpack.c.b16 %v3772, %v3771
      %v3829 = vpack.c.b16 %v3774, %v3773
      %v3830 = vpack.c.b16 %v3776, %v3775
      %v3831 = vpack.c.b16 %v3778, %v3777
      %v3832 = vpack.c.b16 %v3780, %v3779
      %v3833 = vpack.c.b16 %v3782, %v3781
      %v3834 = vpack.c.b16 %v3784, %v3783
      %v3835 = vpack.c.b16 %v3786, %v3785
      %v3836 = vpack.c.b16 %v3788, %v3787
      %v3837 = vpack.c.b16 %v3790, %v3789
      %v3838 = vpack.c.b16 %v3792, %v3791
      %v3839 = vpack.c.b16 %v3794, %v3793
      %v3840 = vpack.c.b16 %v3796, %v3795
      %v3841 = vpack.c.b16 %v3798, %v3797
      %v3842 = vpack.c.b16 %v3800, %v3799
      %v3843 = vpack.c.b16 %v3802, %v3801
      %v3844 = vpack.c.b16 %v3804, %v3803
      %v3845 = vpack.c.b16 %v3806, %v3805
      %v3846 = vpack.c.b16 %v3808, %v3807
      %v3847 = vpack.c.b16 %v3810, %v3809
      %v3848 = vpack.c.b16 %v3812, %v3811
      %v3886 = vsel %vm425, %v2711, 0
      %v3889 = vsel %vm425, %v2751, 0
      %v3892 = vsel %vm425, %v2791, 0
      %v3895 = vsel %vm425, %v2824, 0
      %v3898 = vsel %vm425, %v2856, 0
      %v3901 = vsel %vm425, %v2888, 0
      %v3904 = vsel %vm425, %v2920, 0
      %v3907 = vsel %vm425, %v2952, 0
      %v3910 = vsel %vm425, %v2984, 0
      %v3913 = vsel %vm425, %v3016, 0
      %v3916 = vsel %vm425, %v3048, 0
      %v3919 = vsel %vm425, %v3080, 0
      %v3922 = vsel %vm425, %v3112, 0
      %v3925 = vsel %vm425, %v3144, 0
      %v3928 = vsel %vm425, %v3176, 0
      %v3931 = vsel %vm425, %v3208, 0
      %v3934 = vsel %vm425, %v3240, 0
      %v3937 = vsel %vm425, %v3272, 0
      %v3940 = vsel %vm425, %v3304, 0
      %v3943 = vsel %vm425, %v3336, 0
      %v3946 = vsel %vm425, %v3368, 0
      %v3949 = vsel %vm425, %v3400, 0
      %v3952 = vsel %vm425, %v3433, 0
      %v3955 = vsel %vm425, %v3466, 0
      %v3958 = vsel %vm425, %v3499, 0
      %v3961 = vsel %vm425, %v3540, 0
      %v3964 = vsel %vm425, %v3581, 0
      %3966 = vmatprep.subr.bf16.mxu0 0
      %3967 = vmatpush1.bf16.msra.mxu0 %v3813
      %3968 = vmatprep.subr.bf16.mxu0 0
      %3969 = vmatpush1.bf16.msra.mxu0 %v3814
      %3970 = vmatprep.subr.bf16.mxu0 0
      %3971 = vmatpush1.bf16.msra.mxu0 %v3815
      %3972 = vmatprep.subr.bf16.mxu0 0
      %3973 = vmatpush1.bf16.msra.mxu0 %v3816
      %3974 = vmatprep.subr.bf16.mxu0 0
      %3975 = vmatpush1.bf16.msra.mxu0 %v3817
      %3976 = vmatprep.subr.bf16.mxu0 0
      %3977 = vmatpush1.bf16.msra.mxu0 %v3818
      %3978 = vmatprep.subr.bf16.mxu0 0
      %3979 = vmatpush1.bf16.msra.mxu0 %v3819
      %3980 = vmatprep.subr.bf16.mxu0 0
      %3981 = vmatpush1.bf16.msra.mxu0 %v3820
      %3982 = vmatprep.subr.bf16.mxu0 0
      %3983 = vmatpush1.bf16.msra.mxu0 %v3821
      %3984 = vmatprep.subr.bf16.mxu0 0
      %3985 = vmatpush1.bf16.msra.mxu0 %v3822
      %3986 = vmatprep.subr.bf16.mxu0 0
      %3987 = vmatpush1.bf16.msra.mxu0 %v3823
      %3988 = vmatprep.subr.bf16.mxu0 0
      %3989 = vmatpush1.bf16.msra.mxu0 %v3824
      %3990 = vmatprep.subr.bf16.mxu0 0
      %3991 = vmatpush1.bf16.msra.mxu0 %v3825
      %3992 = vmatprep.subr.bf16.mxu0 0
      %3993 = vmatpush1.bf16.msra.mxu0 %v3826
      %3994 = vmatprep.subr.bf16.mxu0 0
      %3995 = vmatpush1.bf16.msra.mxu0 %v3827
      %3996 = vmatprep.subr.bf16.mxu0 0
      %3997 = vmatpush1.bf16.msra.mxu0 %v3828
      %3998 = vmatprep.mubr.bf16.mxu0 %v2665
      %3999 = vmatmul.mubr.bf16.gmra.mrb[0].mxu0 %v2650
      %v4000 = vpop.f32.mrb[0].mxu0
      %v4001 = vadd.f32 0.0, %v4000
      %v4002 = vpop.f32.mrb[0].mxu0
      %v4003 = vpop.f32.mrb[0].mxu0
      %v4004 = vadd.f32 0.0, %v4003
      %v4005 = vpop.f32.mrb[0].mxu0
      %4006 = vmatprep.mubr.bf16.mxu0 %v2727
      %4007 = vmatmul.mubr.bf16.gmra.mrb[0].mxu0 %v2719
      %v4008 = vpop.f32.mrb[0].mxu0
      %v4009 = vadd.f32 0.0, %v4008
      %v4010 = vpop.f32.mrb[0].mxu0
      %v4011 = vpop.f32.mrb[0].mxu0
      %v4012 = vadd.f32 0.0, %v4011
      %v4013 = vpop.f32.mrb[0].mxu0
      %4014 = vmatprep.mubr.bf16.mxu0 %v2767
      %4015 = vmatmul.mubr.bf16.gmra.mrb[0].mxu0 %v2759
      %v4016 = vpop.f32.mrb[0].mxu0
      %v4017 = vadd.f32 0.0, %v4016
      %v4018 = vpop.f32.mrb[0].mxu0
      %v4019 = vpop.f32.mrb[0].mxu0
      %v4020 = vadd.f32 0.0, %v4019
      %v4021 = vpop.f32.mrb[0].mxu0
      %4022 = vmatprep.mubr.bf16.mxu0 %v2800
      %4023 = vmatmul.mubr.bf16.gmra.mrb[0].mxu0 %v2792
      %v4024 = vpop.f32.mrb[0].mxu0
      %v4025 = vadd.f32 0.0, %v4024
      %v4026 = vpop.f32.mrb[0].mxu0
      %v4027 = vpop.f32.mrb[0].mxu0
      %v4028 = vadd.f32 0.0, %v4027
      %v4029 = vpop.f32.mrb[0].mxu0
      %4030 = vmatprep.mubr.bf16.mxu0 %v2832
      %4031 = vmatmul.mubr.bf16.gmra.mrb[0].mxu0 %v2743
      %v4032 = vpop.f32.mrb[0].mxu0
      %v4033 = vadd.f32 0.0, %v4032
      %v4034 = vpop.f32.mrb[0].mxu0
      %v4035 = vpop.f32.mrb[0].mxu0
      %v4036 = vadd.f32 0.0, %v4035
      %v4037 = vpop.f32.mrb[0].mxu0
      %4038 = vmatprep.mubr.bf16.mxu0 %v2864
      %4039 = vmatmul.mubr.bf16.gmra.mrb[0].mxu0 %v2783
      %v4040 = vpop.f32.mrb[0].mxu0
      %v4041 = vadd.f32 0.0, %v4040
      %v4042 = vpop.f32.mrb[0].mxu0
      %v4043 = vpop.f32.mrb[0].mxu0
      %v4044 = vadd.f32 0.0, %v4043
      %v4045 = vpop.f32.mrb[0].mxu0
      %4046 = vmatprep.mubr.bf16.mxu0 %v2896
      %4047 = vmatmul.mubr.bf16.gmra.mrb[0].mxu0 %v2816
      %v4048 = vpop.f32.mrb[0].mxu0
      %v4049 = vadd.f32 0.0, %v4048
      %v4050 = vpop.f32.mrb[0].mxu0
      %v4051 = vpop.f32.mrb[0].mxu0
      %v4052 = vadd.f32 0.0, %v4051
      %v4053 = vpop.f32.mrb[0].mxu0
      %4054 = vmatprep.mubr.bf16.mxu0 %v2928
      %4055 = vmatmul.mubr.bf16.gmra.mrb[0].mxu0 %v2848
      %v4056 = vpop.f32.mrb[0].mxu0
      %v4057 = vadd.f32 0.0, %v4056
      %v4058 = vpop.f32.mrb[0].mxu0
      %v4059 = vpop.f32.mrb[0].mxu0
      %v4060 = vadd.f32 0.0, %v4059
      %v4061 = vpop.f32.mrb[0].mxu0
      %4062 = vmatprep.mubr.bf16.mxu0 %v2960
      %4063 = vmatmul.mubr.bf16.gmra.mrb[0].mxu0 %v2880
      %v4064 = vpop.f32.mrb[0].mxu0
      %v4065 = vadd.f32 0.0, %v4064
      %v4066 = vpop.f32.mrb[0].mxu0
      %v4067 = vpop.f32.mrb[0].mxu0
      %v4068 = vadd.f32 0.0, %v4067
      %v4069 = vpop.f32.mrb[0].mxu0
      %4070 = vmatprep.mubr.bf16.mxu0 %v2992
      %4071 = vmatmul.mubr.bf16.gmra.mrb[0].mxu0 %v2912
      %v4072 = vpop.f32.mrb[0].mxu0
      %v4073 = vadd.f32 0.0, %v4072
      %v4074 = vpop.f32.mrb[0].mxu0
      %v4075 = vpop.f32.mrb[0].mxu0
      %v4076 = vadd.f32 0.0, %v4075
      %v4077 = vpop.f32.mrb[0].mxu0
      %4078 = vmatprep.mubr.bf16.mxu0 %v3024
      %4079 = vmatmul.mubr.bf16.gmra.mrb[0].mxu0 %v2944
      %v4080 = vpop.f32.mrb[0].mxu0
      %v4081 = vadd.f32 0.0, %v4080
      %v4082 = vpop.f32.mrb[0].mxu0
      %v4083 = vpop.f32.mrb[0].mxu0
      %v4084 = vadd.f32 0.0, %v4083
      %v4085 = vpop.f32.mrb[0].mxu0
      %4086 = vmatprep.mubr.bf16.mxu0 %v3056
      %4087 = vmatmul.mubr.bf16.gmra.mrb[0].mxu0 %v2976
      %v4088 = vpop.f32.mrb[0].mxu0
      %v4089 = vadd.f32 0.0, %v4088
      %v4090 = vpop.f32.mrb[0].mxu0
      %v4091 = vpop.f32.mrb[0].mxu0
      %v4092 = vadd.f32 0.0, %v4091
      %v4093 = vpop.f32.mrb[0].mxu0
      %4094 = vmatprep.mubr.bf16.mxu0 %v3088
      %4095 = vmatmul.mubr.bf16.gmra.mrb[0].mxu0 %v3008
      %v4096 = vpop.f32.mrb[0].mxu0
      %v4097 = vadd.f32 0.0, %v4096
      %v4098 = vpop.f32.mrb[0].mxu0
      %v4099 = vpop.f32.mrb[0].mxu0
      %v4100 = vadd.f32 0.0, %v4099
      %v4101 = vpop.f32.mrb[0].mxu0
      %4102 = vmatprep.mubr.bf16.mxu0 %v3120
      %4103 = vmatmul.mubr.bf16.gmra.mrb[0].mxu0 %v3040
      %v4104 = vpop.f32.mrb[0].mxu0
      %v4105 = vadd.f32 0.0, %v4104
      %v4106 = vpop.f32.mrb[0].mxu0
      %v4107 = vpop.f32.mrb[0].mxu0
      %v4108 = vadd.f32 0.0, %v4107
      %v4109 = vpop.f32.mrb[0].mxu0
      %4110 = vmatprep.mubr.bf16.mxu0 %v3152
      %4111 = vmatmul.mubr.bf16.gmra.mrb[0].mxu0 %v3072
      %v4112 = vpop.f32.mrb[0].mxu0
      %v4113 = vadd.f32 0.0, %v4112
      %v4114 = vpop.f32.mrb[0].mxu0
      %v4115 = vpop.f32.mrb[0].mxu0
      %v4116 = vadd.f32 0.0, %v4115
      %v4117 = vpop.f32.mrb[0].mxu0
      %4118 = vmatprep.mubr.bf16.mxu0 %v3184
      %4119 = vmatmul.mubr.bf16.gmra.mrb[0].mxu0 %v3104
      %v4120 = vpop.f32.mrb[0].mxu0
      %v4121 = vadd.f32 0.0, %v4120
      %v4122 = vpop.f32.mrb[0].mxu0
      %v4123 = vpop.f32.mrb[0].mxu0
      %v4124 = vadd.f32 0.0, %v4123
      %v4125 = vpop.f32.mrb[0].mxu0
      %4126 = vmatprep.mubr.bf16.mxu0 %v3216
      %4127 = vmatmul.mubr.bf16.gmra.mrb[0].mxu0 %v3136
      %v4128 = vpop.f32.mrb[0].mxu0
      %v4129 = vadd.f32 0.0, %v4128
      %v4130 = vpop.f32.mrb[0].mxu0
      %v4131 = vpop.f32.mrb[0].mxu0
      %v4132 = vadd.f32 0.0, %v4131
      %v4133 = vpop.f32.mrb[0].mxu0
      %4134 = vmatprep.mubr.bf16.mxu0 %v3248
      %4135 = vmatmul.mubr.bf16.gmra.mrb[0].mxu0 %v3168
      %v4136 = vpop.f32.mrb[0].mxu0
      %v4137 = vadd.f32 0.0, %v4136
      %v4138 = vpop.f32.mrb[0].mxu0
      %v4139 = vpop.f32.mrb[0].mxu0
      %v4140 = vadd.f32 0.0, %v4139
      %v4141 = vpop.f32.mrb[0].mxu0
      %4142 = vmatprep.mubr.bf16.mxu0 %v3280
      %4143 = vmatmul.mubr.bf16.gmra.mrb[0].mxu0 %v3200
      %v4144 = vpop.f32.mrb[0].mxu0
      %v4145 = vadd.f32 0.0, %v4144
      %v4146 = vpop.f32.mrb[0].mxu0
      %v4147 = vpop.f32.mrb[0].mxu0
      %v4148 = vadd.f32 0.0, %v4147
      %v4149 = vpop.f32.mrb[0].mxu0
      %4150 = vmatprep.mubr.bf16.mxu0 %v3312
      %4151 = vmatmul.mubr.bf16.gmra.mrb[0].mxu0 %v3232
      %v4152 = vpop.f32.mrb[0].mxu0
      %v4153 = vadd.f32 0.0, %v4152
      %v4154 = vpop.f32.mrb[0].mxu0
      %v4155 = vpop.f32.mrb[0].mxu0
      %v4156 = vadd.f32 0.0, %v4155
      %v4157 = vpop.f32.mrb[0].mxu0
      %4158 = vmatprep.mubr.bf16.mxu0 %v3344
      %4159 = vmatmul.mubr.bf16.gmra.mrb[0].mxu0 %v3264
      %v4160 = vpop.f32.mrb[0].mxu0
      %v4161 = vadd.f32 0.0, %v4160
      %v4162 = vpop.f32.mrb[0].mxu0
      %v4163 = vpop.f32.mrb[0].mxu0
      %v4164 = vadd.f32 0.0, %v4163
      %v4165 = vpop.f32.mrb[0].mxu0
      %4166 = vmatprep.mubr.bf16.mxu0 %v3376
      %4167 = vmatmul.mubr.bf16.gmra.mrb[0].mxu0 %v3296
      %v4168 = vpop.f32.mrb[0].mxu0
      %v4169 = vadd.f32 0.0, %v4168
      %v4170 = vpop.f32.mrb[0].mxu0
      %v4171 = vpop.f32.mrb[0].mxu0
      %v4172 = vadd.f32 0.0, %v4171
      %v4173 = vpop.f32.mrb[0].mxu0
      %4174 = vmatprep.mubr.bf16.mxu0 %v3408
      %4175 = vmatmul.mubr.bf16.gmra.mrb[0].mxu0 %v3328
      %v4176 = vpop.f32.mrb[0].mxu0
      %v4177 = vadd.f32 0.0, %v4176
      %v4178 = vpop.f32.mrb[0].mxu0
      %v4179 = vpop.f32.mrb[0].mxu0
      %v4180 = vadd.f32 0.0, %v4179
      %v4181 = vpop.f32.mrb[0].mxu0
      %4182 = vmatprep.mubr.bf16.mxu0 %v3441
      %4183 = vmatmul.mubr.bf16.gmra.mrb[0].mxu0 %v3360
      %v4184 = vpop.f32.mrb[0].mxu0
      %v4185 = vadd.f32 0.0, %v4184
      %v4186 = vpop.f32.mrb[0].mxu0
      %v4187 = vpop.f32.mrb[0].mxu0
      %v4188 = vadd.f32 0.0, %v4187
      %v4189 = vpop.f32.mrb[0].mxu0
      %4190 = vmatprep.mubr.bf16.mxu0 %v3474
      %4191 = vmatmul.mubr.bf16.gmra.mrb[0].mxu0 %v3392
      %v4192 = vpop.f32.mrb[0].mxu0
      %v4193 = vadd.f32 0.0, %v4192
      %v4194 = vpop.f32.mrb[0].mxu0
      %v4195 = vpop.f32.mrb[0].mxu0
      %v4196 = vadd.f32 0.0, %v4195
      %v4197 = vpop.f32.mrb[0].mxu0
      %4198 = vmatprep.mubr.bf16.mxu0 %v3515
      %4199 = vmatmul.mubr.bf16.gmra.mrb[0].mxu0 %v3507
      %v4200 = vpop.f32.mrb[0].mxu0
      %v4201 = vadd.f32 0.0, %v4200
      %v4202 = vpop.f32.mrb[0].mxu0
      %v4203 = vpop.f32.mrb[0].mxu0
      %v4204 = vadd.f32 0.0, %v4203
      %v4205 = vpop.f32.mrb[0].mxu0
      %4206 = vmatprep.mubr.bf16.mxu0 %v3556
      %4207 = vmatmul.mubr.bf16.gmra.mrb[0].mxu0 %v3548
      %v4208 = vpop.f32.mrb[0].mxu0
      %v4209 = vadd.f32 0.0, %v4208
      %v4210 = vpop.f32.mrb[0].mxu0
      %v4211 = vpop.f32.mrb[0].mxu0
      %v4212 = vadd.f32 0.0, %v4211
      %v4213 = vpop.f32.mrb[0].mxu0
      %4214 = vdwg.mxu0
      %4215 = vmatprep.subr.bf16.mxu0 0
      %4216 = vmatpush1.bf16.msra.mxu0 %v3829
      %4217 = vmatprep.subr.bf16.mxu0 0
      %4218 = vmatpush1.bf16.msra.mxu0 %v3830
      %4219 = vmatprep.subr.bf16.mxu0 0
      %4220 = vmatpush1.bf16.msra.mxu0 %v3831
      %4221 = vmatprep.subr.bf16.mxu0 0
      %4222 = vmatpush1.bf16.msra.mxu0 %v3832
      %4223 = vmatprep.subr.bf16.mxu0 0
      %4224 = vmatpush1.bf16.msra.mxu0 %v3833
      %4225 = vmatprep.subr.bf16.mxu0 0
      %4226 = vmatpush1.bf16.msra.mxu0 %v3834
      %4227 = vmatprep.subr.bf16.mxu0 0
      %4228 = vmatpush1.bf16.msra.mxu0 %v3835
      %4229 = vmatprep.subr.bf16.mxu0 0
      %4230 = vmatpush1.bf16.msra.mxu0 %v3836
      %4231 = vmatprep.subr.bf16.mxu0 0
      %4232 = vmatpush1.bf16.msra.mxu0 %v3837
      %4233 = vmatprep.subr.bf16.mxu0 0
      %4234 = vmatpush1.bf16.msra.mxu0 %v3838
      %4235 = vmatprep.subr.bf16.mxu0 0
      %4236 = vmatpush1.bf16.msra.mxu0 %v3839
      %4237 = vmatprep.subr.bf16.mxu0 0
      %4238 = vmatpush1.bf16.msra.mxu0 %v3840
      %4239 = vmatprep.subr.bf16.mxu0 0
      %4240 = vmatpush1.bf16.msra.mxu0 %v3841
      %4241 = vmatprep.subr.bf16.mxu0 0
      %4242 = vmatpush1.bf16.msra.mxu0 %v3842
      %4243 = vmatprep.subr.bf16.mxu0 0
      %4244 = vmatpush1.bf16.msra.mxu0 %v3843
      %4245 = vmatprep.subr.bf16.mxu0 0
      %4246 = vmatpush1.bf16.msra.mxu0 %v3844
      %4247 = vmatprep.mubr.bf16.mxu0 %v2695
      %4248 = vmatmul.mubr.bf16.gmra.mrb[0].mxu0 %v2680
      %v4249 = vpop.f32.mrb[0].mxu0
      %v4250 = vadd.f32 %v4001, %v4249
      %v4251 = vpop.f32.mrb[0].mxu0
      %v4252 = vpop.f32.mrb[0].mxu0
      %v4253 = vadd.f32 %v4004, %v4252
      %v4254 = vpop.f32.mrb[0].mxu0
      %4255 = vmatprep.mubr.bf16.mxu0 %v2743
      %4256 = vmatmul.mubr.bf16.gmra.mrb[0].mxu0 %v2735
      %v4257 = vpop.f32.mrb[0].mxu0
      %v4258 = vadd.f32 %v4009, %v4257
      %v4259 = vpop.f32.mrb[0].mxu0
      %v4260 = vpop.f32.mrb[0].mxu0
      %v4261 = vadd.f32 %v4012, %v4260
      %v4262 = vpop.f32.mrb[0].mxu0
      %4263 = vmatprep.mubr.bf16.mxu0 %v2783
      %4264 = vmatmul.mubr.bf16.gmra.mrb[0].mxu0 %v2775
      %v4265 = vpop.f32.mrb[0].mxu0
      %v4266 = vadd.f32 %v4017, %v4265
      %v4267 = vpop.f32.mrb[0].mxu0
      %v4268 = vpop.f32.mrb[0].mxu0
      %v4269 = vadd.f32 %v4020, %v4268
      %v4270 = vpop.f32.mrb[0].mxu0
      %4271 = vmatprep.mubr.bf16.mxu0 %v2816
      %4272 = vmatmul.mubr.bf16.gmra.mrb[0].mxu0 %v2808
      %v4273 = vpop.f32.mrb[0].mxu0
      %v4274 = vadd.f32 %v4025, %v4273
      %v4275 = vpop.f32.mrb[0].mxu0
      %v4276 = vpop.f32.mrb[0].mxu0
      %v4277 = vadd.f32 %v4028, %v4276
      %v4278 = vpop.f32.mrb[0].mxu0
      %4279 = vmatprep.mubr.bf16.mxu0 %v2848
      %4280 = vmatmul.mubr.bf16.gmra.mrb[0].mxu0 %v2840
      %v4281 = vpop.f32.mrb[0].mxu0
      %v4282 = vadd.f32 %v4033, %v4281
      %v4283 = vpop.f32.mrb[0].mxu0
      %v4284 = vpop.f32.mrb[0].mxu0
      %v4285 = vadd.f32 %v4036, %v4284
      %v4286 = vpop.f32.mrb[0].mxu0
      %4287 = vmatprep.mubr.bf16.mxu0 %v2880
      %4288 = vmatmul.mubr.bf16.gmra.mrb[0].mxu0 %v2872
      %v4289 = vpop.f32.mrb[0].mxu0
      %v4290 = vadd.f32 %v4041, %v4289
      %v4291 = vpop.f32.mrb[0].mxu0
      %v4292 = vpop.f32.mrb[0].mxu0
      %v4293 = vadd.f32 %v4044, %v4292
      %v4294 = vpop.f32.mrb[0].mxu0
      %4295 = vmatprep.mubr.bf16.mxu0 %v2912
      %4296 = vmatmul.mubr.bf16.gmra.mrb[0].mxu0 %v2904
      %v4297 = vpop.f32.mrb[0].mxu0
      %v4298 = vadd.f32 %v4049, %v4297
      %v4299 = vpop.f32.mrb[0].mxu0
      %v4300 = vpop.f32.mrb[0].mxu0
      %v4301 = vadd.f32 %v4052, %v4300
      %v4302 = vpop.f32.mrb[0].mxu0
      %4303 = vmatprep.mubr.bf16.mxu0 %v2944
      %4304 = vmatmul.mubr.bf16.gmra.mrb[0].mxu0 %v2936
      %v4305 = vpop.f32.mrb[0].mxu0
      %v4306 = vadd.f32 %v4057, %v4305
      %v4307 = vpop.f32.mrb[0].mxu0
      %v4308 = vpop.f32.mrb[0].mxu0
      %v4309 = vadd.f32 %v4060, %v4308
      %v4310 = vpop.f32.mrb[0].mxu0
      %4311 = vmatprep.mubr.bf16.mxu0 %v2976
      %4312 = vmatmul.mubr.bf16.gmra.mrb[0].mxu0 %v2968
      %v4313 = vpop.f32.mrb[0].mxu0
      %v4314 = vadd.f32 %v4065, %v4313
      %v4315 = vpop.f32.mrb[0].mxu0
      %v4316 = vpop.f32.mrb[0].mxu0
      %v4317 = vadd.f32 %v4068, %v4316
      %v4318 = vpop.f32.mrb[0].mxu0
      %4319 = vmatprep.mubr.bf16.mxu0 %v3008
      %4320 = vmatmul.mubr.bf16.gmra.mrb[0].mxu0 %v3000
      %v4321 = vpop.f32.mrb[0].mxu0
      %v4322 = vadd.f32 %v4073, %v4321
      %v4323 = vpop.f32.mrb[0].mxu0
      %v4324 = vpop.f32.mrb[0].mxu0
      %v4325 = vadd.f32 %v4076, %v4324
      %v4326 = vpop.f32.mrb[0].mxu0
      %4327 = vmatprep.mubr.bf16.mxu0 %v3040
      %4328 = vmatmul.mubr.bf16.gmra.mrb[0].mxu0 %v3032
      %v4329 = vpop.f32.mrb[0].mxu0
      %v4330 = vadd.f32 %v4081, %v4329
      %v4331 = vpop.f32.mrb[0].mxu0
      %v4332 = vpop.f32.mrb[0].mxu0
      %v4333 = vadd.f32 %v4084, %v4332
      %v4334 = vpop.f32.mrb[0].mxu0
      %4335 = vmatprep.mubr.bf16.mxu0 %v3072
      %4336 = vmatmul.mubr.bf16.gmra.mrb[0].mxu0 %v3064
      %v4337 = vpop.f32.mrb[0].mxu0
      %v4338 = vadd.f32 %v4089, %v4337
      %v4339 = vpop.f32.mrb[0].mxu0
      %v4340 = vpop.f32.mrb[0].mxu0
      %v4341 = vadd.f32 %v4092, %v4340
      %v4342 = vpop.f32.mrb[0].mxu0
      %4343 = vmatprep.mubr.bf16.mxu0 %v3104
      %4344 = vmatmul.mubr.bf16.gmra.mrb[0].mxu0 %v3096
      %v4345 = vpop.f32.mrb[0].mxu0
      %v4346 = vadd.f32 %v4097, %v4345
      %v4347 = vpop.f32.mrb[0].mxu0
      %v4348 = vpop.f32.mrb[0].mxu0
      %v4349 = vadd.f32 %v4100, %v4348
      %v4350 = vpop.f32.mrb[0].mxu0
      %4351 = vmatprep.mubr.bf16.mxu0 %v3136
      %4352 = vmatmul.mubr.bf16.gmra.mrb[0].mxu0 %v3128
      %v4353 = vpop.f32.mrb[0].mxu0
      %v4354 = vadd.f32 %v4105, %v4353
      %v4355 = vpop.f32.mrb[0].mxu0
      %v4356 = vpop.f32.mrb[0].mxu0
      %v4357 = vadd.f32 %v4108, %v4356
      %v4358 = vpop.f32.mrb[0].mxu0
      %4359 = vmatprep.mubr.bf16.mxu0 %v3168
      %4360 = vmatmul.mubr.bf16.gmra.mrb[0].mxu0 %v3160
      %v4361 = vpop.f32.mrb[0].mxu0
      %v4362 = vadd.f32 %v4113, %v4361
      %v4363 = vpop.f32.mrb[0].mxu0
      %v4364 = vpop.f32.mrb[0].mxu0
      %v4365 = vadd.f32 %v4116, %v4364
      %v4366 = vpop.f32.mrb[0].mxu0
      %4367 = vmatprep.mubr.bf16.mxu0 %v3200
      %4368 = vmatmul.mubr.bf16.gmra.mrb[0].mxu0 %v3192
      %v4369 = vpop.f32.mrb[0].mxu0
      %v4370 = vadd.f32 %v4121, %v4369
      %v4371 = vpop.f32.mrb[0].mxu0
      %v4372 = vpop.f32.mrb[0].mxu0
      %v4373 = vadd.f32 %v4124, %v4372
      %v4374 = vpop.f32.mrb[0].mxu0
      %4375 = vmatprep.mubr.bf16.mxu0 %v3232
      %4376 = vmatmul.mubr.bf16.gmra.mrb[0].mxu0 %v3224
      %v4377 = vpop.f32.mrb[0].mxu0
      %v4378 = vadd.f32 %v4129, %v4377
      %v4379 = vpop.f32.mrb[0].mxu0
      %v4380 = vpop.f32.mrb[0].mxu0
      %v4381 = vadd.f32 %v4132, %v4380
      %v4382 = vpop.f32.mrb[0].mxu0
      %4383 = vmatprep.mubr.bf16.mxu0 %v3264
      %4384 = vmatmul.mubr.bf16.gmra.mrb[0].mxu0 %v3256
      %v4385 = vpop.f32.mrb[0].mxu0
      %v4386 = vadd.f32 %v4137, %v4385
      %v4387 = vpop.f32.mrb[0].mxu0
      %v4388 = vpop.f32.mrb[0].mxu0
      %v4389 = vadd.f32 %v4140, %v4388
      %v4390 = vpop.f32.mrb[0].mxu0
      %4391 = vmatprep.mubr.bf16.mxu0 %v3296
      %4392 = vmatmul.mubr.bf16.gmra.mrb[0].mxu0 %v3288
      %v4393 = vpop.f32.mrb[0].mxu0
      %v4394 = vadd.f32 %v4145, %v4393
      %v4395 = vpop.f32.mrb[0].mxu0
      %v4396 = vpop.f32.mrb[0].mxu0
      %v4397 = vadd.f32 %v4148, %v4396
      %v4398 = vpop.f32.mrb[0].mxu0
      %4399 = vmatprep.mubr.bf16.mxu0 %v3328
      %4400 = vmatmul.mubr.bf16.gmra.mrb[0].mxu0 %v3320
      %v4401 = vpop.f32.mrb[0].mxu0
      %v4402 = vadd.f32 %v4153, %v4401
      %v4403 = vpop.f32.mrb[0].mxu0
      %v4404 = vpop.f32.mrb[0].mxu0
      %v4405 = vadd.f32 %v4156, %v4404
      %v4406 = vpop.f32.mrb[0].mxu0
      %4407 = vmatprep.mubr.bf16.mxu0 %v3360
      %4408 = vmatmul.mubr.bf16.gmra.mrb[0].mxu0 %v3352
      %v4409 = vpop.f32.mrb[0].mxu0
      %v4410 = vadd.f32 %v4161, %v4409
      %v4411 = vpop.f32.mrb[0].mxu0
      %v4412 = vpop.f32.mrb[0].mxu0
      %v4413 = vadd.f32 %v4164, %v4412
      %v4414 = vpop.f32.mrb[0].mxu0
      %4415 = vmatprep.mubr.bf16.mxu0 %v3392
      %4416 = vmatmul.mubr.bf16.gmra.mrb[0].mxu0 %v3384
      %v4417 = vpop.f32.mrb[0].mxu0
      %v4418 = vadd.f32 %v4169, %v4417
      %v4419 = vpop.f32.mrb[0].mxu0
      %v4420 = vpop.f32.mrb[0].mxu0
      %v4421 = vadd.f32 %v4172, %v4420
      %v4422 = vpop.f32.mrb[0].mxu0
      %4423 = vmatprep.mubr.bf16.mxu0 %v3424
      %4424 = vmatmul.mubr.bf16.gmra.mrb[0].mxu0 %v3416
      %v4425 = vpop.f32.mrb[0].mxu0
      %v4426 = vadd.f32 %v4177, %v4425
      %v4427 = vpop.f32.mrb[0].mxu0
      %v4428 = vpop.f32.mrb[0].mxu0
      %v4429 = vadd.f32 %v4180, %v4428
      %v4430 = vpop.f32.mrb[0].mxu0
      %4431 = vmatprep.mubr.bf16.mxu0 %v3457
      %4432 = vmatmul.mubr.bf16.gmra.mrb[0].mxu0 %v3449
      %v4433 = vpop.f32.mrb[0].mxu0
      %v4434 = vadd.f32 %v4185, %v4433
      %v4435 = vpop.f32.mrb[0].mxu0
      %v4436 = vpop.f32.mrb[0].mxu0
      %v4437 = vadd.f32 %v4188, %v4436
      %v4438 = vpop.f32.mrb[0].mxu0
      %4439 = vmatprep.mubr.bf16.mxu0 %v3490
      %4440 = vmatmul.mubr.bf16.gmra.mrb[0].mxu0 %v3482
      %v4441 = vpop.f32.mrb[0].mxu0
      %v4442 = vadd.f32 %v4193, %v4441
      %v4443 = vpop.f32.mrb[0].mxu0
      %v4444 = vpop.f32.mrb[0].mxu0
      %v4445 = vadd.f32 %v4196, %v4444
      %v4446 = vpop.f32.mrb[0].mxu0
      %4447 = vmatprep.mubr.bf16.mxu0 %v3531
      %4448 = vmatmul.mubr.bf16.gmra.mrb[0].mxu0 %v3523
      %v4449 = vpop.f32.mrb[0].mxu0
      %v4450 = vadd.f32 %v4201, %v4449
      %v4451 = vpop.f32.mrb[0].mxu0
      %v4452 = vpop.f32.mrb[0].mxu0
      %v4453 = vadd.f32 %v4204, %v4452
      %v4454 = vpop.f32.mrb[0].mxu0
      %4455 = vmatprep.mubr.bf16.mxu0 %v3572
      %4456 = vmatmul.mubr.bf16.gmra.mrb[0].mxu0 %v3564
      %v4457 = vpop.f32.mrb[0].mxu0
      %v4458 = vadd.f32 %v4209, %v4457
      %v4459 = vpop.f32.mrb[0].mxu0
      %v4460 = vpop.f32.mrb[0].mxu0
      %v4461 = vadd.f32 %v4212, %v4460
      %v4462 = vpop.f32.mrb[0].mxu0
      %4463 = vdwg.mxu0
      %4464 = vmatprep.subr.bf16.mxu0 0
      %4465 = vmatpush1.bf16.msra.mxu0 %v3845
      %4466 = vmatprep.subr.bf16.mxu0 0
      %4467 = vmatpush1.bf16.msra.mxu0 %v3846
      %4468 = vmatprep.subr.bf16.mxu0 0
      %4469 = vmatpush1.bf16.msra.mxu0 %v3847
      %4470 = vmatprep.subr.bf16.mxu0 0
      %4471 = vmatpush1.bf16.msra.mxu0 %v3848
      %4472 = vmatprep.subr.bf16.mxu0 0
      %4473 = vmatpush1.bf16.msra.mxu0 0
      %4474 = vmatprep.subr.bf16.mxu0 0
      %4475 = vmatpush1.bf16.msra.mxu0 0
      %4476 = vmatprep.subr.bf16.mxu0 0
      %4477 = vmatpush1.bf16.msra.mxu0 0
      %4478 = vmatprep.subr.bf16.mxu0 0
      %4479 = vmatpush1.bf16.msra.mxu0 0
      %4480 = vmatprep.subr.bf16.mxu0 0
      %4481 = vmatpush1.bf16.msra.mxu0 0
      %4482 = vmatprep.subr.bf16.mxu0 0
      %4483 = vmatpush1.bf16.msra.mxu0 0
      %4484 = vmatprep.subr.bf16.mxu0 0
      %4485 = vmatpush1.bf16.msra.mxu0 0
      %4486 = vmatprep.subr.bf16.mxu0 0
      %4487 = vmatpush1.bf16.msra.mxu0 0
      %4488 = vmatprep.subr.bf16.mxu0 0
      %4489 = vmatpush1.bf16.msra.mxu0 0
      %4490 = vmatprep.subr.bf16.mxu0 0
      %4491 = vmatpush1.bf16.msra.mxu0 0
      %4492 = vmatprep.subr.bf16.mxu0 0
      %4493 = vmatpush1.bf16.msra.mxu0 0
      %4494 = vmatprep.subr.bf16.mxu0 0
      %4495 = vmatpush1.bf16.msra.mxu0 0
      %4496 = vmatprep.mubr.bf16.mxu0 0
      %4497 = vmatmul.mubr.bf16.gmra.mrb[0].mxu0 %v3886
      %v4498 = vpop.f32.mrb[0].mxu0
      %v4499 = vadd.f32 %v4250, %v4498
      %v4500 = vpop.f32.mrb[0].mxu0
      %v4501 = vpop.f32.mrb[0].mxu0
      %v4502 = vadd.f32 %v4253, %v4501
      %v4503 = vpop.f32.mrb[0].mxu0
      %4504 = vmatprep.mubr.bf16.mxu0 0
      %4505 = vmatmul.mubr.bf16.gmra.mrb[0].mxu0 %v3889
      %v4506 = vpop.f32.mrb[0].mxu0
      %v4507 = vadd.f32 %v4258, %v4506
      %v4508 = vpop.f32.mrb[0].mxu0
      %v4509 = vpop.f32.mrb[0].mxu0
      %v4510 = vadd.f32 %v4261, %v4509
      %v4511 = vpop.f32.mrb[0].mxu0
      %4512 = vmatprep.mubr.bf16.mxu0 0
      %4513 = vmatmul.mubr.bf16.gmra.mrb[0].mxu0 %v3892
      %v4514 = vpop.f32.mrb[0].mxu0
      %v4515 = vadd.f32 %v4266, %v4514
      %v4516 = vpop.f32.mrb[0].mxu0
      %v4517 = vpop.f32.mrb[0].mxu0
      %v4518 = vadd.f32 %v4269, %v4517
      %v4519 = vpop.f32.mrb[0].mxu0
      %4520 = vmatprep.mubr.bf16.mxu0 0
      %4521 = vmatmul.mubr.bf16.gmra.mrb[0].mxu0 %v3895
      %v4522 = vpop.f32.mrb[0].mxu0
      %v4523 = vadd.f32 %v4274, %v4522
      %v4524 = vpop.f32.mrb[0].mxu0
      %v4525 = vpop.f32.mrb[0].mxu0
      %v4526 = vadd.f32 %v4277, %v4525
      %v4527 = vpop.f32.mrb[0].mxu0
      %4528 = vmatprep.mubr.bf16.mxu0 0
      %4529 = vmatmul.mubr.bf16.gmra.mrb[0].mxu0 %v3898
      %v4530 = vpop.f32.mrb[0].mxu0
      %v4531 = vadd.f32 %v4282, %v4530
      %v4532 = vpop.f32.mrb[0].mxu0
      %v4533 = vpop.f32.mrb[0].mxu0
      %v4534 = vadd.f32 %v4285, %v4533
      %v4535 = vpop.f32.mrb[0].mxu0
      %4536 = vmatprep.mubr.bf16.mxu0 0
      %4537 = vmatmul.mubr.bf16.gmra.mrb[0].mxu0 %v3901
      %v4538 = vpop.f32.mrb[0].mxu0
      %v4539 = vadd.f32 %v4290, %v4538
      %v4540 = vpop.f32.mrb[0].mxu0
      %v4541 = vpop.f32.mrb[0].mxu0
      %v4542 = vadd.f32 %v4293, %v4541
      %v4543 = vpop.f32.mrb[0].mxu0
      %4544 = vmatprep.mubr.bf16.mxu0 0
      %4545 = vmatmul.mubr.bf16.gmra.mrb[0].mxu0 %v3904
      %v4546 = vpop.f32.mrb[0].mxu0
      %v4547 = vadd.f32 %v4298, %v4546
      %v4548 = vpop.f32.mrb[0].mxu0
      %v4549 = vpop.f32.mrb[0].mxu0
      %v4550 = vadd.f32 %v4301, %v4549
      %v4551 = vpop.f32.mrb[0].mxu0
      %4552 = vmatprep.mubr.bf16.mxu0 0
      %4553 = vmatmul.mubr.bf16.gmra.mrb[0].mxu0 %v3907
      %v4554 = vpop.f32.mrb[0].mxu0
      %v4555 = vadd.f32 %v4306, %v4554
      %v4556 = vpop.f32.mrb[0].mxu0
      %v4557 = vpop.f32.mrb[0].mxu0
      %v4558 = vadd.f32 %v4309, %v4557
      %v4559 = vpop.f32.mrb[0].mxu0
      %4560 = vmatprep.mubr.bf16.mxu0 0
      %4561 = vmatmul.mubr.bf16.gmra.mrb[0].mxu0 %v3910
      %v4562 = vpop.f32.mrb[0].mxu0
      %v4563 = vadd.f32 %v4314, %v4562
      %v4564 = vpop.f32.mrb[0].mxu0
      %v4565 = vpop.f32.mrb[0].mxu0
      %v4566 = vadd.f32 %v4317, %v4565
      %v4567 = vpop.f32.mrb[0].mxu0
      %4568 = vmatprep.mubr.bf16.mxu0 0
      %4569 = vmatmul.mubr.bf16.gmra.mrb[0].mxu0 %v3913
      %v4570 = vpop.f32.mrb[0].mxu0
      %v4571 = vadd.f32 %v4322, %v4570
      %v4572 = vpop.f32.mrb[0].mxu0
      %v4573 = vpop.f32.mrb[0].mxu0
      %v4574 = vadd.f32 %v4325, %v4573
      %v4575 = vpop.f32.mrb[0].mxu0
      %4576 = vmatprep.mubr.bf16.mxu0 0
      %4577 = vmatmul.mubr.bf16.gmra.mrb[0].mxu0 %v3916
      %v4578 = vpop.f32.mrb[0].mxu0
      %v4579 = vadd.f32 %v4330, %v4578
      %v4580 = vpop.f32.mrb[0].mxu0
      %v4581 = vpop.f32.mrb[0].mxu0
      %v4582 = vadd.f32 %v4333, %v4581
      %v4583 = vpop.f32.mrb[0].mxu0
      %4584 = vmatprep.mubr.bf16.mxu0 0
      %4585 = vmatmul.mubr.bf16.gmra.mrb[0].mxu0 %v3919
      %v4586 = vpop.f32.mrb[0].mxu0
      %v4587 = vadd.f32 %v4338, %v4586
      %v4588 = vpop.f32.mrb[0].mxu0
      %v4589 = vpop.f32.mrb[0].mxu0
      %v4590 = vadd.f32 %v4341, %v4589
      %v4591 = vpop.f32.mrb[0].mxu0
      %4592 = vmatprep.mubr.bf16.mxu0 0
      %4593 = vmatmul.mubr.bf16.gmra.mrb[0].mxu0 %v3922
      %v4594 = vpop.f32.mrb[0].mxu0
      %v4595 = vadd.f32 %v4346, %v4594
      %v4596 = vpop.f32.mrb[0].mxu0
      %v4597 = vpop.f32.mrb[0].mxu0
      %v4598 = vadd.f32 %v4349, %v4597
      %v4599 = vpop.f32.mrb[0].mxu0
      %4600 = vmatprep.mubr.bf16.mxu0 0
      %4601 = vmatmul.mubr.bf16.gmra.mrb[0].mxu0 %v3925
      %v4602 = vpop.f32.mrb[0].mxu0
      %v4603 = vadd.f32 %v4354, %v4602
      %v4604 = vpop.f32.mrb[0].mxu0
      %v4605 = vpop.f32.mrb[0].mxu0
      %v4606 = vadd.f32 %v4357, %v4605
      %v4607 = vpop.f32.mrb[0].mxu0
      %4608 = vmatprep.mubr.bf16.mxu0 0
      %4609 = vmatmul.mubr.bf16.gmra.mrb[0].mxu0 %v3928
      %v4610 = vpop.f32.mrb[0].mxu0
      %v4611 = vadd.f32 %v4362, %v4610
      %v4612 = vpop.f32.mrb[0].mxu0
      %v4613 = vpop.f32.mrb[0].mxu0
      %v4614 = vadd.f32 %v4365, %v4613
      %v4615 = vpop.f32.mrb[0].mxu0
      %4616 = vmatprep.mubr.bf16.mxu0 0
      %4617 = vmatmul.mubr.bf16.gmra.mrb[0].mxu0 %v3931
      %v4618 = vpop.f32.mrb[0].mxu0
      %v4619 = vadd.f32 %v4370, %v4618
      %v4620 = vpop.f32.mrb[0].mxu0
      %v4621 = vpop.f32.mrb[0].mxu0
      %v4622 = vadd.f32 %v4373, %v4621
      %v4623 = vpop.f32.mrb[0].mxu0
      %4624 = vmatprep.mubr.bf16.mxu0 0
      %4625 = vmatmul.mubr.bf16.gmra.mrb[0].mxu0 %v3934
      %v4626 = vpop.f32.mrb[0].mxu0
      %v4627 = vadd.f32 %v4378, %v4626
      %v4628 = vpop.f32.mrb[0].mxu0
      %v4629 = vpop.f32.mrb[0].mxu0
      %v4630 = vadd.f32 %v4381, %v4629
      %v4631 = vpop.f32.mrb[0].mxu0
      %4632 = vmatprep.mubr.bf16.mxu0 0
      %4633 = vmatmul.mubr.bf16.gmra.mrb[0].mxu0 %v3937
      %v4634 = vpop.f32.mrb[0].mxu0
      %v4635 = vadd.f32 %v4386, %v4634
      %v4636 = vpop.f32.mrb[0].mxu0
      %v4637 = vpop.f32.mrb[0].mxu0
      %v4638 = vadd.f32 %v4389, %v4637
      %v4639 = vpop.f32.mrb[0].mxu0
      %4640 = vmatprep.mubr.bf16.mxu0 0
      %4641 = vmatmul.mubr.bf16.gmra.mrb[0].mxu0 %v3940
      %v4642 = vpop.f32.mrb[0].mxu0
      %v4643 = vadd.f32 %v4394, %v4642
      %v4644 = vpop.f32.mrb[0].mxu0
      %v4645 = vpop.f32.mrb[0].mxu0
      %v4646 = vadd.f32 %v4397, %v4645
      %v4647 = vpop.f32.mrb[0].mxu0
      %4648 = vmatprep.mubr.bf16.mxu0 0
      %4649 = vmatmul.mubr.bf16.gmra.mrb[0].mxu0 %v3943
      %v4650 = vpop.f32.mrb[0].mxu0
      %v4651 = vadd.f32 %v4402, %v4650
      %v4652 = vpop.f32.mrb[0].mxu0
      %v4653 = vpop.f32.mrb[0].mxu0
      %v4654 = vadd.f32 %v4405, %v4653
      %v4655 = vpop.f32.mrb[0].mxu0
      %4656 = vmatprep.mubr.bf16.mxu0 0
      %4657 = vmatmul.mubr.bf16.gmra.mrb[0].mxu0 %v3946
      %v4658 = vpop.f32.mrb[0].mxu0
      %v4659 = vadd.f32 %v4410, %v4658
      %v4660 = vpop.f32.mrb[0].mxu0
      %v4661 = vpop.f32.mrb[0].mxu0
      %v4662 = vadd.f32 %v4413, %v4661
      %v4663 = vpop.f32.mrb[0].mxu0
      %4664 = vmatprep.mubr.bf16.mxu0 0
      %4665 = vmatmul.mubr.bf16.gmra.mrb[0].mxu0 %v3949
      %v4666 = vpop.f32.mrb[0].mxu0
      %v4667 = vadd.f32 %v4418, %v4666
      %v4668 = vpop.f32.mrb[0].mxu0
      %v4669 = vpop.f32.mrb[0].mxu0
      %v4670 = vadd.f32 %v4421, %v4669
      %v4671 = vpop.f32.mrb[0].mxu0
      %4672 = vmatprep.mubr.bf16.mxu0 0
      %4673 = vmatmul.mubr.bf16.gmra.mrb[0].mxu0 %v3952
      %v4674 = vpop.f32.mrb[0].mxu0
      %v4675 = vadd.f32 %v4426, %v4674
      %v4676 = vpop.f32.mrb[0].mxu0
      %v4677 = vpop.f32.mrb[0].mxu0
      %v4678 = vadd.f32 %v4429, %v4677
      %v4679 = vpop.f32.mrb[0].mxu0
      %4680 = vmatprep.mubr.bf16.mxu0 0
      %4681 = vmatmul.mubr.bf16.gmra.mrb[0].mxu0 %v3955
      %v4682 = vpop.f32.mrb[0].mxu0
      %v4683 = vadd.f32 %v4434, %v4682
      %v4684 = vpop.f32.mrb[0].mxu0
      %v4685 = vpop.f32.mrb[0].mxu0
      %v4686 = vadd.f32 %v4437, %v4685
      %v4687 = vpop.f32.mrb[0].mxu0
      %4688 = vmatprep.mubr.bf16.mxu0 0
      %4689 = vmatmul.mubr.bf16.gmra.mrb[0].mxu0 %v3958
      %v4690 = vpop.f32.mrb[0].mxu0
      %v4691 = vadd.f32 %v4442, %v4690
      %v4692 = vpop.f32.mrb[0].mxu0
      %v4693 = vpop.f32.mrb[0].mxu0
      %v4694 = vadd.f32 %v4445, %v4693
      %v4695 = vpop.f32.mrb[0].mxu0
      %4696 = vmatprep.mubr.bf16.mxu0 0
      %4697 = vmatmul.mubr.bf16.gmra.mrb[0].mxu0 %v3961
      %v4698 = vpop.f32.mrb[0].mxu0
      %v4699 = vadd.f32 %v4450, %v4698
      %v4700 = vpop.f32.mrb[0].mxu0
      %v4701 = vpop.f32.mrb[0].mxu0
      %v4702 = vadd.f32 %v4453, %v4701
      %v4703 = vpop.f32.mrb[0].mxu0
      %4704 = vmatprep.mubr.bf16.mxu0 0
      %4705 = vmatmul.mubr.bf16.gmra.mrb[0].mxu0 %v3964
      %v4706 = vpop.f32.mrb[0].mxu0
      %v4707 = vadd.f32 %v4458, %v4706
      %v4708 = vpop.f32.mrb[0].mxu0
      %v4709 = vpop.f32.mrb[0].mxu0
      %v4710 = vadd.f32 %v4461, %v4709
      %v4711 = vpop.f32.mrb[0].mxu0
      %4712 = vdwg.mxu0
      %v4713 = vmul.f32 %v4499, %v1142
      %v4714 = vmul.f32 %v4502, %v1147
      %v4715 = vmul.f32 %v4507, %v1152
      %v4716 = vmul.f32 %v4510, %v1157
      %v4717 = vmul.f32 %v4515, %v1162
      %v4718 = vmul.f32 %v4518, %v1167
      %v4719 = vmul.f32 %v4523, %v1172
      %v4720 = vmul.f32 %v4526, %v1177
      %v4721 = vmul.f32 %v4531, %v1182
      %v4722 = vmul.f32 %v4534, %v1187
      %v4723 = vmul.f32 %v4539, %v1192
      %v4724 = vmul.f32 %v4542, %v1197
      %v4725 = vmul.f32 %v4547, %v1202
      %v4726 = vmul.f32 %v4550, %v1207
      %v4727 = vmul.f32 %v4555, %v1212
      %v4728 = vmul.f32 %v4558, %v1217
      %v4729 = vmul.f32 %v4563, %v1222
      %v4730 = vmul.f32 %v4566, %v1227
      %v4731 = vmul.f32 %v4571, %v1232
      %v4732 = vmul.f32 %v4574, %v1237
      %v4733 = vmul.f32 %v4579, %v1242
      %v4734 = vmul.f32 %v4582, %v1247
      %v4735 = vmul.f32 %v4587, %v1252
      %v4736 = vmul.f32 %v4590, %v1257
      %v4737 = vmul.f32 %v4595, %v1262
      %v4738 = vmul.f32 %v4598, %v1267
      %v4739 = vmul.f32 %v4603, %v1272
      %v4740 = vmul.f32 %v4606, %v1277
      %v4741 = vmul.f32 %v4611, %v1282
      %v4742 = vmul.f32 %v4614, %v1287
      %v4743 = vmul.f32 %v4619, %v1292
      %v4744 = vmul.f32 %v4622, %v1297
      %v4745 = vmul.f32 %v4627, %v1302
      %v4746 = vmul.f32 %v4630, %v1307
      %v4747 = vmul.f32 %v4635, %v1312
      %v4748 = vmul.f32 %v4638, %v1317
      %v4749 = vmul.f32 %v4643, %v1322
      %v4750 = vmul.f32 %v4646, %v1327
      %v4751 = vmul.f32 %v4651, %v1332
      %v4752 = vmul.f32 %v4654, %v1337
      %v4753 = vmul.f32 %v4659, %v1342
      %v4754 = vmul.f32 %v4662, %v1347
      %v4755 = vmul.f32 %v4667, %v1352
      %v4756 = vmul.f32 %v4670, %v1357
      %v4757 = vmul.f32 %v4675, %v1362
      %v4758 = vmul.f32 %v4678, %v1367
      %v4759 = vmul.f32 %v4683, %v1372
      %v4760 = vmul.f32 %v4686, %v1377
      %v4761 = vmul.f32 %v4691, %v1382
      %v4762 = vmul.f32 %v4694, %v1387
      %v4763 = vmul.f32 %v4699, %v1392
      %v4764 = vmul.f32 %v4702, %v1397
      %v4765 = vmul.f32 %v4707, %v1402
      %v4766 = vmul.f32 %v4710, %v1407
      %v4767 = vadd.f32 %v4713, %v307
      %v4768 = vadd.f32 %v4714, %v308
      %v4769 = vadd.f32 %v4715, %v309
      %v4770 = vadd.f32 %v4716, %v310
      %v4771 = vadd.f32 %v4717, %v311
      %v4772 = vadd.f32 %v4718, %v312
      %v4773 = vadd.f32 %v4719, %v313
      %v4774 = vadd.f32 %v4720, %v314
      %v4775 = vadd.f32 %v4721, %v315
      %v4776 = vadd.f32 %v4722, %v316
      %v4777 = vadd.f32 %v4723, %v317
      %v4778 = vadd.f32 %v4724, %v318
      %v4779 = vadd.f32 %v4725, %v319
      %v4780 = vadd.f32 %v4726, %v320
      %v4781 = vadd.f32 %v4727, %v321
      %v4782 = vadd.f32 %v4728, %v322
      %v4783 = vadd.f32 %v4729, %v323
      %v4784 = vadd.f32 %v4730, %v324
      %v4785 = vadd.f32 %v4731, %v325
      %v4786 = vadd.f32 %v4732, %v326
      %v4787 = vadd.f32 %v4733, %v327
      %v4788 = vadd.f32 %v4734, %v328
      %v4789 = vadd.f32 %v4735, %v329
      %v4790 = vadd.f32 %v4736, %v330
      %v4791 = vadd.f32 %v4737, %v331
      %v4792 = vadd.f32 %v4738, %v332
      %v4793 = vadd.f32 %v4739, %v333
      %v4794 = vadd.f32 %v4740, %v334
      %v4795 = vadd.f32 %v4741, %v335
      %v4796 = vadd.f32 %v4742, %v336
      %v4797 = vadd.f32 %v4743, %v337
      %v4798 = vadd.f32 %v4744, %v338
      %v4799 = vadd.f32 %v4745, %v339
      %v4800 = vadd.f32 %v4746, %v340
      %v4801 = vadd.f32 %v4747, %v341
      %v4802 = vadd.f32 %v4748, %v342
      %v4803 = vadd.f32 %v4749, %v343
      %v4804 = vadd.f32 %v4750, %v344
      %v4805 = vadd.f32 %v4751, %v345
      %v4806 = vadd.f32 %v4752, %v346
      %v4807 = vadd.f32 %v4753, %v347
      %v4808 = vadd.f32 %v4754, %v348
      %v4809 = vadd.f32 %v4755, %v349
      %v4810 = vadd.f32 %v4756, %v350
      %v4811 = vadd.f32 %v4757, %v351
      %v4812 = vadd.f32 %v4758, %v352
      %v4813 = vadd.f32 %v4759, %v353
      %v4814 = vadd.f32 %v4760, %v354
      %v4815 = vadd.f32 %v4761, %v355
      %v4816 = vadd.f32 %v4762, %v356
      %v4817 = vadd.f32 %v4763, %v357
      %v4818 = vadd.f32 %v4764, %v358
      %v4819 = vadd.f32 %v4765, %v359
      %v4820 = vadd.f32 %v4766, %v360
      %v4821 = vpack.c.bf16 %v4768, %v4767
      %v4822 = vpack.c.bf16 %v4770, %v4769
      %v4823 = vpack.c.bf16 %v4772, %v4771
      %v4824 = vpack.c.bf16 %v4774, %v4773
      %v4825 = vpack.c.bf16 %v4776, %v4775
      %v4826 = vpack.c.bf16 %v4778, %v4777
      %v4827 = vpack.c.bf16 %v4780, %v4779
      %v4828 = vpack.c.bf16 %v4782, %v4781
      %v4829 = vpack.c.bf16 %v4784, %v4783
      %v4830 = vpack.c.bf16 %v4786, %v4785
      %v4831 = vpack.c.bf16 %v4788, %v4787
      %v4832 = vpack.c.bf16 %v4790, %v4789
      %v4833 = vpack.c.bf16 %v4792, %v4791
      %v4834 = vpack.c.bf16 %v4794, %v4793
      %v4835 = vpack.c.bf16 %v4796, %v4795
      %v4836 = vpack.c.bf16 %v4798, %v4797
      %v4837 = vpack.c.bf16 %v4800, %v4799
      %v4838 = vpack.c.bf16 %v4802, %v4801
      %v4839 = vpack.c.bf16 %v4804, %v4803
      %v4840 = vpack.c.bf16 %v4806, %v4805
      %v4841 = vpack.c.bf16 %v4808, %v4807
      %v4842 = vpack.c.bf16 %v4810, %v4809
      %v4843 = vpack.c.bf16 %v4812, %v4811
      %v4844 = vpack.c.bf16 %v4814, %v4813
      %v4845 = vpack.c.bf16 %v4816, %v4815
      %v4846 = vpack.c.bf16 %v4818, %v4817
      %v4847 = vpack.c.bf16 %v4820, %v4819
      %v4875 = vunpack.c.l.b16 %v4821
      %v4876 = vunpack.c.h.b16 %v4821
      %v4877 = vunpack.c.l.b16 %v4822
      %v4878 = vunpack.c.h.b16 %v4822
      %v4879 = vunpack.c.l.b16 %v4823
      %v4880 = vunpack.c.h.b16 %v4823
      %v4881 = vunpack.c.l.b16 %v4824
      %v4882 = vunpack.c.h.b16 %v4824
      %v4883 = vunpack.c.l.b16 %v4825
      %v4884 = vunpack.c.h.b16 %v4825
      %v4885 = vunpack.c.l.b16 %v4826
      %v4886 = vunpack.c.h.b16 %v4826
      %v4887 = vunpack.c.l.b16 %v4827
      %v4888 = vunpack.c.h.b16 %v4827
      %v4889 = vunpack.c.l.b16 %v4828
      %v4890 = vunpack.c.h.b16 %v4828
      %v4891 = vunpack.c.l.b16 %v4829
      %v4892 = vunpack.c.h.b16 %v4829
      %v4893 = vunpack.c.l.b16 %v4830
      %v4894 = vunpack.c.h.b16 %v4830
      %v4895 = vunpack.c.l.b16 %v4831
      %v4896 = vunpack.c.h.b16 %v4831
      %v4897 = vunpack.c.l.b16 %v4832
      %v4898 = vunpack.c.h.b16 %v4832
      %v4899 = vunpack.c.l.b16 %v4833
      %v4900 = vunpack.c.h.b16 %v4833
      %v4901 = vunpack.c.l.b16 %v4834
      %v4902 = vunpack.c.h.b16 %v4834
      %v4903 = vunpack.c.l.b16 %v4835
      %v4904 = vunpack.c.h.b16 %v4835
      %v4905 = vunpack.c.l.b16 %v4836
      %v4906 = vunpack.c.h.b16 %v4836
      %v4907 = vunpack.c.l.b16 %v4837
      %v4908 = vunpack.c.h.b16 %v4837
      %v4909 = vunpack.c.l.b16 %v4838
      %v4910 = vunpack.c.h.b16 %v4838
      %v4911 = vunpack.c.l.b16 %v4839
      %v4912 = vunpack.c.h.b16 %v4839
      %v4913 = vunpack.c.l.b16 %v4840
      %v4914 = vunpack.c.h.b16 %v4840
      %v4915 = vunpack.c.l.b16 %v4841
      %v4916 = vunpack.c.h.b16 %v4841
      %v4917 = vunpack.c.l.b16 %v4842
      %v4918 = vunpack.c.h.b16 %v4842
      %v4919 = vunpack.c.l.b16 %v4843
      %v4920 = vunpack.c.h.b16 %v4843
      %v4921 = vunpack.c.l.b16 %v4844
      %v4922 = vunpack.c.h.b16 %v4844
      %v4923 = vunpack.c.l.b16 %v4845
      %v4924 = vunpack.c.h.b16 %v4845
      %v4925 = vunpack.c.l.b16 %v4846
      %v4926 = vunpack.c.h.b16 %v4846
      %v4927 = vunpack.c.l.b16 %v4847
      %v4928 = vunpack.c.h.b16 %v4847
      %v4929 = vpack.c.b16 %v4875, %v4875
      %v4930 = vpack.c.b16 %v4876, %v4876
      %v4931 = vpack.c.b16 %v4877, %v4877
      %v4932 = vpack.c.b16 %v4878, %v4878
      %v4933 = vpack.c.b16 %v4879, %v4879
      %v4934 = vpack.c.b16 %v4880, %v4880
      %v4935 = vpack.c.b16 %v4881, %v4881
      %v4936 = vpack.c.b16 %v4882, %v4882
      %v4937 = vpack.c.b16 %v4883, %v4883
      %v4938 = vpack.c.b16 %v4884, %v4884
      %v4939 = vpack.c.b16 %v4885, %v4885
      %v4940 = vpack.c.b16 %v4886, %v4886
      %v4941 = vpack.c.b16 %v4887, %v4887
      %v4942 = vpack.c.b16 %v4888, %v4888
      %v4943 = vpack.c.b16 %v4889, %v4889
      %v4944 = vpack.c.b16 %v4890, %v4890
      %v4945 = vpack.c.b16 %v4891, %v4891
      %v4946 = vpack.c.b16 %v4892, %v4892
      %v4947 = vpack.c.b16 %v4893, %v4893
      %v4948 = vpack.c.b16 %v4894, %v4894
      %v4949 = vpack.c.b16 %v4895, %v4895
      %v4950 = vpack.c.b16 %v4896, %v4896
      %v4951 = vpack.c.b16 %v4897, %v4897
      %v4952 = vpack.c.b16 %v4898, %v4898
      %v4953 = vpack.c.b16 %v4899, %v4899
      %v4954 = vpack.c.b16 %v4900, %v4900
      %v4955 = vpack.c.b16 %v4901, %v4901
      %v4956 = vpack.c.b16 %v4902, %v4902
      %v4957 = vpack.c.b16 %v4903, %v4903
      %v4958 = vpack.c.b16 %v4904, %v4904
      %v4959 = vpack.c.b16 %v4905, %v4905
      %v4960 = vpack.c.b16 %v4906, %v4906
      %v4961 = vpack.c.b16 %v4907, %v4907
      %v4962 = vpack.c.b16 %v4908, %v4908
      %v4963 = vpack.c.b16 %v4909, %v4909
      %v4964 = vpack.c.b16 %v4910, %v4910
      %v4965 = vpack.c.b16 %v4911, %v4911
      %v4966 = vpack.c.b16 %v4912, %v4912
      %v4967 = vpack.c.b16 %v4913, %v4913
      %v4968 = vpack.c.b16 %v4914, %v4914
      %v4969 = vpack.c.b16 %v4915, %v4915
      %v4970 = vpack.c.b16 %v4916, %v4916
      %v4971 = vpack.c.b16 %v4917, %v4917
      %v4972 = vpack.c.b16 %v4918, %v4918
      %v4973 = vpack.c.b16 %v4919, %v4919
      %v4974 = vpack.c.b16 %v4920, %v4920
      %v4975 = vpack.c.b16 %v4921, %v4921
      %v4976 = vpack.c.b16 %v4922, %v4922
      %v4977 = vpack.c.b16 %v4923, %v4923
      %v4978 = vpack.c.b16 %v4924, %v4924
      %v4979 = vpack.c.b16 %v4925, %v4925
      %v4980 = vpack.c.b16 %v4926, %v4926
      %v4981 = vpack.c.b16 %v4927, %v4927
      %v4982 = vpack.c.b16 %v4928, %v4928
      %vm5037 = vcmask 519168
      %5038 = vst.msk [vmem:[%s251] sm:$0xf] %vm5037, %v4929
      %5039 = vst.msk [vmem:[%s251 + $0x4] sm:$0xf] %vm5037, %v4930
      %5040 = vst.msk [vmem:[%s251 + $0x8] sm:$0xf] %vm5037, %v4931
      %5041 = vst.msk [vmem:[%s251 + $0xc] sm:$0xf] %vm5037, %v4932
      %5042 = vst.msk [vmem:[%s251 + $0x10] sm:$0xf] %vm5037, %v4933
      %5043 = vst.msk [vmem:[%s251 + $0x14] sm:$0xf] %vm5037, %v4934
      %5044 = vst.msk [vmem:[%s251 + $0x18] sm:$0xf] %vm5037, %v4935
      %5045 = vst.msk [vmem:[%s251 + $0x1c] sm:$0xf] %vm5037, %v4936
      %5046 = vst.msk [vmem:[%s251 + $0x20] sm:$0xf] %vm5037, %v4937
      %5047 = vst.msk [vmem:[%s251 + $0x24] sm:$0xf] %vm5037, %v4938
      %5048 = vst.msk [vmem:[%s251 + $0x28] sm:$0xf] %vm5037, %v4939
      %5049 = vst.msk [vmem:[%s251 + $0x2c] sm:$0xf] %vm5037, %v4940
      %5050 = vst.msk [vmem:[%s251 + $0x30] sm:$0xf] %vm5037, %v4941
      %5051 = vst.msk [vmem:[%s251 + $0x34] sm:$0xf] %vm5037, %v4942
      %5052 = vst.msk [vmem:[%s251 + $0x38] sm:$0xf] %vm5037, %v4943
      %5053 = vst.msk [vmem:[%s251 + $0x3c] sm:$0xf] %vm5037, %v4944
      %5054 = vst.msk [vmem:[%s251 + $0x40] sm:$0xf] %vm5037, %v4945
      %5055 = vst.msk [vmem:[%s251 + $0x44] sm:$0xf] %vm5037, %v4946
      %5056 = vst.msk [vmem:[%s251 + $0x48] sm:$0xf] %vm5037, %v4947
      %5057 = vst.msk [vmem:[%s251 + $0x4c] sm:$0xf] %vm5037, %v4948
      %5058 = vst.msk [vmem:[%s251 + $0x50] sm:$0xf] %vm5037, %v4949
      %5059 = vst.msk [vmem:[%s251 + $0x54] sm:$0xf] %vm5037, %v4950
      %5060 = vst.msk [vmem:[%s251 + $0x58] sm:$0xf] %vm5037, %v4951
      %5061 = vst.msk [vmem:[%s251 + $0x5c] sm:$0xf] %vm5037, %v4952
      %5062 = vst.msk [vmem:[%s251 + $0x60] sm:$0xf] %vm5037, %v4953
      %5063 = vst.msk [vmem:[%s251 + $0x64] sm:$0xf] %vm5037, %v4954
      %5064 = vst.msk [vmem:[%s251 + $0x68] sm:$0xf] %vm5037, %v4955
      %5065 = vst.msk [vmem:[%s251 + $0x6c] sm:$0xf] %vm5037, %v4956
      %5066 = vst.msk [vmem:[%s251 + $0x70] sm:$0xf] %vm5037, %v4957
      %5067 = vst.msk [vmem:[%s251 + $0x74] sm:$0xf] %vm5037, %v4958
      %5068 = vst.msk [vmem:[%s251 + $0x78] sm:$0xf] %vm5037, %v4959
      %5069 = vst.msk [vmem:[%s251 + $0x7c] sm:$0xf] %vm5037, %v4960
      %5070 = vst.msk [vmem:[%s251 + $0x80] sm:$0xf] %vm5037, %v4961
      %5071 = vst.msk [vmem:[%s251 + $0x84] sm:$0xf] %vm5037, %v4962
      %5072 = vst.msk [vmem:[%s251 + $0x88] sm:$0xf] %vm5037, %v4963
      %5073 = vst.msk [vmem:[%s251 + $0x8c] sm:$0xf] %vm5037, %v4964
      %5074 = vst.msk [vmem:[%s251 + $0x90] sm:$0xf] %vm5037, %v4965
      %5075 = vst.msk [vmem:[%s251 + $0x94] sm:$0xf] %vm5037, %v4966
      %5076 = vst.msk [vmem:[%s251 + $0x98] sm:$0xf] %vm5037, %v4967
      %5077 = vst.msk [vmem:[%s251 + $0x9c] sm:$0xf] %vm5037, %v4968
      %5078 = vst.msk [vmem:[%s251 + $0xa0] sm:$0xf] %vm5037, %v4969
      %5079 = vst.msk [vmem:[%s251 + $0xa4] sm:$0xf] %vm5037, %v4970
      %5080 = vst.msk [vmem:[%s251 + $0xa8] sm:$0xf] %vm5037, %v4971
      %5081 = vst.msk [vmem:[%s251 + $0xac] sm:$0xf] %vm5037, %v4972
      %5082 = vst.msk [vmem:[%s251 + $0xb0] sm:$0xf] %vm5037, %v4973
      %5083 = vst.msk [vmem:[%s251 + $0xb4] sm:$0xf] %vm5037, %v4974
      %5084 = vst.msk [vmem:[%s251 + $0xb8] sm:$0xf] %vm5037, %v4975
      %5085 = vst.msk [vmem:[%s251 + $0xbc] sm:$0xf] %vm5037, %v4976
      %5086 = vst.msk [vmem:[%s251 + $0xc0] sm:$0xf] %vm5037, %v4977
      %5087 = vst.msk [vmem:[%s251 + $0xc4] sm:$0xf] %vm5037, %v4978
      %5088 = vst.msk [vmem:[%s251 + $0xc8] sm:$0xf] %vm5037, %v4979
      %5089 = vst.msk [vmem:[%s251 + $0xcc] sm:$0xf] %vm5037, %v4980
      %5090 = vst.msk [vmem:[%s251 + $0xd0] sm:$0xf] %vm5037, %v4981
      %5091 = vst.msk [vmem:[%s251 + $0xd4] sm:$0xf] %vm5037, %v4982
      %p5092 = scmp.lt.s32.totalorder %s17, 1
      %s5093 = scalar_select %p5092, %s17, 1
      %s5094 = smul.addr %s5093, 54
      %s5095 = smul.addr %s5094, 4
      %s5096 = scalar_lea.vmem %s6, %s5095
      // Predicated region
      $region45: #{up_block_forward.3} parent=43 // pred_check
        %p5097 = pneg %p166
      $region46: #{up_block_forward.3} parent=43 // pred_check_branch
        %5099 = sbr.rel (%p5097) target = $region48
      $region47: #{up_block_forward.3} parent=43 // pred_region
        _
      $region48: #{up_block_forward.3} parent=43 // pred_fallthru
        _
    $region44: #{up_block_forward.3} parent=5 // pred_fallthru
      _
    %p5100 = scmp.le.s32.totalorder 2, %s12
    // Predicated region
    $region49: #{up_block_forward.3} parent=5 // pred_check
      %p5101 = pneg %p5100
    $region50: #{up_block_forward.3} parent=5 // pred_check_branch
      %5103 = sbr.rel (%p5101) target = $region52
    $region51: #{up_block_forward.3} parent=5 // pred_region
      %s5104 = ssub.s32 %s12, 2
      // Predicated region
      $region53: #{up_block_forward.3} parent=51 // pred_check
        %p5105 = pneg %p172
      $region54: #{up_block_forward.3} parent=51 // pred_check_branch
        %5107 = sbr.rel (%p5105) target = $region56
      $region55: #{up_block_forward.3} parent=51 // pred_region
        %p5108 = scmp.lt.s32.totalorder %s18, 1
        %s5109 = scalar_select %p5108, %s18, 1
        %s5110 = smul.addr %s5109, 54
        %s5111 = smul.addr %s5110, 4
        %s5112 = scalar_lea.vmem %s6, %s5111
      $region56: #{up_block_forward.3} parent=51 // pred_fallthru
        _
    $region52: #{up_block_forward.3} parent=5 // pred_fallthru
      _
  $region6: #{up_block_forward.3} parent=0 // loop_footer
    %s16 = sadd.s32 1, %s12
  $region7: #{up_block_forward.3} parent=0 // loop_footer_branch
    %11 = sbr.rel target = $region3
  $region8: #{up_block_forward.3} parent=0 // loop_exit
    _

// kernel: up_block_forward.5
$region0: #{up_block_forward.5}
  #allocation0 [shape = 'u32[]', space=smem, size = 0x4, offset = 0x4, fixed_abs, tag = 'smem constant byte address 0x4 - core index']
  #allocation1 [shape = 'u32[144,128]{1,0:T(1,128)}', space=vmem, size = 0x12000, scoped, tag = 'internal scratch']
  #allocation2 [shape = 'bf16[496,64]{1,0:T(16,128)(2,1)}', space=vmem, size = 0x1f000, scoped, tag = 'scratch operand']
  %s0 = inlined_call_operand.vmem [shape: f32[432,1], index: 0, kind: input, shape index: {}]
  %s1 = inlined_call_operand.vmem [shape: bf16[2,432,64], index: 1, kind: input, shape index: {}]
  %s2 = inlined_call_operand.vmem [shape: f32[1,64], index: 2, kind: input, shape index: {}]
  %s3 = inlined_call_operand.vmem [shape: f32[1,64], index: 3, kind: input, shape index: {}]
  %s4 = inlined_call_operand.vmem [shape: f32[64,64], index: 4, kind: input, shape index: {}]
  %s5 = inlined_call_operand.vmem [shape: bf16[4,256,32], index: 5, kind: input, shape index: {}]
  %s6 = inlined_call_operand.vmem [shape: bf16[2,432,128], index: 6, kind: output, shape index: {}]
  %s7 = sld [smem:[#allocation0]]
  $region57: #{up_block_forward.5} parent=0
    _
  %s9 = ssub.s32 1, %s7
  %s10 = scalar_select 0, %s9, %s7
  loop: start=0, step=1, limit=4
  $region2: #{up_block_forward.5} parent=0 // loop_pre_header
    _
  $region3: #{up_block_forward.5} parent=0 // loop_header
    %s12 = sphi 0, %s16
    %p13 = scmp.ge.s32.totalorder %s12, 4
    %s20 = sphi 0, %s20
    %s22 = sphi 0, %s20
    %s23 = sphi 0, %s22
    %s37 = sphi 0, %s23
    %s43 = sphi 0, %s45
    %s46 = sphi 0, %s43
    %s47 = sphi 0, %s46
    %s63 = sphi 0, %s47
    %s67 = sphi 0, %s67
    %s69 = sphi 0, %s67
    %s70 = sphi 0, %s69
    %s84 = sphi 0, %s70
    %s88 = sphi 0, %s88
    %s90 = sphi 0, %s88
    %s91 = sphi 0, %s90
    %s105 = sphi 0, %s91
    %s109 = sphi 0, %s109
    %s111 = sphi 0, %s109
    %s112 = sphi 0, %s111
    %s126 = sphi 0, %s112
    %s130 = sphi 0, %s130
    %s132 = sphi 0, %s130
    %s133 = sphi 0, %s132
    %s147 = sphi 0, %s133
    %s153 = sphi 0, %s155
    %s156 = sphi 0, %s153
    %s157 = sphi 0, %s156
    %s173 = sphi 0, %s157
  $region4: #{up_block_forward.5} parent=0 // loop_header_branch
    %15 = sbr.rel (%p13) target = $region8
  $region5: #{up_block_forward.5} parent=0 // loop_body
    %s17 = ssub.s32 %s12, 1
    %s18 = ssub.s32 %s12, 2
    %s19 = sadd.s32 %s12, 1
    %s21 = sadd.s32 %s20, 1
    %p24 = scmp.eq.s32.totalorder %s12, 1
    %p25 = scmp.ne.s32.totalorder %s20, %s22
    %p26 = scmp.eq.s32.totalorder %s12, 0
    %p27 = por %p25, %p26
    %p28 = scmp.ne.s32.totalorder %s20, %s22
    %p29 = scmp.eq.s32.totalorder %s17, 1
    %p30 = por %p28, %p29
    %p31 = scmp.ne.s32.totalorder %s22, %s23
    %p32 = scmp.eq.s32.totalorder %s17, 0
    %p33 = por %p31, %p32
    %p34 = scmp.ne.s32.totalorder %s22, %s23
    %p35 = scmp.eq.s32.totalorder %s18, 1
    %p36 = por %p34, %p35
    %p38 = scmp.ne.s32.totalorder %s23, %s37
    %p39 = scmp.eq.s32.totalorder %s18, 0
    %p40 = por %p38, %p39
    %s41 = ssub.s32 %s12, %s19
    %p42 = scmp.eq.s32.totalorder %s41, 0
    %s44 = sadd.s32 %s43, 1
    %s45 = scalar_select %p42, %s43, %s44
    %p48 = pneg %p42
    %p49 = scmp.eq.s32.totalorder %s12, 1
    %p50 = por %p48, %p49
    %p51 = scmp.ne.s32.totalorder %s43, %s46
    %p52 = scmp.eq.s32.totalorder %s12, 0
    %p53 = por %p51, %p52
    %p54 = scmp.ne.s32.totalorder %s43, %s46
    %p55 = scmp.eq.s32.totalorder %s17, 1
    %p56 = por %p54, %p55
    %p57 = scmp.ne.s32.totalorder %s46, %s47
    %p58 = scmp.eq.s32.totalorder %s17, 0
    %p59 = por %p57, %p58
    %p60 = scmp.ne.s32.totalorder %s46, %s47
    %p61 = scmp.eq.s32.totalorder %s18, 1
    %p62 = por %p60, %p61
    %p64 = scmp.ne.s32.totalorder %s47, %s63
    %p65 = scmp.eq.s32.totalorder %s18, 0
    %p66 = por %p64, %p65
    %s68 = sadd.s32 %s67, 1
    %p71 = scmp.eq.s32.totalorder %s12, 1
    %p72 = scmp.ne.s32.totalorder %s67, %s69
    %p73 = scmp.eq.s32.totalorder %s12, 0
    %p74 = por %p72, %p73
    %p75 = scmp.ne.s32.totalorder %s67, %s69
    %p76 = scmp.eq.s32.totalorder %s17, 1
    %p77 = por %p75, %p76
    %p78 = scmp.ne.s32.totalorder %s69, %s70
    %p79 = scmp.eq.s32.totalorder %s17, 0
    %p80 = por %p78, %p79
    %p81 = scmp.ne.s32.totalorder %s69, %s70
    %p82 = scmp.eq.s32.totalorder %s18, 1
    %p83 = por %p81, %p82
    %p85 = scmp.ne.s32.totalorder %s70, %s84
    %p86 = scmp.eq.s32.totalorder %s18, 0
    %p87 = por %p85, %p86
    %s89 = sadd.s32 %s88, 1
    %p92 = scmp.eq.s32.totalorder %s12, 1
    %p93 = scmp.ne.s32.totalorder %s88, %s90
    %p94 = scmp.eq.s32.totalorder %s12, 0
    %p95 = por %p93, %p94
    %p96 = scmp.ne.s32.totalorder %s88, %s90
    %p97 = scmp.eq.s32.totalorder %s17, 1
    %p98 = por %p96, %p97
    %p99 = scmp.ne.s32.totalorder %s90, %s91
    %p100 = scmp.eq.s32.totalorder %s17, 0
    %p101 = por %p99, %p100
    %p102 = scmp.ne.s32.totalorder %s90, %s91
    %p103 = scmp.eq.s32.totalorder %s18, 1
    %p104 = por %p102, %p103
    %p106 = scmp.ne.s32.totalorder %s91, %s105
    %p107 = scmp.eq.s32.totalorder %s18, 0
    %p108 = por %p106, %p107
    %s110 = sadd.s32 %s109, 1
    %p113 = scmp.eq.s32.totalorder %s12, 1
    %p114 = scmp.ne.s32.totalorder %s109, %s111
    %p115 = scmp.eq.s32.totalorder %s12, 0
    %p116 = por %p114, %p115
    %p117 = scmp.ne.s32.totalorder %s109, %s111
    %p118 = scmp.eq.s32.totalorder %s17, 1
    %p119 = por %p117, %p118
    %p120 = scmp.ne.s32.totalorder %s111, %s112
    %p121 = scmp.eq.s32.totalorder %s17, 0
    %p122 = por %p120, %p121
    %p123 = scmp.ne.s32.totalorder %s111, %s112
    %p124 = scmp.eq.s32.totalorder %s18, 1
    %p125 = por %p123, %p124
    %p127 = scmp.ne.s32.totalorder %s112, %s126
    %p128 = scmp.eq.s32.totalorder %s18, 0
    %p129 = por %p127, %p128
    %s131 = sadd.s32 %s130, 1
    %p134 = scmp.eq.s32.totalorder %s12, 1
    %p135 = scmp.ne.s32.totalorder %s130, %s132
    %p136 = scmp.eq.s32.totalorder %s12, 0
    %p137 = por %p135, %p136
    %p138 = scmp.ne.s32.totalorder %s130, %s132
    %p139 = scmp.eq.s32.totalorder %s17, 1
    %p140 = por %p138, %p139
    %p141 = scmp.ne.s32.totalorder %s132, %s133
    %p142 = scmp.eq.s32.totalorder %s17, 0
    %p143 = por %p141, %p142
    %p144 = scmp.ne.s32.totalorder %s132, %s133
    %p145 = scmp.eq.s32.totalorder %s18, 1
    %p146 = por %p144, %p145
    %p148 = scmp.ne.s32.totalorder %s133, %s147
    %p149 = scmp.eq.s32.totalorder %s18, 0
    %p150 = por %p148, %p149
    %s151 = ssub.s32 %s12, %s19
    %p152 = scmp.eq.s32.totalorder %s151, 0
    %s154 = sadd.s32 %s153, 1
    %s155 = scalar_select %p152, %s153, %s154
    %p158 = pneg %p152
    %p159 = scmp.eq.s32.totalorder %s12, 1
    %p160 = por %p158, %p159
    %p161 = scmp.ne.s32.totalorder %s153, %s156
    %p162 = scmp.eq.s32.totalorder %s12, 0
    %p163 = por %p161, %p162
    %p164 = scmp.ne.s32.totalorder %s153, %s156
    %p165 = scmp.eq.s32.totalorder %s17, 1
    %p166 = por %p164, %p165
    %p167 = scmp.ne.s32.totalorder %s156, %s157
    %p168 = scmp.eq.s32.totalorder %s17, 0
    %p169 = por %p167, %p168
    %p170 = scmp.ne.s32.totalorder %s156, %s157
    %p171 = scmp.eq.s32.totalorder %s18, 1
    %p172 = por %p170, %p171
    %p174 = scmp.ne.s32.totalorder %s157, %s173
    %p175 = scmp.eq.s32.totalorder %s18, 0
    %p176 = por %p174, %p175
    %p177 = scmp.le.s32.totalorder 1, %s12
    %p178 = scmp.lt.s32.totalorder %s12, 3
    %p179 = pnand %p177, %p178
    %p180 = pneg %p179
    // Predicated region
    $region9: #{up_block_forward.5} parent=5 // pred_check
      _
    $region10: #{up_block_forward.5} parent=5 // pred_check_branch
      %182 = sbr.rel (%p179) target = $region12
    $region11: #{up_block_forward.5} parent=5 // pred_region
      %s183 = ssub.s32 %s12, 1
      // Predicated region
      $region13: #{up_block_forward.5} parent=11 // pred_check
        %p184 = pneg %p33
      $region14: #{up_block_forward.5} parent=11 // pred_check_branch
        %186 = sbr.rel (%p184) target = $region16
      $region15: #{up_block_forward.5} parent=11 // pred_region
        _
      $region16: #{up_block_forward.5} parent=11 // pred_fallthru
        _
      // Predicated region
      $region17: #{up_block_forward.5} parent=11 // pred_check
        %p187 = pneg %p80
      $region18: #{up_block_forward.5} parent=11 // pred_check_branch
        %189 = sbr.rel (%p187) target = $region20
      $region19: #{up_block_forward.5} parent=11 // pred_region
        _
      $region20: #{up_block_forward.5} parent=11 // pred_fallthru
        _
      // Predicated region
      $region21: #{up_block_forward.5} parent=11 // pred_check
        %p190 = pneg %p101
      $region22: #{up_block_forward.5} parent=11 // pred_check_branch
        %192 = sbr.rel (%p190) target = $region24
      $region23: #{up_block_forward.5} parent=11 // pred_region
        _
      $region24: #{up_block_forward.5} parent=11 // pred_fallthru
        _
      // Predicated region
      $region25: #{up_block_forward.5} parent=11 // pred_check
        %p193 = pneg %p122
      $region26: #{up_block_forward.5} parent=11 // pred_check_branch
        %195 = sbr.rel (%p193) target = $region28
      $region27: #{up_block_forward.5} parent=11 // pred_region
        _
      $region28: #{up_block_forward.5} parent=11 // pred_fallthru
        _
      // Predicated region
      $region29: #{up_block_forward.5} parent=11 // pred_check
        %p196 = pneg %p143
      $region30: #{up_block_forward.5} parent=11 // pred_check_branch
        %198 = sbr.rel (%p196) target = $region32
      $region31: #{up_block_forward.5} parent=11 // pred_region
        _
      $region32: #{up_block_forward.5} parent=11 // pred_fallthru
        _
    $region12: #{up_block_forward.5} parent=5 // pred_fallthru
      _
    %p199 = scmp.lt.s32.totalorder %s12, 2
    // Predicated region
    $region33: #{up_block_forward.5} parent=5 // pred_check
      %p200 = pneg %p199
    $region34: #{up_block_forward.5} parent=5 // pred_check_branch
      %202 = sbr.rel (%p200) target = $region36
    $region35: #{up_block_forward.5} parent=5 // pred_region
      // Predicated region
      $region37: #{up_block_forward.5} parent=35 // pred_check
        %p203 = pneg %p53
      $region38: #{up_block_forward.5} parent=35 // pred_check_branch
        %205 = sbr.rel (%p203) target = $region40
      $region39: #{up_block_forward.5} parent=35 // pred_region
        %p206 = scmp.lt.s32.totalorder %s12, 1
        %s207 = scalar_select %p206, %s12, 1
        %s208 = smul.addr %s207, 54
        %s209 = smul.addr %s208, 4
        %s210 = scalar_lea.vmem %s1, %s209
      $region40: #{up_block_forward.5} parent=35 // pred_fallthru
        _
    $region36: #{up_block_forward.5} parent=5 // pred_fallthru
      _
    %p211 = scmp.le.s32.totalorder 1, %s12
    %p212 = scmp.lt.s32.totalorder %s12, 3
    %p213 = pnand %p211, %p212
    %p214 = pneg %p213
    // Predicated region
    $region41: #{up_block_forward.5} parent=5 // pred_check
      _
    $region42: #{up_block_forward.5} parent=5 // pred_check_branch
      %216 = sbr.rel (%p213) target = $region44
    $region43: #{up_block_forward.5} parent=5 // pred_region
      %s217 = ssub.s32 %s12, 1
      %p218 = pneg %p33
      %p219 = pneg %p30
      %p220 = scmp.lt.s32.totalorder %s17, 1
      %s221 = scalar_select %p220, %s17, 1
      %s222 = smul.addr %s221, 54
      %s223 = smul.addr %s222, 4
      %s224 = scalar_lea.vmem %s1, %s223
      %p225 = pneg %p59
      %p226 = pneg %p56
      %p227 = pneg %p80
      %p228 = pneg %p77
      %p229 = pneg %p101
      %p230 = pneg %p98
      %p231 = pneg %p122
      %p232 = pneg %p119
      %p233 = pneg %p143
      %p234 = pneg %p140
      %p235 = pneg %p169
      %p236 = pneg %p166
      %p237 = scmp.lt.s32.totalorder %s17, 1
      %s238 = scalar_select %p237, %s17, 1
      %s239 = smul.addr %s238, 54
      %s240 = smul.addr %s239, 4
      %s241 = scalar_lea.vmem %s6, %s240
      %p242 = scmp.lt.s32.totalorder %s17, 1
      %s243 = scalar_select %p242, %s17, 1
      %s244 = smul.addr %s243, 54
      %s245 = smul.addr %s244, 4
      %s246 = scalar_lea.vmem %s1, %s245
      %p247 = scmp.lt.s32.totalorder %s17, 1
      %s248 = scalar_select %p247, %s17, 1
      %s249 = smul.addr %s248, 54
      %s250 = smul.addr %s249, 4
      %s251 = scalar_lea.vmem %s6, %s250
      %v253 = vld [vmem:[%s246] sm:$0xf]
      %v254 = vld [vmem:[%s246 + $0x4] sm:$0xf]
      %v255 = vld [vmem:[%s246 + $0x8] sm:$0xf]
      %v256 = vld [vmem:[%s246 + $0xc] sm:$0xf]
      %v257 = vld [vmem:[%s246 + $0x10] sm:$0xf]
      %v258 = vld [vmem:[%s246 + $0x14] sm:$0xf]
      %v259 = vld [vmem:[%s246 + $0x18] sm:$0xf]
      %v260 = vld [vmem:[%s246 + $0x1c] sm:$0xf]
      %v261 = vld [vmem:[%s246 + $0x20] sm:$0xf]
      %v262 = vld [vmem:[%s246 + $0x24] sm:$0xf]
      %v263 = vld [vmem:[%s246 + $0x28] sm:$0xf]
      %v264 = vld [vmem:[%s246 + $0x2c] sm:$0xf]
      %v265 = vld [vmem:[%s246 + $0x30] sm:$0xf]
      %v266 = vld [vmem:[%s246 + $0x34] sm:$0xf]
      %v267 = vld [vmem:[%s246 + $0x38] sm:$0xf]
      %v268 = vld [vmem:[%s246 + $0x3c] sm:$0xf]
      %v269 = vld [vmem:[%s246 + $0x40] sm:$0xf]
      %v270 = vld [vmem:[%s246 + $0x44] sm:$0xf]
      %v271 = vld [vmem:[%s246 + $0x48] sm:$0xf]
      %v272 = vld [vmem:[%s246 + $0x4c] sm:$0xf]
      %v273 = vld [vmem:[%s246 + $0x50] sm:$0xf]
      %v274 = vld [vmem:[%s246 + $0x54] sm:$0xf]
      %v275 = vld [vmem:[%s246 + $0x58] sm:$0xf]
      %v276 = vld [vmem:[%s246 + $0x5c] sm:$0xf]
      %v277 = vld [vmem:[%s246 + $0x60] sm:$0xf]
      %v278 = vld [vmem:[%s246 + $0x64] sm:$0xf]
      %v279 = vld [vmem:[%s246 + $0x68] sm:$0xf]
      %v280 = vld [vmem:[%s246 + $0x6c] sm:$0xf]
      %v281 = vld [vmem:[%s246 + $0x70] sm:$0xf]
      %v282 = vld [vmem:[%s246 + $0x74] sm:$0xf]
      %v283 = vld [vmem:[%s246 + $0x78] sm:$0xf]
      %v284 = vld [vmem:[%s246 + $0x7c] sm:$0xf]
      %v285 = vld [vmem:[%s246 + $0x80] sm:$0xf]
      %v286 = vld [vmem:[%s246 + $0x84] sm:$0xf]
      %v287 = vld [vmem:[%s246 + $0x88] sm:$0xf]
      %v288 = vld [vmem:[%s246 + $0x8c] sm:$0xf]
      %v289 = vld [vmem:[%s246 + $0x90] sm:$0xf]
      %v290 = vld [vmem:[%s246 + $0x94] sm:$0xf]
      %v291 = vld [vmem:[%s246 + $0x98] sm:$0xf]
      %v292 = vld [vmem:[%s246 + $0x9c] sm:$0xf]
      %v293 = vld [vmem:[%s246 + $0xa0] sm:$0xf]
      %v294 = vld [vmem:[%s246 + $0xa4] sm:$0xf]
      %v295 = vld [vmem:[%s246 + $0xa8] sm:$0xf]
      %v296 = vld [vmem:[%s246 + $0xac] sm:$0xf]
      %v297 = vld [vmem:[%s246 + $0xb0] sm:$0xf]
      %v298 = vld [vmem:[%s246 + $0xb4] sm:$0xf]
      %v299 = vld [vmem:[%s246 + $0xb8] sm:$0xf]
      %v300 = vld [vmem:[%s246 + $0xbc] sm:$0xf]
      %v301 = vld [vmem:[%s246 + $0xc0] sm:$0xf]
      %v302 = vld [vmem:[%s246 + $0xc4] sm:$0xf]
      %v303 = vld [vmem:[%s246 + $0xc8] sm:$0xf]
      %v304 = vld [vmem:[%s246 + $0xcc] sm:$0xf]
      %v305 = vld [vmem:[%s246 + $0xd0] sm:$0xf]
      %v306 = vld [vmem:[%s246 + $0xd4] sm:$0xf]
      %v307 = vunpack.c.l.bf16 %v253
      %v308 = vunpack.c.l.bf16 %v254
      %v309 = vunpack.c.l.bf16 %v255
      %v310 = vunpack.c.l.bf16 %v256
      %v311 = vunpack.c.l.bf16 %v257
      %v312 = vunpack.c.l.bf16 %v258
      %v313 = vunpack.c.l.bf16 %v259
      %v314 = vunpack.c.l.bf16 %v260
      %v315 = vunpack.c.l.bf16 %v261
      %v316 = vunpack.c.l.bf16 %v262
      %v317 = vunpack.c.l.bf16 %v263
      %v318 = vunpack.c.l.bf16 %v264
      %v319 = vunpack.c.l.bf16 %v265
      %v320 = vunpack.c.l.bf16 %v266
      %v321 = vunpack.c.l.bf16 %v267
      %v322 = vunpack.c.l.bf16 %v268
      %v323 = vunpack.c.l.bf16 %v269
      %v324 = vunpack.c.l.bf16 %v270
      %v325 = vunpack.c.l.bf16 %v271
      %v326 = vunpack.c.l.bf16 %v272
      %v327 = vunpack.c.l.bf16 %v273
      %v328 = vunpack.c.l.bf16 %v274
      %v329 = vunpack.c.l.bf16 %v275
      %v330 = vunpack.c.l.bf16 %v276
      %v331 = vunpack.c.l.bf16 %v277
      %v332 = vunpack.c.l.bf16 %v278
      %v333 = vunpack.c.l.bf16 %v279
      %v334 = vunpack.c.l.bf16 %v280
      %v335 = vunpack.c.l.bf16 %v281
      %v336 = vunpack.c.l.bf16 %v282
      %v337 = vunpack.c.l.bf16 %v283
      %v338 = vunpack.c.l.bf16 %v284
      %v339 = vunpack.c.l.bf16 %v285
      %v340 = vunpack.c.l.bf16 %v286
      %v341 = vunpack.c.l.bf16 %v287
      %v342 = vunpack.c.l.bf16 %v288
      %v343 = vunpack.c.l.bf16 %v289
      %v344 = vunpack.c.l.bf16 %v290
      %v345 = vunpack.c.l.bf16 %v291
      %v346 = vunpack.c.l.bf16 %v292
      %v347 = vunpack.c.l.bf16 %v293
      %v348 = vunpack.c.l.bf16 %v294
      %v349 = vunpack.c.l.bf16 %v295
      %v350 = vunpack.c.l.bf16 %v296
      %v351 = vunpack.c.l.bf16 %v297
      %v352 = vunpack.c.l.bf16 %v298
      %v353 = vunpack.c.l.bf16 %v299
      %v354 = vunpack.c.l.bf16 %v300
      %v355 = vunpack.c.l.bf16 %v301
      %v356 = vunpack.c.l.bf16 %v302
      %v357 = vunpack.c.l.bf16 %v303
      %v358 = vunpack.c.l.bf16 %v304
      %v359 = vunpack.c.l.bf16 %v305
      %v360 = vunpack.c.l.bf16 %v306
      %v361 = vld [vmem:[%s0] sm:$0xff]
      %v362 = vld [vmem:[%s0 + $0x8] sm:$0xff]
      %v363 = vld [vmem:[%s0 + $0x10] sm:$0xff]
      %v364 = vld [vmem:[%s0 + $0x18] sm:$0xff]
      %v365 = vld [vmem:[%s0 + $0x20] sm:$0xff]
      %v366 = vld [vmem:[%s0 + $0x28] sm:$0xff]
      %v367 = vld [vmem:[%s0 + $0x30] sm:$0xff]
      %v368 = vld [vmem:[%s0 + $0x38] sm:$0xff]
      %v369 = vld [vmem:[%s0 + $0x40] sm:$0xff]
      %v370 = vld [vmem:[%s0 + $0x48] sm:$0xff]
      %v371 = vld [vmem:[%s0 + $0x50] sm:$0xff]
      %v372 = vld [vmem:[%s0 + $0x58] sm:$0xff]
      %v373 = vld [vmem:[%s0 + $0x60] sm:$0xff]
      %v374 = vld [vmem:[%s0 + $0x68] sm:$0xff]
      %v375 = vld [vmem:[%s0 + $0x70] sm:$0xff]
      %v376 = vld [vmem:[%s0 + $0x78] sm:$0xff]
      %v377 = vld [vmem:[%s0 + $0x80] sm:$0xff]
      %v378 = vld [vmem:[%s0 + $0x88] sm:$0xff]
      %v379 = vld [vmem:[%s0 + $0x90] sm:$0xff]
      %v380 = vld [vmem:[%s0 + $0x98] sm:$0xff]
      %v381 = vld [vmem:[%s0 + $0xa0] sm:$0xff]
      %v382 = vld [vmem:[%s0 + $0xa8] sm:$0xff]
      %v383 = vld [vmem:[%s0 + $0xb0] sm:$0xff]
      %v384 = vld [vmem:[%s0 + $0xb8] sm:$0xff]
      %v385 = vld [vmem:[%s0 + $0xc0] sm:$0xff]
      %v386 = vld [vmem:[%s0 + $0xc8] sm:$0xff]
      %v387 = vld [vmem:[%s0 + $0xd0] sm:$0xff]
      %v388 = vld [vmem:[%s0 + $0xd8] sm:$0xff]
      %v389 = vld [vmem:[%s0 + $0xe0] sm:$0xff]
      %v390 = vld [vmem:[%s0 + $0xe8] sm:$0xff]
      %v391 = vld [vmem:[%s0 + $0xf0] sm:$0xff]
      %v392 = vld [vmem:[%s0 + $0xf8] sm:$0xff]
      %v393 = vld [vmem:[%s0 + $0x100] sm:$0xff]
      %v394 = vld [vmem:[%s0 + $0x108] sm:$0xff]
      %v395 = vld [vmem:[%s0 + $0x110] sm:$0xff]
      %v396 = vld [vmem:[%s0 + $0x118] sm:$0xff]
      %v397 = vld [vmem:[%s0 + $0x120] sm:$0xff]
      %v398 = vld [vmem:[%s0 + $0x128] sm:$0xff]
      %v399 = vld [vmem:[%s0 + $0x130] sm:$0xff]
      %v400 = vld [vmem:[%s0 + $0x138] sm:$0xff]
      %v401 = vld [vmem:[%s0 + $0x140] sm:$0xff]
      %v402 = vld [vmem:[%s0 + $0x148] sm:$0xff]
      %v403 = vld [vmem:[%s0 + $0x150] sm:$0xff]
      %v404 = vld [vmem:[%s0 + $0x158] sm:$0xff]
      %v405 = vld [vmem:[%s0 + $0x160] sm:$0xff]
      %v406 = vld [vmem:[%s0 + $0x168] sm:$0xff]
      %v407 = vld [vmem:[%s0 + $0x170] sm:$0xff]
      %v408 = vld [vmem:[%s0 + $0x178] sm:$0xff]
      %v409 = vld [vmem:[%s0 + $0x180] sm:$0xff]
      %v410 = vld [vmem:[%s0 + $0x188] sm:$0xff]
      %v411 = vld [vmem:[%s0 + $0x190] sm:$0xff]
      %v412 = vld [vmem:[%s0 + $0x198] sm:$0xff]
      %v413 = vld [vmem:[%s0 + $0x1a0] sm:$0xff]
      %v414 = vld [vmem:[%s0 + $0x1a8] sm:$0xff]
      %v415 = vld [vmem:[%s2] sm:$0x1]
      %v416 = vld [vmem:[%s3] sm:$0x1]
      %v417 = vld [vmem:[%s4] sm:$0xff]
      %v418 = vld [vmem:[%s4 + $0x8] sm:$0xff]
      %v419 = vld [vmem:[%s4 + $0x10] sm:$0xff]
      %v420 = vld [vmem:[%s4 + $0x18] sm:$0xff]
      %v421 = vld [vmem:[%s4 + $0x20] sm:$0xff]
      %v422 = vld [vmem:[%s4 + $0x28] sm:$0xff]
      %v423 = vld [vmem:[%s4 + $0x30] sm:$0xff]
      %v424 = vld [vmem:[%s4 + $0x38] sm:$0xff]
      %vm425 = vcmask 523264
      %v426 = vsel %vm425, %v307, 0.0
      %v427 = vsel %vm425, %v308, 0.0
      %v428 = vadd.f32 %v426, %v427
      %v429 = vsel %vm425, %v309, 0.0
      %v430 = vadd.f32 %v428, %v429
      %v431 = vsel %vm425, %v310, 0.0
      %v432 = vadd.f32 %v430, %v431
      %v433 = vsel %vm425, %v311, 0.0
      %v434 = vadd.f32 %v432, %v433
      %v435 = vsel %vm425, %v312, 0.0
      %v436 = vadd.f32 %v434, %v435
      %v437 = vsel %vm425, %v313, 0.0
      %v438 = vadd.f32 %v436, %v437
      %v439 = vsel %vm425, %v314, 0.0
      %v440 = vadd.f32 %v438, %v439
      %v441 = vsel %vm425, %v315, 0.0
      %v442 = vadd.f32 %v440, %v441
      %v443 = vsel %vm425, %v316, 0.0
      %v444 = vadd.f32 %v442, %v443
      %v445 = vsel %vm425, %v317, 0.0
      %v446 = vadd.f32 %v444, %v445
      %v447 = vsel %vm425, %v318, 0.0
      %v448 = vadd.f32 %v446, %v447
      %v449 = vsel %vm425, %v319, 0.0
      %v450 = vadd.f32 %v448, %v449
      %v451 = vsel %vm425, %v320, 0.0
      %v452 = vadd.f32 %v450, %v451
      %v453 = vsel %vm425, %v321, 0.0
      %v454 = vadd.f32 %v452, %v453
      %v455 = vsel %vm425, %v322, 0.0
      %v456 = vadd.f32 %v454, %v455
      %v457 = vsel %vm425, %v323, 0.0
      %v458 = vadd.f32 %v456, %v457
      %v459 = vsel %vm425, %v324, 0.0
      %v460 = vadd.f32 %v458, %v459
      %v461 = vsel %vm425, %v325, 0.0
      %v462 = vadd.f32 %v460, %v461
      %v463 = vsel %vm425, %v326, 0.0
      %v464 = vadd.f32 %v462, %v463
      %v465 = vsel %vm425, %v327, 0.0
      %v466 = vadd.f32 %v464, %v465
      %v467 = vsel %vm425, %v328, 0.0
      %v468 = vadd.f32 %v466, %v467
      %v469 = vsel %vm425, %v329, 0.0
      %v470 = vadd.f32 %v468, %v469
      %v471 = vsel %vm425, %v330, 0.0
      %v472 = vadd.f32 %v470, %v471
      %v473 = vsel %vm425, %v331, 0.0
      %v474 = vadd.f32 %v472, %v473
      %v475 = vsel %vm425, %v332, 0.0
      %v476 = vadd.f32 %v474, %v475
      %v477 = vsel %vm425, %v333, 0.0
      %v478 = vadd.f32 %v476, %v477
      %v479 = vsel %vm425, %v334, 0.0
      %v480 = vadd.f32 %v478, %v479
      %v481 = vsel %vm425, %v335, 0.0
      %v482 = vadd.f32 %v480, %v481
      %v483 = vsel %vm425, %v336, 0.0
      %v484 = vadd.f32 %v482, %v483
      %v485 = vsel %vm425, %v337, 0.0
      %v486 = vadd.f32 %v484, %v485
      %v487 = vsel %vm425, %v338, 0.0
      %v488 = vadd.f32 %v486, %v487
      %v489 = vsel %vm425, %v339, 0.0
      %v490 = vadd.f32 %v488, %v489
      %v491 = vsel %vm425, %v340, 0.0
      %v492 = vadd.f32 %v490, %v491
      %v493 = vsel %vm425, %v341, 0.0
      %v494 = vadd.f32 %v492, %v493
      %v495 = vsel %vm425, %v342, 0.0
      %v496 = vadd.f32 %v494, %v495
      %v497 = vsel %vm425, %v343, 0.0
      %v498 = vadd.f32 %v496, %v497
      %v499 = vsel %vm425, %v344, 0.0
      %v500 = vadd.f32 %v498, %v499
      %v501 = vsel %vm425, %v345, 0.0
      %v502 = vadd.f32 %v500, %v501
      %v503 = vsel %vm425, %v346, 0.0
      %v504 = vadd.f32 %v502, %v503
      %v505 = vsel %vm425, %v347, 0.0
      %v506 = vadd.f32 %v504, %v505
      %v507 = vsel %vm425, %v348, 0.0
      %v508 = vadd.f32 %v506, %v507
      %v509 = vsel %vm425, %v349, 0.0
      %v510 = vadd.f32 %v508, %v509
      %v511 = vsel %vm425, %v350, 0.0
      %v512 = vadd.f32 %v510, %v511
      %v513 = vsel %vm425, %v351, 0.0
      %v514 = vadd.f32 %v512, %v513
      %v515 = vsel %vm425, %v352, 0.0
      %v516 = vadd.f32 %v514, %v515
      %v517 = vsel %vm425, %v353, 0.0
      %v518 = vadd.f32 %v516, %v517
      %v519 = vsel %vm425, %v354, 0.0
      %v520 = vadd.f32 %v518, %v519
      %v521 = vsel %vm425, %v355, 0.0
      %v522 = vadd.f32 %v520, %v521
      %v523 = vsel %vm425, %v356, 0.0
      %v524 = vadd.f32 %v522, %v523
      %v525 = vsel %vm425, %v357, 0.0
      %v526 = vadd.f32 %v524, %v525
      %v527 = vsel %vm425, %v358, 0.0
      %v528 = vadd.f32 %v526, %v527
      %v529 = vsel %vm425, %v359, 0.0
      %v530 = vadd.f32 %v528, %v529
      %v531 = vsel %vm425, %v360, 0.0
      %v532 = vadd.f32 %v530, %v531
      %v533 = vrot.slane %v532, 4
      %v534 = vadd.f32 %v532, %v533
      %v535 = vrot.slane %v534, 2
      %v536 = vadd.f32 %v534, %v535
      %v537 = vrot.slane %v536, 1
      %v538 = vadd.f32 %v536, %v537
      %v539 = vmul.f32 %v307, %v307
      %v540 = vmul.f32 %v308, %v308
      %v541 = vmul.f32 %v309, %v309
      %v542 = vmul.f32 %v310, %v310
      %v543 = vmul.f32 %v311, %v311
      %v544 = vmul.f32 %v312, %v312
      %v545 = vmul.f32 %v313, %v313
      %v546 = vmul.f32 %v314, %v314
      %v547 = vmul.f32 %v315, %v315
      %v548 = vmul.f32 %v316, %v316
      %v549 = vmul.f32 %v317, %v317
      %v550 = vmul.f32 %v318, %v318
      %v551 = vmul.f32 %v319, %v319
      %v552 = vmul.f32 %v320, %v320
      %v553 = vmul.f32 %v321, %v321
      %v554 = vmul.f32 %v322, %v322
      %v555 = vmul.f32 %v323, %v323
      %v556 = vmul.f32 %v324, %v324
      %v557 = vmul.f32 %v325, %v325
      %v558 = vmul.f32 %v326, %v326
      %v559 = vmul.f32 %v327, %v327
      %v560 = vmul.f32 %v328, %v328
      %v561 = vmul.f32 %v329, %v329
      %v562 = vmul.f32 %v330, %v330
      %v563 = vmul.f32 %v331, %v331
      %v564 = vmul.f32 %v332, %v332
      %v565 = vmul.f32 %v333, %v333
      %v566 = vmul.f32 %v334, %v334
      %v567 = vmul.f32 %v335, %v335
      %v568 = vmul.f32 %v336, %v336
      %v569 = vmul.f32 %v337, %v337
      %v570 = vmul.f32 %v338, %v338
      %v571 = vmul.f32 %v339, %v339
      %v572 = vmul.f32 %v340, %v340
      %v573 = vmul.f32 %v341, %v341
      %v574 = vmul.f32 %v342, %v342
      %v575 = vmul.f32 %v343, %v343
      %v576 = vmul.f32 %v344, %v344
      %v577 = vmul.f32 %v345, %v345
      %v578 = vmul.f32 %v346, %v346
      %v579 = vmul.f32 %v347, %v347
      %v580 = vmul.f32 %v348, %v348
      %v581 = vmul.f32 %v349, %v349
      %v582 = vmul.f32 %v350, %v350
      %v583 = vmul.f32 %v351, %v351
      %v584 = vmul.f32 %v352, %v352
      %v585 = vmul.f32 %v353, %v353
      %v586 = vmul.f32 %v354, %v354
      %v587 = vmul.f32 %v355, %v355
      %v588 = vmul.f32 %v356, %v356
      %v589 = vmul.f32 %v357, %v357
      %v590 = vmul.f32 %v358, %v358
      %v591 = vmul.f32 %v359, %v359
      %v592 = vmul.f32 %v360, %v360
      %v593 = vsel %vm425, %v539, 0.0
      %v594 = vsel %vm425, %v540, 0.0
      %v595 = vadd.f32 %v593, %v594
      %v596 = vsel %vm425, %v541, 0.0
      %v597 = vadd.f32 %v595, %v596
      %v598 = vsel %vm425, %v542, 0.0
      %v599 = vadd.f32 %v597, %v598
      %v600 = vsel %vm425, %v543, 0.0
      %v601 = vadd.f32 %v599, %v600
      %v602 = vsel %vm425, %v544, 0.0
      %v603 = vadd.f32 %v601, %v602
      %v604 = vsel %vm425, %v545, 0.0
      %v605 = vadd.f32 %v603, %v604
      %v606 = vsel %vm425, %v546, 0.0
      %v607 = vadd.f32 %v605, %v606
      %v608 = vsel %vm425, %v547, 0.0
      %v609 = vadd.f32 %v607, %v608
      %v610 = vsel %vm425, %v548, 0.0
      %v611 = vadd.f32 %v609, %v610
      %v612 = vsel %vm425, %v549, 0.0
      %v613 = vadd.f32 %v611, %v612
      %v614 = vsel %vm425, %v550, 0.0
      %v615 = vadd.f32 %v613, %v614
      %v616 = vsel %vm425, %v551, 0.0
      %v617 = vadd.f32 %v615, %v616
      %v618 = vsel %vm425, %v552, 0.0
      %v619 = vadd.f32 %v617, %v618
      %v620 = vsel %vm425, %v553, 0.0
      %v621 = vadd.f32 %v619, %v620
      %v622 = vsel %vm425, %v554, 0.0
      %v623 = vadd.f32 %v621, %v622
      %v624 = vsel %vm425, %v555, 0.0
      %v625 = vadd.f32 %v623, %v624
      %v626 = vsel %vm425, %v556, 0.0
      %v627 = vadd.f32 %v625, %v626
      %v628 = vsel %vm425, %v557, 0.0
      %v629 = vadd.f32 %v627, %v628
      %v630 = vsel %vm425, %v558, 0.0
      %v631 = vadd.f32 %v629, %v630
      %v632 = vsel %vm425, %v559, 0.0
      %v633 = vadd.f32 %v631, %v632
      %v634 = vsel %vm425, %v560, 0.0
      %v635 = vadd.f32 %v633, %v634
      %v636 = vsel %vm425, %v561, 0.0
      %v637 = vadd.f32 %v635, %v636
      %v638 = vsel %vm425, %v562, 0.0
      %v639 = vadd.f32 %v637, %v638
      %v640 = vsel %vm425, %v563, 0.0
      %v641 = vadd.f32 %v639, %v640
      %v642 = vsel %vm425, %v564, 0.0
      %v643 = vadd.f32 %v641, %v642
      %v644 = vsel %vm425, %v565, 0.0
      %v645 = vadd.f32 %v643, %v644
      %v646 = vsel %vm425, %v566, 0.0
      %v647 = vadd.f32 %v645, %v646
      %v648 = vsel %vm425, %v567, 0.0
      %v649 = vadd.f32 %v647, %v648
      %v650 = vsel %vm425, %v568, 0.0
      %v651 = vadd.f32 %v649, %v650
      %v652 = vsel %vm425, %v569, 0.0
      %v653 = vadd.f32 %v651, %v652
      %v654 = vsel %vm425, %v570, 0.0
      %v655 = vadd.f32 %v653, %v654
      %v656 = vsel %vm425, %v571, 0.0
      %v657 = vadd.f32 %v655, %v656
      %v658 = vsel %vm425, %v572, 0.0
      %v659 = vadd.f32 %v657, %v658
      %v660 = vsel %vm425, %v573, 0.0
      %v661 = vadd.f32 %v659, %v660
      %v662 = vsel %vm425, %v574, 0.0
      %v663 = vadd.f32 %v661, %v662
      %v664 = vsel %vm425, %v575, 0.0
      %v665 = vadd.f32 %v663, %v664
      %v666 = vsel %vm425, %v576, 0.0
      %v667 = vadd.f32 %v665, %v666
      %v668 = vsel %vm425, %v577, 0.0
      %v669 = vadd.f32 %v667, %v668
      %v670 = vsel %vm425, %v578, 0.0
      %v671 = vadd.f32 %v669, %v670
      %v672 = vsel %vm425, %v579, 0.0
      %v673 = vadd.f32 %v671, %v672
      %v674 = vsel %vm425, %v580, 0.0
      %v675 = vadd.f32 %v673, %v674
      %v676 = vsel %vm425, %v581, 0.0
      %v677 = vadd.f32 %v675, %v676
      %v678 = vsel %vm425, %v582, 0.0
      %v679 = vadd.f32 %v677, %v678
      %v680 = vsel %vm425, %v583, 0.0
      %v681 = vadd.f32 %v679, %v680
      %v682 = vsel %vm425, %v584, 0.0
      %v683 = vadd.f32 %v681, %v682
      %v684 = vsel %vm425, %v585, 0.0
      %v685 = vadd.f32 %v683, %v684
      %v686 = vsel %vm425, %v586, 0.0
      %v687 = vadd.f32 %v685, %v686
      %v688 = vsel %vm425, %v587, 0.0
      %v689 = vadd.f32 %v687, %v688
      %v690 = vsel %vm425, %v588, 0.0
      %v691 = vadd.f32 %v689, %v690
      %v692 = vsel %vm425, %v589, 0.0
      %v693 = vadd.f32 %v691, %v692
      %v694 = vsel %vm425, %v590, 0.0
      %v695 = vadd.f32 %v693, %v694
      %v696 = vsel %vm425, %v591, 0.0
      %v697 = vadd.f32 %v695, %v696
      %v698 = vsel %vm425, %v592, 0.0
      %v699 = vadd.f32 %v697, %v698
      %v700 = vrot.slane %v699, 4
      %v701 = vadd.f32 %v699, %v700
      %v702 = vrot.slane %v701, 2
      %v703 = vadd.f32 %v701, %v702
      %v704 = vrot.slane %v703, 1
      %v705 = vadd.f32 %v703, %v704
      %v707 = vsel %vm425, %v538, 0
      %709 = vmatprep.subr.mxu0 0.0
      %710 = vmatpush1.msra.mxu0 %v417
      %711 = vmatprep.subr.mxu0 0.0
      %712 = vmatpush1.msra.mxu0 %v418
      %713 = vmatprep.subr.mxu0 0.0
      %714 = vmatpush1.msra.mxu0 %v419
      %715 = vmatprep.subr.mxu0 0.0
      %716 = vmatpush1.msra.mxu0 %v420
      %717 = vmatprep.subr.mxu0 0.0
      %718 = vmatpush1.msra.mxu0 %v421
      %719 = vmatprep.subr.mxu0 0.0
      %720 = vmatpush1.msra.mxu0 %v422
      %721 = vmatprep.subr.mxu0 0.0
      %722 = vmatpush1.msra.mxu0 %v423
      %723 = vmatprep.subr.mxu0 0.0
      %724 = vmatpush1.msra.mxu0 %v424
      %725 = vmatprep.subr.mxu0 0.0
      %726 = vmatpush1.msra.mxu0 0.0
      %727 = vmatprep.subr.mxu0 0.0
      %728 = vmatpush1.msra.mxu0 0.0
      %729 = vmatprep.subr.mxu0 0.0
      %730 = vmatpush1.msra.mxu0 0.0
      %731 = vmatprep.subr.mxu0 0.0
      %732 = vmatpush1.msra.mxu0 0.0
      %733 = vmatprep.subr.mxu0 0.0
      %734 = vmatpush1.msra.mxu0 0.0
      %735 = vmatprep.subr.mxu0 0.0
      %736 = vmatpush1.msra.mxu0 0.0
      %737 = vmatprep.subr.mxu0 0.0
      %738 = vmatpush1.msra.mxu0 0.0
      %739 = vmatprep.subr.mxu0 0.0
      %740 = vmatpush1.msra.mxu0 0.0
      %741 = vmatprep.subr.mxu0 0.0
      %742 = vmatpush1.msra.mxu0 0.0
      %743 = vmatprep.subr.mxu0 0.0
      %744 = vmatpush1.msra.mxu0 0.0
      %745 = vmatprep.subr.mxu0 0.0
      %746 = vmatpush1.msra.mxu0 0.0
      %747 = vmatprep.subr.mxu0 0.0
      %748 = vmatpush1.msra.mxu0 0.0
      %749 = vmatprep.subr.mxu0 0.0
      %750 = vmatpush1.msra.mxu0 0.0
      %751 = vmatprep.subr.mxu0 0.0
      %752 = vmatpush1.msra.mxu0 0.0
      %753 = vmatprep.subr.mxu0 0.0
      %754 = vmatpush1.msra.mxu0 0.0
      %755 = vmatprep.subr.mxu0 0.0
      %756 = vmatpush1.msra.mxu0 0.0
      %757 = vmatprep.subr.mxu0 0.0
      %758 = vmatpush1.msra.mxu0 0.0
      %759 = vmatprep.subr.mxu0 0.0
      %760 = vmatpush1.msra.mxu0 0.0
      %761 = vmatprep.subr.mxu0 0.0
      %762 = vmatpush1.msra.mxu0 0.0
      %763 = vmatprep.subr.mxu0 0.0
      %764 = vmatpush1.msra.mxu0 0.0
      %765 = vmatprep.subr.mxu0 0.0
      %766 = vmatpush1.msra.mxu0 0.0
      %767 = vmatprep.subr.mxu0 0.0
      %768 = vmatpush1.msra.mxu0 0.0
      %769 = vmatprep.subr.mxu0 0.0
      %770 = vmatpush1.msra.mxu0 0.0
      %771 = vmatprep.subr.mxu0 0.0
      %772 = vmatpush1.msra.mxu0 0.0
      %773 = vmatprep.mubr.f32.mxu0 0.0
      %774 = vmatmul.mubr.f32.gmra.mrb[0].mxu0 %v707
      %v775 = vpop.f32.mrb[0].mxu0
      %v776 = vadd.f32 0.0, %v775
      %v777 = vpop.f32.mrb[0].mxu0
      %778 = vdwg.mxu0
      %v780 = vsel %vm425, %v705, 0
      %782 = vmatprep.subr.mxu0 0.0
      %783 = vmatpush1.msra.mxu0 %v417
      %784 = vmatprep.subr.mxu0 0.0
      %785 = vmatpush1.msra.mxu0 %v418
      %786 = vmatprep.subr.mxu0 0.0
      %787 = vmatpush1.msra.mxu0 %v419
      %788 = vmatprep.subr.mxu0 0.0
      %789 = vmatpush1.msra.mxu0 %v420
      %790 = vmatprep.subr.mxu0 0.0
      %791 = vmatpush1.msra.mxu0 %v421
      %792 = vmatprep.subr.mxu0 0.0
      %793 = vmatpush1.msra.mxu0 %v422
      %794 = vmatprep.subr.mxu0 0.0
      %795 = vmatpush1.msra.mxu0 %v423
      %796 = vmatprep.subr.mxu0 0.0
      %797 = vmatpush1.msra.mxu0 %v424
      %798 = vmatprep.subr.mxu0 0.0
      %799 = vmatpush1.msra.mxu0 0.0
      %800 = vmatprep.subr.mxu0 0.0
      %801 = vmatpush1.msra.mxu0 0.0
      %802 = vmatprep.subr.mxu0 0.0
      %803 = vmatpush1.msra.mxu0 0.0
      %804 = vmatprep.subr.mxu0 0.0
      %805 = vmatpush1.msra.mxu0 0.0
      %806 = vmatprep.subr.mxu0 0.0
      %807 = vmatpush1.msra.mxu0 0.0
      %808 = vmatprep.subr.mxu0 0.0
      %809 = vmatpush1.msra.mxu0 0.0
      %810 = vmatprep.subr.mxu0 0.0
      %811 = vmatpush1.msra.mxu0 0.0
      %812 = vmatprep.subr.mxu0 0.0
      %813 = vmatpush1.msra.mxu0 0.0
      %814 = vmatprep.subr.mxu0 0.0
      %815 = vmatpush1.msra.mxu0 0.0
      %816 = vmatprep.subr.mxu0 0.0
      %817 = vmatpush1.msra.mxu0 0.0
      %818 = vmatprep.subr.mxu0 0.0
      %819 = vmatpush1.msra.mxu0 0.0
      %820 = vmatprep.subr.mxu0 0.0
      %821 = vmatpush1.msra.mxu0 0.0
      %822 = vmatprep.subr.mxu0 0.0
      %823 = vmatpush1.msra.mxu0 0.0
      %824 = vmatprep.subr.mxu0 0.0
      %825 = vmatpush1.msra.mxu0 0.0
      %826 = vmatprep.subr.mxu0 0.0
      %827 = vmatpush1.msra.mxu0 0.0
      %828 = vmatprep.subr.mxu0 0.0
      %829 = vmatpush1.msra.mxu0 0.0
      %830 = vmatprep.subr.mxu0 0.0
      %831 = vmatpush1.msra.mxu0 0.0
      %832 = vmatprep.subr.mxu0 0.0
      %833 = vmatpush1.msra.mxu0 0.0
      %834 = vmatprep.subr.mxu0 0.0
      %835 = vmatpush1.msra.mxu0 0.0
      %836 = vmatprep.subr.mxu0 0.0
      %837 = vmatpush1.msra.mxu0 0.0
      %838 = vmatprep.subr.mxu0 0.0
      %839 = vmatpush1.msra.mxu0 0.0
      %840 = vmatprep.subr.mxu0 0.0
      %841 = vmatpush1.msra.mxu0 0.0
      %842 = vmatprep.subr.mxu0 0.0
      %843 = vmatpush1.msra.mxu0 0.0
      %844 = vmatprep.subr.mxu0 0.0
      %845 = vmatpush1.msra.mxu0 0.0
      %846 = vmatprep.mubr.f32.mxu0 0.0
      %847 = vmatmul.mubr.f32.gmra.mrb[0].mxu0 %v780
      %v848 = vpop.f32.mrb[0].mxu0
      %v849 = vadd.f32 0.0, %v848
      %v850 = vpop.f32.mrb[0].mxu0
      %851 = vdwg.mxu0
      %v852 = vmul.f32 %v776, %v776
      %v853 = vsub.f32 %v849, %v852
      %v854 = vadd.f32 %v853, 1e-05
      %v855 = vrsqrt.pop %v854
      %v856 = vmul.f32 %v855, %v415
      %v857 = vmul.f32 %v776, %v856
      %v858 = vsub.f32 %v416, %v857
      %v859 = vlaneseq
      %v860 = vshrl.u32 %v859, 7
      %v861 = vsub.s32 0, %v860
      %v862 = vrot.slane %v856, %v861
      %v863 = vmul.f32 %v307, %v862
      %v864 = vmul.f32 %v308, %v862
      %v865 = vmul.f32 %v309, %v862
      %v866 = vmul.f32 %v310, %v862
      %v867 = vmul.f32 %v311, %v862
      %v868 = vmul.f32 %v312, %v862
      %v869 = vmul.f32 %v313, %v862
      %v870 = vmul.f32 %v314, %v862
      %v871 = vmul.f32 %v315, %v862
      %v872 = vmul.f32 %v316, %v862
      %v873 = vmul.f32 %v317, %v862
      %v874 = vmul.f32 %v318, %v862
      %v875 = vmul.f32 %v319, %v862
      %v876 = vmul.f32 %v320, %v862
      %v877 = vmul.f32 %v321, %v862
      %v878 = vmul.f32 %v322, %v862
      %v879 = vmul.f32 %v323, %v862
      %v880 = vmul.f32 %v324, %v862
      %v881 = vmul.f32 %v325, %v862
      %v882 = vmul.f32 %v326, %v862
      %v883 = vmul.f32 %v327, %v862
      %v884 = vmul.f32 %v328, %v862
      %v885 = vmul.f32 %v329, %v862
      %v886 = vmul.f32 %v330, %v862
      %v887 = vmul.f32 %v331, %v862
      %v888 = vmul.f32 %v332, %v862
      %v889 = vmul.f32 %v333, %v862
      %v890 = vmul.f32 %v334, %v862
      %v891 = vmul.f32 %v335, %v862
      %v892 = vmul.f32 %v336, %v862
      %v893 = vmul.f32 %v337, %v862
      %v894 = vmul.f32 %v338, %v862
      %v895 = vmul.f32 %v339, %v862
      %v896 = vmul.f32 %v340, %v862
      %v897 = vmul.f32 %v341, %v862
      %v898 = vmul.f32 %v342, %v862
      %v899 = vmul.f32 %v343, %v862
      %v900 = vmul.f32 %v344, %v862
      %v901 = vmul.f32 %v345, %v862
      %v902 = vmul.f32 %v346, %v862
      %v903 = vmul.f32 %v347, %v862
      %v904 = vmul.f32 %v348, %v862
      %v905 = vmul.f32 %v349, %v862
      %v906 = vmul.f32 %v350, %v862
      %v907 = vmul.f32 %v351, %v862
      %v908 = vmul.f32 %v352, %v862
      %v909 = vmul.f32 %v353, %v862
      %v910 = vmul.f32 %v354, %v862
      %v911 = vmul.f32 %v355, %v862
      %v912 = vmul.f32 %v356, %v862
      %v913 = vmul.f32 %v357, %v862
      %v914 = vmul.f32 %v358, %v862
      %v915 = vmul.f32 %v359, %v862
      %v916 = vmul.f32 %v360, %v862
      %v918 = vlaneseq
      %v919 = vshrl.u32 %v918, 7
      %v920 = vsub.s32 0, %v919
      %v921 = vrot.slane %v858, %v920
      %v923 = vadd.f32 %v863, %v921
      %v924 = vadd.f32 %v864, %v921
      %v925 = vadd.f32 %v865, %v921
      %v926 = vadd.f32 %v866, %v921
      %v927 = vadd.f32 %v867, %v921
      %v928 = vadd.f32 %v868, %v921
      %v929 = vadd.f32 %v869, %v921
      %v930 = vadd.f32 %v870, %v921
      %v931 = vadd.f32 %v871, %v921
      %v932 = vadd.f32 %v872, %v921
      %v933 = vadd.f32 %v873, %v921
      %v934 = vadd.f32 %v874, %v921
      %v935 = vadd.f32 %v875, %v921
      %v936 = vadd.f32 %v876, %v921
      %v937 = vadd.f32 %v877, %v921
      %v938 = vadd.f32 %v878, %v921
      %v939 = vadd.f32 %v879, %v921
      %v940 = vadd.f32 %v880, %v921
      %v941 = vadd.f32 %v881, %v921
      %v942 = vadd.f32 %v882, %v921
      %v943 = vadd.f32 %v883, %v921
      %v944 = vadd.f32 %v884, %v921
      %v945 = vadd.f32 %v885, %v921
      %v946 = vadd.f32 %v886, %v921
      %v947 = vadd.f32 %v887, %v921
      %v948 = vadd.f32 %v888, %v921
      %v949 = vadd.f32 %v889, %v921
      %v950 = vadd.f32 %v890, %v921
      %v951 = vadd.f32 %v891, %v921
      %v952 = vadd.f32 %v892, %v921
      %v953 = vadd.f32 %v893, %v921
      %v954 = vadd.f32 %v894, %v921
      %v955 = vadd.f32 %v895, %v921
      %v956 = vadd.f32 %v896, %v921
      %v957 = vadd.f32 %v897, %v921
      %v958 = vadd.f32 %v898, %v921
      %v959 = vadd.f32 %v899, %v921
      %v960 = vadd.f32 %v900, %v921
      %v961 = vadd.f32 %v901, %v921
      %v962 = vadd.f32 %v902, %v921
      %v963 = vadd.f32 %v903, %v921
      %v964 = vadd.f32 %v904, %v921
      %v965 = vadd.f32 %v905, %v921
      %v966 = vadd.f32 %v906, %v921
      %v967 = vadd.f32 %v907, %v921
      %v968 = vadd.f32 %v908, %v921
      %v969 = vadd.f32 %v909, %v921
      %v970 = vadd.f32 %v910, %v921
      %v971 = vadd.f32 %v911, %v921
      %v972 = vadd.f32 %v912, %v921
      %v973 = vadd.f32 %v913, %v921
      %v974 = vadd.f32 %v914, %v921
      %v975 = vadd.f32 %v915, %v921
      %v976 = vadd.f32 %v916, %v921
      %vm977 = vcmp.ge.f32.partialorder %v923, 0.0
      %vm978 = vcmp.ge.f32.partialorder %v924, 0.0
      %vm979 = vcmp.ge.f32.partialorder %v925, 0.0
      %vm980 = vcmp.ge.f32.partialorder %v926, 0.0
      %vm981 = vcmp.ge.f32.partialorder %v927, 0.0
      %vm982 = vcmp.ge.f32.partialorder %v928, 0.0
      %vm983 = vcmp.ge.f32.partialorder %v929, 0.0
      %vm984 = vcmp.ge.f32.partialorder %v930, 0.0
      %vm985 = vcmp.ge.f32.partialorder %v931, 0.0
      %vm986 = vcmp.ge.f32.partialorder %v932, 0.0
      %vm987 = vcmp.ge.f32.partialorder %v933, 0.0
      %vm988 = vcmp.ge.f32.partialorder %v934, 0.0
      %vm989 = vcmp.ge.f32.partialorder %v935, 0.0
      %vm990 = vcmp.ge.f32.partialorder %v936, 0.0
      %vm991 = vcmp.ge.f32.partialorder %v937, 0.0
      %vm992 = vcmp.ge.f32.partialorder %v938, 0.0
      %vm993 = vcmp.ge.f32.partialorder %v939, 0.0
      %vm994 = vcmp.ge.f32.partialorder %v940, 0.0
      %vm995 = vcmp.ge.f32.partialorder %v941, 0.0
      %vm996 = vcmp.ge.f32.partialorder %v942, 0.0
      %vm997 = vcmp.ge.f32.partialorder %v943, 0.0
      %vm998 = vcmp.ge.f32.partialorder %v944, 0.0
      %vm999 = vcmp.ge.f32.partialorder %v945, 0.0
      %vm1000 = vcmp.ge.f32.partialorder %v946, 0.0
      %vm1001 = vcmp.ge.f32.partialorder %v947, 0.0
      %vm1002 = vcmp.ge.f32.partialorder %v948, 0.0
      %vm1003 = vcmp.ge.f32.partialorder %v949, 0.0
      %vm1004 = vcmp.ge.f32.partialorder %v950, 0.0
      %vm1005 = vcmp.ge.f32.partialorder %v951, 0.0
      %vm1006 = vcmp.ge.f32.partialorder %v952, 0.0
      %vm1007 = vcmp.ge.f32.partialorder %v953, 0.0
      %vm1008 = vcmp.ge.f32.partialorder %v954, 0.0
      %vm1009 = vcmp.ge.f32.partialorder %v955, 0.0
      %vm1010 = vcmp.ge.f32.partialorder %v956, 0.0
      %vm1011 = vcmp.ge.f32.partialorder %v957, 0.0
      %vm1012 = vcmp.ge.f32.partialorder %v958, 0.0
      %vm1013 = vcmp.ge.f32.partialorder %v959, 0.0
      %vm1014 = vcmp.ge.f32.partialorder %v960, 0.0
      %vm1015 = vcmp.ge.f32.partialorder %v961, 0.0
      %vm1016 = vcmp.ge.f32.partialorder %v962, 0.0
      %vm1017 = vcmp.ge.f32.partialorder %v963, 0.0
      %vm1018 = vcmp.ge.f32.partialorder %v964, 0.0
      %vm1019 = vcmp.ge.f32.partialorder %v965, 0.0
      %vm1020 = vcmp.ge.f32.partialorder %v966, 0.0
      %vm1021 = vcmp.ge.f32.partialorder %v967, 0.0
      %vm1022 = vcmp.ge.f32.partialorder %v968, 0.0
      %vm1023 = vcmp.ge.f32.partialorder %v969, 0.0
      %vm1024 = vcmp.ge.f32.partialorder %v970, 0.0
      %vm1025 = vcmp.ge.f32.partialorder %v971, 0.0
      %vm1026 = vcmp.ge.f32.partialorder %v972, 0.0
      %vm1027 = vcmp.ge.f32.partialorder %v973, 0.0
      %vm1028 = vcmp.ge.f32.partialorder %v974, 0.0
      %vm1029 = vcmp.ge.f32.partialorder %v975, 0.0
      %vm1030 = vcmp.ge.f32.partialorder %v976, 0.0
      %v1031 = vmul.f32 %v923, 0.01
      %v1032 = vmul.f32 %v924, 0.01
      %v1033 = vmul.f32 %v925, 0.01
      %v1034 = vmul.f32 %v926, 0.01
      %v1035 = vmul.f32 %v927, 0.01
      %v1036 = vmul.f32 %v928, 0.01
      %v1037 = vmul.f32 %v929, 0.01
      %v1038 = vmul.f32 %v930, 0.01
      %v1039 = vmul.f32 %v931, 0.01
      %v1040 = vmul.f32 %v932, 0.01
      %v1041 = vmul.f32 %v933, 0.01
      %v1042 = vmul.f32 %v934, 0.01
      %v1043 = vmul.f32 %v935, 0.01
      %v1044 = vmul.f32 %v936, 0.01
      %v1045 = vmul.f32 %v937, 0.01
      %v1046 = vmul.f32 %v938, 0.01
      %v1047 = vmul.f32 %v939, 0.01
      %v1048 = vmul.f32 %v940, 0.01
      %v1049 = vmul.f32 %v941, 0.01
      %v1050 = vmul.f32 %v942, 0.01
      %v1051 = vmul.f32 %v943, 0.01
      %v1052 = vmul.f32 %v944, 0.01
      %v1053 = vmul.f32 %v945, 0.01
      %v1054 = vmul.f32 %v946, 0.01
      %v1055 = vmul.f32 %v947, 0.01
      %v1056 = vmul.f32 %v948, 0.01
      %v1057 = vmul.f32 %v949, 0.01
      %v1058 = vmul.f32 %v950, 0.01
      %v1059 = vmul.f32 %v951, 0.01
      %v1060 = vmul.f32 %v952, 0.01
      %v1061 = vmul.f32 %v953, 0.01
      %v1062 = vmul.f32 %v954, 0.01
      %v1063 = vmul.f32 %v955, 0.01
      %v1064 = vmul.f32 %v956, 0.01
      %v1065 = vmul.f32 %v957, 0.01
      %v1066 = vmul.f32 %v958, 0.01
      %v1067 = vmul.f32 %v959, 0.01
      %v1068 = vmul.f32 %v960, 0.01
      %v1069 = vmul.f32 %v961, 0.01
      %v1070 = vmul.f32 %v962, 0.01
      %v1071 = vmul.f32 %v963, 0.01
      %v1072 = vmul.f32 %v964, 0.01
      %v1073 = vmul.f32 %v965, 0.01
      %v1074 = vmul.f32 %v966, 0.01
      %v1075 = vmul.f32 %v967, 0.01
      %v1076 = vmul.f32 %v968, 0.01
      %v1077 = vmul.f32 %v969, 0.01
      %v1078 = vmul.f32 %v970, 0.01
      %v1079 = vmul.f32 %v971, 0.01
      %v1080 = vmul.f32 %v972, 0.01
      %v1081 = vmul.f32 %v973, 0.01
      %v1082 = vmul.f32 %v974, 0.01
      %v1083 = vmul.f32 %v975, 0.01
      %v1084 = vmul.f32 %v976, 0.01
      %v1085 = vsel %vm977, %v923, %v1031
      %v1086 = vsel %vm978, %v924, %v1032
      %v1087 = vsel %vm979, %v925, %v1033
      %v1088 = vsel %vm980, %v926, %v1034
      %v1089 = vsel %vm981, %v927, %v1035
      %v1090 = vsel %vm982, %v928, %v1036
      %v1091 = vsel %vm983, %v929, %v1037
      %v1092 = vsel %vm984, %v930, %v1038
      %v1093 = vsel %vm985, %v931, %v1039
      %v1094 = vsel %vm986, %v932, %v1040
      %v1095 = vsel %vm987, %v933, %v1041
      %v1096 = vsel %vm988, %v934, %v1042
      %v1097 = vsel %vm989, %v935, %v1043
      %v1098 = vsel %vm990, %v936, %v1044
      %v1099 = vsel %vm991, %v937, %v1045
      %v1100 = vsel %vm992, %v938, %v1046
      %v1101 = vsel %vm993, %v939, %v1047
      %v1102 = vsel %vm994, %v940, %v1048
      %v1103 = vsel %vm995, %v941, %v1049
      %v1104 = vsel %vm996, %v942, %v1050
      %v1105 = vsel %vm997, %v943, %v1051
      %v1106 = vsel %vm998, %v944, %v1052
      %v1107 = vsel %vm999, %v945, %v1053
      %v1108 = vsel %vm1000, %v946, %v1054
      %v1109 = vsel %vm1001, %v947, %v1055
      %v1110 = vsel %vm1002, %v948, %v1056
      %v1111 = vsel %vm1003, %v949, %v1057
      %v1112 = vsel %vm1004, %v950, %v1058
      %v1113 = vsel %vm1005, %v951, %v1059
      %v1114 = vsel %vm1006, %v952, %v1060
      %v1115 = vsel %vm1007, %v953, %v1061
      %v1116 = vsel %vm1008, %v954, %v1062
      %v1117 = vsel %vm1009, %v955, %v1063
      %v1118 = vsel %vm1010, %v956, %v1064
      %v1119 = vsel %vm1011, %v957, %v1065
      %v1120 = vsel %vm1012, %v958, %v1066
      %v1121 = vsel %vm1013, %v959, %v1067
      %v1122 = vsel %vm1014, %v960, %v1068
      %v1123 = vsel %vm1015, %v961, %v1069
      %v1124 = vsel %vm1016, %v962, %v1070
      %v1125 = vsel %vm1017, %v963, %v1071
      %v1126 = vsel %vm1018, %v964, %v1072
      %v1127 = vsel %vm1019, %v965, %v1073
      %v1128 = vsel %vm1020, %v966, %v1074
      %v1129 = vsel %vm1021, %v967, %v1075
      %v1130 = vsel %vm1022, %v968, %v1076
      %v1131 = vsel %vm1023, %v969, %v1077
      %v1132 = vsel %vm1024, %v970, %v1078
      %v1133 = vsel %vm1025, %v971, %v1079
      %v1134 = vsel %vm1026, %v972, %v1080
      %v1135 = vsel %vm1027, %v973, %v1081
      %v1136 = vsel %vm1028, %v974, %v1082
      %v1137 = vsel %vm1029, %v975, %v1083
      %v1138 = vsel %vm1030, %v976, %v1084
      %1140 = vset.pattern.permute.xlu0 0
      %1141 = vperm.xlu0 %1140, %v361
      %v1142 = vpop.permute.xlu0 %1141
      %1145 = vset.pattern.permute.xlu0 0
      %1146 = vperm.xlu0 %1145, %v362
      %v1147 = vpop.permute.xlu0 %1146
      %1150 = vset.pattern.permute.xlu0 0
      %1151 = vperm.xlu0 %1150, %v363
      %v1152 = vpop.permute.xlu0 %1151
      %1155 = vset.pattern.permute.xlu0 0
      %1156 = vperm.xlu0 %1155, %v364
      %v1157 = vpop.permute.xlu0 %1156
      %1160 = vset.pattern.permute.xlu0 0
      %1161 = vperm.xlu0 %1160, %v365
      %v1162 = vpop.permute.xlu0 %1161
      %1165 = vset.pattern.permute.xlu0 0
      %1166 = vperm.xlu0 %1165, %v366
      %v1167 = vpop.permute.xlu0 %1166
      %1170 = vset.pattern.permute.xlu0 0
      %1171 = vperm.xlu0 %1170, %v367
      %v1172 = vpop.permute.xlu0 %1171
      %1175 = vset.pattern.permute.xlu0 0
      %1176 = vperm.xlu0 %1175, %v368
      %v1177 = vpop.permute.xlu0 %1176
      %1180 = vset.pattern.permute.xlu0 0
      %1181 = vperm.xlu0 %1180, %v369
      %v1182 = vpop.permute.xlu0 %1181
      %1185 = vset.pattern.permute.xlu0 0
      %1186 = vperm.xlu0 %1185, %v370
      %v1187 = vpop.permute.xlu0 %1186
      %1190 = vset.pattern.permute.xlu0 0
      %1191 = vperm.xlu0 %1190, %v371
      %v1192 = vpop.permute.xlu0 %1191
      %1195 = vset.pattern.permute.xlu0 0
      %1196 = vperm.xlu0 %1195, %v372
      %v1197 = vpop.permute.xlu0 %1196
      %1200 = vset.pattern.permute.xlu0 0
      %1201 = vperm.xlu0 %1200, %v373
      %v1202 = vpop.permute.xlu0 %1201
      %1205 = vset.pattern.permute.xlu0 0
      %1206 = vperm.xlu0 %1205, %v374
      %v1207 = vpop.permute.xlu0 %1206
      %1210 = vset.pattern.permute.xlu0 0
      %1211 = vperm.xlu0 %1210, %v375
      %v1212 = vpop.permute.xlu0 %1211
      %1215 = vset.pattern.permute.xlu0 0
      %1216 = vperm.xlu0 %1215, %v376
      %v1217 = vpop.permute.xlu0 %1216
      %1220 = vset.pattern.permute.xlu0 0
      %1221 = vperm.xlu0 %1220, %v377
      %v1222 = vpop.permute.xlu0 %1221
      %1225 = vset.pattern.permute.xlu0 0
      %1226 = vperm.xlu0 %1225, %v378
      %v1227 = vpop.permute.xlu0 %1226
      %1230 = vset.pattern.permute.xlu0 0
      %1231 = vperm.xlu0 %1230, %v379
      %v1232 = vpop.permute.xlu0 %1231
      %1235 = vset.pattern.permute.xlu0 0
      %1236 = vperm.xlu0 %1235, %v380
      %v1237 = vpop.permute.xlu0 %1236
      %1240 = vset.pattern.permute.xlu0 0
      %1241 = vperm.xlu0 %1240, %v381
      %v1242 = vpop.permute.xlu0 %1241
      %1245 = vset.pattern.permute.xlu0 0
      %1246 = vperm.xlu0 %1245, %v382
      %v1247 = vpop.permute.xlu0 %1246
      %1250 = vset.pattern.permute.xlu0 0
      %1251 = vperm.xlu0 %1250, %v383
      %v1252 = vpop.permute.xlu0 %1251
      %1255 = vset.pattern.permute.xlu0 0
      %1256 = vperm.xlu0 %1255, %v384
      %v1257 = vpop.permute.xlu0 %1256
      %1260 = vset.pattern.permute.xlu0 0
      %1261 = vperm.xlu0 %1260, %v385
      %v1262 = vpop.permute.xlu0 %1261
      %1265 = vset.pattern.permute.xlu0 0
      %1266 = vperm.xlu0 %1265, %v386
      %v1267 = vpop.permute.xlu0 %1266
      %1270 = vset.pattern.permute.xlu0 0
      %1271 = vperm.xlu0 %1270, %v387
      %v1272 = vpop.permute.xlu0 %1271
      %1275 = vset.pattern.permute.xlu0 0
      %1276 = vperm.xlu0 %1275, %v388
      %v1277 = vpop.permute.xlu0 %1276
      %1280 = vset.pattern.permute.xlu0 0
      %1281 = vperm.xlu0 %1280, %v389
      %v1282 = vpop.permute.xlu0 %1281
      %1285 = vset.pattern.permute.xlu0 0
      %1286 = vperm.xlu0 %1285, %v390
      %v1287 = vpop.permute.xlu0 %1286
      %1290 = vset.pattern.permute.xlu0 0
      %1291 = vperm.xlu0 %1290, %v391
      %v1292 = vpop.permute.xlu0 %1291
      %1295 = vset.pattern.permute.xlu0 0
      %1296 = vperm.xlu0 %1295, %v392
      %v1297 = vpop.permute.xlu0 %1296
      %1300 = vset.pattern.permute.xlu0 0
      %1301 = vperm.xlu0 %1300, %v393
      %v1302 = vpop.permute.xlu0 %1301
      %1305 = vset.pattern.permute.xlu0 0
      %1306 = vperm.xlu0 %1305, %v394
      %v1307 = vpop.permute.xlu0 %1306
      %1310 = vset.pattern.permute.xlu0 0
      %1311 = vperm.xlu0 %1310, %v395
      %v1312 = vpop.permute.xlu0 %1311
      %1315 = vset.pattern.permute.xlu0 0
      %1316 = vperm.xlu0 %1315, %v396
      %v1317 = vpop.permute.xlu0 %1316
      %1320 = vset.pattern.permute.xlu0 0
      %1321 = vperm.xlu0 %1320, %v397
      %v1322 = vpop.permute.xlu0 %1321
      %1325 = vset.pattern.permute.xlu0 0
      %1326 = vperm.xlu0 %1325, %v398
      %v1327 = vpop.permute.xlu0 %1326
      %1330 = vset.pattern.permute.xlu0 0
      %1331 = vperm.xlu0 %1330, %v399
      %v1332 = vpop.permute.xlu0 %1331
      %1335 = vset.pattern.permute.xlu0 0
      %1336 = vperm.xlu0 %1335, %v400
      %v1337 = vpop.permute.xlu0 %1336
      %1340 = vset.pattern.permute.xlu0 0
      %1341 = vperm.xlu0 %1340, %v401
      %v1342 = vpop.permute.xlu0 %1341
      %1345 = vset.pattern.permute.xlu0 0
      %1346 = vperm.xlu0 %1345, %v402
      %v1347 = vpop.permute.xlu0 %1346
      %1350 = vset.pattern.permute.xlu0 0
      %1351 = vperm.xlu0 %1350, %v403
      %v1352 = vpop.permute.xlu0 %1351
      %1355 = vset.pattern.permute.xlu0 0
      %1356 = vperm.xlu0 %1355, %v404
      %v1357 = vpop.permute.xlu0 %1356
      %1360 = vset.pattern.permute.xlu0 0
      %1361 = vperm.xlu0 %1360, %v405
      %v1362 = vpop.permute.xlu0 %1361
      %1365 = vset.pattern.permute.xlu0 0
      %1366 = vperm.xlu0 %1365, %v406
      %v1367 = vpop.permute.xlu0 %1366
      %1370 = vset.pattern.permute.xlu0 0
      %1371 = vperm.xlu0 %1370, %v407
      %v1372 = vpop.permute.xlu0 %1371
      %1375 = vset.pattern.permute.xlu0 0
      %1376 = vperm.xlu0 %1375, %v408
      %v1377 = vpop.permute.xlu0 %1376
      %1380 = vset.pattern.permute.xlu0 0
      %1381 = vperm.xlu0 %1380, %v409
      %v1382 = vpop.permute.xlu0 %1381
      %1385 = vset.pattern.permute.xlu0 0
      %1386 = vperm.xlu0 %1385, %v410
      %v1387 = vpop.permute.xlu0 %1386
      %1390 = vset.pattern.permute.xlu0 0
      %1391 = vperm.xlu0 %1390, %v411
      %v1392 = vpop.permute.xlu0 %1391
      %1395 = vset.pattern.permute.xlu0 0
      %1396 = vperm.xlu0 %1395, %v412
      %v1397 = vpop.permute.xlu0 %1396
      %1400 = vset.pattern.permute.xlu0 0
      %1401 = vperm.xlu0 %1400, %v413
      %v1402 = vpop.permute.xlu0 %1401
      %1405 = vset.pattern.permute.xlu0 0
      %1406 = vperm.xlu0 %1405, %v414
      %v1407 = vpop.permute.xlu0 %1406
      %v1409 = vmul.f32 %v1085, %v1142
      %v1410 = vmul.f32 %v1086, %v1147
      %v1411 = vmul.f32 %v1087, %v1152
      %v1412 = vmul.f32 %v1088, %v1157
      %v1413 = vmul.f32 %v1089, %v1162
      %v1414 = vmul.f32 %v1090, %v1167
      %v1415 = vmul.f32 %v1091, %v1172
      %v1416 = vmul.f32 %v1092, %v1177
      %v1417 = vmul.f32 %v1093, %v1182
      %v1418 = vmul.f32 %v1094, %v1187
      %v1419 = vmul.f32 %v1095, %v1192
      %v1420 = vmul.f32 %v1096, %v1197
      %v1421 = vmul.f32 %v1097, %v1202
      %v1422 = vmul.f32 %v1098, %v1207
      %v1423 = vmul.f32 %v1099, %v1212
      %v1424 = vmul.f32 %v1100, %v1217
      %v1425 = vmul.f32 %v1101, %v1222
      %v1426 = vmul.f32 %v1102, %v1227
      %v1427 = vmul.f32 %v1103, %v1232
      %v1428 = vmul.f32 %v1104, %v1237
      %v1429 = vmul.f32 %v1105, %v1242
      %v1430 = vmul.f32 %v1106, %v1247
      %v1431 = vmul.f32 %v1107, %v1252
      %v1432 = vmul.f32 %v1108, %v1257
      %v1433 = vmul.f32 %v1109, %v1262
      %v1434 = vmul.f32 %v1110, %v1267
      %v1435 = vmul.f32 %v1111, %v1272
      %v1436 = vmul.f32 %v1112, %v1277
      %v1437 = vmul.f32 %v1113, %v1282
      %v1438 = vmul.f32 %v1114, %v1287
      %v1439 = vmul.f32 %v1115, %v1292
      %v1440 = vmul.f32 %v1116, %v1297
      %v1441 = vmul.f32 %v1117, %v1302
      %v1442 = vmul.f32 %v1118, %v1307
      %v1443 = vmul.f32 %v1119, %v1312
      %v1444 = vmul.f32 %v1120, %v1317
      %v1445 = vmul.f32 %v1121, %v1322
      %v1446 = vmul.f32 %v1122, %v1327
      %v1447 = vmul.f32 %v1123, %v1332
      %v1448 = vmul.f32 %v1124, %v1337
      %v1449 = vmul.f32 %v1125, %v1342
      %v1450 = vmul.f32 %v1126, %v1347
      %v1451 = vmul.f32 %v1127, %v1352
      %v1452 = vmul.f32 %v1128, %v1357
      %v1453 = vmul.f32 %v1129, %v1362
      %v1454 = vmul.f32 %v1130, %v1367
      %v1455 = vmul.f32 %v1131, %v1372
      %v1456 = vmul.f32 %v1132, %v1377
      %v1457 = vmul.f32 %v1133, %v1382
      %v1458 = vmul.f32 %v1134, %v1387
      %v1459 = vmul.f32 %v1135, %v1392
      %v1460 = vmul.f32 %v1136, %v1397
      %v1461 = vmul.f32 %v1137, %v1402
      %v1462 = vmul.f32 %v1138, %v1407
      %1463 = vst.msk [vmem:[#allocation2] sm:$0xff] %vm425, 0
      %1464 = vst.msk [vmem:[#allocation2 + $0x8] sm:$0xff] %vm425, 0
      %1465 = vst.msk [vmem:[#allocation2 + $0xe8] sm:$0xff] %vm425, 0
      %1466 = vst.msk [vmem:[#allocation2 + $0xf0] sm:$0xff] %vm425, 0
      %v1467 = vpack.c.bf16 %v1410, %v1409
      %v1468 = vpack.c.bf16 %v1412, %v1411
      %v1469 = vpack.c.bf16 %v1414, %v1413
      %v1470 = vpack.c.bf16 %v1416, %v1415
      %v1471 = vpack.c.bf16 %v1418, %v1417
      %v1472 = vpack.c.bf16 %v1420, %v1419
      %v1473 = vpack.c.bf16 %v1422, %v1421
      %v1474 = vpack.c.bf16 %v1424, %v1423
      %v1475 = vpack.c.bf16 %v1426, %v1425
      %v1476 = vpack.c.bf16 %v1428, %v1427
      %v1477 = vpack.c.bf16 %v1430, %v1429
      %v1478 = vpack.c.bf16 %v1432, %v1431
      %v1479 = vpack.c.bf16 %v1434, %v1433
      %v1480 = vpack.c.bf16 %v1436, %v1435
      %v1481 = vpack.c.bf16 %v1438, %v1437
      %v1482 = vpack.c.bf16 %v1440, %v1439
      %v1483 = vpack.c.bf16 %v1442, %v1441
      %v1484 = vpack.c.bf16 %v1444, %v1443
      %v1485 = vpack.c.bf16 %v1446, %v1445
      %v1486 = vpack.c.bf16 %v1448, %v1447
      %v1487 = vpack.c.bf16 %v1450, %v1449
      %v1488 = vpack.c.bf16 %v1452, %v1451
      %v1489 = vpack.c.bf16 %v1454, %v1453
      %v1490 = vpack.c.bf16 %v1456, %v1455
      %v1491 = vpack.c.bf16 %v1458, %v1457
      %v1492 = vpack.c.bf16 %v1460, %v1459
      %v1493 = vpack.c.bf16 %v1462, %v1461
      %1494 = vst.msk [vmem:[#allocation2 + $0x10] sm:$0xff] %vm425, %v1467
      %1495 = vst.msk [vmem:[#allocation2 + $0x18] sm:$0xff] %vm425, %v1468
      %1496 = vst.msk [vmem:[#allocation2 + $0x20] sm:$0xff] %vm425, %v1469
      %1497 = vst.msk [vmem:[#allocation2 + $0x28] sm:$0xff] %vm425, %v1470
      %1498 = vst.msk [vmem:[#allocation2 + $0x30] sm:$0xff] %vm425, %v1471
      %1499 = vst.msk [vmem:[#allocation2 + $0x38] sm:$0xff] %vm425, %v1472
      %1500 = vst.msk [vmem:[#allocation2 + $0x40] sm:$0xff] %vm425, %v1473
      %1501 = vst.msk [vmem:[#allocation2 + $0x48] sm:$0xff] %vm425, %v1474
      %1502 = vst.msk [vmem:[#allocation2 + $0x50] sm:$0xff] %vm425, %v1475
      %1503 = vst.msk [vmem:[#allocation2 + $0x58] sm:$0xff] %vm425, %v1476
      %1504 = vst.msk [vmem:[#allocation2 + $0x60] sm:$0xff] %vm425, %v1477
      %1505 = vst.msk [vmem:[#allocation2 + $0x68] sm:$0xff] %vm425, %v1478
      %1506 = vst.msk [vmem:[#allocation2 + $0x70] sm:$0xff] %vm425, %v1479
      %1507 = vst.msk [vmem:[#allocation2 + $0x78] sm:$0xff] %vm425, %v1480
      %1508 = vst.msk [vmem:[#allocation2 + $0x80] sm:$0xff] %vm425, %v1481
      %1509 = vst.msk [vmem:[#allocation2 + $0x88] sm:$0xff] %vm425, %v1482
      %1510 = vst.msk [vmem:[#allocation2 + $0x90] sm:$0xff] %vm425, %v1483
      %1511 = vst.msk [vmem:[#allocation2 + $0x98] sm:$0xff] %vm425, %v1484
      %1512 = vst.msk [vmem:[#allocation2 + $0xa0] sm:$0xff] %vm425, %v1485
      %1513 = vst.msk [vmem:[#allocation2 + $0xa8] sm:$0xff] %vm425, %v1486
      %1514 = vst.msk [vmem:[#allocation2 + $0xb0] sm:$0xff] %vm425, %v1487
      %1515 = vst.msk [vmem:[#allocation2 + $0xb8] sm:$0xff] %vm425, %v1488
      %1516 = vst.msk [vmem:[#allocation2 + $0xc0] sm:$0xff] %vm425, %v1489
      %1517 = vst.msk [vmem:[#allocation2 + $0xc8] sm:$0xff] %vm425, %v1490
      %1518 = vst.msk [vmem:[#allocation2 + $0xd0] sm:$0xff] %vm425, %v1491
      %1519 = vst.msk [vmem:[#allocation2 + $0xd8] sm:$0xff] %vm425, %v1492
      %1520 = vst.msk [vmem:[#allocation2 + $0xe0] sm:$0xff] %vm425, %v1493
      %v1521 = vld [vmem:[#allocation2] sm:$0xf8]
      %v1522 = vld [vmem:[#allocation2 + $0x8] sm:$0xff]
      %v1523 = vld [vmem:[#allocation2 + $0x10] sm:$0xff]
      %v1524 = vld [vmem:[#allocation2 + $0x18] sm:$0xff]
      %v1525 = vld [vmem:[#allocation2 + $0x20] sm:$0xff]
      %v1526 = vld [vmem:[#allocation2 + $0x28] sm:$0xff]
      %v1527 = vld [vmem:[#allocation2 + $0x30] sm:$0xff]
      %v1528 = vld [vmem:[#allocation2 + $0x38] sm:$0xff]
      %v1529 = vld [vmem:[#allocation2 + $0x40] sm:$0xff]
      %v1530 = vld [vmem:[#allocation2 + $0x48] sm:$0xff]
      %v1531 = vld [vmem:[#allocation2 + $0x50] sm:$0xff]
      %v1532 = vld [vmem:[#allocation2 + $0x58] sm:$0xff]
      %v1533 = vld [vmem:[#allocation2 + $0x60] sm:$0xff]
      %v1534 = vld [vmem:[#allocation2 + $0x68] sm:$0xff]
      %v1535 = vld [vmem:[#allocation2 + $0x70] sm:$0xff]
      %v1536 = vld [vmem:[#allocation2 + $0x78] sm:$0xff]
      %v1537 = vld [vmem:[#allocation2 + $0x80] sm:$0xff]
      %v1538 = vld [vmem:[#allocation2 + $0x88] sm:$0xff]
      %v1539 = vld [vmem:[#allocation2 + $0x90] sm:$0xff]
      %v1540 = vld [vmem:[#allocation2 + $0x98] sm:$0xff]
      %v1541 = vld [vmem:[#allocation2 + $0xa0] sm:$0xff]
      %v1542 = vld [vmem:[#allocation2 + $0xa8] sm:$0xff]
      %v1543 = vld [vmem:[#allocation2 + $0xb0] sm:$0xff]
      %v1544 = vld [vmem:[#allocation2 + $0xb8] sm:$0xff]
      %v1545 = vld [vmem:[#allocation2 + $0xc0] sm:$0xff]
      %v1546 = vld [vmem:[#allocation2 + $0xc8] sm:$0xff]
      %v1547 = vld [vmem:[#allocation2 + $0xd0] sm:$0xff]
      %v1548 = vld [vmem:[#allocation2 + $0xd8] sm:$0xf]
      %v1549 = vld [vmem:[#allocation2] sm:$0xf0]
      %v1550 = vld [vmem:[#allocation2 + $0x8] sm:$0x80]
      %v1551 = vld [vmem:[#allocation2 + $0xd8] sm:$0xff]
      %v1552 = vld [vmem:[#allocation2 + $0xe0] sm:$0xff]
      %vm1553 = vsmask.f32 7424
      %v1555 = vshrl.u32 %v1549, 16
      %v1557 = vshll.u32 %v1549, 16
      %v1559 = vrot.slane %v1557, 1
      %v1560 = vor.u32 %v1555, %v1559
      %v1562 = vshll.u32 %v1522, 16
      %v1564 = vrot.slane %v1562, 1
      %v1565 = vsel %vm1553, %v1560, %v1564
      %v1566 = vshrl.u32 %v1522, 16
      %v1568 = vor.u32 %v1566, %v1564
      %v1570 = vshll.u32 %v1523, 16
      %v1572 = vrot.slane %v1570, 1
      %v1573 = vsel %vm1553, %v1568, %v1572
      %v1574 = vshrl.u32 %v1523, 16
      %v1576 = vor.u32 %v1574, %v1572
      %v1578 = vshll.u32 %v1524, 16
      %v1580 = vrot.slane %v1578, 1
      %v1581 = vsel %vm1553, %v1576, %v1580
      %v1582 = vshrl.u32 %v1524, 16
      %v1584 = vor.u32 %v1582, %v1580
      %v1586 = vshll.u32 %v1525, 16
      %v1588 = vrot.slane %v1586, 1
      %v1589 = vsel %vm1553, %v1584, %v1588
      %v1590 = vshrl.u32 %v1525, 16
      %v1592 = vor.u32 %v1590, %v1588
      %v1594 = vshll.u32 %v1526, 16
      %v1596 = vrot.slane %v1594, 1
      %v1597 = vsel %vm1553, %v1592, %v1596
      %v1598 = vshrl.u32 %v1526, 16
      %v1600 = vor.u32 %v1598, %v1596
      %v1602 = vshll.u32 %v1527, 16
      %v1604 = vrot.slane %v1602, 1
      %v1605 = vsel %vm1553, %v1600, %v1604
      %v1606 = vshrl.u32 %v1527, 16
      %v1608 = vor.u32 %v1606, %v1604
      %v1610 = vshll.u32 %v1528, 16
      %v1612 = vrot.slane %v1610, 1
      %v1613 = vsel %vm1553, %v1608, %v1612
      %v1614 = vshrl.u32 %v1528, 16
      %v1616 = vor.u32 %v1614, %v1612
      %v1618 = vshll.u32 %v1529, 16
      %v1620 = vrot.slane %v1618, 1
      %v1621 = vsel %vm1553, %v1616, %v1620
      %v1622 = vshrl.u32 %v1529, 16
      %v1624 = vor.u32 %v1622, %v1620
      %v1626 = vshll.u32 %v1530, 16
      %v1628 = vrot.slane %v1626, 1
      %v1629 = vsel %vm1553, %v1624, %v1628
      %v1630 = vshrl.u32 %v1530, 16
      %v1632 = vor.u32 %v1630, %v1628
      %v1634 = vshll.u32 %v1531, 16
      %v1636 = vrot.slane %v1634, 1
      %v1637 = vsel %vm1553, %v1632, %v1636
      %v1638 = vshrl.u32 %v1531, 16
      %v1640 = vor.u32 %v1638, %v1636
      %v1642 = vshll.u32 %v1532, 16
      %v1644 = vrot.slane %v1642, 1
      %v1645 = vsel %vm1553, %v1640, %v1644
      %v1646 = vshrl.u32 %v1532, 16
      %v1648 = vor.u32 %v1646, %v1644
      %v1650 = vshll.u32 %v1533, 16
      %v1652 = vrot.slane %v1650, 1
      %v1653 = vsel %vm1553, %v1648, %v1652
      %v1654 = vshrl.u32 %v1533, 16
      %v1656 = vor.u32 %v1654, %v1652
      %v1658 = vshll.u32 %v1534, 16
      %v1660 = vrot.slane %v1658, 1
      %v1661 = vsel %vm1553, %v1656, %v1660
      %v1662 = vshrl.u32 %v1534, 16
      %v1664 = vor.u32 %v1662, %v1660
      %v1666 = vshll.u32 %v1535, 16
      %v1668 = vrot.slane %v1666, 1
      %v1669 = vsel %vm1553, %v1664, %v1668
      %v1670 = vshrl.u32 %v1535, 16
      %v1672 = vor.u32 %v1670, %v1668
      %v1674 = vshll.u32 %v1536, 16
      %v1676 = vrot.slane %v1674, 1
      %v1677 = vsel %vm1553, %v1672, %v1676
      %v1678 = vshrl.u32 %v1536, 16
      %v1680 = vor.u32 %v1678, %v1676
      %v1682 = vshll.u32 %v1537, 16
      %v1684 = vrot.slane %v1682, 1
      %v1685 = vsel %vm1553, %v1680, %v1684
      %v1686 = vshrl.u32 %v1537, 16
      %v1688 = vor.u32 %v1686, %v1684
      %v1690 = vshll.u32 %v1538, 16
      %v1692 = vrot.slane %v1690, 1
      %v1693 = vsel %vm1553, %v1688, %v1692
      %v1694 = vshrl.u32 %v1538, 16
      %v1696 = vor.u32 %v1694, %v1692
      %v1698 = vshll.u32 %v1539, 16
      %v1700 = vrot.slane %v1698, 1
      %v1701 = vsel %vm1553, %v1696, %v1700
      %v1702 = vshrl.u32 %v1539, 16
      %v1704 = vor.u32 %v1702, %v1700
      %v1706 = vshll.u32 %v1540, 16
      %v1708 = vrot.slane %v1706, 1
      %v1709 = vsel %vm1553, %v1704, %v1708
      %v1710 = vshrl.u32 %v1540, 16
      %v1712 = vor.u32 %v1710, %v1708
      %v1714 = vshll.u32 %v1541, 16
      %v1716 = vrot.slane %v1714, 1
      %v1717 = vsel %vm1553, %v1712, %v1716
      %v1718 = vshrl.u32 %v1541, 16
      %v1720 = vor.u32 %v1718, %v1716
      %v1722 = vshll.u32 %v1542, 16
      %v1724 = vrot.slane %v1722, 1
      %v1725 = vsel %vm1553, %v1720, %v1724
      %v1726 = vshrl.u32 %v1542, 16
      %v1728 = vor.u32 %v1726, %v1724
      %v1730 = vshll.u32 %v1543, 16
      %v1732 = vrot.slane %v1730, 1
      %v1733 = vsel %vm1553, %v1728, %v1732
      %v1734 = vshrl.u32 %v1543, 16
      %v1736 = vor.u32 %v1734, %v1732
      %v1738 = vshll.u32 %v1544, 16
      %v1740 = vrot.slane %v1738, 1
      %v1741 = vsel %vm1553, %v1736, %v1740
      %v1742 = vshrl.u32 %v1544, 16
      %v1744 = vor.u32 %v1742, %v1740
      %v1746 = vshll.u32 %v1545, 16
      %v1748 = vrot.slane %v1746, 1
      %v1749 = vsel %vm1553, %v1744, %v1748
      %v1750 = vshrl.u32 %v1545, 16
      %v1752 = vor.u32 %v1750, %v1748
      %v1754 = vshll.u32 %v1546, 16
      %v1756 = vrot.slane %v1754, 1
      %v1757 = vsel %vm1553, %v1752, %v1756
      %v1758 = vshrl.u32 %v1546, 16
      %v1760 = vor.u32 %v1758, %v1756
      %v1762 = vshll.u32 %v1547, 16
      %v1764 = vrot.slane %v1762, 1
      %v1765 = vsel %vm1553, %v1760, %v1764
      %v1766 = vshrl.u32 %v1547, 16
      %v1768 = vor.u32 %v1766, %v1764
      %v1770 = vshll.u32 %v1548, 16
      %v1772 = vrot.slane %v1770, 1
      %v1773 = vsel %vm1553, %v1768, %v1772
      %v1774 = vshrl.u32 %v1548, 16
      %v1776 = vor.u32 %v1774, %v1772
      %1777 = vrot.lane.b32.xlu0 %v1565, 64
      %v1778 = vpop.permute.xlu0 %1777
      %1779 = vrot.lane.b32.xlu0 %v1573, 64
      %v1780 = vpop.permute.xlu0 %1779
      %1781 = vrot.lane.b32.xlu0 %v1581, 64
      %v1782 = vpop.permute.xlu0 %1781
      %1783 = vrot.lane.b32.xlu0 %v1589, 64
      %v1784 = vpop.permute.xlu0 %1783
      %1785 = vrot.lane.b32.xlu0 %v1597, 64
      %v1786 = vpop.permute.xlu0 %1785
      %1787 = vrot.lane.b32.xlu0 %v1605, 64
      %v1788 = vpop.permute.xlu0 %1787
      %1789 = vrot.lane.b32.xlu0 %v1613, 64
      %v1790 = vpop.permute.xlu0 %1789
      %1791 = vrot.lane.b32.xlu0 %v1621, 64
      %v1792 = vpop.permute.xlu0 %1791
      %1793 = vrot.lane.b32.xlu0 %v1629, 64
      %v1794 = vpop.permute.xlu0 %1793
      %1795 = vrot.lane.b32.xlu0 %v1637, 64
      %v1796 = vpop.permute.xlu0 %1795
      %1797 = vrot.lane.b32.xlu0 %v1645, 64
      %v1798 = vpop.permute.xlu0 %1797
      %1799 = vrot.lane.b32.xlu0 %v1653, 64
      %v1800 = vpop.permute.xlu0 %1799
      %1801 = vrot.lane.b32.xlu0 %v1661, 64
      %v1802 = vpop.permute.xlu0 %1801
      %1803 = vrot.lane.b32.xlu0 %v1669, 64
      %v1804 = vpop.permute.xlu0 %1803
      %1805 = vrot.lane.b32.xlu0 %v1677, 64
      %v1806 = vpop.permute.xlu0 %1805
      %1807 = vrot.lane.b32.xlu0 %v1685, 64
      %v1808 = vpop.permute.xlu0 %1807
      %1809 = vrot.lane.b32.xlu0 %v1693, 64
      %v1810 = vpop.permute.xlu0 %1809
      %1811 = vrot.lane.b32.xlu0 %v1701, 64
      %v1812 = vpop.permute.xlu0 %1811
      %1813 = vrot.lane.b32.xlu0 %v1709, 64
      %v1814 = vpop.permute.xlu0 %1813
      %1815 = vrot.lane.b32.xlu0 %v1717, 64
      %v1816 = vpop.permute.xlu0 %1815
      %1817 = vrot.lane.b32.xlu0 %v1725, 64
      %v1818 = vpop.permute.xlu0 %1817
      %1819 = vrot.lane.b32.xlu0 %v1733, 64
      %v1820 = vpop.permute.xlu0 %1819
      %1821 = vrot.lane.b32.xlu0 %v1741, 64
      %v1822 = vpop.permute.xlu0 %1821
      %1823 = vrot.lane.b32.xlu0 %v1749, 64
      %v1824 = vpop.permute.xlu0 %1823
      %1825 = vrot.lane.b32.xlu0 %v1757, 64
      %v1826 = vpop.permute.xlu0 %1825
      %1827 = vrot.lane.b32.xlu0 %v1765, 64
      %v1828 = vpop.permute.xlu0 %1827
      %1829 = vrot.lane.b32.xlu0 %v1773, 64
      %v1830 = vpop.permute.xlu0 %1829
      %1831 = vrot.lane.b32.xlu0 %v1776, 64
      %v1832 = vpop.permute.xlu0 %1831
      %vm1861 = vcmask 1043456
      %v1862 = vrot.slane %v1550, 4
      %v1863 = vrot.slane %v1523, 4
      %v1864 = vsel %vm1861, %v1862, %v1863
      %v1865 = vrot.slane %v1524, 4
      %v1866 = vsel %vm1861, %v1863, %v1865
      %v1867 = vrot.slane %v1525, 4
      %v1868 = vsel %vm1861, %v1865, %v1867
      %v1869 = vrot.slane %v1526, 4
      %v1870 = vsel %vm1861, %v1867, %v1869
      %v1871 = vrot.slane %v1527, 4
      %v1872 = vsel %vm1861, %v1869, %v1871
      %v1873 = vrot.slane %v1528, 4
      %v1874 = vsel %vm1861, %v1871, %v1873
      %v1875 = vrot.slane %v1529, 4
      %v1876 = vsel %vm1861, %v1873, %v1875
      %v1877 = vrot.slane %v1530, 4
      %v1878 = vsel %vm1861, %v1875, %v1877
      %v1879 = vrot.slane %v1531, 4
      %v1880 = vsel %vm1861, %v1877, %v1879
      %v1881 = vrot.slane %v1532, 4
      %v1882 = vsel %vm1861, %v1879, %v1881
      %v1883 = vrot.slane %v1533, 4
      %v1884 = vsel %vm1861, %v1881, %v1883
      %v1885 = vrot.slane %v1534, 4
      %v1886 = vsel %vm1861, %v1883, %v1885
      %v1887 = vrot.slane %v1535, 4
      %v1888 = vsel %vm1861, %v1885, %v1887
      %v1889 = vrot.slane %v1536, 4
      %v1890 = vsel %vm1861, %v1887, %v1889
      %v1891 = vrot.slane %v1537, 4
      %v1892 = vsel %vm1861, %v1889, %v1891
      %v1893 = vrot.slane %v1538, 4
      %v1894 = vsel %vm1861, %v1891, %v1893
      %v1895 = vrot.slane %v1539, 4
      %v1896 = vsel %vm1861, %v1893, %v1895
      %v1897 = vrot.slane %v1540, 4
      %v1898 = vsel %vm1861, %v1895, %v1897
      %v1899 = vrot.slane %v1541, 4
      %v1900 = vsel %vm1861, %v1897, %v1899
      %v1901 = vrot.slane %v1542, 4
      %v1902 = vsel %vm1861, %v1899, %v1901
      %v1903 = vrot.slane %v1543, 4
      %v1904 = vsel %vm1861, %v1901, %v1903
      %v1905 = vrot.slane %v1544, 4
      %v1906 = vsel %vm1861, %v1903, %v1905
      %v1907 = vrot.slane %v1545, 4
      %v1908 = vsel %vm1861, %v1905, %v1907
      %v1909 = vrot.slane %v1546, 4
      %v1910 = vsel %vm1861, %v1907, %v1909
      %v1911 = vrot.slane %v1547, 4
      %v1912 = vsel %vm1861, %v1909, %v1911
      %v1913 = vrot.slane %v1551, 4
      %v1914 = vsel %vm1861, %v1911, %v1913
      %v1915 = vrot.slane %v1552, 4
      %v1916 = vsel %vm1861, %v1913, %v1915
      %vm1917 = vsmask.f32 3328
      %v1918 = vrot.slane %v1574, 4
      %v1919 = vrot.slane %v1570, 5
      %v1920 = vor.u32 %v1918, %v1919
      %v1921 = vrot.slane %v1582, 4
      %v1922 = vrot.slane %v1578, 5
      %v1923 = vor.u32 %v1921, %v1922
      %v1924 = vsel %vm1917, %v1920, %v1923
      %v1925 = vrot.slane %v1590, 4
      %v1926 = vrot.slane %v1586, 5
      %v1927 = vor.u32 %v1925, %v1926
      %v1928 = vsel %vm1917, %v1923, %v1927
      %v1929 = vrot.slane %v1598, 4
      %v1930 = vrot.slane %v1594, 5
      %v1931 = vor.u32 %v1929, %v1930
      %v1932 = vsel %vm1917, %v1927, %v1931
      %v1933 = vrot.slane %v1606, 4
      %v1934 = vrot.slane %v1602, 5
      %v1935 = vor.u32 %v1933, %v1934
      %v1936 = vsel %vm1917, %v1931, %v1935
      %v1937 = vrot.slane %v1614, 4
      %v1938 = vrot.slane %v1610, 5
      %v1939 = vor.u32 %v1937, %v1938
      %v1940 = vsel %vm1917, %v1935, %v1939
      %v1941 = vrot.slane %v1622, 4
      %v1942 = vrot.slane %v1618, 5
      %v1943 = vor.u32 %v1941, %v1942
      %v1944 = vsel %vm1917, %v1939, %v1943
      %v1945 = vrot.slane %v1630, 4
      %v1946 = vrot.slane %v1626, 5
      %v1947 = vor.u32 %v1945, %v1946
      %v1948 = vsel %vm1917, %v1943, %v1947
      %v1949 = vrot.slane %v1638, 4
      %v1950 = vrot.slane %v1634, 5
      %v1951 = vor.u32 %v1949, %v1950
      %v1952 = vsel %vm1917, %v1947, %v1951
      %v1953 = vrot.slane %v1646, 4
      %v1954 = vrot.slane %v1642, 5
      %v1955 = vor.u32 %v1953, %v1954
      %v1956 = vsel %vm1917, %v1951, %v1955
      %v1957 = vrot.slane %v1654, 4
      %v1958 = vrot.slane %v1650, 5
      %v1959 = vor.u32 %v1957, %v1958
      %v1960 = vsel %vm1917, %v1955, %v1959
      %v1961 = vrot.slane %v1662, 4
      %v1962 = vrot.slane %v1658, 5
      %v1963 = vor.u32 %v1961, %v1962
      %v1964 = vsel %vm1917, %v1959, %v1963
      %v1965 = vrot.slane %v1670, 4
      %v1966 = vrot.slane %v1666, 5
      %v1967 = vor.u32 %v1965, %v1966
      %v1968 = vsel %vm1917, %v1963, %v1967
      %v1969 = vrot.slane %v1678, 4
      %v1970 = vrot.slane %v1674, 5
      %v1971 = vor.u32 %v1969, %v1970
      %v1972 = vsel %vm1917, %v1967, %v1971
      %v1973 = vrot.slane %v1686, 4
      %v1974 = vrot.slane %v1682, 5
      %v1975 = vor.u32 %v1973, %v1974
      %v1976 = vsel %vm1917, %v1971, %v1975
      %v1977 = vrot.slane %v1694, 4
      %v1978 = vrot.slane %v1690, 5
      %v1979 = vor.u32 %v1977, %v1978
      %v1980 = vsel %vm1917, %v1975, %v1979
      %v1981 = vrot.slane %v1702, 4
      %v1982 = vrot.slane %v1698, 5
      %v1983 = vor.u32 %v1981, %v1982
      %v1984 = vsel %vm1917, %v1979, %v1983
      %v1985 = vrot.slane %v1710, 4
      %v1986 = vrot.slane %v1706, 5
      %v1987 = vor.u32 %v1985, %v1986
      %v1988 = vsel %vm1917, %v1983, %v1987
      %v1989 = vrot.slane %v1718, 4
      %v1990 = vrot.slane %v1714, 5
      %v1991 = vor.u32 %v1989, %v1990
      %v1992 = vsel %vm1917, %v1987, %v1991
      %v1993 = vrot.slane %v1726, 4
      %v1994 = vrot.slane %v1722, 5
      %v1995 = vor.u32 %v1993, %v1994
      %v1996 = vsel %vm1917, %v1991, %v1995
      %v1997 = vrot.slane %v1734, 4
      %v1998 = vrot.slane %v1730, 5
      %v1999 = vor.u32 %v1997, %v1998
      %v2000 = vsel %vm1917, %v1995, %v1999
      %v2001 = vrot.slane %v1742, 4
      %v2002 = vrot.slane %v1738, 5
      %v2003 = vor.u32 %v2001, %v2002
      %v2004 = vsel %vm1917, %v1999, %v2003
      %v2005 = vrot.slane %v1750, 4
      %v2006 = vrot.slane %v1746, 5
      %v2007 = vor.u32 %v2005, %v2006
      %v2008 = vsel %vm1917, %v2003, %v2007
      %v2009 = vrot.slane %v1758, 4
      %v2010 = vrot.slane %v1754, 5
      %v2011 = vor.u32 %v2009, %v2010
      %v2012 = vsel %vm1917, %v2007, %v2011
      %v2013 = vrot.slane %v1766, 4
      %v2014 = vrot.slane %v1762, 5
      %v2015 = vor.u32 %v2013, %v2014
      %v2016 = vsel %vm1917, %v2011, %v2015
      %v2018 = vshrl.u32 %v1551, 16
      %v2020 = vrot.slane %v2018, 4
      %v2021 = vshll.u32 %v1551, 16
      %v2023 = vrot.slane %v2021, 5
      %v2024 = vor.u32 %v2020, %v2023
      %v2025 = vsel %vm1917, %v2015, %v2024
      %v2027 = vshrl.u32 %v1552, 16
      %v2029 = vrot.slane %v2027, 4
      %v2030 = vshll.u32 %v1552, 16
      %v2032 = vrot.slane %v2030, 5
      %v2033 = vor.u32 %v2029, %v2032
      %v2034 = vsel %vm1917, %v2024, %v2033
      %2035 = vrot.lane.b32.xlu0 %v1920, 64
      %v2036 = vpop.permute.xlu0 %2035
      %2037 = vrot.lane.b32.xlu0 %v1924, 64
      %v2038 = vpop.permute.xlu0 %2037
      %2039 = vrot.lane.b32.xlu0 %v1928, 64
      %v2040 = vpop.permute.xlu0 %2039
      %2041 = vrot.lane.b32.xlu0 %v1932, 64
      %v2042 = vpop.permute.xlu0 %2041
      %2043 = vrot.lane.b32.xlu0 %v1936, 64
      %v2044 = vpop.permute.xlu0 %2043
      %2045 = vrot.lane.b32.xlu0 %v1940, 64
      %v2046 = vpop.permute.xlu0 %2045
      %2047 = vrot.lane.b32.xlu0 %v1944, 64
      %v2048 = vpop.permute.xlu0 %2047
      %2049 = vrot.lane.b32.xlu0 %v1948, 64
      %v2050 = vpop.permute.xlu0 %2049
      %2051 = vrot.lane.b32.xlu0 %v1952, 64
      %v2052 = vpop.permute.xlu0 %2051
      %2053 = vrot.lane.b32.xlu0 %v1956, 64
      %v2054 = vpop.permute.xlu0 %2053
      %2055 = vrot.lane.b32.xlu0 %v1960, 64
      %v2056 = vpop.permute.xlu0 %2055
      %2057 = vrot.lane.b32.xlu0 %v1964, 64
      %v2058 = vpop.permute.xlu0 %2057
      %2059 = vrot.lane.b32.xlu0 %v1968, 64
      %v2060 = vpop.permute.xlu0 %2059
      %2061 = vrot.lane.b32.xlu0 %v1972, 64
      %v2062 = vpop.permute.xlu0 %2061
      %2063 = vrot.lane.b32.xlu0 %v1976, 64
      %v2064 = vpop.permute.xlu0 %2063
      %2065 = vrot.lane.b32.xlu0 %v1980, 64
      %v2066 = vpop.permute.xlu0 %2065
      %2067 = vrot.lane.b32.xlu0 %v1984, 64
      %v2068 = vpop.permute.xlu0 %2067
      %2069 = vrot.lane.b32.xlu0 %v1988, 64
      %v2070 = vpop.permute.xlu0 %2069
      %2071 = vrot.lane.b32.xlu0 %v1992, 64
      %v2072 = vpop.permute.xlu0 %2071
      %2073 = vrot.lane.b32.xlu0 %v1996, 64
      %v2074 = vpop.permute.xlu0 %2073
      %2075 = vrot.lane.b32.xlu0 %v2000, 64
      %v2076 = vpop.permute.xlu0 %2075
      %2077 = vrot.lane.b32.xlu0 %v2004, 64
      %v2078 = vpop.permute.xlu0 %2077
      %2079 = vrot.lane.b32.xlu0 %v2008, 64
      %v2080 = vpop.permute.xlu0 %2079
      %2081 = vrot.lane.b32.xlu0 %v2012, 64
      %v2082 = vpop.permute.xlu0 %2081
      %2083 = vrot.lane.b32.xlu0 %v2016, 64
      %v2084 = vpop.permute.xlu0 %2083
      %2085 = vrot.lane.b32.xlu0 %v2025, 64
      %v2086 = vpop.permute.xlu0 %2085
      %2087 = vrot.lane.b32.xlu0 %v2034, 64
      %v2088 = vpop.permute.xlu0 %2087
      %2089 = vrot.lane.b32.xlu0 %v2033, 64
      %v2090 = vpop.permute.xlu0 %2089
      %v2093 = vsel %vm425, %v1521, %v1778
      %v2095 = vsel %vm425, %v1522, %v1780
      %v2097 = vsel %vm425, %v1523, %v1782
      %v2099 = vsel %vm425, %v1524, %v1784
      %v2101 = vsel %vm425, %v1525, %v1786
      %v2103 = vsel %vm425, %v1526, %v1788
      %v2105 = vsel %vm425, %v1527, %v1790
      %v2107 = vsel %vm425, %v1528, %v1792
      %v2109 = vsel %vm425, %v1529, %v1794
      %v2111 = vsel %vm425, %v1530, %v1796
      %v2113 = vsel %vm425, %v1531, %v1798
      %v2115 = vsel %vm425, %v1532, %v1800
      %v2117 = vsel %vm425, %v1533, %v1802
      %v2119 = vsel %vm425, %v1534, %v1804
      %v2121 = vsel %vm425, %v1535, %v1806
      %v2123 = vsel %vm425, %v1536, %v1808
      %v2125 = vsel %vm425, %v1537, %v1810
      %v2127 = vsel %vm425, %v1538, %v1812
      %v2129 = vsel %vm425, %v1539, %v1814
      %v2131 = vsel %vm425, %v1540, %v1816
      %v2133 = vsel %vm425, %v1541, %v1818
      %v2135 = vsel %vm425, %v1542, %v1820
      %v2137 = vsel %vm425, %v1543, %v1822
      %v2139 = vsel %vm425, %v1544, %v1824
      %v2141 = vsel %vm425, %v1545, %v1826
      %v2143 = vsel %vm425, %v1546, %v1828
      %v2145 = vsel %vm425, %v1547, %v1830
      %v2147 = vsel %vm425, %v1548, %v1832
      %v2150 = vsel %vm425, %v1864, %v2036
      %v2153 = vsel %vm425, %v1866, %v2038
      %v2156 = vsel %vm425, %v1868, %v2040
      %v2159 = vsel %vm425, %v1870, %v2042
      %v2162 = vsel %vm425, %v1872, %v2044
      %v2165 = vsel %vm425, %v1874, %v2046
      %v2168 = vsel %vm425, %v1876, %v2048
      %v2171 = vsel %vm425, %v1878, %v2050
      %v2174 = vsel %vm425, %v1880, %v2052
      %v2177 = vsel %vm425, %v1882, %v2054
      %v2180 = vsel %vm425, %v1884, %v2056
      %v2183 = vsel %vm425, %v1886, %v2058
      %v2186 = vsel %vm425, %v1888, %v2060
      %v2189 = vsel %vm425, %v1890, %v2062
      %v2192 = vsel %vm425, %v1892, %v2064
      %v2195 = vsel %vm425, %v1894, %v2066
      %v2198 = vsel %vm425, %v1896, %v2068
      %v2201 = vsel %vm425, %v1898, %v2070
      %v2204 = vsel %vm425, %v1900, %v2072
      %v2207 = vsel %vm425, %v1902, %v2074
      %v2210 = vsel %vm425, %v1904, %v2076
      %v2213 = vsel %vm425, %v1906, %v2078
      %v2216 = vsel %vm425, %v1908, %v2080
      %v2219 = vsel %vm425, %v1910, %v2082
      %v2222 = vsel %vm425, %v1912, %v2084
      %v2225 = vsel %vm425, %v1914, %v2086
      %v2228 = vsel %vm425, %v1916, %v2088
      %v2231 = vsel %vm425, %v1915, %v2090
      %v2232 = vld [vmem:[%s5] sm:$0xf]
      %v2233 = vld [vmem:[%s5 + $0x4] sm:$0xf]
      %v2234 = vld [vmem:[%s5 + $0x8] sm:$0xf]
      %v2235 = vld [vmem:[%s5 + $0xc] sm:$0xf]
      %v2236 = vld [vmem:[%s5 + $0x10] sm:$0xf]
      %v2237 = vld [vmem:[%s5 + $0x14] sm:$0xf]
      %v2238 = vld [vmem:[%s5 + $0x18] sm:$0xf]
      %v2239 = vld [vmem:[%s5 + $0x1c] sm:$0xf]
      %v2240 = vld [vmem:[%s5 + $0x20] sm:$0xf]
      %v2241 = vld [vmem:[%s5 + $0x24] sm:$0xf]
      %v2242 = vld [vmem:[%s5 + $0x28] sm:$0xf]
      %v2243 = vld [vmem:[%s5 + $0x2c] sm:$0xf]
      %v2244 = vld [vmem:[%s5 + $0x30] sm:$0xf]
      %v2245 = vld [vmem:[%s5 + $0x34] sm:$0xf]
      %v2246 = vld [vmem:[%s5 + $0x38] sm:$0xf]
      %v2247 = vld [vmem:[%s5 + $0x3c] sm:$0xf]
      %v2248 = vld [vmem:[%s5 + $0x40] sm:$0xf]
      %v2249 = vld [vmem:[%s5 + $0x44] sm:$0xf]
      %v2250 = vld [vmem:[%s5 + $0x48] sm:$0xf]
      %v2251 = vld [vmem:[%s5 + $0x4c] sm:$0xf]
      %v2252 = vld [vmem:[%s5 + $0x50] sm:$0xf]
      %v2253 = vld [vmem:[%s5 + $0x54] sm:$0xf]
      %v2254 = vld [vmem:[%s5 + $0x58] sm:$0xf]
      %v2255 = vld [vmem:[%s5 + $0x5c] sm:$0xf]
      %v2256 = vld [vmem:[%s5 + $0x60] sm:$0xf]
      %v2257 = vld [vmem:[%s5 + $0x64] sm:$0xf]
      %v2258 = vld [vmem:[%s5 + $0x68] sm:$0xf]
      %v2259 = vld [vmem:[%s5 + $0x6c] sm:$0xf]
      %v2260 = vld [vmem:[%s5 + $0x70] sm:$0xf]
      %v2261 = vld [vmem:[%s5 + $0x74] sm:$0xf]
      %v2262 = vld [vmem:[%s5 + $0x78] sm:$0xf]
      %v2263 = vld [vmem:[%s5 + $0x7c] sm:$0xf]
      %vm2264 = vsmask.f32 4352
      %v2265 = vshrl.u32 %v2093, 16
      %v2267 = vrot.slane %v2265, 3
      %v2268 = vshll.u32 %v2093, 16
      %v2270 = vrot.slane %v2268, 4
      %v2271 = vor.u32 %v2267, %v2270
      %v2272 = vshrl.u32 %v2095, 16
      %v2274 = vrot.slane %v2272, 3
      %v2275 = vshll.u32 %v2095, 16
      %v2277 = vrot.slane %v2275, 4
      %v2278 = vor.u32 %v2274, %v2277
      %v2279 = vsel %vm2264, %v2271, %v2278
      %v2280 = vshrl.u32 %v2150, 16
      %v2282 = vrot.slane %v2280, 3
      %v2283 = vshll.u32 %v2150, 16
      %v2285 = vrot.slane %v2283, 4
      %v2286 = vor.u32 %v2282, %v2285
      %v2287 = vshrl.u32 %v2153, 16
      %v2289 = vrot.slane %v2287, 3
      %v2290 = vshll.u32 %v2153, 16
      %v2292 = vrot.slane %v2290, 4
      %v2293 = vor.u32 %v2289, %v2292
      %v2294 = vsel %vm2264, %v2286, %v2293
      %v2295 = vshrl.u32 %v2097, 16
      %v2297 = vrot.slane %v2295, 3
      %v2298 = vshll.u32 %v2097, 16
      %v2300 = vrot.slane %v2298, 4
      %v2301 = vor.u32 %v2297, %v2300
      %v2302 = vsel %vm2264, %v2278, %v2301
      %v2303 = vshrl.u32 %v2156, 16
      %v2305 = vrot.slane %v2303, 3
      %v2306 = vshll.u32 %v2156, 16
      %v2308 = vrot.slane %v2306, 4
      %v2309 = vor.u32 %v2305, %v2308
      %v2310 = vsel %vm2264, %v2293, %v2309
      %v2311 = vshrl.u32 %v2099, 16
      %v2313 = vrot.slane %v2311, 3
      %v2314 = vshll.u32 %v2099, 16
      %v2316 = vrot.slane %v2314, 4
      %v2317 = vor.u32 %v2313, %v2316
      %v2318 = vsel %vm2264, %v2301, %v2317
      %v2319 = vshrl.u32 %v2159, 16
      %v2321 = vrot.slane %v2319, 3
      %v2322 = vshll.u32 %v2159, 16
      %v2324 = vrot.slane %v2322, 4
      %v2325 = vor.u32 %v2321, %v2324
      %v2326 = vsel %vm2264, %v2309, %v2325
      %v2327 = vshrl.u32 %v2101, 16
      %v2329 = vrot.slane %v2327, 3
      %v2330 = vshll.u32 %v2101, 16
      %v2332 = vrot.slane %v2330, 4
      %v2333 = vor.u32 %v2329, %v2332
      %v2334 = vsel %vm2264, %v2317, %v2333
      %v2335 = vshrl.u32 %v2162, 16
      %v2337 = vrot.slane %v2335, 3
      %v2338 = vshll.u32 %v2162, 16
      %v2340 = vrot.slane %v2338, 4
      %v2341 = vor.u32 %v2337, %v2340
      %v2342 = vsel %vm2264, %v2325, %v2341
      %v2343 = vshrl.u32 %v2103, 16
      %v2345 = vrot.slane %v2343, 3
      %v2346 = vshll.u32 %v2103, 16
      %v2348 = vrot.slane %v2346, 4
      %v2349 = vor.u32 %v2345, %v2348
      %v2350 = vsel %vm2264, %v2333, %v2349
      %v2351 = vshrl.u32 %v2165, 16
      %v2353 = vrot.slane %v2351, 3
      %v2354 = vshll.u32 %v2165, 16
      %v2356 = vrot.slane %v2354, 4
      %v2357 = vor.u32 %v2353, %v2356
      %v2358 = vsel %vm2264, %v2341, %v2357
      %v2359 = vshrl.u32 %v2105, 16
      %v2361 = vrot.slane %v2359, 3
      %v2362 = vshll.u32 %v2105, 16
      %v2364 = vrot.slane %v2362, 4
      %v2365 = vor.u32 %v2361, %v2364
      %v2366 = vsel %vm2264, %v2349, %v2365
      %v2367 = vshrl.u32 %v2168, 16
      %v2369 = vrot.slane %v2367, 3
      %v2370 = vshll.u32 %v2168, 16
      %v2372 = vrot.slane %v2370, 4
      %v2373 = vor.u32 %v2369, %v2372
      %v2374 = vsel %vm2264, %v2357, %v2373
      %v2375 = vshrl.u32 %v2107, 16
      %v2377 = vrot.slane %v2375, 3
      %v2378 = vshll.u32 %v2107, 16
      %v2380 = vrot.slane %v2378, 4
      %v2381 = vor.u32 %v2377, %v2380
      %v2382 = vsel %vm2264, %v2365, %v2381
      %v2383 = vshrl.u32 %v2171, 16
      %v2385 = vrot.slane %v2383, 3
      %v2386 = vshll.u32 %v2171, 16
      %v2388 = vrot.slane %v2386, 4
      %v2389 = vor.u32 %v2385, %v2388
      %v2390 = vsel %vm2264, %v2373, %v2389
      %v2391 = vshrl.u32 %v2109, 16
      %v2393 = vrot.slane %v2391, 3
      %v2394 = vshll.u32 %v2109, 16
      %v2396 = vrot.slane %v2394, 4
      %v2397 = vor.u32 %v2393, %v2396
      %v2398 = vsel %vm2264, %v2381, %v2397
      %v2399 = vshrl.u32 %v2174, 16
      %v2401 = vrot.slane %v2399, 3
      %v2402 = vshll.u32 %v2174, 16
      %v2404 = vrot.slane %v2402, 4
      %v2405 = vor.u32 %v2401, %v2404
      %v2406 = vsel %vm2264, %v2389, %v2405
      %v2407 = vshrl.u32 %v2111, 16
      %v2409 = vrot.slane %v2407, 3
      %v2410 = vshll.u32 %v2111, 16
      %v2412 = vrot.slane %v2410, 4
      %v2413 = vor.u32 %v2409, %v2412
      %v2414 = vsel %vm2264, %v2397, %v2413
      %v2415 = vshrl.u32 %v2177, 16
      %v2417 = vrot.slane %v2415, 3
      %v2418 = vshll.u32 %v2177, 16
      %v2420 = vrot.slane %v2418, 4
      %v2421 = vor.u32 %v2417, %v2420
      %v2422 = vsel %vm2264, %v2405, %v2421
      %v2423 = vshrl.u32 %v2113, 16
      %v2425 = vrot.slane %v2423, 3
      %v2426 = vshll.u32 %v2113, 16
      %v2428 = vrot.slane %v2426, 4
      %v2429 = vor.u32 %v2425, %v2428
      %v2430 = vsel %vm2264, %v2413, %v2429
      %v2431 = vshrl.u32 %v2180, 16
      %v2433 = vrot.slane %v2431, 3
      %v2434 = vshll.u32 %v2180, 16
      %v2436 = vrot.slane %v2434, 4
      %v2437 = vor.u32 %v2433, %v2436
      %v2438 = vsel %vm2264, %v2421, %v2437
      %v2439 = vshrl.u32 %v2115, 16
      %v2441 = vrot.slane %v2439, 3
      %v2442 = vshll.u32 %v2115, 16
      %v2444 = vrot.slane %v2442, 4
      %v2445 = vor.u32 %v2441, %v2444
      %v2446 = vsel %vm2264, %v2429, %v2445
      %v2447 = vshrl.u32 %v2183, 16
      %v2449 = vrot.slane %v2447, 3
      %v2450 = vshll.u32 %v2183, 16
      %v2452 = vrot.slane %v2450, 4
      %v2453 = vor.u32 %v2449, %v2452
      %v2454 = vsel %vm2264, %v2437, %v2453
      %v2455 = vshrl.u32 %v2117, 16
      %v2457 = vrot.slane %v2455, 3
      %v2458 = vshll.u32 %v2117, 16
      %v2460 = vrot.slane %v2458, 4
      %v2461 = vor.u32 %v2457, %v2460
      %v2462 = vsel %vm2264, %v2445, %v2461
      %v2463 = vshrl.u32 %v2186, 16
      %v2465 = vrot.slane %v2463, 3
      %v2466 = vshll.u32 %v2186, 16
      %v2468 = vrot.slane %v2466, 4
      %v2469 = vor.u32 %v2465, %v2468
      %v2470 = vsel %vm2264, %v2453, %v2469
      %v2471 = vshrl.u32 %v2119, 16
      %v2473 = vrot.slane %v2471, 3
      %v2474 = vshll.u32 %v2119, 16
      %v2476 = vrot.slane %v2474, 4
      %v2477 = vor.u32 %v2473, %v2476
      %v2478 = vsel %vm2264, %v2461, %v2477
      %v2479 = vshrl.u32 %v2189, 16
      %v2481 = vrot.slane %v2479, 3
      %v2482 = vshll.u32 %v2189, 16
      %v2484 = vrot.slane %v2482, 4
      %v2485 = vor.u32 %v2481, %v2484
      %v2486 = vsel %vm2264, %v2469, %v2485
      %v2487 = vshrl.u32 %v2121, 16
      %v2489 = vrot.slane %v2487, 3
      %v2490 = vshll.u32 %v2121, 16
      %v2492 = vrot.slane %v2490, 4
      %v2493 = vor.u32 %v2489, %v2492
      %v2494 = vsel %vm2264, %v2477, %v2493
      %v2495 = vshrl.u32 %v2192, 16
      %v2497 = vrot.slane %v2495, 3
      %v2498 = vshll.u32 %v2192, 16
      %v2500 = vrot.slane %v2498, 4
      %v2501 = vor.u32 %v2497, %v2500
      %v2502 = vsel %vm2264, %v2485, %v2501
      %v2503 = vshrl.u32 %v2123, 16
      %v2505 = vrot.slane %v2503, 3
      %v2506 = vshll.u32 %v2123, 16
      %v2508 = vrot.slane %v2506, 4
      %v2509 = vor.u32 %v2505, %v2508
      %v2510 = vsel %vm2264, %v2493, %v2509
      %v2511 = vshrl.u32 %v2195, 16
      %v2513 = vrot.slane %v2511, 3
      %v2514 = vshll.u32 %v2195, 16
      %v2516 = vrot.slane %v2514, 4
      %v2517 = vor.u32 %v2513, %v2516
      %v2518 = vsel %vm2264, %v2501, %v2517
      %v2519 = vshrl.u32 %v2125, 16
      %v2521 = vrot.slane %v2519, 3
      %v2522 = vshll.u32 %v2125, 16
      %v2524 = vrot.slane %v2522, 4
      %v2525 = vor.u32 %v2521, %v2524
      %v2526 = vsel %vm2264, %v2509, %v2525
      %v2527 = vshrl.u32 %v2198, 16
      %v2529 = vrot.slane %v2527, 3
      %v2530 = vshll.u32 %v2198, 16
      %v2532 = vrot.slane %v2530, 4
      %v2533 = vor.u32 %v2529, %v2532
      %v2534 = vsel %vm2264, %v2517, %v2533
      %v2535 = vshrl.u32 %v2127, 16
      %v2537 = vrot.slane %v2535, 3
      %v2538 = vshll.u32 %v2127, 16
      %v2540 = vrot.slane %v2538, 4
      %v2541 = vor.u32 %v2537, %v2540
      %v2542 = vsel %vm2264, %v2525, %v2541
      %v2543 = vshrl.u32 %v2201, 16
      %v2545 = vrot.slane %v2543, 3
      %v2546 = vshll.u32 %v2201, 16
      %v2548 = vrot.slane %v2546, 4
      %v2549 = vor.u32 %v2545, %v2548
      %v2550 = vsel %vm2264, %v2533, %v2549
      %v2551 = vshrl.u32 %v2129, 16
      %v2553 = vrot.slane %v2551, 3
      %v2554 = vshll.u32 %v2129, 16
      %v2556 = vrot.slane %v2554, 4
      %v2557 = vor.u32 %v2553, %v2556
      %v2558 = vsel %vm2264, %v2541, %v2557
      %v2559 = vshrl.u32 %v2204, 16
      %v2561 = vrot.slane %v2559, 3
      %v2562 = vshll.u32 %v2204, 16
      %v2564 = vrot.slane %v2562, 4
      %v2565 = vor.u32 %v2561, %v2564
      %v2566 = vsel %vm2264, %v2549, %v2565
      %v2567 = vshrl.u32 %v2131, 16
      %v2569 = vrot.slane %v2567, 3
      %v2570 = vshll.u32 %v2131, 16
      %v2572 = vrot.slane %v2570, 4
      %v2573 = vor.u32 %v2569, %v2572
      %v2574 = vsel %vm2264, %v2557, %v2573
      %v2575 = vshrl.u32 %v2207, 16
      %v2577 = vrot.slane %v2575, 3
      %v2578 = vshll.u32 %v2207, 16
      %v2580 = vrot.slane %v2578, 4
      %v2581 = vor.u32 %v2577, %v2580
      %v2582 = vsel %vm2264, %v2565, %v2581
      %v2583 = vshrl.u32 %v2133, 16
      %v2585 = vrot.slane %v2583, 3
      %v2586 = vshll.u32 %v2133, 16
      %v2588 = vrot.slane %v2586, 4
      %v2589 = vor.u32 %v2585, %v2588
      %v2590 = vsel %vm2264, %v2573, %v2589
      %v2591 = vshrl.u32 %v2210, 16
      %v2593 = vrot.slane %v2591, 3
      %v2594 = vshll.u32 %v2210, 16
      %v2596 = vrot.slane %v2594, 4
      %v2597 = vor.u32 %v2593, %v2596
      %v2598 = vsel %vm2264, %v2581, %v2597
      %v2599 = vshrl.u32 %v2135, 16
      %v2601 = vrot.slane %v2599, 3
      %v2602 = vshll.u32 %v2135, 16
      %v2604 = vrot.slane %v2602, 4
      %v2605 = vor.u32 %v2601, %v2604
      %v2606 = vsel %vm2264, %v2589, %v2605
      %v2607 = vshrl.u32 %v2213, 16
      %v2609 = vrot.slane %v2607, 3
      %v2610 = vshll.u32 %v2213, 16
      %v2612 = vrot.slane %v2610, 4
      %v2613 = vor.u32 %v2609, %v2612
      %v2614 = vsel %vm2264, %v2597, %v2613
      %v2615 = vshrl.u32 %v2137, 16
      %v2617 = vrot.slane %v2615, 3
      %v2618 = vshll.u32 %v2137, 16
      %v2620 = vrot.slane %v2618, 4
      %v2621 = vor.u32 %v2617, %v2620
      %v2622 = vsel %vm2264, %v2605, %v2621
      %v2623 = vshrl.u32 %v2216, 16
      %v2625 = vrot.slane %v2623, 3
      %v2626 = vshll.u32 %v2216, 16
      %v2628 = vrot.slane %v2626, 4
      %v2629 = vor.u32 %v2625, %v2628
      %v2630 = vsel %vm2264, %v2613, %v2629
      %v2631 = vshrl.u32 %v2139, 16
      %v2633 = vrot.slane %v2631, 3
      %v2634 = vshll.u32 %v2139, 16
      %v2636 = vrot.slane %v2634, 4
      %v2637 = vor.u32 %v2633, %v2636
      %v2638 = vsel %vm2264, %v2621, %v2637
      %v2639 = vshrl.u32 %v2219, 16
      %v2641 = vrot.slane %v2639, 3
      %v2642 = vshll.u32 %v2219, 16
      %v2644 = vrot.slane %v2642, 4
      %v2645 = vor.u32 %v2641, %v2644
      %v2646 = vsel %vm2264, %v2629, %v2645
      %v2647 = vshrl.u32 %v2141, 16
      %v2649 = vrot.slane %v2647, 3
      %v2650 = vshll.u32 %v2141, 16
      %v2652 = vrot.slane %v2650, 4
      %v2653 = vor.u32 %v2649, %v2652
      %v2654 = vsel %vm2264, %v2637, %v2653
      %v2655 = vshrl.u32 %v2222, 16
      %v2657 = vrot.slane %v2655, 3
      %v2658 = vshll.u32 %v2222, 16
      %v2660 = vrot.slane %v2658, 4
      %v2661 = vor.u32 %v2657, %v2660
      %v2662 = vsel %vm2264, %v2645, %v2661
      %v2663 = vshrl.u32 %v2143, 16
      %v2665 = vrot.slane %v2663, 3
      %v2666 = vshll.u32 %v2143, 16
      %v2668 = vrot.slane %v2666, 4
      %v2669 = vor.u32 %v2665, %v2668
      %v2670 = vsel %vm2264, %v2653, %v2669
      %v2671 = vshrl.u32 %v2225, 16
      %v2673 = vrot.slane %v2671, 3
      %v2674 = vshll.u32 %v2225, 16
      %v2676 = vrot.slane %v2674, 4
      %v2677 = vor.u32 %v2673, %v2676
      %v2678 = vsel %vm2264, %v2661, %v2677
      %v2679 = vshrl.u32 %v2145, 16
      %v2681 = vrot.slane %v2679, 3
      %v2682 = vshll.u32 %v2145, 16
      %v2684 = vrot.slane %v2682, 4
      %v2685 = vor.u32 %v2681, %v2684
      %v2686 = vsel %vm2264, %v2669, %v2685
      %v2687 = vshrl.u32 %v2228, 16
      %v2689 = vrot.slane %v2687, 3
      %v2690 = vshll.u32 %v2228, 16
      %v2692 = vrot.slane %v2690, 4
      %v2693 = vor.u32 %v2689, %v2692
      %v2694 = vsel %vm2264, %v2677, %v2693
      %v2695 = vshrl.u32 %v2147, 16
      %v2697 = vrot.slane %v2695, 3
      %v2698 = vshll.u32 %v2147, 16
      %v2700 = vrot.slane %v2698, 4
      %v2701 = vor.u32 %v2697, %v2700
      %v2702 = vsel %vm2264, %v2685, %v2701
      %v2703 = vshrl.u32 %v2231, 16
      %v2705 = vrot.slane %v2703, 3
      %v2706 = vshll.u32 %v2231, 16
      %v2708 = vrot.slane %v2706, 4
      %v2709 = vor.u32 %v2705, %v2708
      %v2710 = vsel %vm2264, %v2693, %v2709
      %v2797 = vunpack.c.l.b16 %v2232
      %v2798 = vunpack.c.l.b16 %v2233
      %v2799 = vunpack.c.l.b16 %v2234
      %v2800 = vunpack.c.l.b16 %v2235
      %v2801 = vunpack.c.l.b16 %v2236
      %v2802 = vunpack.c.l.b16 %v2237
      %v2803 = vunpack.c.l.b16 %v2238
      %v2804 = vunpack.c.l.b16 %v2239
      %v2805 = vunpack.c.l.b16 %v2240
      %v2806 = vunpack.c.l.b16 %v2241
      %v2807 = vunpack.c.l.b16 %v2242
      %v2808 = vunpack.c.l.b16 %v2243
      %v2809 = vunpack.c.l.b16 %v2244
      %v2810 = vunpack.c.l.b16 %v2245
      %v2811 = vunpack.c.l.b16 %v2246
      %v2812 = vunpack.c.l.b16 %v2247
      %v2813 = vunpack.c.l.b16 %v2248
      %v2814 = vunpack.c.l.b16 %v2249
      %v2815 = vunpack.c.l.b16 %v2250
      %v2816 = vunpack.c.l.b16 %v2251
      %v2817 = vunpack.c.l.b16 %v2252
      %v2818 = vunpack.c.l.b16 %v2253
      %v2819 = vunpack.c.l.b16 %v2254
      %v2820 = vunpack.c.l.b16 %v2255
      %v2821 = vunpack.c.l.b16 %v2256
      %v2822 = vunpack.c.l.b16 %v2257
      %v2823 = vunpack.c.l.b16 %v2258
      %v2824 = vunpack.c.l.b16 %v2259
      %v2825 = vunpack.c.l.b16 %v2260
      %v2826 = vunpack.c.l.b16 %v2261
      %v2827 = vunpack.c.l.b16 %v2262
      %v2828 = vunpack.c.l.b16 %v2263
      %v2829 = vpack.c.b16 %v2798, %v2797
      %v2830 = vpack.c.b16 %v2800, %v2799
      %v2831 = vpack.c.b16 %v2802, %v2801
      %v2832 = vpack.c.b16 %v2804, %v2803
      %v2833 = vpack.c.b16 %v2806, %v2805
      %v2834 = vpack.c.b16 %v2808, %v2807
      %v2835 = vpack.c.b16 %v2810, %v2809
      %v2836 = vpack.c.b16 %v2812, %v2811
      %v2837 = vpack.c.b16 %v2814, %v2813
      %v2838 = vpack.c.b16 %v2816, %v2815
      %v2839 = vpack.c.b16 %v2818, %v2817
      %v2840 = vpack.c.b16 %v2820, %v2819
      %v2841 = vpack.c.b16 %v2822, %v2821
      %v2842 = vpack.c.b16 %v2824, %v2823
      %v2843 = vpack.c.b16 %v2826, %v2825
      %v2844 = vpack.c.b16 %v2828, %v2827
      %2861 = vmatprep.subr.bf16.mxu0 0
      %2862 = vmatpush1.bf16.msra.mxu0 %v2829
      %2863 = vmatprep.subr.bf16.mxu0 0
      %2864 = vmatpush1.bf16.msra.mxu0 %v2830
      %2865 = vmatprep.subr.bf16.mxu0 0
      %2866 = vmatpush1.bf16.msra.mxu0 %v2831
      %2867 = vmatprep.subr.bf16.mxu0 0
      %2868 = vmatpush1.bf16.msra.mxu0 %v2832
      %2869 = vmatprep.subr.bf16.mxu0 0
      %2870 = vmatpush1.bf16.msra.mxu0 %v2833
      %2871 = vmatprep.subr.bf16.mxu0 0
      %2872 = vmatpush1.bf16.msra.mxu0 %v2834
      %2873 = vmatprep.subr.bf16.mxu0 0
      %2874 = vmatpush1.bf16.msra.mxu0 %v2835
      %2875 = vmatprep.subr.bf16.mxu0 0
      %2876 = vmatpush1.bf16.msra.mxu0 %v2836
      %2877 = vmatprep.subr.bf16.mxu0 0
      %2878 = vmatpush1.bf16.msra.mxu0 %v2837
      %2879 = vmatprep.subr.bf16.mxu0 0
      %2880 = vmatpush1.bf16.msra.mxu0 %v2838
      %2881 = vmatprep.subr.bf16.mxu0 0
      %2882 = vmatpush1.bf16.msra.mxu0 %v2839
      %2883 = vmatprep.subr.bf16.mxu0 0
      %2884 = vmatpush1.bf16.msra.mxu0 %v2840
      %2885 = vmatprep.subr.bf16.mxu0 0
      %2886 = vmatpush1.bf16.msra.mxu0 %v2841
      %2887 = vmatprep.subr.bf16.mxu0 0
      %2888 = vmatpush1.bf16.msra.mxu0 %v2842
      %2889 = vmatprep.subr.bf16.mxu0 0
      %2890 = vmatpush1.bf16.msra.mxu0 %v2843
      %2891 = vmatprep.subr.bf16.mxu0 0
      %2892 = vmatpush1.bf16.msra.mxu0 %v2844
      %2893 = vmatprep.mubr.bf16.mxu0 %v2294
      %2894 = vmatmul.mubr.bf16.gmra.mrb[0].mxu0 %v2279
      %v2895 = vpop.f32.mrb[0].mxu0
      %v2896 = vadd.f32 0.0, %v2895
      %v2897 = vpop.f32.mrb[0].mxu0
      %v2898 = vpop.f32.mrb[0].mxu0
      %v2899 = vadd.f32 0.0, %v2898
      %v2900 = vpop.f32.mrb[0].mxu0
      %2901 = vmatprep.mubr.bf16.mxu0 %v2310
      %2902 = vmatmul.mubr.bf16.gmra.mrb[0].mxu0 %v2302
      %v2903 = vpop.f32.mrb[0].mxu0
      %v2904 = vadd.f32 0.0, %v2903
      %v2905 = vpop.f32.mrb[0].mxu0
      %v2906 = vpop.f32.mrb[0].mxu0
      %v2907 = vadd.f32 0.0, %v2906
      %v2908 = vpop.f32.mrb[0].mxu0
      %2909 = vmatprep.mubr.bf16.mxu0 %v2326
      %2910 = vmatmul.mubr.bf16.gmra.mrb[0].mxu0 %v2318
      %v2911 = vpop.f32.mrb[0].mxu0
      %v2912 = vadd.f32 0.0, %v2911
      %v2913 = vpop.f32.mrb[0].mxu0
      %v2914 = vpop.f32.mrb[0].mxu0
      %v2915 = vadd.f32 0.0, %v2914
      %v2916 = vpop.f32.mrb[0].mxu0
      %2917 = vmatprep.mubr.bf16.mxu0 %v2342
      %2918 = vmatmul.mubr.bf16.gmra.mrb[0].mxu0 %v2334
      %v2919 = vpop.f32.mrb[0].mxu0
      %v2920 = vadd.f32 0.0, %v2919
      %v2921 = vpop.f32.mrb[0].mxu0
      %v2922 = vpop.f32.mrb[0].mxu0
      %v2923 = vadd.f32 0.0, %v2922
      %v2924 = vpop.f32.mrb[0].mxu0
      %2925 = vmatprep.mubr.bf16.mxu0 %v2358
      %2926 = vmatmul.mubr.bf16.gmra.mrb[0].mxu0 %v2350
      %v2927 = vpop.f32.mrb[0].mxu0
      %v2928 = vadd.f32 0.0, %v2927
      %v2929 = vpop.f32.mrb[0].mxu0
      %v2930 = vpop.f32.mrb[0].mxu0
      %v2931 = vadd.f32 0.0, %v2930
      %v2932 = vpop.f32.mrb[0].mxu0
      %2933 = vmatprep.mubr.bf16.mxu0 %v2374
      %2934 = vmatmul.mubr.bf16.gmra.mrb[0].mxu0 %v2366
      %v2935 = vpop.f32.mrb[0].mxu0
      %v2936 = vadd.f32 0.0, %v2935
      %v2937 = vpop.f32.mrb[0].mxu0
      %v2938 = vpop.f32.mrb[0].mxu0
      %v2939 = vadd.f32 0.0, %v2938
      %v2940 = vpop.f32.mrb[0].mxu0
      %2941 = vmatprep.mubr.bf16.mxu0 %v2390
      %2942 = vmatmul.mubr.bf16.gmra.mrb[0].mxu0 %v2382
      %v2943 = vpop.f32.mrb[0].mxu0
      %v2944 = vadd.f32 0.0, %v2943
      %v2945 = vpop.f32.mrb[0].mxu0
      %v2946 = vpop.f32.mrb[0].mxu0
      %v2947 = vadd.f32 0.0, %v2946
      %v2948 = vpop.f32.mrb[0].mxu0
      %2949 = vmatprep.mubr.bf16.mxu0 %v2406
      %2950 = vmatmul.mubr.bf16.gmra.mrb[0].mxu0 %v2398
      %v2951 = vpop.f32.mrb[0].mxu0
      %v2952 = vadd.f32 0.0, %v2951
      %v2953 = vpop.f32.mrb[0].mxu0
      %v2954 = vpop.f32.mrb[0].mxu0
      %v2955 = vadd.f32 0.0, %v2954
      %v2956 = vpop.f32.mrb[0].mxu0
      %2957 = vmatprep.mubr.bf16.mxu0 %v2422
      %2958 = vmatmul.mubr.bf16.gmra.mrb[0].mxu0 %v2414
      %v2959 = vpop.f32.mrb[0].mxu0
      %v2960 = vadd.f32 0.0, %v2959
      %v2961 = vpop.f32.mrb[0].mxu0
      %v2962 = vpop.f32.mrb[0].mxu0
      %v2963 = vadd.f32 0.0, %v2962
      %v2964 = vpop.f32.mrb[0].mxu0
      %2965 = vmatprep.mubr.bf16.mxu0 %v2438
      %2966 = vmatmul.mubr.bf16.gmra.mrb[0].mxu0 %v2430
      %v2967 = vpop.f32.mrb[0].mxu0
      %v2968 = vadd.f32 0.0, %v2967
      %v2969 = vpop.f32.mrb[0].mxu0
      %v2970 = vpop.f32.mrb[0].mxu0
      %v2971 = vadd.f32 0.0, %v2970
      %v2972 = vpop.f32.mrb[0].mxu0
      %2973 = vmatprep.mubr.bf16.mxu0 %v2454
      %2974 = vmatmul.mubr.bf16.gmra.mrb[0].mxu0 %v2446
      %v2975 = vpop.f32.mrb[0].mxu0
      %v2976 = vadd.f32 0.0, %v2975
      %v2977 = vpop.f32.mrb[0].mxu0
      %v2978 = vpop.f32.mrb[0].mxu0
      %v2979 = vadd.f32 0.0, %v2978
      %v2980 = vpop.f32.mrb[0].mxu0
      %2981 = vmatprep.mubr.bf16.mxu0 %v2470
      %2982 = vmatmul.mubr.bf16.gmra.mrb[0].mxu0 %v2462
      %v2983 = vpop.f32.mrb[0].mxu0
      %v2984 = vadd.f32 0.0, %v2983
      %v2985 = vpop.f32.mrb[0].mxu0
      %v2986 = vpop.f32.mrb[0].mxu0
      %v2987 = vadd.f32 0.0, %v2986
      %v2988 = vpop.f32.mrb[0].mxu0
      %2989 = vmatprep.mubr.bf16.mxu0 %v2486
      %2990 = vmatmul.mubr.bf16.gmra.mrb[0].mxu0 %v2478
      %v2991 = vpop.f32.mrb[0].mxu0
      %v2992 = vadd.f32 0.0, %v2991
      %v2993 = vpop.f32.mrb[0].mxu0
      %v2994 = vpop.f32.mrb[0].mxu0
      %v2995 = vadd.f32 0.0, %v2994
      %v2996 = vpop.f32.mrb[0].mxu0
      %2997 = vmatprep.mubr.bf16.mxu0 %v2502
      %2998 = vmatmul.mubr.bf16.gmra.mrb[0].mxu0 %v2494
      %v2999 = vpop.f32.mrb[0].mxu0
      %v3000 = vadd.f32 0.0, %v2999
      %v3001 = vpop.f32.mrb[0].mxu0
      %v3002 = vpop.f32.mrb[0].mxu0
      %v3003 = vadd.f32 0.0, %v3002
      %v3004 = vpop.f32.mrb[0].mxu0
      %3005 = vmatprep.mubr.bf16.mxu0 %v2518
      %3006 = vmatmul.mubr.bf16.gmra.mrb[0].mxu0 %v2510
      %v3007 = vpop.f32.mrb[0].mxu0
      %v3008 = vadd.f32 0.0, %v3007
      %v3009 = vpop.f32.mrb[0].mxu0
      %v3010 = vpop.f32.mrb[0].mxu0
      %v3011 = vadd.f32 0.0, %v3010
      %v3012 = vpop.f32.mrb[0].mxu0
      %3013 = vmatprep.mubr.bf16.mxu0 %v2534
      %3014 = vmatmul.mubr.bf16.gmra.mrb[0].mxu0 %v2526
      %v3015 = vpop.f32.mrb[0].mxu0
      %v3016 = vadd.f32 0.0, %v3015
      %v3017 = vpop.f32.mrb[0].mxu0
      %v3018 = vpop.f32.mrb[0].mxu0
      %v3019 = vadd.f32 0.0, %v3018
      %v3020 = vpop.f32.mrb[0].mxu0
      %3021 = vmatprep.mubr.bf16.mxu0 %v2550
      %3022 = vmatmul.mubr.bf16.gmra.mrb[0].mxu0 %v2542
      %v3023 = vpop.f32.mrb[0].mxu0
      %v3024 = vadd.f32 0.0, %v3023
      %v3025 = vpop.f32.mrb[0].mxu0
      %v3026 = vpop.f32.mrb[0].mxu0
      %v3027 = vadd.f32 0.0, %v3026
      %v3028 = vpop.f32.mrb[0].mxu0
      %3029 = vmatprep.mubr.bf16.mxu0 %v2566
      %3030 = vmatmul.mubr.bf16.gmra.mrb[0].mxu0 %v2558
      %v3031 = vpop.f32.mrb[0].mxu0
      %v3032 = vadd.f32 0.0, %v3031
      %v3033 = vpop.f32.mrb[0].mxu0
      %v3034 = vpop.f32.mrb[0].mxu0
      %v3035 = vadd.f32 0.0, %v3034
      %v3036 = vpop.f32.mrb[0].mxu0
      %3037 = vmatprep.mubr.bf16.mxu0 %v2582
      %3038 = vmatmul.mubr.bf16.gmra.mrb[0].mxu0 %v2574
      %v3039 = vpop.f32.mrb[0].mxu0
      %v3040 = vadd.f32 0.0, %v3039
      %v3041 = vpop.f32.mrb[0].mxu0
      %v3042 = vpop.f32.mrb[0].mxu0
      %v3043 = vadd.f32 0.0, %v3042
      %v3044 = vpop.f32.mrb[0].mxu0
      %3045 = vmatprep.mubr.bf16.mxu0 %v2598
      %3046 = vmatmul.mubr.bf16.gmra.mrb[0].mxu0 %v2590
      %v3047 = vpop.f32.mrb[0].mxu0
      %v3048 = vadd.f32 0.0, %v3047
      %v3049 = vpop.f32.mrb[0].mxu0
      %v3050 = vpop.f32.mrb[0].mxu0
      %v3051 = vadd.f32 0.0, %v3050
      %v3052 = vpop.f32.mrb[0].mxu0
      %3053 = vmatprep.mubr.bf16.mxu0 %v2614
      %3054 = vmatmul.mubr.bf16.gmra.mrb[0].mxu0 %v2606
      %v3055 = vpop.f32.mrb[0].mxu0
      %v3056 = vadd.f32 0.0, %v3055
      %v3057 = vpop.f32.mrb[0].mxu0
      %v3058 = vpop.f32.mrb[0].mxu0
      %v3059 = vadd.f32 0.0, %v3058
      %v3060 = vpop.f32.mrb[0].mxu0
      %3061 = vmatprep.mubr.bf16.mxu0 %v2630
      %3062 = vmatmul.mubr.bf16.gmra.mrb[0].mxu0 %v2622
      %v3063 = vpop.f32.mrb[0].mxu0
      %v3064 = vadd.f32 0.0, %v3063
      %v3065 = vpop.f32.mrb[0].mxu0
      %v3066 = vpop.f32.mrb[0].mxu0
      %v3067 = vadd.f32 0.0, %v3066
      %v3068 = vpop.f32.mrb[0].mxu0
      %3069 = vmatprep.mubr.bf16.mxu0 %v2646
      %3070 = vmatmul.mubr.bf16.gmra.mrb[0].mxu0 %v2638
      %v3071 = vpop.f32.mrb[0].mxu0
      %v3072 = vadd.f32 0.0, %v3071
      %v3073 = vpop.f32.mrb[0].mxu0
      %v3074 = vpop.f32.mrb[0].mxu0
      %v3075 = vadd.f32 0.0, %v3074
      %v3076 = vpop.f32.mrb[0].mxu0
      %3077 = vmatprep.mubr.bf16.mxu0 %v2662
      %3078 = vmatmul.mubr.bf16.gmra.mrb[0].mxu0 %v2654
      %v3079 = vpop.f32.mrb[0].mxu0
      %v3080 = vadd.f32 0.0, %v3079
      %v3081 = vpop.f32.mrb[0].mxu0
      %v3082 = vpop.f32.mrb[0].mxu0
      %v3083 = vadd.f32 0.0, %v3082
      %v3084 = vpop.f32.mrb[0].mxu0
      %3085 = vmatprep.mubr.bf16.mxu0 %v2678
      %3086 = vmatmul.mubr.bf16.gmra.mrb[0].mxu0 %v2670
      %v3087 = vpop.f32.mrb[0].mxu0
      %v3088 = vadd.f32 0.0, %v3087
      %v3089 = vpop.f32.mrb[0].mxu0
      %v3090 = vpop.f32.mrb[0].mxu0
      %v3091 = vadd.f32 0.0, %v3090
      %v3092 = vpop.f32.mrb[0].mxu0
      %3093 = vmatprep.mubr.bf16.mxu0 %v2694
      %3094 = vmatmul.mubr.bf16.gmra.mrb[0].mxu0 %v2686
      %v3095 = vpop.f32.mrb[0].mxu0
      %v3096 = vadd.f32 0.0, %v3095
      %v3097 = vpop.f32.mrb[0].mxu0
      %v3098 = vpop.f32.mrb[0].mxu0
      %v3099 = vadd.f32 0.0, %v3098
      %v3100 = vpop.f32.mrb[0].mxu0
      %3101 = vmatprep.mubr.bf16.mxu0 %v2710
      %3102 = vmatmul.mubr.bf16.gmra.mrb[0].mxu0 %v2702
      %v3103 = vpop.f32.mrb[0].mxu0
      %v3104 = vadd.f32 0.0, %v3103
      %v3105 = vpop.f32.mrb[0].mxu0
      %v3106 = vpop.f32.mrb[0].mxu0
      %v3107 = vadd.f32 0.0, %v3106
      %v3108 = vpop.f32.mrb[0].mxu0
      %3109 = vdwg.mxu0
      %v3110 = vld [vmem:[#allocation2 + $0xd8] sm:$0x1f]
      %v3111 = vld [vmem:[#allocation2 + $0x10] sm:$0xff]
      %v3112 = vld [vmem:[#allocation2 + $0x18] sm:$0xff]
      %v3113 = vld [vmem:[#allocation2 + $0x20] sm:$0xff]
      %v3114 = vld [vmem:[#allocation2 + $0x28] sm:$0xff]
      %v3115 = vld [vmem:[#allocation2 + $0x30] sm:$0xff]
      %v3116 = vld [vmem:[#allocation2 + $0x38] sm:$0xff]
      %v3117 = vld [vmem:[#allocation2 + $0x40] sm:$0xff]
      %v3118 = vld [vmem:[#allocation2 + $0x48] sm:$0xff]
      %v3119 = vld [vmem:[#allocation2 + $0x50] sm:$0xff]
      %v3120 = vld [vmem:[#allocation2 + $0x58] sm:$0xff]
      %v3121 = vld [vmem:[#allocation2 + $0x60] sm:$0xff]
      %v3122 = vld [vmem:[#allocation2 + $0x68] sm:$0xff]
      %v3123 = vld [vmem:[#allocation2 + $0x70] sm:$0xff]
      %v3124 = vld [vmem:[#allocation2 + $0x78] sm:$0xff]
      %v3125 = vld [vmem:[#allocation2 + $0x80] sm:$0xff]
      %v3126 = vld [vmem:[#allocation2 + $0x88] sm:$0xff]
      %v3127 = vld [vmem:[#allocation2 + $0x90] sm:$0xff]
      %v3128 = vld [vmem:[#allocation2 + $0x98] sm:$0xff]
      %v3129 = vld [vmem:[#allocation2 + $0xa0] sm:$0xff]
      %v3130 = vld [vmem:[#allocation2 + $0xa8] sm:$0xff]
      %v3131 = vld [vmem:[#allocation2 + $0xb0] sm:$0xff]
      %v3132 = vld [vmem:[#allocation2 + $0xb8] sm:$0xff]
      %v3133 = vld [vmem:[#allocation2 + $0xc0] sm:$0xff]
      %v3134 = vld [vmem:[#allocation2 + $0xc8] sm:$0xff]
      %v3135 = vld [vmem:[#allocation2 + $0xd0] sm:$0xff]
      %v3136 = vld [vmem:[#allocation2 + $0xd8] sm:$0xff]
      %v3137 = vld [vmem:[#allocation2 + $0xe0] sm:$0xff]
      %v3138 = vld [vmem:[#allocation2 + $0xe8] sm:$0x1]
      %v3140 = vshll.u32 %v3110, 16
      %v3142 = vrot.slane %v3140, 1
      %v3143 = vsel %vm1553, %v1768, %v3142
      %v3144 = vshrl.u32 %v3110, 16
      %v3146 = vor.u32 %v3144, %v3142
      %3147 = vrot.lane.b32.xlu0 %v3143, 64
      %v3148 = vpop.permute.xlu0 %3147
      %3149 = vrot.lane.b32.xlu0 %v3146, 64
      %v3150 = vpop.permute.xlu0 %3149
      %v3152 = vshrl.u32 %v3111, 16
      %v3154 = vrot.slane %v3152, 4
      %v3155 = vshll.u32 %v3111, 16
      %v3157 = vrot.slane %v3155, 5
      %v3158 = vor.u32 %v3154, %v3157
      %v3160 = vshrl.u32 %v3112, 16
      %v3162 = vrot.slane %v3160, 4
      %v3163 = vshll.u32 %v3112, 16
      %v3165 = vrot.slane %v3163, 5
      %v3166 = vor.u32 %v3162, %v3165
      %v3167 = vsel %vm1917, %v3158, %v3166
      %v3169 = vshrl.u32 %v3113, 16
      %v3171 = vrot.slane %v3169, 4
      %v3172 = vshll.u32 %v3113, 16
      %v3174 = vrot.slane %v3172, 5
      %v3175 = vor.u32 %v3171, %v3174
      %v3176 = vsel %vm1917, %v3166, %v3175
      %v3178 = vshrl.u32 %v3114, 16
      %v3180 = vrot.slane %v3178, 4
      %v3181 = vshll.u32 %v3114, 16
      %v3183 = vrot.slane %v3181, 5
      %v3184 = vor.u32 %v3180, %v3183
      %v3185 = vsel %vm1917, %v3175, %v3184
      %v3187 = vshrl.u32 %v3115, 16
      %v3189 = vrot.slane %v3187, 4
      %v3190 = vshll.u32 %v3115, 16
      %v3192 = vrot.slane %v3190, 5
      %v3193 = vor.u32 %v3189, %v3192
      %v3194 = vsel %vm1917, %v3184, %v3193
      %v3196 = vshrl.u32 %v3116, 16
      %v3198 = vrot.slane %v3196, 4
      %v3199 = vshll.u32 %v3116, 16
      %v3201 = vrot.slane %v3199, 5
      %v3202 = vor.u32 %v3198, %v3201
      %v3203 = vsel %vm1917, %v3193, %v3202
      %v3205 = vshrl.u32 %v3117, 16
      %v3207 = vrot.slane %v3205, 4
      %v3208 = vshll.u32 %v3117, 16
      %v3210 = vrot.slane %v3208, 5
      %v3211 = vor.u32 %v3207, %v3210
      %v3212 = vsel %vm1917, %v3202, %v3211
      %v3214 = vshrl.u32 %v3118, 16
      %v3216 = vrot.slane %v3214, 4
      %v3217 = vshll.u32 %v3118, 16
      %v3219 = vrot.slane %v3217, 5
      %v3220 = vor.u32 %v3216, %v3219
      %v3221 = vsel %vm1917, %v3211, %v3220
      %v3223 = vshrl.u32 %v3119, 16
      %v3225 = vrot.slane %v3223, 4
      %v3226 = vshll.u32 %v3119, 16
      %v3228 = vrot.slane %v3226, 5
      %v3229 = vor.u32 %v3225, %v3228
      %v3230 = vsel %vm1917, %v3220, %v3229
      %v3232 = vshrl.u32 %v3120, 16
      %v3234 = vrot.slane %v3232, 4
      %v3235 = vshll.u32 %v3120, 16
      %v3237 = vrot.slane %v3235, 5
      %v3238 = vor.u32 %v3234, %v3237
      %v3239 = vsel %vm1917, %v3229, %v3238
      %v3241 = vshrl.u32 %v3121, 16
      %v3243 = vrot.slane %v3241, 4
      %v3244 = vshll.u32 %v3121, 16
      %v3246 = vrot.slane %v3244, 5
      %v3247 = vor.u32 %v3243, %v3246
      %v3248 = vsel %vm1917, %v3238, %v3247
      %v3250 = vshrl.u32 %v3122, 16
      %v3252 = vrot.slane %v3250, 4
      %v3253 = vshll.u32 %v3122, 16
      %v3255 = vrot.slane %v3253, 5
      %v3256 = vor.u32 %v3252, %v3255
      %v3257 = vsel %vm1917, %v3247, %v3256
      %v3259 = vshrl.u32 %v3123, 16
      %v3261 = vrot.slane %v3259, 4
      %v3262 = vshll.u32 %v3123, 16
      %v3264 = vrot.slane %v3262, 5
      %v3265 = vor.u32 %v3261, %v3264
      %v3266 = vsel %vm1917, %v3256, %v3265
      %v3268 = vshrl.u32 %v3124, 16
      %v3270 = vrot.slane %v3268, 4
      %v3271 = vshll.u32 %v3124, 16
      %v3273 = vrot.slane %v3271, 5
      %v3274 = vor.u32 %v3270, %v3273
      %v3275 = vsel %vm1917, %v3265, %v3274
      %v3277 = vshrl.u32 %v3125, 16
      %v3279 = vrot.slane %v3277, 4
      %v3280 = vshll.u32 %v3125, 16
      %v3282 = vrot.slane %v3280, 5
      %v3283 = vor.u32 %v3279, %v3282
      %v3284 = vsel %vm1917, %v3274, %v3283
      %v3286 = vshrl.u32 %v3126, 16
      %v3288 = vrot.slane %v3286, 4
      %v3289 = vshll.u32 %v3126, 16
      %v3291 = vrot.slane %v3289, 5
      %v3292 = vor.u32 %v3288, %v3291
      %v3293 = vsel %vm1917, %v3283, %v3292
      %v3295 = vshrl.u32 %v3127, 16
      %v3297 = vrot.slane %v3295, 4
      %v3298 = vshll.u32 %v3127, 16
      %v3300 = vrot.slane %v3298, 5
      %v3301 = vor.u32 %v3297, %v3300
      %v3302 = vsel %vm1917, %v3292, %v3301
      %v3304 = vshrl.u32 %v3128, 16
      %v3306 = vrot.slane %v3304, 4
      %v3307 = vshll.u32 %v3128, 16
      %v3309 = vrot.slane %v3307, 5
      %v3310 = vor.u32 %v3306, %v3309
      %v3311 = vsel %vm1917, %v3301, %v3310
      %v3313 = vshrl.u32 %v3129, 16
      %v3315 = vrot.slane %v3313, 4
      %v3316 = vshll.u32 %v3129, 16
      %v3318 = vrot.slane %v3316, 5
      %v3319 = vor.u32 %v3315, %v3318
      %v3320 = vsel %vm1917, %v3310, %v3319
      %v3322 = vshrl.u32 %v3130, 16
      %v3324 = vrot.slane %v3322, 4
      %v3325 = vshll.u32 %v3130, 16
      %v3327 = vrot.slane %v3325, 5
      %v3328 = vor.u32 %v3324, %v3327
      %v3329 = vsel %vm1917, %v3319, %v3328
      %v3331 = vshrl.u32 %v3131, 16
      %v3333 = vrot.slane %v3331, 4
      %v3334 = vshll.u32 %v3131, 16
      %v3336 = vrot.slane %v3334, 5
      %v3337 = vor.u32 %v3333, %v3336
      %v3338 = vsel %vm1917, %v3328, %v3337
      %v3340 = vshrl.u32 %v3132, 16
      %v3342 = vrot.slane %v3340, 4
      %v3343 = vshll.u32 %v3132, 16
      %v3345 = vrot.slane %v3343, 5
      %v3346 = vor.u32 %v3342, %v3345
      %v3347 = vsel %vm1917, %v3337, %v3346
      %v3349 = vshrl.u32 %v3133, 16
      %v3351 = vrot.slane %v3349, 4
      %v3352 = vshll.u32 %v3133, 16
      %v3354 = vrot.slane %v3352, 5
      %v3355 = vor.u32 %v3351, %v3354
      %v3356 = vsel %vm1917, %v3346, %v3355
      %v3358 = vshrl.u32 %v3134, 16
      %v3360 = vrot.slane %v3358, 4
      %v3361 = vshll.u32 %v3134, 16
      %v3363 = vrot.slane %v3361, 5
      %v3364 = vor.u32 %v3360, %v3363
      %v3365 = vsel %vm1917, %v3355, %v3364
      %v3367 = vshrl.u32 %v3135, 16
      %v3369 = vrot.slane %v3367, 4
      %v3370 = vshll.u32 %v3135, 16
      %v3372 = vrot.slane %v3370, 5
      %v3373 = vor.u32 %v3369, %v3372
      %v3374 = vsel %vm1917, %v3364, %v3373
      %v3376 = vshrl.u32 %v3136, 16
      %v3378 = vrot.slane %v3376, 4
      %v3379 = vshll.u32 %v3136, 16
      %v3381 = vrot.slane %v3379, 5
      %v3382 = vor.u32 %v3378, %v3381
      %v3383 = vsel %vm1917, %v3373, %v3382
      %v3385 = vshrl.u32 %v3137, 16
      %v3387 = vrot.slane %v3385, 4
      %v3388 = vshll.u32 %v3137, 16
      %v3390 = vrot.slane %v3388, 5
      %v3391 = vor.u32 %v3387, %v3390
      %v3392 = vsel %vm1917, %v3382, %v3391
      %v3394 = vshll.u32 %v3138, 16
      %v3396 = vrot.slane %v3394, 5
      %v3397 = vsel %vm1917, %v3391, %v3396
      %3398 = vrot.lane.b32.xlu0 %v3158, 64
      %v3399 = vpop.permute.xlu0 %3398
      %3400 = vrot.lane.b32.xlu0 %v3167, 64
      %v3401 = vpop.permute.xlu0 %3400
      %3402 = vrot.lane.b32.xlu0 %v3176, 64
      %v3403 = vpop.permute.xlu0 %3402
      %3404 = vrot.lane.b32.xlu0 %v3185, 64
      %v3405 = vpop.permute.xlu0 %3404
      %3406 = vrot.lane.b32.xlu0 %v3194, 64
      %v3407 = vpop.permute.xlu0 %3406
      %3408 = vrot.lane.b32.xlu0 %v3203, 64
      %v3409 = vpop.permute.xlu0 %3408
      %3410 = vrot.lane.b32.xlu0 %v3212, 64
      %v3411 = vpop.permute.xlu0 %3410
      %3412 = vrot.lane.b32.xlu0 %v3221, 64
      %v3413 = vpop.permute.xlu0 %3412
      %3414 = vrot.lane.b32.xlu0 %v3230, 64
      %v3415 = vpop.permute.xlu0 %3414
      %3416 = vrot.lane.b32.xlu0 %v3239, 64
      %v3417 = vpop.permute.xlu0 %3416
      %3418 = vrot.lane.b32.xlu0 %v3248, 64
      %v3419 = vpop.permute.xlu0 %3418
      %3420 = vrot.lane.b32.xlu0 %v3257, 64
      %v3421 = vpop.permute.xlu0 %3420
      %3422 = vrot.lane.b32.xlu0 %v3266, 64
      %v3423 = vpop.permute.xlu0 %3422
      %3424 = vrot.lane.b32.xlu0 %v3275, 64
      %v3425 = vpop.permute.xlu0 %3424
      %3426 = vrot.lane.b32.xlu0 %v3284, 64
      %v3427 = vpop.permute.xlu0 %3426
      %3428 = vrot.lane.b32.xlu0 %v3293, 64
      %v3429 = vpop.permute.xlu0 %3428
      %3430 = vrot.lane.b32.xlu0 %v3302, 64
      %v3431 = vpop.permute.xlu0 %3430
      %3432 = vrot.lane.b32.xlu0 %v3311, 64
      %v3433 = vpop.permute.xlu0 %3432
      %3434 = vrot.lane.b32.xlu0 %v3320, 64
      %v3435 = vpop.permute.xlu0 %3434
      %3436 = vrot.lane.b32.xlu0 %v3329, 64
      %v3437 = vpop.permute.xlu0 %3436
      %3438 = vrot.lane.b32.xlu0 %v3338, 64
      %v3439 = vpop.permute.xlu0 %3438
      %3440 = vrot.lane.b32.xlu0 %v3347, 64
      %v3441 = vpop.permute.xlu0 %3440
      %3442 = vrot.lane.b32.xlu0 %v3356, 64
      %v3443 = vpop.permute.xlu0 %3442
      %3444 = vrot.lane.b32.xlu0 %v3365, 64
      %v3445 = vpop.permute.xlu0 %3444
      %3446 = vrot.lane.b32.xlu0 %v3374, 64
      %v3447 = vpop.permute.xlu0 %3446
      %3448 = vrot.lane.b32.xlu0 %v3383, 64
      %v3449 = vpop.permute.xlu0 %3448
      %3450 = vrot.lane.b32.xlu0 %v3392, 64
      %v3451 = vpop.permute.xlu0 %3450
      %3452 = vrot.lane.b32.xlu0 %v3397, 64
      %v3453 = vpop.permute.xlu0 %3452
      %v3454 = vsel %vm425, %v1549, %v1778
      %v3456 = vsel %vm425, %v1547, %v3148
      %v3458 = vsel %vm425, %v1548, %v3150
      %v3461 = vsel %vm425, %v1863, %v3399
      %v3463 = vsel %vm425, %v1866, %v3401
      %v3465 = vsel %vm425, %v1868, %v3403
      %v3467 = vsel %vm425, %v1870, %v3405
      %v3469 = vsel %vm425, %v1872, %v3407
      %v3471 = vsel %vm425, %v1874, %v3409
      %v3473 = vsel %vm425, %v1876, %v3411
      %v3475 = vsel %vm425, %v1878, %v3413
      %v3477 = vsel %vm425, %v1880, %v3415
      %v3479 = vsel %vm425, %v1882, %v3417
      %v3481 = vsel %vm425, %v1884, %v3419
      %v3483 = vsel %vm425, %v1886, %v3421
      %v3485 = vsel %vm425, %v1888, %v3423
      %v3487 = vsel %vm425, %v1890, %v3425
      %v3489 = vsel %vm425, %v1892, %v3427
      %v3491 = vsel %vm425, %v1894, %v3429
      %v3493 = vsel %vm425, %v1896, %v3431
      %v3495 = vsel %vm425, %v1898, %v3433
      %v3497 = vsel %vm425, %v1900, %v3435
      %v3499 = vsel %vm425, %v1902, %v3437
      %v3501 = vsel %vm425, %v1904, %v3439
      %v3503 = vsel %vm425, %v1906, %v3441
      %v3505 = vsel %vm425, %v1908, %v3443
      %v3507 = vsel %vm425, %v1910, %v3445
      %v3509 = vsel %vm425, %v1912, %v3447
      %v3511 = vsel %vm425, %v1914, %v3449
      %v3513 = vsel %vm425, %v1916, %v3451
      %v3515 = vsel %vm425, %v1915, %v3453
      %s3516 = scalar_lea.vmem %s5, 128
      %v3517 = vld [vmem:[%s3516] sm:$0xf]
      %v3518 = vld [vmem:[%s3516 + $0x4] sm:$0xf]
      %v3519 = vld [vmem:[%s3516 + $0x8] sm:$0xf]
      %v3520 = vld [vmem:[%s3516 + $0xc] sm:$0xf]
      %v3521 = vld [vmem:[%s3516 + $0x10] sm:$0xf]
      %v3522 = vld [vmem:[%s3516 + $0x14] sm:$0xf]
      %v3523 = vld [vmem:[%s3516 + $0x18] sm:$0xf]
      %v3524 = vld [vmem:[%s3516 + $0x1c] sm:$0xf]
      %v3525 = vld [vmem:[%s3516 + $0x20] sm:$0xf]
      %v3526 = vld [vmem:[%s3516 + $0x24] sm:$0xf]
      %v3527 = vld [vmem:[%s3516 + $0x28] sm:$0xf]
      %v3528 = vld [vmem:[%s3516 + $0x2c] sm:$0xf]
      %v3529 = vld [vmem:[%s3516 + $0x30] sm:$0xf]
      %v3530 = vld [vmem:[%s3516 + $0x34] sm:$0xf]
      %v3531 = vld [vmem:[%s3516 + $0x38] sm:$0xf]
      %v3532 = vld [vmem:[%s3516 + $0x3c] sm:$0xf]
      %v3533 = vld [vmem:[%s3516 + $0x40] sm:$0xf]
      %v3534 = vld [vmem:[%s3516 + $0x44] sm:$0xf]
      %v3535 = vld [vmem:[%s3516 + $0x48] sm:$0xf]
      %v3536 = vld [vmem:[%s3516 + $0x4c] sm:$0xf]
      %v3537 = vld [vmem:[%s3516 + $0x50] sm:$0xf]
      %v3538 = vld [vmem:[%s3516 + $0x54] sm:$0xf]
      %v3539 = vld [vmem:[%s3516 + $0x58] sm:$0xf]
      %v3540 = vld [vmem:[%s3516 + $0x5c] sm:$0xf]
      %v3541 = vld [vmem:[%s3516 + $0x60] sm:$0xf]
      %v3542 = vld [vmem:[%s3516 + $0x64] sm:$0xf]
      %v3543 = vld [vmem:[%s3516 + $0x68] sm:$0xf]
      %v3544 = vld [vmem:[%s3516 + $0x6c] sm:$0xf]
      %v3545 = vld [vmem:[%s3516 + $0x70] sm:$0xf]
      %v3546 = vld [vmem:[%s3516 + $0x74] sm:$0xf]
      %v3547 = vld [vmem:[%s3516 + $0x78] sm:$0xf]
      %v3548 = vld [vmem:[%s3516 + $0x7c] sm:$0xf]
      %v3605 = vrot.slane %v3454, 4
      %v3606 = vrot.slane %v2095, 4
      %v3607 = vsel %vm1861, %v3605, %v3606
      %v3608 = vrot.slane %v3461, 4
      %v3609 = vrot.slane %v3463, 4
      %v3610 = vsel %vm1861, %v3608, %v3609
      %v3611 = vrot.slane %v2097, 4
      %v3612 = vsel %vm1861, %v3606, %v3611
      %v3613 = vrot.slane %v3465, 4
      %v3614 = vsel %vm1861, %v3609, %v3613
      %v3615 = vrot.slane %v2099, 4
      %v3616 = vsel %vm1861, %v3611, %v3615
      %v3617 = vrot.slane %v3467, 4
      %v3618 = vsel %vm1861, %v3613, %v3617
      %v3619 = vrot.slane %v2101, 4
      %v3620 = vsel %vm1861, %v3615, %v3619
      %v3621 = vrot.slane %v3469, 4
      %v3622 = vsel %vm1861, %v3617, %v3621
      %v3623 = vrot.slane %v2103, 4
      %v3624 = vsel %vm1861, %v3619, %v3623
      %v3625 = vrot.slane %v3471, 4
      %v3626 = vsel %vm1861, %v3621, %v3625
      %v3627 = vrot.slane %v2105, 4
      %v3628 = vsel %vm1861, %v3623, %v3627
      %v3629 = vrot.slane %v3473, 4
      %v3630 = vsel %vm1861, %v3625, %v3629
      %v3631 = vrot.slane %v2107, 4
      %v3632 = vsel %vm1861, %v3627, %v3631
      %v3633 = vrot.slane %v3475, 4
      %v3634 = vsel %vm1861, %v3629, %v3633
      %v3635 = vrot.slane %v2109, 4
      %v3636 = vsel %vm1861, %v3631, %v3635
      %v3637 = vrot.slane %v3477, 4
      %v3638 = vsel %vm1861, %v3633, %v3637
      %v3639 = vrot.slane %v2111, 4
      %v3640 = vsel %vm1861, %v3635, %v3639
      %v3641 = vrot.slane %v3479, 4
      %v3642 = vsel %vm1861, %v3637, %v3641
      %v3643 = vrot.slane %v2113, 4
      %v3644 = vsel %vm1861, %v3639, %v3643
      %v3645 = vrot.slane %v3481, 4
      %v3646 = vsel %vm1861, %v3641, %v3645
      %v3647 = vrot.slane %v2115, 4
      %v3648 = vsel %vm1861, %v3643, %v3647
      %v3649 = vrot.slane %v3483, 4
      %v3650 = vsel %vm1861, %v3645, %v3649
      %v3651 = vrot.slane %v2117, 4
      %v3652 = vsel %vm1861, %v3647, %v3651
      %v3653 = vrot.slane %v3485, 4
      %v3654 = vsel %vm1861, %v3649, %v3653
      %v3655 = vrot.slane %v2119, 4
      %v3656 = vsel %vm1861, %v3651, %v3655
      %v3657 = vrot.slane %v3487, 4
      %v3658 = vsel %vm1861, %v3653, %v3657
      %v3659 = vrot.slane %v2121, 4
      %v3660 = vsel %vm1861, %v3655, %v3659
      %v3661 = vrot.slane %v3489, 4
      %v3662 = vsel %vm1861, %v3657, %v3661
      %v3663 = vrot.slane %v2123, 4
      %v3664 = vsel %vm1861, %v3659, %v3663
      %v3665 = vrot.slane %v3491, 4
      %v3666 = vsel %vm1861, %v3661, %v3665
      %v3667 = vrot.slane %v2125, 4
      %v3668 = vsel %vm1861, %v3663, %v3667
      %v3669 = vrot.slane %v3493, 4
      %v3670 = vsel %vm1861, %v3665, %v3669
      %v3671 = vrot.slane %v2127, 4
      %v3672 = vsel %vm1861, %v3667, %v3671
      %v3673 = vrot.slane %v3495, 4
      %v3674 = vsel %vm1861, %v3669, %v3673
      %v3675 = vrot.slane %v2129, 4
      %v3676 = vsel %vm1861, %v3671, %v3675
      %v3677 = vrot.slane %v3497, 4
      %v3678 = vsel %vm1861, %v3673, %v3677
      %v3679 = vrot.slane %v2131, 4
      %v3680 = vsel %vm1861, %v3675, %v3679
      %v3681 = vrot.slane %v3499, 4
      %v3682 = vsel %vm1861, %v3677, %v3681
      %v3683 = vrot.slane %v2133, 4
      %v3684 = vsel %vm1861, %v3679, %v3683
      %v3685 = vrot.slane %v3501, 4
      %v3686 = vsel %vm1861, %v3681, %v3685
      %v3687 = vrot.slane %v2135, 4
      %v3688 = vsel %vm1861, %v3683, %v3687
      %v3689 = vrot.slane %v3503, 4
      %v3690 = vsel %vm1861, %v3685, %v3689
      %v3691 = vrot.slane %v2137, 4
      %v3692 = vsel %vm1861, %v3687, %v3691
      %v3693 = vrot.slane %v3505, 4
      %v3694 = vsel %vm1861, %v3689, %v3693
      %v3695 = vrot.slane %v2139, 4
      %v3696 = vsel %vm1861, %v3691, %v3695
      %v3697 = vrot.slane %v3507, 4
      %v3698 = vsel %vm1861, %v3693, %v3697
      %v3699 = vrot.slane %v2141, 4
      %v3700 = vsel %vm1861, %v3695, %v3699
      %v3701 = vrot.slane %v3509, 4
      %v3702 = vsel %vm1861, %v3697, %v3701
      %v3703 = vrot.slane %v2143, 4
      %v3704 = vsel %vm1861, %v3699, %v3703
      %v3705 = vrot.slane %v3511, 4
      %v3706 = vsel %vm1861, %v3701, %v3705
      %v3707 = vrot.slane %v3456, 4
      %v3708 = vsel %vm1861, %v3703, %v3707
      %v3709 = vrot.slane %v3513, 4
      %v3710 = vsel %vm1861, %v3705, %v3709
      %v3711 = vrot.slane %v3458, 4
      %v3712 = vsel %vm1861, %v3707, %v3711
      %v3713 = vrot.slane %v3515, 4
      %v3714 = vsel %vm1861, %v3709, %v3713
      %v3801 = vunpack.c.l.b16 %v3517
      %v3802 = vunpack.c.l.b16 %v3518
      %v3803 = vunpack.c.l.b16 %v3519
      %v3804 = vunpack.c.l.b16 %v3520
      %v3805 = vunpack.c.l.b16 %v3521
      %v3806 = vunpack.c.l.b16 %v3522
      %v3807 = vunpack.c.l.b16 %v3523
      %v3808 = vunpack.c.l.b16 %v3524
      %v3809 = vunpack.c.l.b16 %v3525
      %v3810 = vunpack.c.l.b16 %v3526
      %v3811 = vunpack.c.l.b16 %v3527
      %v3812 = vunpack.c.l.b16 %v3528
      %v3813 = vunpack.c.l.b16 %v3529
      %v3814 = vunpack.c.l.b16 %v3530
      %v3815 = vunpack.c.l.b16 %v3531
      %v3816 = vunpack.c.l.b16 %v3532
      %v3817 = vunpack.c.l.b16 %v3533
      %v3818 = vunpack.c.l.b16 %v3534
      %v3819 = vunpack.c.l.b16 %v3535
      %v3820 = vunpack.c.l.b16 %v3536
      %v3821 = vunpack.c.l.b16 %v3537
      %v3822 = vunpack.c.l.b16 %v3538
      %v3823 = vunpack.c.l.b16 %v3539
      %v3824 = vunpack.c.l.b16 %v3540
      %v3825 = vunpack.c.l.b16 %v3541
      %v3826 = vunpack.c.l.b16 %v3542
      %v3827 = vunpack.c.l.b16 %v3543
      %v3828 = vunpack.c.l.b16 %v3544
      %v3829 = vunpack.c.l.b16 %v3545
      %v3830 = vunpack.c.l.b16 %v3546
      %v3831 = vunpack.c.l.b16 %v3547
      %v3832 = vunpack.c.l.b16 %v3548
      %v3833 = vpack.c.b16 %v3802, %v3801
      %v3834 = vpack.c.b16 %v3804, %v3803
      %v3835 = vpack.c.b16 %v3806, %v3805
      %v3836 = vpack.c.b16 %v3808, %v3807
      %v3837 = vpack.c.b16 %v3810, %v3809
      %v3838 = vpack.c.b16 %v3812, %v3811
      %v3839 = vpack.c.b16 %v3814, %v3813
      %v3840 = vpack.c.b16 %v3816, %v3815
      %v3841 = vpack.c.b16 %v3818, %v3817
      %v3842 = vpack.c.b16 %v3820, %v3819
      %v3843 = vpack.c.b16 %v3822, %v3821
      %v3844 = vpack.c.b16 %v3824, %v3823
      %v3845 = vpack.c.b16 %v3826, %v3825
      %v3846 = vpack.c.b16 %v3828, %v3827
      %v3847 = vpack.c.b16 %v3830, %v3829
      %v3848 = vpack.c.b16 %v3832, %v3831
      %3865 = vmatprep.subr.bf16.mxu0 0
      %3866 = vmatpush1.bf16.msra.mxu0 %v3833
      %3867 = vmatprep.subr.bf16.mxu0 0
      %3868 = vmatpush1.bf16.msra.mxu0 %v3834
      %3869 = vmatprep.subr.bf16.mxu0 0
      %3870 = vmatpush1.bf16.msra.mxu0 %v3835
      %3871 = vmatprep.subr.bf16.mxu0 0
      %3872 = vmatpush1.bf16.msra.mxu0 %v3836
      %3873 = vmatprep.subr.bf16.mxu0 0
      %3874 = vmatpush1.bf16.msra.mxu0 %v3837
      %3875 = vmatprep.subr.bf16.mxu0 0
      %3876 = vmatpush1.bf16.msra.mxu0 %v3838
      %3877 = vmatprep.subr.bf16.mxu0 0
      %3878 = vmatpush1.bf16.msra.mxu0 %v3839
      %3879 = vmatprep.subr.bf16.mxu0 0
      %3880 = vmatpush1.bf16.msra.mxu0 %v3840
      %3881 = vmatprep.subr.bf16.mxu0 0
      %3882 = vmatpush1.bf16.msra.mxu0 %v3841
      %3883 = vmatprep.subr.bf16.mxu0 0
      %3884 = vmatpush1.bf16.msra.mxu0 %v3842
      %3885 = vmatprep.subr.bf16.mxu0 0
      %3886 = vmatpush1.bf16.msra.mxu0 %v3843
      %3887 = vmatprep.subr.bf16.mxu0 0
      %3888 = vmatpush1.bf16.msra.mxu0 %v3844
      %3889 = vmatprep.subr.bf16.mxu0 0
      %3890 = vmatpush1.bf16.msra.mxu0 %v3845
      %3891 = vmatprep.subr.bf16.mxu0 0
      %3892 = vmatpush1.bf16.msra.mxu0 %v3846
      %3893 = vmatprep.subr.bf16.mxu0 0
      %3894 = vmatpush1.bf16.msra.mxu0 %v3847
      %3895 = vmatprep.subr.bf16.mxu0 0
      %3896 = vmatpush1.bf16.msra.mxu0 %v3848
      %3897 = vmatprep.mubr.bf16.mxu0 %v3610
      %3898 = vmatmul.mubr.bf16.gmra.mrb[0].mxu0 %v3607
      %v3899 = vpop.f32.mrb[0].mxu0
      %v3900 = vadd.f32 0.0, %v3899
      %v3901 = vpop.f32.mrb[0].mxu0
      %v3902 = vpop.f32.mrb[0].mxu0
      %v3903 = vadd.f32 0.0, %v3902
      %v3904 = vpop.f32.mrb[0].mxu0
      %3905 = vmatprep.mubr.bf16.mxu0 %v3614
      %3906 = vmatmul.mubr.bf16.gmra.mrb[0].mxu0 %v3612
      %v3907 = vpop.f32.mrb[0].mxu0
      %v3908 = vadd.f32 0.0, %v3907
      %v3909 = vpop.f32.mrb[0].mxu0
      %v3910 = vpop.f32.mrb[0].mxu0
      %v3911 = vadd.f32 0.0, %v3910
      %v3912 = vpop.f32.mrb[0].mxu0
      %3913 = vmatprep.mubr.bf16.mxu0 %v3618
      %3914 = vmatmul.mubr.bf16.gmra.mrb[0].mxu0 %v3616
      %v3915 = vpop.f32.mrb[0].mxu0
      %v3916 = vadd.f32 0.0, %v3915
      %v3917 = vpop.f32.mrb[0].mxu0
      %v3918 = vpop.f32.mrb[0].mxu0
      %v3919 = vadd.f32 0.0, %v3918
      %v3920 = vpop.f32.mrb[0].mxu0
      %3921 = vmatprep.mubr.bf16.mxu0 %v3622
      %3922 = vmatmul.mubr.bf16.gmra.mrb[0].mxu0 %v3620
      %v3923 = vpop.f32.mrb[0].mxu0
      %v3924 = vadd.f32 0.0, %v3923
      %v3925 = vpop.f32.mrb[0].mxu0
      %v3926 = vpop.f32.mrb[0].mxu0
      %v3927 = vadd.f32 0.0, %v3926
      %v3928 = vpop.f32.mrb[0].mxu0
      %3929 = vmatprep.mubr.bf16.mxu0 %v3626
      %3930 = vmatmul.mubr.bf16.gmra.mrb[0].mxu0 %v3624
      %v3931 = vpop.f32.mrb[0].mxu0
      %v3932 = vadd.f32 0.0, %v3931
      %v3933 = vpop.f32.mrb[0].mxu0
      %v3934 = vpop.f32.mrb[0].mxu0
      %v3935 = vadd.f32 0.0, %v3934
      %v3936 = vpop.f32.mrb[0].mxu0
      %3937 = vmatprep.mubr.bf16.mxu0 %v3630
      %3938 = vmatmul.mubr.bf16.gmra.mrb[0].mxu0 %v3628
      %v3939 = vpop.f32.mrb[0].mxu0
      %v3940 = vadd.f32 0.0, %v3939
      %v3941 = vpop.f32.mrb[0].mxu0
      %v3942 = vpop.f32.mrb[0].mxu0
      %v3943 = vadd.f32 0.0, %v3942
      %v3944 = vpop.f32.mrb[0].mxu0
      %3945 = vmatprep.mubr.bf16.mxu0 %v3634
      %3946 = vmatmul.mubr.bf16.gmra.mrb[0].mxu0 %v3632
      %v3947 = vpop.f32.mrb[0].mxu0
      %v3948 = vadd.f32 0.0, %v3947
      %v3949 = vpop.f32.mrb[0].mxu0
      %v3950 = vpop.f32.mrb[0].mxu0
      %v3951 = vadd.f32 0.0, %v3950
      %v3952 = vpop.f32.mrb[0].mxu0
      %3953 = vmatprep.mubr.bf16.mxu0 %v3638
      %3954 = vmatmul.mubr.bf16.gmra.mrb[0].mxu0 %v3636
      %v3955 = vpop.f32.mrb[0].mxu0
      %v3956 = vadd.f32 0.0, %v3955
      %v3957 = vpop.f32.mrb[0].mxu0
      %v3958 = vpop.f32.mrb[0].mxu0
      %v3959 = vadd.f32 0.0, %v3958
      %v3960 = vpop.f32.mrb[0].mxu0
      %3961 = vmatprep.mubr.bf16.mxu0 %v3642
      %3962 = vmatmul.mubr.bf16.gmra.mrb[0].mxu0 %v3640
      %v3963 = vpop.f32.mrb[0].mxu0
      %v3964 = vadd.f32 0.0, %v3963
      %v3965 = vpop.f32.mrb[0].mxu0
      %v3966 = vpop.f32.mrb[0].mxu0
      %v3967 = vadd.f32 0.0, %v3966
      %v3968 = vpop.f32.mrb[0].mxu0
      %3969 = vmatprep.mubr.bf16.mxu0 %v3646
      %3970 = vmatmul.mubr.bf16.gmra.mrb[0].mxu0 %v3644
      %v3971 = vpop.f32.mrb[0].mxu0
      %v3972 = vadd.f32 0.0, %v3971
      %v3973 = vpop.f32.mrb[0].mxu0
      %v3974 = vpop.f32.mrb[0].mxu0
      %v3975 = vadd.f32 0.0, %v3974
      %v3976 = vpop.f32.mrb[0].mxu0
      %3977 = vmatprep.mubr.bf16.mxu0 %v3650
      %3978 = vmatmul.mubr.bf16.gmra.mrb[0].mxu0 %v3648
      %v3979 = vpop.f32.mrb[0].mxu0
      %v3980 = vadd.f32 0.0, %v3979
      %v3981 = vpop.f32.mrb[0].mxu0
      %v3982 = vpop.f32.mrb[0].mxu0
      %v3983 = vadd.f32 0.0, %v3982
      %v3984 = vpop.f32.mrb[0].mxu0
      %3985 = vmatprep.mubr.bf16.mxu0 %v3654
      %3986 = vmatmul.mubr.bf16.gmra.mrb[0].mxu0 %v3652
      %v3987 = vpop.f32.mrb[0].mxu0
      %v3988 = vadd.f32 0.0, %v3987
      %v3989 = vpop.f32.mrb[0].mxu0
      %v3990 = vpop.f32.mrb[0].mxu0
      %v3991 = vadd.f32 0.0, %v3990
      %v3992 = vpop.f32.mrb[0].mxu0
      %3993 = vmatprep.mubr.bf16.mxu0 %v3658
      %3994 = vmatmul.mubr.bf16.gmra.mrb[0].mxu0 %v3656
      %v3995 = vpop.f32.mrb[0].mxu0
      %v3996 = vadd.f32 0.0, %v3995
      %v3997 = vpop.f32.mrb[0].mxu0
      %v3998 = vpop.f32.mrb[0].mxu0
      %v3999 = vadd.f32 0.0, %v3998
      %v4000 = vpop.f32.mrb[0].mxu0
      %4001 = vmatprep.mubr.bf16.mxu0 %v3662
      %4002 = vmatmul.mubr.bf16.gmra.mrb[0].mxu0 %v3660
      %v4003 = vpop.f32.mrb[0].mxu0
      %v4004 = vadd.f32 0.0, %v4003
      %v4005 = vpop.f32.mrb[0].mxu0
      %v4006 = vpop.f32.mrb[0].mxu0
      %v4007 = vadd.f32 0.0, %v4006
      %v4008 = vpop.f32.mrb[0].mxu0
      %4009 = vmatprep.mubr.bf16.mxu0 %v3666
      %4010 = vmatmul.mubr.bf16.gmra.mrb[0].mxu0 %v3664
      %v4011 = vpop.f32.mrb[0].mxu0
      %v4012 = vadd.f32 0.0, %v4011
      %v4013 = vpop.f32.mrb[0].mxu0
      %v4014 = vpop.f32.mrb[0].mxu0
      %v4015 = vadd.f32 0.0, %v4014
      %v4016 = vpop.f32.mrb[0].mxu0
      %4017 = vmatprep.mubr.bf16.mxu0 %v3670
      %4018 = vmatmul.mubr.bf16.gmra.mrb[0].mxu0 %v3668
      %v4019 = vpop.f32.mrb[0].mxu0
      %v4020 = vadd.f32 0.0, %v4019
      %v4021 = vpop.f32.mrb[0].mxu0
      %v4022 = vpop.f32.mrb[0].mxu0
      %v4023 = vadd.f32 0.0, %v4022
      %v4024 = vpop.f32.mrb[0].mxu0
      %4025 = vmatprep.mubr.bf16.mxu0 %v3674
      %4026 = vmatmul.mubr.bf16.gmra.mrb[0].mxu0 %v3672
      %v4027 = vpop.f32.mrb[0].mxu0
      %v4028 = vadd.f32 0.0, %v4027
      %v4029 = vpop.f32.mrb[0].mxu0
      %v4030 = vpop.f32.mrb[0].mxu0
      %v4031 = vadd.f32 0.0, %v4030
      %v4032 = vpop.f32.mrb[0].mxu0
      %4033 = vmatprep.mubr.bf16.mxu0 %v3678
      %4034 = vmatmul.mubr.bf16.gmra.mrb[0].mxu0 %v3676
      %v4035 = vpop.f32.mrb[0].mxu0
      %v4036 = vadd.f32 0.0, %v4035
      %v4037 = vpop.f32.mrb[0].mxu0
      %v4038 = vpop.f32.mrb[0].mxu0
      %v4039 = vadd.f32 0.0, %v4038
      %v4040 = vpop.f32.mrb[0].mxu0
      %4041 = vmatprep.mubr.bf16.mxu0 %v3682
      %4042 = vmatmul.mubr.bf16.gmra.mrb[0].mxu0 %v3680
      %v4043 = vpop.f32.mrb[0].mxu0
      %v4044 = vadd.f32 0.0, %v4043
      %v4045 = vpop.f32.mrb[0].mxu0
      %v4046 = vpop.f32.mrb[0].mxu0
      %v4047 = vadd.f32 0.0, %v4046
      %v4048 = vpop.f32.mrb[0].mxu0
      %4049 = vmatprep.mubr.bf16.mxu0 %v3686
      %4050 = vmatmul.mubr.bf16.gmra.mrb[0].mxu0 %v3684
      %v4051 = vpop.f32.mrb[0].mxu0
      %v4052 = vadd.f32 0.0, %v4051
      %v4053 = vpop.f32.mrb[0].mxu0
      %v4054 = vpop.f32.mrb[0].mxu0
      %v4055 = vadd.f32 0.0, %v4054
      %v4056 = vpop.f32.mrb[0].mxu0
      %4057 = vmatprep.mubr.bf16.mxu0 %v3690
      %4058 = vmatmul.mubr.bf16.gmra.mrb[0].mxu0 %v3688
      %v4059 = vpop.f32.mrb[0].mxu0
      %v4060 = vadd.f32 0.0, %v4059
      %v4061 = vpop.f32.mrb[0].mxu0
      %v4062 = vpop.f32.mrb[0].mxu0
      %v4063 = vadd.f32 0.0, %v4062
      %v4064 = vpop.f32.mrb[0].mxu0
      %4065 = vmatprep.mubr.bf16.mxu0 %v3694
      %4066 = vmatmul.mubr.bf16.gmra.mrb[0].mxu0 %v3692
      %v4067 = vpop.f32.mrb[0].mxu0
      %v4068 = vadd.f32 0.0, %v4067
      %v4069 = vpop.f32.mrb[0].mxu0
      %v4070 = vpop.f32.mrb[0].mxu0
      %v4071 = vadd.f32 0.0, %v4070
      %v4072 = vpop.f32.mrb[0].mxu0
      %4073 = vmatprep.mubr.bf16.mxu0 %v3698
      %4074 = vmatmul.mubr.bf16.gmra.mrb[0].mxu0 %v3696
      %v4075 = vpop.f32.mrb[0].mxu0
      %v4076 = vadd.f32 0.0, %v4075
      %v4077 = vpop.f32.mrb[0].mxu0
      %v4078 = vpop.f32.mrb[0].mxu0
      %v4079 = vadd.f32 0.0, %v4078
      %v4080 = vpop.f32.mrb[0].mxu0
      %4081 = vmatprep.mubr.bf16.mxu0 %v3702
      %4082 = vmatmul.mubr.bf16.gmra.mrb[0].mxu0 %v3700
      %v4083 = vpop.f32.mrb[0].mxu0
      %v4084 = vadd.f32 0.0, %v4083
      %v4085 = vpop.f32.mrb[0].mxu0
      %v4086 = vpop.f32.mrb[0].mxu0
      %v4087 = vadd.f32 0.0, %v4086
      %v4088 = vpop.f32.mrb[0].mxu0
      %4089 = vmatprep.mubr.bf16.mxu0 %v3706
      %4090 = vmatmul.mubr.bf16.gmra.mrb[0].mxu0 %v3704
      %v4091 = vpop.f32.mrb[0].mxu0
      %v4092 = vadd.f32 0.0, %v4091
      %v4093 = vpop.f32.mrb[0].mxu0
      %v4094 = vpop.f32.mrb[0].mxu0
      %v4095 = vadd.f32 0.0, %v4094
      %v4096 = vpop.f32.mrb[0].mxu0
      %4097 = vmatprep.mubr.bf16.mxu0 %v3710
      %4098 = vmatmul.mubr.bf16.gmra.mrb[0].mxu0 %v3708
      %v4099 = vpop.f32.mrb[0].mxu0
      %v4100 = vadd.f32 0.0, %v4099
      %v4101 = vpop.f32.mrb[0].mxu0
      %v4102 = vpop.f32.mrb[0].mxu0
      %v4103 = vadd.f32 0.0, %v4102
      %v4104 = vpop.f32.mrb[0].mxu0
      %4105 = vmatprep.mubr.bf16.mxu0 %v3714
      %4106 = vmatmul.mubr.bf16.gmra.mrb[0].mxu0 %v3712
      %v4107 = vpop.f32.mrb[0].mxu0
      %v4108 = vadd.f32 0.0, %v4107
      %v4109 = vpop.f32.mrb[0].mxu0
      %v4110 = vpop.f32.mrb[0].mxu0
      %v4111 = vadd.f32 0.0, %v4110
      %v4112 = vpop.f32.mrb[0].mxu0
      %4113 = vdwg.mxu0
      %v4114 = vld [vmem:[#allocation2 + $0x18] sm:$0xf8]
      %v4115 = vld [vmem:[#allocation2 + $0x20] sm:$0xff]
      %v4116 = vld [vmem:[#allocation2 + $0x28] sm:$0xff]
      %v4117 = vld [vmem:[#allocation2 + $0x30] sm:$0xff]
      %v4118 = vld [vmem:[#allocation2 + $0x38] sm:$0xff]
      %v4119 = vld [vmem:[#allocation2 + $0x40] sm:$0xff]
      %v4120 = vld [vmem:[#allocation2 + $0x48] sm:$0xff]
      %v4121 = vld [vmem:[#allocation2 + $0x50] sm:$0xff]
      %v4122 = vld [vmem:[#allocation2 + $0x58] sm:$0xff]
      %v4123 = vld [vmem:[#allocation2 + $0x60] sm:$0xff]
      %v4124 = vld [vmem:[#allocation2 + $0x68] sm:$0xff]
      %v4125 = vld [vmem:[#allocation2 + $0x70] sm:$0xff]
      %v4126 = vld [vmem:[#allocation2 + $0x78] sm:$0xff]
      %v4127 = vld [vmem:[#allocation2 + $0x80] sm:$0xff]
      %v4128 = vld [vmem:[#allocation2 + $0x88] sm:$0xff]
      %v4129 = vld [vmem:[#allocation2 + $0x90] sm:$0xff]
      %v4130 = vld [vmem:[#allocation2 + $0x98] sm:$0xff]
      %v4131 = vld [vmem:[#allocation2 + $0xa0] sm:$0xff]
      %v4132 = vld [vmem:[#allocation2 + $0xa8] sm:$0xff]
      %v4133 = vld [vmem:[#allocation2 + $0xb0] sm:$0xff]
      %v4134 = vld [vmem:[#allocation2 + $0xb8] sm:$0xff]
      %v4135 = vld [vmem:[#allocation2 + $0xc0] sm:$0xff]
      %v4136 = vld [vmem:[#allocation2 + $0xc8] sm:$0xff]
      %v4137 = vld [vmem:[#allocation2 + $0xd0] sm:$0xff]
      %v4138 = vld [vmem:[#allocation2 + $0xd8] sm:$0xff]
      %v4139 = vld [vmem:[#allocation2 + $0xe0] sm:$0xff]
      %v4140 = vld [vmem:[#allocation2 + $0xe8] sm:$0xff]
      %v4141 = vld [vmem:[#allocation2 + $0xf0] sm:$0xf]
      %v4142 = vld [vmem:[#allocation2 + $0x18] sm:$0xf0]
      %v4143 = vrot.slane %v2021, 1
      %v4144 = vsel %vm1553, %v1768, %v4143
      %v4145 = vor.u32 %v2018, %v4143
      %v4146 = vrot.slane %v2030, 1
      %v4147 = vsel %vm1553, %v4145, %v4146
      %v4148 = vor.u32 %v2027, %v4146
      %4149 = vrot.lane.b32.xlu0 %v1572, 64
      %v4150 = vpop.permute.xlu0 %4149
      %4151 = vrot.lane.b32.xlu0 %v4144, 64
      %v4152 = vpop.permute.xlu0 %4151
      %4153 = vrot.lane.b32.xlu0 %v4147, 64
      %v4154 = vpop.permute.xlu0 %4153
      %4155 = vrot.lane.b32.xlu0 %v4148, 64
      %v4156 = vpop.permute.xlu0 %4155
      %v4185 = vrot.slane %v4114, 4
      %v4186 = vrot.slane %v4115, 4
      %v4187 = vsel %vm1861, %v4185, %v4186
      %v4188 = vrot.slane %v4116, 4
      %v4189 = vsel %vm1861, %v4186, %v4188
      %v4190 = vrot.slane %v4117, 4
      %v4191 = vsel %vm1861, %v4188, %v4190
      %v4192 = vrot.slane %v4118, 4
      %v4193 = vsel %vm1861, %v4190, %v4192
      %v4194 = vrot.slane %v4119, 4
      %v4195 = vsel %vm1861, %v4192, %v4194
      %v4196 = vrot.slane %v4120, 4
      %v4197 = vsel %vm1861, %v4194, %v4196
      %v4198 = vrot.slane %v4121, 4
      %v4199 = vsel %vm1861, %v4196, %v4198
      %v4200 = vrot.slane %v4122, 4
      %v4201 = vsel %vm1861, %v4198, %v4200
      %v4202 = vrot.slane %v4123, 4
      %v4203 = vsel %vm1861, %v4200, %v4202
      %v4204 = vrot.slane %v4124, 4
      %v4205 = vsel %vm1861, %v4202, %v4204
      %v4206 = vrot.slane %v4125, 4
      %v4207 = vsel %vm1861, %v4204, %v4206
      %v4208 = vrot.slane %v4126, 4
      %v4209 = vsel %vm1861, %v4206, %v4208
      %v4210 = vrot.slane %v4127, 4
      %v4211 = vsel %vm1861, %v4208, %v4210
      %v4212 = vrot.slane %v4128, 4
      %v4213 = vsel %vm1861, %v4210, %v4212
      %v4214 = vrot.slane %v4129, 4
      %v4215 = vsel %vm1861, %v4212, %v4214
      %v4216 = vrot.slane %v4130, 4
      %v4217 = vsel %vm1861, %v4214, %v4216
      %v4218 = vrot.slane %v4131, 4
      %v4219 = vsel %vm1861, %v4216, %v4218
      %v4220 = vrot.slane %v4132, 4
      %v4221 = vsel %vm1861, %v4218, %v4220
      %v4222 = vrot.slane %v4133, 4
      %v4223 = vsel %vm1861, %v4220, %v4222
      %v4224 = vrot.slane %v4134, 4
      %v4225 = vsel %vm1861, %v4222, %v4224
      %v4226 = vrot.slane %v4135, 4
      %v4227 = vsel %vm1861, %v4224, %v4226
      %v4228 = vrot.slane %v4136, 4
      %v4229 = vsel %vm1861, %v4226, %v4228
      %v4230 = vrot.slane %v4137, 4
      %v4231 = vsel %vm1861, %v4228, %v4230
      %v4232 = vrot.slane %v4138, 4
      %v4233 = vsel %vm1861, %v4230, %v4232
      %v4234 = vrot.slane %v4139, 4
      %v4235 = vsel %vm1861, %v4232, %v4234
      %v4236 = vrot.slane %v4140, 4
      %v4237 = vsel %vm1861, %v4234, %v4236
      %v4238 = vrot.slane %v4141, 4
      %v4239 = vsel %vm1861, %v4236, %v4238
      %v4241 = vshll.u32 %v4142, 16
      %v4243 = vrot.slane %v4241, 5
      %v4244 = vshrl.u32 %v4142, 16
      %v4246 = vrot.slane %v4244, 4
      %v4247 = vor.u32 %v4246, %v4243
      %v4249 = vshrl.u32 %v4115, 16
      %v4251 = vrot.slane %v4249, 4
      %v4252 = vshll.u32 %v4115, 16
      %v4254 = vrot.slane %v4252, 5
      %v4255 = vor.u32 %v4251, %v4254
      %v4256 = vsel %vm1917, %v4247, %v4255
      %v4258 = vshrl.u32 %v4116, 16
      %v4260 = vrot.slane %v4258, 4
      %v4261 = vshll.u32 %v4116, 16
      %v4263 = vrot.slane %v4261, 5
      %v4264 = vor.u32 %v4260, %v4263
      %v4265 = vsel %vm1917, %v4255, %v4264
      %v4267 = vshrl.u32 %v4117, 16
      %v4269 = vrot.slane %v4267, 4
      %v4270 = vshll.u32 %v4117, 16
      %v4272 = vrot.slane %v4270, 5
      %v4273 = vor.u32 %v4269, %v4272
      %v4274 = vsel %vm1917, %v4264, %v4273
      %v4276 = vshrl.u32 %v4118, 16
      %v4278 = vrot.slane %v4276, 4
      %v4279 = vshll.u32 %v4118, 16
      %v4281 = vrot.slane %v4279, 5
      %v4282 = vor.u32 %v4278, %v4281
      %v4283 = vsel %vm1917, %v4273, %v4282
      %v4285 = vshrl.u32 %v4119, 16
      %v4287 = vrot.slane %v4285, 4
      %v4288 = vshll.u32 %v4119, 16
      %v4290 = vrot.slane %v4288, 5
      %v4291 = vor.u32 %v4287, %v4290
      %v4292 = vsel %vm1917, %v4282, %v4291
      %v4294 = vshrl.u32 %v4120, 16
      %v4296 = vrot.slane %v4294, 4
      %v4297 = vshll.u32 %v4120, 16
      %v4299 = vrot.slane %v4297, 5
      %v4300 = vor.u32 %v4296, %v4299
      %v4301 = vsel %vm1917, %v4291, %v4300
      %v4303 = vshrl.u32 %v4121, 16
      %v4305 = vrot.slane %v4303, 4
      %v4306 = vshll.u32 %v4121, 16
      %v4308 = vrot.slane %v4306, 5
      %v4309 = vor.u32 %v4305, %v4308
      %v4310 = vsel %vm1917, %v4300, %v4309
      %v4312 = vshrl.u32 %v4122, 16
      %v4314 = vrot.slane %v4312, 4
      %v4315 = vshll.u32 %v4122, 16
      %v4317 = vrot.slane %v4315, 5
      %v4318 = vor.u32 %v4314, %v4317
      %v4319 = vsel %vm1917, %v4309, %v4318
      %v4321 = vshrl.u32 %v4123, 16
      %v4323 = vrot.slane %v4321, 4
      %v4324 = vshll.u32 %v4123, 16
      %v4326 = vrot.slane %v4324, 5
      %v4327 = vor.u32 %v4323, %v4326
      %v4328 = vsel %vm1917, %v4318, %v4327
      %v4330 = vshrl.u32 %v4124, 16
      %v4332 = vrot.slane %v4330, 4
      %v4333 = vshll.u32 %v4124, 16
      %v4335 = vrot.slane %v4333, 5
      %v4336 = vor.u32 %v4332, %v4335
      %v4337 = vsel %vm1917, %v4327, %v4336
      %v4339 = vshrl.u32 %v4125, 16
      %v4341 = vrot.slane %v4339, 4
      %v4342 = vshll.u32 %v4125, 16
      %v4344 = vrot.slane %v4342, 5
      %v4345 = vor.u32 %v4341, %v4344
      %v4346 = vsel %vm1917, %v4336, %v4345
      %v4348 = vshrl.u32 %v4126, 16
      %v4350 = vrot.slane %v4348, 4
      %v4351 = vshll.u32 %v4126, 16
      %v4353 = vrot.slane %v4351, 5
      %v4354 = vor.u32 %v4350, %v4353
      %v4355 = vsel %vm1917, %v4345, %v4354
      %v4357 = vshrl.u32 %v4127, 16
      %v4359 = vrot.slane %v4357, 4
      %v4360 = vshll.u32 %v4127, 16
      %v4362 = vrot.slane %v4360, 5
      %v4363 = vor.u32 %v4359, %v4362
      %v4364 = vsel %vm1917, %v4354, %v4363
      %v4366 = vshrl.u32 %v4128, 16
      %v4368 = vrot.slane %v4366, 4
      %v4369 = vshll.u32 %v4128, 16
      %v4371 = vrot.slane %v4369, 5
      %v4372 = vor.u32 %v4368, %v4371
      %v4373 = vsel %vm1917, %v4363, %v4372
      %v4375 = vshrl.u32 %v4129, 16
      %v4377 = vrot.slane %v4375, 4
      %v4378 = vshll.u32 %v4129, 16
      %v4380 = vrot.slane %v4378, 5
      %v4381 = vor.u32 %v4377, %v4380
      %v4382 = vsel %vm1917, %v4372, %v4381
      %v4384 = vshrl.u32 %v4130, 16
      %v4386 = vrot.slane %v4384, 4
      %v4387 = vshll.u32 %v4130, 16
      %v4389 = vrot.slane %v4387, 5
      %v4390 = vor.u32 %v4386, %v4389
      %v4391 = vsel %vm1917, %v4381, %v4390
      %v4393 = vshrl.u32 %v4131, 16
      %v4395 = vrot.slane %v4393, 4
      %v4396 = vshll.u32 %v4131, 16
      %v4398 = vrot.slane %v4396, 5
      %v4399 = vor.u32 %v4395, %v4398
      %v4400 = vsel %vm1917, %v4390, %v4399
      %v4402 = vshrl.u32 %v4132, 16
      %v4404 = vrot.slane %v4402, 4
      %v4405 = vshll.u32 %v4132, 16
      %v4407 = vrot.slane %v4405, 5
      %v4408 = vor.u32 %v4404, %v4407
      %v4409 = vsel %vm1917, %v4399, %v4408
      %v4411 = vshrl.u32 %v4133, 16
      %v4413 = vrot.slane %v4411, 4
      %v4414 = vshll.u32 %v4133, 16
      %v4416 = vrot.slane %v4414, 5
      %v4417 = vor.u32 %v4413, %v4416
      %v4418 = vsel %vm1917, %v4408, %v4417
      %v4420 = vshrl.u32 %v4134, 16
      %v4422 = vrot.slane %v4420, 4
      %v4423 = vshll.u32 %v4134, 16
      %v4425 = vrot.slane %v4423, 5
      %v4426 = vor.u32 %v4422, %v4425
      %v4427 = vsel %vm1917, %v4417, %v4426
      %v4429 = vshrl.u32 %v4135, 16
      %v4431 = vrot.slane %v4429, 4
      %v4432 = vshll.u32 %v4135, 16
      %v4434 = vrot.slane %v4432, 5
      %v4435 = vor.u32 %v4431, %v4434
      %v4436 = vsel %vm1917, %v4426, %v4435
      %v4438 = vshrl.u32 %v4136, 16
      %v4440 = vrot.slane %v4438, 4
      %v4441 = vshll.u32 %v4136, 16
      %v4443 = vrot.slane %v4441, 5
      %v4444 = vor.u32 %v4440, %v4443
      %v4445 = vsel %vm1917, %v4435, %v4444
      %v4447 = vshrl.u32 %v4137, 16
      %v4449 = vrot.slane %v4447, 4
      %v4450 = vshll.u32 %v4137, 16
      %v4452 = vrot.slane %v4450, 5
      %v4453 = vor.u32 %v4449, %v4452
      %v4454 = vsel %vm1917, %v4444, %v4453
      %v4456 = vshrl.u32 %v4138, 16
      %v4458 = vrot.slane %v4456, 4
      %v4459 = vshll.u32 %v4138, 16
      %v4461 = vrot.slane %v4459, 5
      %v4462 = vor.u32 %v4458, %v4461
      %v4463 = vsel %vm1917, %v4453, %v4462
      %v4465 = vshrl.u32 %v4139, 16
      %v4467 = vrot.slane %v4465, 4
      %v4468 = vshll.u32 %v4139, 16
      %v4470 = vrot.slane %v4468, 5
      %v4471 = vor.u32 %v4467, %v4470
      %v4472 = vsel %vm1917, %v4462, %v4471
      %v4474 = vshrl.u32 %v4140, 16
      %v4476 = vrot.slane %v4474, 4
      %v4477 = vshll.u32 %v4140, 16
      %v4479 = vrot.slane %v4477, 5
      %v4480 = vor.u32 %v4476, %v4479
      %v4481 = vsel %vm1917, %v4471, %v4480
      %v4483 = vshrl.u32 %v4141, 16
      %v4485 = vrot.slane %v4483, 4
      %v4486 = vshll.u32 %v4141, 16
      %v4488 = vrot.slane %v4486, 5
      %v4489 = vor.u32 %v4485, %v4488
      %v4490 = vsel %vm1917, %v4480, %v4489
      %4491 = vrot.lane.b32.xlu0 %v4243, 64
      %v4492 = vpop.permute.xlu0 %4491
      %4493 = vrot.lane.b32.xlu0 %v4256, 64
      %v4494 = vpop.permute.xlu0 %4493
      %4495 = vrot.lane.b32.xlu0 %v4265, 64
      %v4496 = vpop.permute.xlu0 %4495
      %4497 = vrot.lane.b32.xlu0 %v4274, 64
      %v4498 = vpop.permute.xlu0 %4497
      %4499 = vrot.lane.b32.xlu0 %v4283, 64
      %v4500 = vpop.permute.xlu0 %4499
      %4501 = vrot.lane.b32.xlu0 %v4292, 64
      %v4502 = vpop.permute.xlu0 %4501
      %4503 = vrot.lane.b32.xlu0 %v4301, 64
      %v4504 = vpop.permute.xlu0 %4503
      %4505 = vrot.lane.b32.xlu0 %v4310, 64
      %v4506 = vpop.permute.xlu0 %4505
      %4507 = vrot.lane.b32.xlu0 %v4319, 64
      %v4508 = vpop.permute.xlu0 %4507
      %4509 = vrot.lane.b32.xlu0 %v4328, 64
      %v4510 = vpop.permute.xlu0 %4509
      %4511 = vrot.lane.b32.xlu0 %v4337, 64
      %v4512 = vpop.permute.xlu0 %4511
      %4513 = vrot.lane.b32.xlu0 %v4346, 64
      %v4514 = vpop.permute.xlu0 %4513
      %4515 = vrot.lane.b32.xlu0 %v4355, 64
      %v4516 = vpop.permute.xlu0 %4515
      %4517 = vrot.lane.b32.xlu0 %v4364, 64
      %v4518 = vpop.permute.xlu0 %4517
      %4519 = vrot.lane.b32.xlu0 %v4373, 64
      %v4520 = vpop.permute.xlu0 %4519
      %4521 = vrot.lane.b32.xlu0 %v4382, 64
      %v4522 = vpop.permute.xlu0 %4521
      %4523 = vrot.lane.b32.xlu0 %v4391, 64
      %v4524 = vpop.permute.xlu0 %4523
      %4525 = vrot.lane.b32.xlu0 %v4400, 64
      %v4526 = vpop.permute.xlu0 %4525
      %4527 = vrot.lane.b32.xlu0 %v4409, 64
      %v4528 = vpop.permute.xlu0 %4527
      %4529 = vrot.lane.b32.xlu0 %v4418, 64
      %v4530 = vpop.permute.xlu0 %4529
      %4531 = vrot.lane.b32.xlu0 %v4427, 64
      %v4532 = vpop.permute.xlu0 %4531
      %4533 = vrot.lane.b32.xlu0 %v4436, 64
      %v4534 = vpop.permute.xlu0 %4533
      %4535 = vrot.lane.b32.xlu0 %v4445, 64
      %v4536 = vpop.permute.xlu0 %4535
      %4537 = vrot.lane.b32.xlu0 %v4454, 64
      %v4538 = vpop.permute.xlu0 %4537
      %4539 = vrot.lane.b32.xlu0 %v4463, 64
      %v4540 = vpop.permute.xlu0 %4539
      %4541 = vrot.lane.b32.xlu0 %v4472, 64
      %v4542 = vpop.permute.xlu0 %4541
      %4543 = vrot.lane.b32.xlu0 %v4481, 64
      %v4544 = vpop.permute.xlu0 %4543
      %4545 = vrot.lane.b32.xlu0 %v4490, 64
      %v4546 = vpop.permute.xlu0 %4545
      %v4549 = vsel %vm425, %v1550, %v4150
      %v4551 = vsel %vm425, %v1547, %v4152
      %v4553 = vsel %vm425, %v1551, %v4154
      %v4555 = vsel %vm425, %v1552, %v4156
      %v4558 = vsel %vm425, %v4185, %v4492
      %v4561 = vsel %vm425, %v4187, %v4494
      %v4564 = vsel %vm425, %v4189, %v4496
      %v4567 = vsel %vm425, %v4191, %v4498
      %v4570 = vsel %vm425, %v4193, %v4500
      %v4573 = vsel %vm425, %v4195, %v4502
      %v4576 = vsel %vm425, %v4197, %v4504
      %v4579 = vsel %vm425, %v4199, %v4506
      %v4582 = vsel %vm425, %v4201, %v4508
      %v4585 = vsel %vm425, %v4203, %v4510
      %v4588 = vsel %vm425, %v4205, %v4512
      %v4591 = vsel %vm425, %v4207, %v4514
      %v4594 = vsel %vm425, %v4209, %v4516
      %v4597 = vsel %vm425, %v4211, %v4518
      %v4600 = vsel %vm425, %v4213, %v4520
      %v4603 = vsel %vm425, %v4215, %v4522
      %v4606 = vsel %vm425, %v4217, %v4524
      %v4609 = vsel %vm425, %v4219, %v4526
      %v4612 = vsel %vm425, %v4221, %v4528
      %v4615 = vsel %vm425, %v4223, %v4530
      %v4618 = vsel %vm425, %v4225, %v4532
      %v4621 = vsel %vm425, %v4227, %v4534
      %v4624 = vsel %vm425, %v4229, %v4536
      %v4627 = vsel %vm425, %v4231, %v4538
      %v4630 = vsel %vm425, %v4233, %v4540
      %v4633 = vsel %vm425, %v4235, %v4542
      %v4636 = vsel %vm425, %v4237, %v4544
      %v4639 = vsel %vm425, %v4239, %v4546
      %s4640 = scalar_lea.vmem %s5, 256
      %v4641 = vld [vmem:[%s4640] sm:$0xf]
      %v4642 = vld [vmem:[%s4640 + $0x4] sm:$0xf]
      %v4643 = vld [vmem:[%s4640 + $0x8] sm:$0xf]
      %v4644 = vld [vmem:[%s4640 + $0xc] sm:$0xf]
      %v4645 = vld [vmem:[%s4640 + $0x10] sm:$0xf]
      %v4646 = vld [vmem:[%s4640 + $0x14] sm:$0xf]
      %v4647 = vld [vmem:[%s4640 + $0x18] sm:$0xf]
      %v4648 = vld [vmem:[%s4640 + $0x1c] sm:$0xf]
      %v4649 = vld [vmem:[%s4640 + $0x20] sm:$0xf]
      %v4650 = vld [vmem:[%s4640 + $0x24] sm:$0xf]
      %v4651 = vld [vmem:[%s4640 + $0x28] sm:$0xf]
      %v4652 = vld [vmem:[%s4640 + $0x2c] sm:$0xf]
      %v4653 = vld [vmem:[%s4640 + $0x30] sm:$0xf]
      %v4654 = vld [vmem:[%s4640 + $0x34] sm:$0xf]
      %v4655 = vld [vmem:[%s4640 + $0x38] sm:$0xf]
      %v4656 = vld [vmem:[%s4640 + $0x3c] sm:$0xf]
      %v4657 = vld [vmem:[%s4640 + $0x40] sm:$0xf]
      %v4658 = vld [vmem:[%s4640 + $0x44] sm:$0xf]
      %v4659 = vld [vmem:[%s4640 + $0x48] sm:$0xf]
      %v4660 = vld [vmem:[%s4640 + $0x4c] sm:$0xf]
      %v4661 = vld [vmem:[%s4640 + $0x50] sm:$0xf]
      %v4662 = vld [vmem:[%s4640 + $0x54] sm:$0xf]
      %v4663 = vld [vmem:[%s4640 + $0x58] sm:$0xf]
      %v4664 = vld [vmem:[%s4640 + $0x5c] sm:$0xf]
      %v4665 = vld [vmem:[%s4640 + $0x60] sm:$0xf]
      %v4666 = vld [vmem:[%s4640 + $0x64] sm:$0xf]
      %v4667 = vld [vmem:[%s4640 + $0x68] sm:$0xf]
      %v4668 = vld [vmem:[%s4640 + $0x6c] sm:$0xf]
      %v4669 = vld [vmem:[%s4640 + $0x70] sm:$0xf]
      %v4670 = vld [vmem:[%s4640 + $0x74] sm:$0xf]
      %v4671 = vld [vmem:[%s4640 + $0x78] sm:$0xf]
      %v4672 = vld [vmem:[%s4640 + $0x7c] sm:$0xf]
      %vm4673 = vsmask.f32 256
      %v4674 = vshrl.u32 %v4549, 16
      %v4676 = vrot.slane %v4674, 7
      %v4677 = vrot.slane %v2295, 7
      %v4678 = vor.u32 %v4677, %v2298
      %v4679 = vsel %vm4673, %v4676, %v4678
      %v4680 = vshrl.u32 %v4558, 16
      %v4682 = vrot.slane %v4680, 7
      %v4683 = vshrl.u32 %v4561, 16
      %v4685 = vrot.slane %v4683, 7
      %v4686 = vshll.u32 %v4561, 16
      %v4688 = vor.u32 %v4685, %v4686
      %v4689 = vsel %vm4673, %v4682, %v4688
      %v4690 = vrot.slane %v2311, 7
      %v4691 = vor.u32 %v4690, %v2314
      %v4692 = vsel %vm4673, %v4677, %v4691
      %v4693 = vshrl.u32 %v4564, 16
      %v4695 = vrot.slane %v4693, 7
      %v4696 = vshll.u32 %v4564, 16
      %v4698 = vor.u32 %v4695, %v4696
      %v4699 = vsel %vm4673, %v4685, %v4698
      %v4700 = vrot.slane %v2327, 7
      %v4701 = vor.u32 %v4700, %v2330
      %v4702 = vsel %vm4673, %v4690, %v4701
      %v4703 = vshrl.u32 %v4567, 16
      %v4705 = vrot.slane %v4703, 7
      %v4706 = vshll.u32 %v4567, 16
      %v4708 = vor.u32 %v4705, %v4706
      %v4709 = vsel %vm4673, %v4695, %v4708
      %v4710 = vrot.slane %v2343, 7
      %v4711 = vor.u32 %v4710, %v2346
      %v4712 = vsel %vm4673, %v4700, %v4711
      %v4713 = vshrl.u32 %v4570, 16
      %v4715 = vrot.slane %v4713, 7
      %v4716 = vshll.u32 %v4570, 16
      %v4718 = vor.u32 %v4715, %v4716
      %v4719 = vsel %vm4673, %v4705, %v4718
      %v4720 = vrot.slane %v2359, 7
      %v4721 = vor.u32 %v4720, %v2362
      %v4722 = vsel %vm4673, %v4710, %v4721
      %v4723 = vshrl.u32 %v4573, 16
      %v4725 = vrot.slane %v4723, 7
      %v4726 = vshll.u32 %v4573, 16
      %v4728 = vor.u32 %v4725, %v4726
      %v4729 = vsel %vm4673, %v4715, %v4728
      %v4730 = vrot.slane %v2375, 7
      %v4731 = vor.u32 %v4730, %v2378
      %v4732 = vsel %vm4673, %v4720, %v4731
      %v4733 = vshrl.u32 %v4576, 16
      %v4735 = vrot.slane %v4733, 7
      %v4736 = vshll.u32 %v4576, 16
      %v4738 = vor.u32 %v4735, %v4736
      %v4739 = vsel %vm4673, %v4725, %v4738
      %v4740 = vrot.slane %v2391, 7
      %v4741 = vor.u32 %v4740, %v2394
      %v4742 = vsel %vm4673, %v4730, %v4741
      %v4743 = vshrl.u32 %v4579, 16
      %v4745 = vrot.slane %v4743, 7
      %v4746 = vshll.u32 %v4579, 16
      %v4748 = vor.u32 %v4745, %v4746
      %v4749 = vsel %vm4673, %v4735, %v4748
      %v4750 = vrot.slane %v2407, 7
      %v4751 = vor.u32 %v4750, %v2410
      %v4752 = vsel %vm4673, %v4740, %v4751
      %v4753 = vshrl.u32 %v4582, 16
      %v4755 = vrot.slane %v4753, 7
      %v4756 = vshll.u32 %v4582, 16
      %v4758 = vor.u32 %v4755, %v4756
      %v4759 = vsel %vm4673, %v4745, %v4758
      %v4760 = vrot.slane %v2423, 7
      %v4761 = vor.u32 %v4760, %v2426
      %v4762 = vsel %vm4673, %v4750, %v4761
      %v4763 = vshrl.u32 %v4585, 16
      %v4765 = vrot.slane %v4763, 7
      %v4766 = vshll.u32 %v4585, 16
      %v4768 = vor.u32 %v4765, %v4766
      %v4769 = vsel %vm4673, %v4755, %v4768
      %v4770 = vrot.slane %v2439, 7
      %v4771 = vor.u32 %v4770, %v2442
      %v4772 = vsel %vm4673, %v4760, %v4771
      %v4773 = vshrl.u32 %v4588, 16
      %v4775 = vrot.slane %v4773, 7
      %v4776 = vshll.u32 %v4588, 16
      %v4778 = vor.u32 %v4775, %v4776
      %v4779 = vsel %vm4673, %v4765, %v4778
      %v4780 = vrot.slane %v2455, 7
      %v4781 = vor.u32 %v4780, %v2458
      %v4782 = vsel %vm4673, %v4770, %v4781
      %v4783 = vshrl.u32 %v4591, 16
      %v4785 = vrot.slane %v4783, 7
      %v4786 = vshll.u32 %v4591, 16
      %v4788 = vor.u32 %v4785, %v4786
      %v4789 = vsel %vm4673, %v4775, %v4788
      %v4790 = vrot.slane %v2471, 7
      %v4791 = vor.u32 %v4790, %v2474
      %v4792 = vsel %vm4673, %v4780, %v4791
      %v4793 = vshrl.u32 %v4594, 16
      %v4795 = vrot.slane %v4793, 7
      %v4796 = vshll.u32 %v4594, 16
      %v4798 = vor.u32 %v4795, %v4796
      %v4799 = vsel %vm4673, %v4785, %v4798
      %v4800 = vrot.slane %v2487, 7
      %v4801 = vor.u32 %v4800, %v2490
      %v4802 = vsel %vm4673, %v4790, %v4801
      %v4803 = vshrl.u32 %v4597, 16
      %v4805 = vrot.slane %v4803, 7
      %v4806 = vshll.u32 %v4597, 16
      %v4808 = vor.u32 %v4805, %v4806
      %v4809 = vsel %vm4673, %v4795, %v4808
      %v4810 = vrot.slane %v2503, 7
      %v4811 = vor.u32 %v4810, %v2506
      %v4812 = vsel %vm4673, %v4800, %v4811
      %v4813 = vshrl.u32 %v4600, 16
      %v4815 = vrot.slane %v4813, 7
      %v4816 = vshll.u32 %v4600, 16
      %v4818 = vor.u32 %v4815, %v4816
      %v4819 = vsel %vm4673, %v4805, %v4818
      %v4820 = vrot.slane %v2519, 7
      %v4821 = vor.u32 %v4820, %v2522
      %v4822 = vsel %vm4673, %v4810, %v4821
      %v4823 = vshrl.u32 %v4603, 16
      %v4825 = vrot.slane %v4823, 7
      %v4826 = vshll.u32 %v4603, 16
      %v4828 = vor.u32 %v4825, %v4826
      %v4829 = vsel %vm4673, %v4815, %v4828
      %v4830 = vrot.slane %v2535, 7
      %v4831 = vor.u32 %v4830, %v2538
      %v4832 = vsel %vm4673, %v4820, %v4831
      %v4833 = vshrl.u32 %v4606, 16
      %v4835 = vrot.slane %v4833, 7
      %v4836 = vshll.u32 %v4606, 16
      %v4838 = vor.u32 %v4835, %v4836
      %v4839 = vsel %vm4673, %v4825, %v4838
      %v4840 = vrot.slane %v2551, 7
      %v4841 = vor.u32 %v4840, %v2554
      %v4842 = vsel %vm4673, %v4830, %v4841
      %v4843 = vshrl.u32 %v4609, 16
      %v4845 = vrot.slane %v4843, 7
      %v4846 = vshll.u32 %v4609, 16
      %v4848 = vor.u32 %v4845, %v4846
      %v4849 = vsel %vm4673, %v4835, %v4848
      %v4850 = vrot.slane %v2567, 7
      %v4851 = vor.u32 %v4850, %v2570
      %v4852 = vsel %vm4673, %v4840, %v4851
      %v4853 = vshrl.u32 %v4612, 16
      %v4855 = vrot.slane %v4853, 7
      %v4856 = vshll.u32 %v4612, 16
      %v4858 = vor.u32 %v4855, %v4856
      %v4859 = vsel %vm4673, %v4845, %v4858
      %v4860 = vrot.slane %v2583, 7
      %v4861 = vor.u32 %v4860, %v2586
      %v4862 = vsel %vm4673, %v4850, %v4861
      %v4863 = vshrl.u32 %v4615, 16
      %v4865 = vrot.slane %v4863, 7
      %v4866 = vshll.u32 %v4615, 16
      %v4868 = vor.u32 %v4865, %v4866
      %v4869 = vsel %vm4673, %v4855, %v4868
      %v4870 = vrot.slane %v2599, 7
      %v4871 = vor.u32 %v4870, %v2602
      %v4872 = vsel %vm4673, %v4860, %v4871
      %v4873 = vshrl.u32 %v4618, 16
      %v4875 = vrot.slane %v4873, 7
      %v4876 = vshll.u32 %v4618, 16
      %v4878 = vor.u32 %v4875, %v4876
      %v4879 = vsel %vm4673, %v4865, %v4878
      %v4880 = vrot.slane %v2615, 7
      %v4881 = vor.u32 %v4880, %v2618
      %v4882 = vsel %vm4673, %v4870, %v4881
      %v4883 = vshrl.u32 %v4621, 16
      %v4885 = vrot.slane %v4883, 7
      %v4886 = vshll.u32 %v4621, 16
      %v4888 = vor.u32 %v4885, %v4886
      %v4889 = vsel %vm4673, %v4875, %v4888
      %v4890 = vrot.slane %v2631, 7
      %v4891 = vor.u32 %v4890, %v2634
      %v4892 = vsel %vm4673, %v4880, %v4891
      %v4893 = vshrl.u32 %v4624, 16
      %v4895 = vrot.slane %v4893, 7
      %v4896 = vshll.u32 %v4624, 16
      %v4898 = vor.u32 %v4895, %v4896
      %v4899 = vsel %vm4673, %v4885, %v4898
      %v4900 = vrot.slane %v2647, 7
      %v4901 = vor.u32 %v4900, %v2650
      %v4902 = vsel %vm4673, %v4890, %v4901
      %v4903 = vshrl.u32 %v4627, 16
      %v4905 = vrot.slane %v4903, 7
      %v4906 = vshll.u32 %v4627, 16
      %v4908 = vor.u32 %v4905, %v4906
      %v4909 = vsel %vm4673, %v4895, %v4908
      %v4910 = vrot.slane %v2663, 7
      %v4911 = vor.u32 %v4910, %v2666
      %v4912 = vsel %vm4673, %v4900, %v4911
      %v4913 = vshrl.u32 %v4630, 16
      %v4915 = vrot.slane %v4913, 7
      %v4916 = vshll.u32 %v4630, 16
      %v4918 = vor.u32 %v4915, %v4916
      %v4919 = vsel %vm4673, %v4905, %v4918
      %v4920 = vshrl.u32 %v4551, 16
      %v4922 = vrot.slane %v4920, 7
      %v4923 = vshll.u32 %v4551, 16
      %v4925 = vor.u32 %v4922, %v4923
      %v4926 = vsel %vm4673, %v4910, %v4925
      %v4927 = vshrl.u32 %v4633, 16
      %v4929 = vrot.slane %v4927, 7
      %v4930 = vshll.u32 %v4633, 16
      %v4932 = vor.u32 %v4929, %v4930
      %v4933 = vsel %vm4673, %v4915, %v4932
      %v4934 = vshrl.u32 %v4553, 16
      %v4936 = vrot.slane %v4934, 7
      %v4937 = vshll.u32 %v4553, 16
      %v4939 = vor.u32 %v4936, %v4937
      %v4940 = vsel %vm4673, %v4922, %v4939
      %v4941 = vshrl.u32 %v4636, 16
      %v4943 = vrot.slane %v4941, 7
      %v4944 = vshll.u32 %v4636, 16
      %v4946 = vor.u32 %v4943, %v4944
      %v4947 = vsel %vm4673, %v4929, %v4946
      %v4948 = vshrl.u32 %v4555, 16
      %v4950 = vrot.slane %v4948, 7
      %v4951 = vshll.u32 %v4555, 16
      %v4953 = vor.u32 %v4950, %v4951
      %v4954 = vsel %vm4673, %v4936, %v4953
      %v4955 = vshrl.u32 %v4639, 16
      %v4957 = vrot.slane %v4955, 7
      %v4958 = vshll.u32 %v4639, 16
      %v4960 = vor.u32 %v4957, %v4958
      %v4961 = vsel %vm4673, %v4943, %v4960
      %v5048 = vunpack.c.l.b16 %v4641
      %v5049 = vunpack.c.l.b16 %v4642
      %v5050 = vunpack.c.l.b16 %v4643
      %v5051 = vunpack.c.l.b16 %v4644
      %v5052 = vunpack.c.l.b16 %v4645
      %v5053 = vunpack.c.l.b16 %v4646
      %v5054 = vunpack.c.l.b16 %v4647
      %v5055 = vunpack.c.l.b16 %v4648
      %v5056 = vunpack.c.l.b16 %v4649
      %v5057 = vunpack.c.l.b16 %v4650
      %v5058 = vunpack.c.l.b16 %v4651
      %v5059 = vunpack.c.l.b16 %v4652
      %v5060 = vunpack.c.l.b16 %v4653
      %v5061 = vunpack.c.l.b16 %v4654
      %v5062 = vunpack.c.l.b16 %v4655
      %v5063 = vunpack.c.l.b16 %v4656
      %v5064 = vunpack.c.l.b16 %v4657
      %v5065 = vunpack.c.l.b16 %v4658
      %v5066 = vunpack.c.l.b16 %v4659
      %v5067 = vunpack.c.l.b16 %v4660
      %v5068 = vunpack.c.l.b16 %v4661
      %v5069 = vunpack.c.l.b16 %v4662
      %v5070 = vunpack.c.l.b16 %v4663
      %v5071 = vunpack.c.l.b16 %v4664
      %v5072 = vunpack.c.l.b16 %v4665
      %v5073 = vunpack.c.l.b16 %v4666
      %v5074 = vunpack.c.l.b16 %v4667
      %v5075 = vunpack.c.l.b16 %v4668
      %v5076 = vunpack.c.l.b16 %v4669
      %v5077 = vunpack.c.l.b16 %v4670
      %v5078 = vunpack.c.l.b16 %v4671
      %v5079 = vunpack.c.l.b16 %v4672
      %v5080 = vpack.c.b16 %v5049, %v5048
      %v5081 = vpack.c.b16 %v5051, %v5050
      %v5082 = vpack.c.b16 %v5053, %v5052
      %v5083 = vpack.c.b16 %v5055, %v5054
      %v5084 = vpack.c.b16 %v5057, %v5056
      %v5085 = vpack.c.b16 %v5059, %v5058
      %v5086 = vpack.c.b16 %v5061, %v5060
      %v5087 = vpack.c.b16 %v5063, %v5062
      %v5088 = vpack.c.b16 %v5065, %v5064
      %v5089 = vpack.c.b16 %v5067, %v5066
      %v5090 = vpack.c.b16 %v5069, %v5068
      %v5091 = vpack.c.b16 %v5071, %v5070
      %v5092 = vpack.c.b16 %v5073, %v5072
      %v5093 = vpack.c.b16 %v5075, %v5074
      %v5094 = vpack.c.b16 %v5077, %v5076
      %v5095 = vpack.c.b16 %v5079, %v5078
      %5112 = vmatprep.subr.bf16.mxu0 0
      %5113 = vmatpush1.bf16.msra.mxu0 %v5080
      %5114 = vmatprep.subr.bf16.mxu0 0
      %5115 = vmatpush1.bf16.msra.mxu0 %v5081
      %5116 = vmatprep.subr.bf16.mxu0 0
      %5117 = vmatpush1.bf16.msra.mxu0 %v5082
      %5118 = vmatprep.subr.bf16.mxu0 0
      %5119 = vmatpush1.bf16.msra.mxu0 %v5083
      %5120 = vmatprep.subr.bf16.mxu0 0
      %5121 = vmatpush1.bf16.msra.mxu0 %v5084
      %5122 = vmatprep.subr.bf16.mxu0 0
      %5123 = vmatpush1.bf16.msra.mxu0 %v5085
      %5124 = vmatprep.subr.bf16.mxu0 0
      %5125 = vmatpush1.bf16.msra.mxu0 %v5086
      %5126 = vmatprep.subr.bf16.mxu0 0
      %5127 = vmatpush1.bf16.msra.mxu0 %v5087
      %5128 = vmatprep.subr.bf16.mxu0 0
      %5129 = vmatpush1.bf16.msra.mxu0 %v5088
      %5130 = vmatprep.subr.bf16.mxu0 0
      %5131 = vmatpush1.bf16.msra.mxu0 %v5089
      %5132 = vmatprep.subr.bf16.mxu0 0
      %5133 = vmatpush1.bf16.msra.mxu0 %v5090
      %5134 = vmatprep.subr.bf16.mxu0 0
      %5135 = vmatpush1.bf16.msra.mxu0 %v5091
      %5136 = vmatprep.subr.bf16.mxu0 0
      %5137 = vmatpush1.bf16.msra.mxu0 %v5092
      %5138 = vmatprep.subr.bf16.mxu0 0
      %5139 = vmatpush1.bf16.msra.mxu0 %v5093
      %5140 = vmatprep.subr.bf16.mxu0 0
      %5141 = vmatpush1.bf16.msra.mxu0 %v5094
      %5142 = vmatprep.subr.bf16.mxu0 0
      %5143 = vmatpush1.bf16.msra.mxu0 %v5095
      %5144 = vmatprep.mubr.bf16.mxu0 %v4689
      %5145 = vmatmul.mubr.bf16.gmra.mrb[0].mxu0 %v4679
      %v5146 = vpop.f32.mrb[0].mxu0
      %v5147 = vadd.f32 0.0, %v5146
      %v5148 = vpop.f32.mrb[0].mxu0
      %v5149 = vpop.f32.mrb[0].mxu0
      %v5150 = vadd.f32 0.0, %v5149
      %v5151 = vpop.f32.mrb[0].mxu0
      %5152 = vmatprep.mubr.bf16.mxu0 %v4699
      %5153 = vmatmul.mubr.bf16.gmra.mrb[0].mxu0 %v4692
      %v5154 = vpop.f32.mrb[0].mxu0
      %v5155 = vadd.f32 0.0, %v5154
      %v5156 = vpop.f32.mrb[0].mxu0
      %v5157 = vpop.f32.mrb[0].mxu0
      %v5158 = vadd.f32 0.0, %v5157
      %v5159 = vpop.f32.mrb[0].mxu0
      %5160 = vmatprep.mubr.bf16.mxu0 %v4709
      %5161 = vmatmul.mubr.bf16.gmra.mrb[0].mxu0 %v4702
      %v5162 = vpop.f32.mrb[0].mxu0
      %v5163 = vadd.f32 0.0, %v5162
      %v5164 = vpop.f32.mrb[0].mxu0
      %v5165 = vpop.f32.mrb[0].mxu0
      %v5166 = vadd.f32 0.0, %v5165
      %v5167 = vpop.f32.mrb[0].mxu0
      %5168 = vmatprep.mubr.bf16.mxu0 %v4719
      %5169 = vmatmul.mubr.bf16.gmra.mrb[0].mxu0 %v4712
      %v5170 = vpop.f32.mrb[0].mxu0
      %v5171 = vadd.f32 0.0, %v5170
      %v5172 = vpop.f32.mrb[0].mxu0
      %v5173 = vpop.f32.mrb[0].mxu0
      %v5174 = vadd.f32 0.0, %v5173
      %v5175 = vpop.f32.mrb[0].mxu0
      %5176 = vmatprep.mubr.bf16.mxu0 %v4729
      %5177 = vmatmul.mubr.bf16.gmra.mrb[0].mxu0 %v4722
      %v5178 = vpop.f32.mrb[0].mxu0
      %v5179 = vadd.f32 0.0, %v5178
      %v5180 = vpop.f32.mrb[0].mxu0
      %v5181 = vpop.f32.mrb[0].mxu0
      %v5182 = vadd.f32 0.0, %v5181
      %v5183 = vpop.f32.mrb[0].mxu0
      %5184 = vmatprep.mubr.bf16.mxu0 %v4739
      %5185 = vmatmul.mubr.bf16.gmra.mrb[0].mxu0 %v4732
      %v5186 = vpop.f32.mrb[0].mxu0
      %v5187 = vadd.f32 0.0, %v5186
      %v5188 = vpop.f32.mrb[0].mxu0
      %v5189 = vpop.f32.mrb[0].mxu0
      %v5190 = vadd.f32 0.0, %v5189
      %v5191 = vpop.f32.mrb[0].mxu0
      %5192 = vmatprep.mubr.bf16.mxu0 %v4749
      %5193 = vmatmul.mubr.bf16.gmra.mrb[0].mxu0 %v4742
      %v5194 = vpop.f32.mrb[0].mxu0
      %v5195 = vadd.f32 0.0, %v5194
      %v5196 = vpop.f32.mrb[0].mxu0
      %v5197 = vpop.f32.mrb[0].mxu0
      %v5198 = vadd.f32 0.0, %v5197
      %v5199 = vpop.f32.mrb[0].mxu0
      %5200 = vmatprep.mubr.bf16.mxu0 %v4759
      %5201 = vmatmul.mubr.bf16.gmra.mrb[0].mxu0 %v4752
      %v5202 = vpop.f32.mrb[0].mxu0
      %v5203 = vadd.f32 0.0, %v5202
      %v5204 = vpop.f32.mrb[0].mxu0
      %v5205 = vpop.f32.mrb[0].mxu0
      %v5206 = vadd.f32 0.0, %v5205
      %v5207 = vpop.f32.mrb[0].mxu0
      %5208 = vmatprep.mubr.bf16.mxu0 %v4769
      %5209 = vmatmul.mubr.bf16.gmra.mrb[0].mxu0 %v4762
      %v5210 = vpop.f32.mrb[0].mxu0
      %v5211 = vadd.f32 0.0, %v5210
      %v5212 = vpop.f32.mrb[0].mxu0
      %v5213 = vpop.f32.mrb[0].mxu0
      %v5214 = vadd.f32 0.0, %v5213
      %v5215 = vpop.f32.mrb[0].mxu0
      %5216 = vmatprep.mubr.bf16.mxu0 %v4779
      %5217 = vmatmul.mubr.bf16.gmra.mrb[0].mxu0 %v4772
      %v5218 = vpop.f32.mrb[0].mxu0
      %v5219 = vadd.f32 0.0, %v5218
      %v5220 = vpop.f32.mrb[0].mxu0
      %v5221 = vpop.f32.mrb[0].mxu0
      %v5222 = vadd.f32 0.0, %v5221
      %v5223 = vpop.f32.mrb[0].mxu0
      %5224 = vmatprep.mubr.bf16.mxu0 %v4789
      %5225 = vmatmul.mubr.bf16.gmra.mrb[0].mxu0 %v4782
      %v5226 = vpop.f32.mrb[0].mxu0
      %v5227 = vadd.f32 0.0, %v5226
      %v5228 = vpop.f32.mrb[0].mxu0
      %v5229 = vpop.f32.mrb[0].mxu0
      %v5230 = vadd.f32 0.0, %v5229
      %v5231 = vpop.f32.mrb[0].mxu0
      %5232 = vmatprep.mubr.bf16.mxu0 %v4799
      %5233 = vmatmul.mubr.bf16.gmra.mrb[0].mxu0 %v4792
      %v5234 = vpop.f32.mrb[0].mxu0
      %v5235 = vadd.f32 0.0, %v5234
      %v5236 = vpop.f32.mrb[0].mxu0
      %v5237 = vpop.f32.mrb[0].mxu0
      %v5238 = vadd.f32 0.0, %v5237
      %v5239 = vpop.f32.mrb[0].mxu0
      %5240 = vmatprep.mubr.bf16.mxu0 %v4809
      %5241 = vmatmul.mubr.bf16.gmra.mrb[0].mxu0 %v4802
      %v5242 = vpop.f32.mrb[0].mxu0
      %v5243 = vadd.f32 0.0, %v5242
      %v5244 = vpop.f32.mrb[0].mxu0
      %v5245 = vpop.f32.mrb[0].mxu0
      %v5246 = vadd.f32 0.0, %v5245
      %v5247 = vpop.f32.mrb[0].mxu0
      %5248 = vmatprep.mubr.bf16.mxu0 %v4819
      %5249 = vmatmul.mubr.bf16.gmra.mrb[0].mxu0 %v4812
      %v5250 = vpop.f32.mrb[0].mxu0
      %v5251 = vadd.f32 0.0, %v5250
      %v5252 = vpop.f32.mrb[0].mxu0
      %v5253 = vpop.f32.mrb[0].mxu0
      %v5254 = vadd.f32 0.0, %v5253
      %v5255 = vpop.f32.mrb[0].mxu0
      %5256 = vmatprep.mubr.bf16.mxu0 %v4829
      %5257 = vmatmul.mubr.bf16.gmra.mrb[0].mxu0 %v4822
      %v5258 = vpop.f32.mrb[0].mxu0
      %v5259 = vadd.f32 0.0, %v5258
      %v5260 = vpop.f32.mrb[0].mxu0
      %v5261 = vpop.f32.mrb[0].mxu0
      %v5262 = vadd.f32 0.0, %v5261
      %v5263 = vpop.f32.mrb[0].mxu0
      %5264 = vmatprep.mubr.bf16.mxu0 %v4839
      %5265 = vmatmul.mubr.bf16.gmra.mrb[0].mxu0 %v4832
      %v5266 = vpop.f32.mrb[0].mxu0
      %v5267 = vadd.f32 0.0, %v5266
      %v5268 = vpop.f32.mrb[0].mxu0
      %v5269 = vpop.f32.mrb[0].mxu0
      %v5270 = vadd.f32 0.0, %v5269
      %v5271 = vpop.f32.mrb[0].mxu0
      %5272 = vmatprep.mubr.bf16.mxu0 %v4849
      %5273 = vmatmul.mubr.bf16.gmra.mrb[0].mxu0 %v4842
      %v5274 = vpop.f32.mrb[0].mxu0
      %v5275 = vadd.f32 0.0, %v5274
      %v5276 = vpop.f32.mrb[0].mxu0
      %v5277 = vpop.f32.mrb[0].mxu0
      %v5278 = vadd.f32 0.0, %v5277
      %v5279 = vpop.f32.mrb[0].mxu0
      %5280 = vmatprep.mubr.bf16.mxu0 %v4859
      %5281 = vmatmul.mubr.bf16.gmra.mrb[0].mxu0 %v4852
      %v5282 = vpop.f32.mrb[0].mxu0
      %v5283 = vadd.f32 0.0, %v5282
      %v5284 = vpop.f32.mrb[0].mxu0
      %v5285 = vpop.f32.mrb[0].mxu0
      %v5286 = vadd.f32 0.0, %v5285
      %v5287 = vpop.f32.mrb[0].mxu0
      %5288 = vmatprep.mubr.bf16.mxu0 %v4869
      %5289 = vmatmul.mubr.bf16.gmra.mrb[0].mxu0 %v4862
      %v5290 = vpop.f32.mrb[0].mxu0
      %v5291 = vadd.f32 0.0, %v5290
      %v5292 = vpop.f32.mrb[0].mxu0
      %v5293 = vpop.f32.mrb[0].mxu0
      %v5294 = vadd.f32 0.0, %v5293
      %v5295 = vpop.f32.mrb[0].mxu0
      %5296 = vmatprep.mubr.bf16.mxu0 %v4879
      %5297 = vmatmul.mubr.bf16.gmra.mrb[0].mxu0 %v4872
      %v5298 = vpop.f32.mrb[0].mxu0
      %v5299 = vadd.f32 0.0, %v5298
      %v5300 = vpop.f32.mrb[0].mxu0
      %v5301 = vpop.f32.mrb[0].mxu0
      %v5302 = vadd.f32 0.0, %v5301
      %v5303 = vpop.f32.mrb[0].mxu0
      %5304 = vmatprep.mubr.bf16.mxu0 %v4889
      %5305 = vmatmul.mubr.bf16.gmra.mrb[0].mxu0 %v4882
      %v5306 = vpop.f32.mrb[0].mxu0
      %v5307 = vadd.f32 0.0, %v5306
      %v5308 = vpop.f32.mrb[0].mxu0
      %v5309 = vpop.f32.mrb[0].mxu0
      %v5310 = vadd.f32 0.0, %v5309
      %v5311 = vpop.f32.mrb[0].mxu0
      %5312 = vmatprep.mubr.bf16.mxu0 %v4899
      %5313 = vmatmul.mubr.bf16.gmra.mrb[0].mxu0 %v4892
      %v5314 = vpop.f32.mrb[0].mxu0
      %v5315 = vadd.f32 0.0, %v5314
      %v5316 = vpop.f32.mrb[0].mxu0
      %v5317 = vpop.f32.mrb[0].mxu0
      %v5318 = vadd.f32 0.0, %v5317
      %v5319 = vpop.f32.mrb[0].mxu0
      %5320 = vmatprep.mubr.bf16.mxu0 %v4909
      %5321 = vmatmul.mubr.bf16.gmra.mrb[0].mxu0 %v4902
      %v5322 = vpop.f32.mrb[0].mxu0
      %v5323 = vadd.f32 0.0, %v5322
      %v5324 = vpop.f32.mrb[0].mxu0
      %v5325 = vpop.f32.mrb[0].mxu0
      %v5326 = vadd.f32 0.0, %v5325
      %v5327 = vpop.f32.mrb[0].mxu0
      %5328 = vmatprep.mubr.bf16.mxu0 %v4919
      %5329 = vmatmul.mubr.bf16.gmra.mrb[0].mxu0 %v4912
      %v5330 = vpop.f32.mrb[0].mxu0
      %v5331 = vadd.f32 0.0, %v5330
      %v5332 = vpop.f32.mrb[0].mxu0
      %v5333 = vpop.f32.mrb[0].mxu0
      %v5334 = vadd.f32 0.0, %v5333
      %v5335 = vpop.f32.mrb[0].mxu0
      %5336 = vmatprep.mubr.bf16.mxu0 %v4933
      %5337 = vmatmul.mubr.bf16.gmra.mrb[0].mxu0 %v4926
      %v5338 = vpop.f32.mrb[0].mxu0
      %v5339 = vadd.f32 0.0, %v5338
      %v5340 = vpop.f32.mrb[0].mxu0
      %v5341 = vpop.f32.mrb[0].mxu0
      %v5342 = vadd.f32 0.0, %v5341
      %v5343 = vpop.f32.mrb[0].mxu0
      %5344 = vmatprep.mubr.bf16.mxu0 %v4947
      %5345 = vmatmul.mubr.bf16.gmra.mrb[0].mxu0 %v4940
      %v5346 = vpop.f32.mrb[0].mxu0
      %v5347 = vadd.f32 0.0, %v5346
      %v5348 = vpop.f32.mrb[0].mxu0
      %v5349 = vpop.f32.mrb[0].mxu0
      %v5350 = vadd.f32 0.0, %v5349
      %v5351 = vpop.f32.mrb[0].mxu0
      %5352 = vmatprep.mubr.bf16.mxu0 %v4961
      %5353 = vmatmul.mubr.bf16.gmra.mrb[0].mxu0 %v4954
      %v5354 = vpop.f32.mrb[0].mxu0
      %v5355 = vadd.f32 0.0, %v5354
      %v5356 = vpop.f32.mrb[0].mxu0
      %v5357 = vpop.f32.mrb[0].mxu0
      %v5358 = vadd.f32 0.0, %v5357
      %v5359 = vpop.f32.mrb[0].mxu0
      %5360 = vdwg.mxu0
      %v5361 = vld [vmem:[#allocation2 + $0xf0] sm:$0x1f]
      %v5362 = vrot.slane %v3155, 1
      %v5363 = vor.u32 %v3152, %v5362
      %v5364 = vrot.slane %v3163, 1
      %v5365 = vsel %vm1553, %v5363, %v5364
      %v5366 = vor.u32 %v3160, %v5364
      %v5367 = vrot.slane %v3172, 1
      %v5368 = vsel %vm1553, %v5366, %v5367
      %v5369 = vor.u32 %v3169, %v5367
      %v5370 = vrot.slane %v3181, 1
      %v5371 = vsel %vm1553, %v5369, %v5370
      %v5372 = vor.u32 %v3178, %v5370
      %v5373 = vrot.slane %v3190, 1
      %v5374 = vsel %vm1553, %v5372, %v5373
      %v5375 = vor.u32 %v3187, %v5373
      %v5376 = vrot.slane %v3199, 1
      %v5377 = vsel %vm1553, %v5375, %v5376
      %v5378 = vor.u32 %v3196, %v5376
      %v5379 = vrot.slane %v3208, 1
      %v5380 = vsel %vm1553, %v5378, %v5379
      %v5381 = vor.u32 %v3205, %v5379
      %v5382 = vrot.slane %v3217, 1
      %v5383 = vsel %vm1553, %v5381, %v5382
      %v5384 = vor.u32 %v3214, %v5382
      %v5385 = vrot.slane %v3226, 1
      %v5386 = vsel %vm1553, %v5384, %v5385
      %v5387 = vor.u32 %v3223, %v5385
      %v5388 = vrot.slane %v3235, 1
      %v5389 = vsel %vm1553, %v5387, %v5388
      %v5390 = vor.u32 %v3232, %v5388
      %v5391 = vrot.slane %v3244, 1
      %v5392 = vsel %vm1553, %v5390, %v5391
      %v5393 = vor.u32 %v3241, %v5391
      %v5394 = vrot.slane %v3253, 1
      %v5395 = vsel %vm1553, %v5393, %v5394
      %v5396 = vor.u32 %v3250, %v5394
      %v5397 = vrot.slane %v3262, 1
      %v5398 = vsel %vm1553, %v5396, %v5397
      %v5399 = vor.u32 %v3259, %v5397
      %v5400 = vrot.slane %v3271, 1
      %v5401 = vsel %vm1553, %v5399, %v5400
      %v5402 = vor.u32 %v3268, %v5400
      %v5403 = vrot.slane %v3280, 1
      %v5404 = vsel %vm1553, %v5402, %v5403
      %v5405 = vor.u32 %v3277, %v5403
      %v5406 = vrot.slane %v3289, 1
      %v5407 = vsel %vm1553, %v5405, %v5406
      %v5408 = vor.u32 %v3286, %v5406
      %v5409 = vrot.slane %v3298, 1
      %v5410 = vsel %vm1553, %v5408, %v5409
      %v5411 = vor.u32 %v3295, %v5409
      %v5412 = vrot.slane %v3307, 1
      %v5413 = vsel %vm1553, %v5411, %v5412
      %v5414 = vor.u32 %v3304, %v5412
      %v5415 = vrot.slane %v3316, 1
      %v5416 = vsel %vm1553, %v5414, %v5415
      %v5417 = vor.u32 %v3313, %v5415
      %v5418 = vrot.slane %v3325, 1
      %v5419 = vsel %vm1553, %v5417, %v5418
      %v5420 = vor.u32 %v3322, %v5418
      %v5421 = vrot.slane %v3334, 1
      %v5422 = vsel %vm1553, %v5420, %v5421
      %v5423 = vor.u32 %v3331, %v5421
      %v5424 = vrot.slane %v3343, 1
      %v5425 = vsel %vm1553, %v5423, %v5424
      %v5426 = vor.u32 %v3340, %v5424
      %v5427 = vrot.slane %v3352, 1
      %v5428 = vsel %vm1553, %v5426, %v5427
      %v5429 = vor.u32 %v3349, %v5427
      %v5430 = vrot.slane %v3361, 1
      %v5431 = vsel %vm1553, %v5429, %v5430
      %v5432 = vor.u32 %v3358, %v5430
      %v5433 = vrot.slane %v3370, 1
      %v5434 = vsel %vm1553, %v5432, %v5433
      %v5435 = vor.u32 %v3367, %v5433
      %v5436 = vrot.slane %v3379, 1
      %v5437 = vsel %vm1553, %v5435, %v5436
      %v5438 = vor.u32 %v3376, %v5436
      %v5439 = vrot.slane %v3388, 1
      %v5440 = vsel %vm1553, %v5438, %v5439
      %v5441 = vor.u32 %v3385, %v5439
      %v5442 = vrot.slane %v3394, 1
      %v5443 = vsel %vm1553, %v5441, %v5442
      %5444 = vrot.lane.b32.xlu0 %v5365, 64
      %v5445 = vpop.permute.xlu0 %5444
      %5446 = vrot.lane.b32.xlu0 %v5368, 64
      %v5447 = vpop.permute.xlu0 %5446
      %5448 = vrot.lane.b32.xlu0 %v5371, 64
      %v5449 = vpop.permute.xlu0 %5448
      %5450 = vrot.lane.b32.xlu0 %v5374, 64
      %v5451 = vpop.permute.xlu0 %5450
      %5452 = vrot.lane.b32.xlu0 %v5377, 64
      %v5453 = vpop.permute.xlu0 %5452
      %5454 = vrot.lane.b32.xlu0 %v5380, 64
      %v5455 = vpop.permute.xlu0 %5454
      %5456 = vrot.lane.b32.xlu0 %v5383, 64
      %v5457 = vpop.permute.xlu0 %5456
      %5458 = vrot.lane.b32.xlu0 %v5386, 64
      %v5459 = vpop.permute.xlu0 %5458
      %5460 = vrot.lane.b32.xlu0 %v5389, 64
      %v5461 = vpop.permute.xlu0 %5460
      %5462 = vrot.lane.b32.xlu0 %v5392, 64
      %v5463 = vpop.permute.xlu0 %5462
      %5464 = vrot.lane.b32.xlu0 %v5395, 64
      %v5465 = vpop.permute.xlu0 %5464
      %5466 = vrot.lane.b32.xlu0 %v5398, 64
      %v5467 = vpop.permute.xlu0 %5466
      %5468 = vrot.lane.b32.xlu0 %v5401, 64
      %v5469 = vpop.permute.xlu0 %5468
      %5470 = vrot.lane.b32.xlu0 %v5404, 64
      %v5471 = vpop.permute.xlu0 %5470
      %5472 = vrot.lane.b32.xlu0 %v5407, 64
      %v5473 = vpop.permute.xlu0 %5472
      %5474 = vrot.lane.b32.xlu0 %v5410, 64
      %v5475 = vpop.permute.xlu0 %5474
      %5476 = vrot.lane.b32.xlu0 %v5413, 64
      %v5477 = vpop.permute.xlu0 %5476
      %5478 = vrot.lane.b32.xlu0 %v5416, 64
      %v5479 = vpop.permute.xlu0 %5478
      %5480 = vrot.lane.b32.xlu0 %v5419, 64
      %v5481 = vpop.permute.xlu0 %5480
      %5482 = vrot.lane.b32.xlu0 %v5422, 64
      %v5483 = vpop.permute.xlu0 %5482
      %5484 = vrot.lane.b32.xlu0 %v5425, 64
      %v5485 = vpop.permute.xlu0 %5484
      %5486 = vrot.lane.b32.xlu0 %v5428, 64
      %v5487 = vpop.permute.xlu0 %5486
      %5488 = vrot.lane.b32.xlu0 %v5431, 64
      %v5489 = vpop.permute.xlu0 %5488
      %5490 = vrot.lane.b32.xlu0 %v5434, 64
      %v5491 = vpop.permute.xlu0 %5490
      %5492 = vrot.lane.b32.xlu0 %v5437, 64
      %v5493 = vpop.permute.xlu0 %5492
      %5494 = vrot.lane.b32.xlu0 %v5440, 64
      %v5495 = vpop.permute.xlu0 %5494
      %5496 = vrot.lane.b32.xlu0 %v5443, 64
      %v5497 = vpop.permute.xlu0 %5496
      %v5499 = vrot.slane %v4142, 4
      %v5500 = vsel %vm1861, %v5499, %v4186
      %v5502 = vshrl.u32 %v5361, 16
      %v5504 = vrot.slane %v5502, 4
      %v5505 = vshll.u32 %v5361, 16
      %v5507 = vrot.slane %v5505, 5
      %v5508 = vor.u32 %v5504, %v5507
      %v5509 = vsel %vm1917, %v4480, %v5508
      %5510 = vrot.lane.b32.xlu0 %v5509, 64
      %v5511 = vpop.permute.xlu0 %5510
      %v5513 = vsel %vm425, %v1523, %v5445
      %v5516 = vsel %vm425, %v1524, %v5447
      %v5519 = vsel %vm425, %v1525, %v5449
      %v5522 = vsel %vm425, %v1526, %v5451
      %v5525 = vsel %vm425, %v1527, %v5453
      %v5528 = vsel %vm425, %v1528, %v5455
      %v5531 = vsel %vm425, %v1529, %v5457
      %v5534 = vsel %vm425, %v1530, %v5459
      %v5537 = vsel %vm425, %v1531, %v5461
      %v5540 = vsel %vm425, %v1532, %v5463
      %v5543 = vsel %vm425, %v1533, %v5465
      %v5546 = vsel %vm425, %v1534, %v5467
      %v5549 = vsel %vm425, %v1535, %v5469
      %v5552 = vsel %vm425, %v1536, %v5471
      %v5555 = vsel %vm425, %v1537, %v5473
      %v5558 = vsel %vm425, %v1538, %v5475
      %v5561 = vsel %vm425, %v1539, %v5477
      %v5564 = vsel %vm425, %v1540, %v5479
      %v5567 = vsel %vm425, %v1541, %v5481
      %v5570 = vsel %vm425, %v1542, %v5483
      %v5573 = vsel %vm425, %v1543, %v5485
      %v5576 = vsel %vm425, %v1544, %v5487
      %v5579 = vsel %vm425, %v1545, %v5489
      %v5582 = vsel %vm425, %v1546, %v5491
      %v5585 = vsel %vm425, %v1547, %v5493
      %v5588 = vsel %vm425, %v1551, %v5495
      %v5591 = vsel %vm425, %v1552, %v5497
      %v5594 = vsel %vm425, %v5500, %v4494
      %v5622 = vsel %vm425, %v4239, %v5511
      %s5624 = scalar_lea.vmem %s5, 384
      %v5625 = vld [vmem:[%s5624] sm:$0xf]
      %v5626 = vld [vmem:[%s5624 + $0x4] sm:$0xf]
      %v5627 = vld [vmem:[%s5624 + $0x8] sm:$0xf]
      %v5628 = vld [vmem:[%s5624 + $0xc] sm:$0xf]
      %v5629 = vld [vmem:[%s5624 + $0x10] sm:$0xf]
      %v5630 = vld [vmem:[%s5624 + $0x14] sm:$0xf]
      %v5631 = vld [vmem:[%s5624 + $0x18] sm:$0xf]
      %v5632 = vld [vmem:[%s5624 + $0x1c] sm:$0xf]
      %v5633 = vld [vmem:[%s5624 + $0x20] sm:$0xf]
      %v5634 = vld [vmem:[%s5624 + $0x24] sm:$0xf]
      %v5635 = vld [vmem:[%s5624 + $0x28] sm:$0xf]
      %v5636 = vld [vmem:[%s5624 + $0x2c] sm:$0xf]
      %v5637 = vld [vmem:[%s5624 + $0x30] sm:$0xf]
      %v5638 = vld [vmem:[%s5624 + $0x34] sm:$0xf]
      %v5639 = vld [vmem:[%s5624 + $0x38] sm:$0xf]
      %v5640 = vld [vmem:[%s5624 + $0x3c] sm:$0xf]
      %v5641 = vld [vmem:[%s5624 + $0x40] sm:$0xf]
      %v5642 = vld [vmem:[%s5624 + $0x44] sm:$0xf]
      %v5643 = vld [vmem:[%s5624 + $0x48] sm:$0xf]
      %v5644 = vld [vmem:[%s5624 + $0x4c] sm:$0xf]
      %v5645 = vld [vmem:[%s5624 + $0x50] sm:$0xf]
      %v5646 = vld [vmem:[%s5624 + $0x54] sm:$0xf]
      %v5647 = vld [vmem:[%s5624 + $0x58] sm:$0xf]
      %v5648 = vld [vmem:[%s5624 + $0x5c] sm:$0xf]
      %v5649 = vld [vmem:[%s5624 + $0x60] sm:$0xf]
      %v5650 = vld [vmem:[%s5624 + $0x64] sm:$0xf]
      %v5651 = vld [vmem:[%s5624 + $0x68] sm:$0xf]
      %v5652 = vld [vmem:[%s5624 + $0x6c] sm:$0xf]
      %v5653 = vld [vmem:[%s5624 + $0x70] sm:$0xf]
      %v5654 = vld [vmem:[%s5624 + $0x74] sm:$0xf]
      %v5655 = vld [vmem:[%s5624 + $0x78] sm:$0xf]
      %v5656 = vld [vmem:[%s5624 + $0x7c] sm:$0xf]
      %v5689 = vunpack.c.l.b16 %v5625
      %v5690 = vunpack.c.l.b16 %v5626
      %v5691 = vunpack.c.l.b16 %v5627
      %v5692 = vunpack.c.l.b16 %v5628
      %v5693 = vunpack.c.l.b16 %v5629
      %v5694 = vunpack.c.l.b16 %v5630
      %v5695 = vunpack.c.l.b16 %v5631
      %v5696 = vunpack.c.l.b16 %v5632
      %v5697 = vunpack.c.l.b16 %v5633
      %v5698 = vunpack.c.l.b16 %v5634
      %v5699 = vunpack.c.l.b16 %v5635
      %v5700 = vunpack.c.l.b16 %v5636
      %v5701 = vunpack.c.l.b16 %v5637
      %v5702 = vunpack.c.l.b16 %v5638
      %v5703 = vunpack.c.l.b16 %v5639
      %v5704 = vunpack.c.l.b16 %v5640
      %v5705 = vunpack.c.l.b16 %v5641
      %v5706 = vunpack.c.l.b16 %v5642
      %v5707 = vunpack.c.l.b16 %v5643
      %v5708 = vunpack.c.l.b16 %v5644
      %v5709 = vunpack.c.l.b16 %v5645
      %v5710 = vunpack.c.l.b16 %v5646
      %v5711 = vunpack.c.l.b16 %v5647
      %v5712 = vunpack.c.l.b16 %v5648
      %v5713 = vunpack.c.l.b16 %v5649
      %v5714 = vunpack.c.l.b16 %v5650
      %v5715 = vunpack.c.l.b16 %v5651
      %v5716 = vunpack.c.l.b16 %v5652
      %v5717 = vunpack.c.l.b16 %v5653
      %v5718 = vunpack.c.l.b16 %v5654
      %v5719 = vunpack.c.l.b16 %v5655
      %v5720 = vunpack.c.l.b16 %v5656
      %v5721 = vpack.c.b16 %v5690, %v5689
      %v5722 = vpack.c.b16 %v5692, %v5691
      %v5723 = vpack.c.b16 %v5694, %v5693
      %v5724 = vpack.c.b16 %v5696, %v5695
      %v5725 = vpack.c.b16 %v5698, %v5697
      %v5726 = vpack.c.b16 %v5700, %v5699
      %v5727 = vpack.c.b16 %v5702, %v5701
      %v5728 = vpack.c.b16 %v5704, %v5703
      %v5729 = vpack.c.b16 %v5706, %v5705
      %v5730 = vpack.c.b16 %v5708, %v5707
      %v5731 = vpack.c.b16 %v5710, %v5709
      %v5732 = vpack.c.b16 %v5712, %v5711
      %v5733 = vpack.c.b16 %v5714, %v5713
      %v5734 = vpack.c.b16 %v5716, %v5715
      %v5735 = vpack.c.b16 %v5718, %v5717
      %v5736 = vpack.c.b16 %v5720, %v5719
      %5753 = vmatprep.subr.bf16.mxu0 0
      %5754 = vmatpush1.bf16.msra.mxu0 %v5721
      %5755 = vmatprep.subr.bf16.mxu0 0
      %5756 = vmatpush1.bf16.msra.mxu0 %v5722
      %5757 = vmatprep.subr.bf16.mxu0 0
      %5758 = vmatpush1.bf16.msra.mxu0 %v5723
      %5759 = vmatprep.subr.bf16.mxu0 0
      %5760 = vmatpush1.bf16.msra.mxu0 %v5724
      %5761 = vmatprep.subr.bf16.mxu0 0
      %5762 = vmatpush1.bf16.msra.mxu0 %v5725
      %5763 = vmatprep.subr.bf16.mxu0 0
      %5764 = vmatpush1.bf16.msra.mxu0 %v5726
      %5765 = vmatprep.subr.bf16.mxu0 0
      %5766 = vmatpush1.bf16.msra.mxu0 %v5727
      %5767 = vmatprep.subr.bf16.mxu0 0
      %5768 = vmatpush1.bf16.msra.mxu0 %v5728
      %5769 = vmatprep.subr.bf16.mxu0 0
      %5770 = vmatpush1.bf16.msra.mxu0 %v5729
      %5771 = vmatprep.subr.bf16.mxu0 0
      %5772 = vmatpush1.bf16.msra.mxu0 %v5730
      %5773 = vmatprep.subr.bf16.mxu0 0
      %5774 = vmatpush1.bf16.msra.mxu0 %v5731
      %5775 = vmatprep.subr.bf16.mxu0 0
      %5776 = vmatpush1.bf16.msra.mxu0 %v5732
      %5777 = vmatprep.subr.bf16.mxu0 0
      %5778 = vmatpush1.bf16.msra.mxu0 %v5733
      %5779 = vmatprep.subr.bf16.mxu0 0
      %5780 = vmatpush1.bf16.msra.mxu0 %v5734
      %5781 = vmatprep.subr.bf16.mxu0 0
      %5782 = vmatpush1.bf16.msra.mxu0 %v5735
      %5783 = vmatprep.subr.bf16.mxu0 0
      %5784 = vmatpush1.bf16.msra.mxu0 %v5736
      %5785 = vmatprep.mubr.bf16.mxu0 %v5594
      %5786 = vmatmul.mubr.bf16.gmra.mrb[0].mxu0 %v5513
      %v5787 = vpop.f32.mrb[0].mxu0
      %v5788 = vadd.f32 0.0, %v5787
      %v5789 = vpop.f32.mrb[0].mxu0
      %v5790 = vpop.f32.mrb[0].mxu0
      %v5791 = vadd.f32 0.0, %v5790
      %v5792 = vpop.f32.mrb[0].mxu0
      %5793 = vmatprep.mubr.bf16.mxu0 %v4564
      %5794 = vmatmul.mubr.bf16.gmra.mrb[0].mxu0 %v5516
      %v5795 = vpop.f32.mrb[0].mxu0
      %v5796 = vadd.f32 0.0, %v5795
      %v5797 = vpop.f32.mrb[0].mxu0
      %v5798 = vpop.f32.mrb[0].mxu0
      %v5799 = vadd.f32 0.0, %v5798
      %v5800 = vpop.f32.mrb[0].mxu0
      %5801 = vmatprep.mubr.bf16.mxu0 %v4567
      %5802 = vmatmul.mubr.bf16.gmra.mrb[0].mxu0 %v5519
      %v5803 = vpop.f32.mrb[0].mxu0
      %v5804 = vadd.f32 0.0, %v5803
      %v5805 = vpop.f32.mrb[0].mxu0
      %v5806 = vpop.f32.mrb[0].mxu0
      %v5807 = vadd.f32 0.0, %v5806
      %v5808 = vpop.f32.mrb[0].mxu0
      %5809 = vmatprep.mubr.bf16.mxu0 %v4570
      %5810 = vmatmul.mubr.bf16.gmra.mrb[0].mxu0 %v5522
      %v5811 = vpop.f32.mrb[0].mxu0
      %v5812 = vadd.f32 0.0, %v5811
      %v5813 = vpop.f32.mrb[0].mxu0
      %v5814 = vpop.f32.mrb[0].mxu0
      %v5815 = vadd.f32 0.0, %v5814
      %v5816 = vpop.f32.mrb[0].mxu0
      %5817 = vmatprep.mubr.bf16.mxu0 %v4573
      %5818 = vmatmul.mubr.bf16.gmra.mrb[0].mxu0 %v5525
      %v5819 = vpop.f32.mrb[0].mxu0
      %v5820 = vadd.f32 0.0, %v5819
      %v5821 = vpop.f32.mrb[0].mxu0
      %v5822 = vpop.f32.mrb[0].mxu0
      %v5823 = vadd.f32 0.0, %v5822
      %v5824 = vpop.f32.mrb[0].mxu0
      %5825 = vmatprep.mubr.bf16.mxu0 %v4576
      %5826 = vmatmul.mubr.bf16.gmra.mrb[0].mxu0 %v5528
      %v5827 = vpop.f32.mrb[0].mxu0
      %v5828 = vadd.f32 0.0, %v5827
      %v5829 = vpop.f32.mrb[0].mxu0
      %v5830 = vpop.f32.mrb[0].mxu0
      %v5831 = vadd.f32 0.0, %v5830
      %v5832 = vpop.f32.mrb[0].mxu0
      %5833 = vmatprep.mubr.bf16.mxu0 %v4579
      %5834 = vmatmul.mubr.bf16.gmra.mrb[0].mxu0 %v5531
      %v5835 = vpop.f32.mrb[0].mxu0
      %v5836 = vadd.f32 0.0, %v5835
      %v5837 = vpop.f32.mrb[0].mxu0
      %v5838 = vpop.f32.mrb[0].mxu0
      %v5839 = vadd.f32 0.0, %v5838
      %v5840 = vpop.f32.mrb[0].mxu0
      %5841 = vmatprep.mubr.bf16.mxu0 %v4582
      %5842 = vmatmul.mubr.bf16.gmra.mrb[0].mxu0 %v5534
      %v5843 = vpop.f32.mrb[0].mxu0
      %v5844 = vadd.f32 0.0, %v5843
      %v5845 = vpop.f32.mrb[0].mxu0
      %v5846 = vpop.f32.mrb[0].mxu0
      %v5847 = vadd.f32 0.0, %v5846
      %v5848 = vpop.f32.mrb[0].mxu0
      %5849 = vmatprep.mubr.bf16.mxu0 %v4585
      %5850 = vmatmul.mubr.bf16.gmra.mrb[0].mxu0 %v5537
      %v5851 = vpop.f32.mrb[0].mxu0
      %v5852 = vadd.f32 0.0, %v5851
      %v5853 = vpop.f32.mrb[0].mxu0
      %v5854 = vpop.f32.mrb[0].mxu0
      %v5855 = vadd.f32 0.0, %v5854
      %v5856 = vpop.f32.mrb[0].mxu0
      %5857 = vmatprep.mubr.bf16.mxu0 %v4588
      %5858 = vmatmul.mubr.bf16.gmra.mrb[0].mxu0 %v5540
      %v5859 = vpop.f32.mrb[0].mxu0
      %v5860 = vadd.f32 0.0, %v5859
      %v5861 = vpop.f32.mrb[0].mxu0
      %v5862 = vpop.f32.mrb[0].mxu0
      %v5863 = vadd.f32 0.0, %v5862
      %v5864 = vpop.f32.mrb[0].mxu0
      %5865 = vmatprep.mubr.bf16.mxu0 %v4591
      %5866 = vmatmul.mubr.bf16.gmra.mrb[0].mxu0 %v5543
      %v5867 = vpop.f32.mrb[0].mxu0
      %v5868 = vadd.f32 0.0, %v5867
      %v5869 = vpop.f32.mrb[0].mxu0
      %v5870 = vpop.f32.mrb[0].mxu0
      %v5871 = vadd.f32 0.0, %v5870
      %v5872 = vpop.f32.mrb[0].mxu0
      %5873 = vmatprep.mubr.bf16.mxu0 %v4594
      %5874 = vmatmul.mubr.bf16.gmra.mrb[0].mxu0 %v5546
      %v5875 = vpop.f32.mrb[0].mxu0
      %v5876 = vadd.f32 0.0, %v5875
      %v5877 = vpop.f32.mrb[0].mxu0
      %v5878 = vpop.f32.mrb[0].mxu0
      %v5879 = vadd.f32 0.0, %v5878
      %v5880 = vpop.f32.mrb[0].mxu0
      %5881 = vmatprep.mubr.bf16.mxu0 %v4597
      %5882 = vmatmul.mubr.bf16.gmra.mrb[0].mxu0 %v5549
      %v5883 = vpop.f32.mrb[0].mxu0
      %v5884 = vadd.f32 0.0, %v5883
      %v5885 = vpop.f32.mrb[0].mxu0
      %v5886 = vpop.f32.mrb[0].mxu0
      %v5887 = vadd.f32 0.0, %v5886
      %v5888 = vpop.f32.mrb[0].mxu0
      %5889 = vmatprep.mubr.bf16.mxu0 %v4600
      %5890 = vmatmul.mubr.bf16.gmra.mrb[0].mxu0 %v5552
      %v5891 = vpop.f32.mrb[0].mxu0
      %v5892 = vadd.f32 0.0, %v5891
      %v5893 = vpop.f32.mrb[0].mxu0
      %v5894 = vpop.f32.mrb[0].mxu0
      %v5895 = vadd.f32 0.0, %v5894
      %v5896 = vpop.f32.mrb[0].mxu0
      %5897 = vmatprep.mubr.bf16.mxu0 %v4603
      %5898 = vmatmul.mubr.bf16.gmra.mrb[0].mxu0 %v5555
      %v5899 = vpop.f32.mrb[0].mxu0
      %v5900 = vadd.f32 0.0, %v5899
      %v5901 = vpop.f32.mrb[0].mxu0
      %v5902 = vpop.f32.mrb[0].mxu0
      %v5903 = vadd.f32 0.0, %v5902
      %v5904 = vpop.f32.mrb[0].mxu0
      %5905 = vmatprep.mubr.bf16.mxu0 %v4606
      %5906 = vmatmul.mubr.bf16.gmra.mrb[0].mxu0 %v5558
      %v5907 = vpop.f32.mrb[0].mxu0
      %v5908 = vadd.f32 0.0, %v5907
      %v5909 = vpop.f32.mrb[0].mxu0
      %v5910 = vpop.f32.mrb[0].mxu0
      %v5911 = vadd.f32 0.0, %v5910
      %v5912 = vpop.f32.mrb[0].mxu0
      %5913 = vmatprep.mubr.bf16.mxu0 %v4609
      %5914 = vmatmul.mubr.bf16.gmra.mrb[0].mxu0 %v5561
      %v5915 = vpop.f32.mrb[0].mxu0
      %v5916 = vadd.f32 0.0, %v5915
      %v5917 = vpop.f32.mrb[0].mxu0
      %v5918 = vpop.f32.mrb[0].mxu0
      %v5919 = vadd.f32 0.0, %v5918
      %v5920 = vpop.f32.mrb[0].mxu0
      %5921 = vmatprep.mubr.bf16.mxu0 %v4612
      %5922 = vmatmul.mubr.bf16.gmra.mrb[0].mxu0 %v5564
      %v5923 = vpop.f32.mrb[0].mxu0
      %v5924 = vadd.f32 0.0, %v5923
      %v5925 = vpop.f32.mrb[0].mxu0
      %v5926 = vpop.f32.mrb[0].mxu0
      %v5927 = vadd.f32 0.0, %v5926
      %v5928 = vpop.f32.mrb[0].mxu0
      %5929 = vmatprep.mubr.bf16.mxu0 %v4615
      %5930 = vmatmul.mubr.bf16.gmra.mrb[0].mxu0 %v5567
      %v5931 = vpop.f32.mrb[0].mxu0
      %v5932 = vadd.f32 0.0, %v5931
      %v5933 = vpop.f32.mrb[0].mxu0
      %v5934 = vpop.f32.mrb[0].mxu0
      %v5935 = vadd.f32 0.0, %v5934
      %v5936 = vpop.f32.mrb[0].mxu0
      %5937 = vmatprep.mubr.bf16.mxu0 %v4618
      %5938 = vmatmul.mubr.bf16.gmra.mrb[0].mxu0 %v5570
      %v5939 = vpop.f32.mrb[0].mxu0
      %v5940 = vadd.f32 0.0, %v5939
      %v5941 = vpop.f32.mrb[0].mxu0
      %v5942 = vpop.f32.mrb[0].mxu0
      %v5943 = vadd.f32 0.0, %v5942
      %v5944 = vpop.f32.mrb[0].mxu0
      %5945 = vmatprep.mubr.bf16.mxu0 %v4621
      %5946 = vmatmul.mubr.bf16.gmra.mrb[0].mxu0 %v5573
      %v5947 = vpop.f32.mrb[0].mxu0
      %v5948 = vadd.f32 0.0, %v5947
      %v5949 = vpop.f32.mrb[0].mxu0
      %v5950 = vpop.f32.mrb[0].mxu0
      %v5951 = vadd.f32 0.0, %v5950
      %v5952 = vpop.f32.mrb[0].mxu0
      %5953 = vmatprep.mubr.bf16.mxu0 %v4624
      %5954 = vmatmul.mubr.bf16.gmra.mrb[0].mxu0 %v5576
      %v5955 = vpop.f32.mrb[0].mxu0
      %v5956 = vadd.f32 0.0, %v5955
      %v5957 = vpop.f32.mrb[0].mxu0
      %v5958 = vpop.f32.mrb[0].mxu0
      %v5959 = vadd.f32 0.0, %v5958
      %v5960 = vpop.f32.mrb[0].mxu0
      %5961 = vmatprep.mubr.bf16.mxu0 %v4627
      %5962 = vmatmul.mubr.bf16.gmra.mrb[0].mxu0 %v5579
      %v5963 = vpop.f32.mrb[0].mxu0
      %v5964 = vadd.f32 0.0, %v5963
      %v5965 = vpop.f32.mrb[0].mxu0
      %v5966 = vpop.f32.mrb[0].mxu0
      %v5967 = vadd.f32 0.0, %v5966
      %v5968 = vpop.f32.mrb[0].mxu0
      %5969 = vmatprep.mubr.bf16.mxu0 %v4630
      %5970 = vmatmul.mubr.bf16.gmra.mrb[0].mxu0 %v5582
      %v5971 = vpop.f32.mrb[0].mxu0
      %v5972 = vadd.f32 0.0, %v5971
      %v5973 = vpop.f32.mrb[0].mxu0
      %v5974 = vpop.f32.mrb[0].mxu0
      %v5975 = vadd.f32 0.0, %v5974
      %v5976 = vpop.f32.mrb[0].mxu0
      %5977 = vmatprep.mubr.bf16.mxu0 %v4633
      %5978 = vmatmul.mubr.bf16.gmra.mrb[0].mxu0 %v5585
      %v5979 = vpop.f32.mrb[0].mxu0
      %v5980 = vadd.f32 0.0, %v5979
      %v5981 = vpop.f32.mrb[0].mxu0
      %v5982 = vpop.f32.mrb[0].mxu0
      %v5983 = vadd.f32 0.0, %v5982
      %v5984 = vpop.f32.mrb[0].mxu0
      %5985 = vmatprep.mubr.bf16.mxu0 %v4636
      %5986 = vmatmul.mubr.bf16.gmra.mrb[0].mxu0 %v5588
      %v5987 = vpop.f32.mrb[0].mxu0
      %v5988 = vadd.f32 0.0, %v5987
      %v5989 = vpop.f32.mrb[0].mxu0
      %v5990 = vpop.f32.mrb[0].mxu0
      %v5991 = vadd.f32 0.0, %v5990
      %v5992 = vpop.f32.mrb[0].mxu0
      %5993 = vmatprep.mubr.bf16.mxu0 %v5622
      %5994 = vmatmul.mubr.bf16.gmra.mrb[0].mxu0 %v5591
      %v5995 = vpop.f32.mrb[0].mxu0
      %v5996 = vadd.f32 0.0, %v5995
      %v5997 = vpop.f32.mrb[0].mxu0
      %v5998 = vpop.f32.mrb[0].mxu0
      %v5999 = vadd.f32 0.0, %v5998
      %v6000 = vpop.f32.mrb[0].mxu0
      %6001 = vdwg.mxu0
      %6056 = vrot.lane.b32.xlu0 %v3900, 32
      %v6057 = vpop.permute.xlu0 %6056
      %6058 = vrot.lane.b32.xlu0 %v3903, 32
      %v6059 = vpop.permute.xlu0 %6058
      %6060 = vrot.lane.b32.xlu0 %v3908, 32
      %v6061 = vpop.permute.xlu0 %6060
      %6062 = vrot.lane.b32.xlu0 %v3911, 32
      %v6063 = vpop.permute.xlu0 %6062
      %6064 = vrot.lane.b32.xlu0 %v3916, 32
      %v6065 = vpop.permute.xlu0 %6064
      %6066 = vrot.lane.b32.xlu0 %v3919, 32
      %v6067 = vpop.permute.xlu0 %6066
      %6068 = vrot.lane.b32.xlu0 %v3924, 32
      %v6069 = vpop.permute.xlu0 %6068
      %6070 = vrot.lane.b32.xlu0 %v3927, 32
      %v6071 = vpop.permute.xlu0 %6070
      %6072 = vrot.lane.b32.xlu0 %v3932, 32
      %v6073 = vpop.permute.xlu0 %6072
      %6074 = vrot.lane.b32.xlu0 %v3935, 32
      %v6075 = vpop.permute.xlu0 %6074
      %6076 = vrot.lane.b32.xlu0 %v3940, 32
      %v6077 = vpop.permute.xlu0 %6076
      %6078 = vrot.lane.b32.xlu0 %v3943, 32
      %v6079 = vpop.permute.xlu0 %6078
      %6080 = vrot.lane.b32.xlu0 %v3948, 32
      %v6081 = vpop.permute.xlu0 %6080
      %6082 = vrot.lane.b32.xlu0 %v3951, 32
      %v6083 = vpop.permute.xlu0 %6082
      %6084 = vrot.lane.b32.xlu0 %v3956, 32
      %v6085 = vpop.permute.xlu0 %6084
      %6086 = vrot.lane.b32.xlu0 %v3959, 32
      %v6087 = vpop.permute.xlu0 %6086
      %6088 = vrot.lane.b32.xlu0 %v3964, 32
      %v6089 = vpop.permute.xlu0 %6088
      %6090 = vrot.lane.b32.xlu0 %v3967, 32
      %v6091 = vpop.permute.xlu0 %6090
      %6092 = vrot.lane.b32.xlu0 %v3972, 32
      %v6093 = vpop.permute.xlu0 %6092
      %6094 = vrot.lane.b32.xlu0 %v3975, 32
      %v6095 = vpop.permute.xlu0 %6094
      %6096 = vrot.lane.b32.xlu0 %v3980, 32
      %v6097 = vpop.permute.xlu0 %6096
      %6098 = vrot.lane.b32.xlu0 %v3983, 32
      %v6099 = vpop.permute.xlu0 %6098
      %6100 = vrot.lane.b32.xlu0 %v3988, 32
      %v6101 = vpop.permute.xlu0 %6100
      %6102 = vrot.lane.b32.xlu0 %v3991, 32
      %v6103 = vpop.permute.xlu0 %6102
      %6104 = vrot.lane.b32.xlu0 %v3996, 32
      %v6105 = vpop.permute.xlu0 %6104
      %6106 = vrot.lane.b32.xlu0 %v3999, 32
      %v6107 = vpop.permute.xlu0 %6106
      %6108 = vrot.lane.b32.xlu0 %v4004, 32
      %v6109 = vpop.permute.xlu0 %6108
      %6110 = vrot.lane.b32.xlu0 %v4007, 32
      %v6111 = vpop.permute.xlu0 %6110
      %6112 = vrot.lane.b32.xlu0 %v4012, 32
      %v6113 = vpop.permute.xlu0 %6112
      %6114 = vrot.lane.b32.xlu0 %v4015, 32
      %v6115 = vpop.permute.xlu0 %6114
      %6116 = vrot.lane.b32.xlu0 %v4020, 32
      %v6117 = vpop.permute.xlu0 %6116
      %6118 = vrot.lane.b32.xlu0 %v4023, 32
      %v6119 = vpop.permute.xlu0 %6118
      %6120 = vrot.lane.b32.xlu0 %v4028, 32
      %v6121 = vpop.permute.xlu0 %6120
      %6122 = vrot.lane.b32.xlu0 %v4031, 32
      %v6123 = vpop.permute.xlu0 %6122
      %6124 = vrot.lane.b32.xlu0 %v4036, 32
      %v6125 = vpop.permute.xlu0 %6124
      %6126 = vrot.lane.b32.xlu0 %v4039, 32
      %v6127 = vpop.permute.xlu0 %6126
      %6128 = vrot.lane.b32.xlu0 %v4044, 32
      %v6129 = vpop.permute.xlu0 %6128
      %6130 = vrot.lane.b32.xlu0 %v4047, 32
      %v6131 = vpop.permute.xlu0 %6130
      %6132 = vrot.lane.b32.xlu0 %v4052, 32
      %v6133 = vpop.permute.xlu0 %6132
      %6134 = vrot.lane.b32.xlu0 %v4055, 32
      %v6135 = vpop.permute.xlu0 %6134
      %6136 = vrot.lane.b32.xlu0 %v4060, 32
      %v6137 = vpop.permute.xlu0 %6136
      %6138 = vrot.lane.b32.xlu0 %v4063, 32
      %v6139 = vpop.permute.xlu0 %6138
      %6140 = vrot.lane.b32.xlu0 %v4068, 32
      %v6141 = vpop.permute.xlu0 %6140
      %6142 = vrot.lane.b32.xlu0 %v4071, 32
      %v6143 = vpop.permute.xlu0 %6142
      %6144 = vrot.lane.b32.xlu0 %v4076, 32
      %v6145 = vpop.permute.xlu0 %6144
      %6146 = vrot.lane.b32.xlu0 %v4079, 32
      %v6147 = vpop.permute.xlu0 %6146
      %6148 = vrot.lane.b32.xlu0 %v4084, 32
      %v6149 = vpop.permute.xlu0 %6148
      %6150 = vrot.lane.b32.xlu0 %v4087, 32
      %v6151 = vpop.permute.xlu0 %6150
      %6152 = vrot.lane.b32.xlu0 %v4092, 32
      %v6153 = vpop.permute.xlu0 %6152
      %6154 = vrot.lane.b32.xlu0 %v4095, 32
      %v6155 = vpop.permute.xlu0 %6154
      %6156 = vrot.lane.b32.xlu0 %v4100, 32
      %v6157 = vpop.permute.xlu0 %6156
      %6158 = vrot.lane.b32.xlu0 %v4103, 32
      %v6159 = vpop.permute.xlu0 %6158
      %6160 = vrot.lane.b32.xlu0 %v4108, 32
      %v6161 = vpop.permute.xlu0 %6160
      %6162 = vrot.lane.b32.xlu0 %v4111, 32
      %v6163 = vpop.permute.xlu0 %6162
      %6272 = vrot.lane.b32.xlu0 %v5147, 64
      %v6273 = vpop.permute.xlu0 %6272
      %6274 = vrot.lane.b32.xlu0 %v5150, 64
      %v6275 = vpop.permute.xlu0 %6274
      %6276 = vrot.lane.b32.xlu0 %v5155, 64
      %v6277 = vpop.permute.xlu0 %6276
      %6278 = vrot.lane.b32.xlu0 %v5158, 64
      %v6279 = vpop.permute.xlu0 %6278
      %6280 = vrot.lane.b32.xlu0 %v5163, 64
      %v6281 = vpop.permute.xlu0 %6280
      %6282 = vrot.lane.b32.xlu0 %v5166, 64
      %v6283 = vpop.permute.xlu0 %6282
      %6284 = vrot.lane.b32.xlu0 %v5171, 64
      %v6285 = vpop.permute.xlu0 %6284
      %6286 = vrot.lane.b32.xlu0 %v5174, 64
      %v6287 = vpop.permute.xlu0 %6286
      %6288 = vrot.lane.b32.xlu0 %v5179, 64
      %v6289 = vpop.permute.xlu0 %6288
      %6290 = vrot.lane.b32.xlu0 %v5182, 64
      %v6291 = vpop.permute.xlu0 %6290
      %6292 = vrot.lane.b32.xlu0 %v5187, 64
      %v6293 = vpop.permute.xlu0 %6292
      %6294 = vrot.lane.b32.xlu0 %v5190, 64
      %v6295 = vpop.permute.xlu0 %6294
      %6296 = vrot.lane.b32.xlu0 %v5195, 64
      %v6297 = vpop.permute.xlu0 %6296
      %6298 = vrot.lane.b32.xlu0 %v5198, 64
      %v6299 = vpop.permute.xlu0 %6298
      %6300 = vrot.lane.b32.xlu0 %v5203, 64
      %v6301 = vpop.permute.xlu0 %6300
      %6302 = vrot.lane.b32.xlu0 %v5206, 64
      %v6303 = vpop.permute.xlu0 %6302
      %6304 = vrot.lane.b32.xlu0 %v5211, 64
      %v6305 = vpop.permute.xlu0 %6304
      %6306 = vrot.lane.b32.xlu0 %v5214, 64
      %v6307 = vpop.permute.xlu0 %6306
      %6308 = vrot.lane.b32.xlu0 %v5219, 64
      %v6309 = vpop.permute.xlu0 %6308
      %6310 = vrot.lane.b32.xlu0 %v5222, 64
      %v6311 = vpop.permute.xlu0 %6310
      %6312 = vrot.lane.b32.xlu0 %v5227, 64
      %v6313 = vpop.permute.xlu0 %6312
      %6314 = vrot.lane.b32.xlu0 %v5230, 64
      %v6315 = vpop.permute.xlu0 %6314
      %6316 = vrot.lane.b32.xlu0 %v5235, 64
      %v6317 = vpop.permute.xlu0 %6316
      %6318 = vrot.lane.b32.xlu0 %v5238, 64
      %v6319 = vpop.permute.xlu0 %6318
      %6320 = vrot.lane.b32.xlu0 %v5243, 64
      %v6321 = vpop.permute.xlu0 %6320
      %6322 = vrot.lane.b32.xlu0 %v5246, 64
      %v6323 = vpop.permute.xlu0 %6322
      %6324 = vrot.lane.b32.xlu0 %v5251, 64
      %v6325 = vpop.permute.xlu0 %6324
      %6326 = vrot.lane.b32.xlu0 %v5254, 64
      %v6327 = vpop.permute.xlu0 %6326
      %6328 = vrot.lane.b32.xlu0 %v5259, 64
      %v6329 = vpop.permute.xlu0 %6328
      %6330 = vrot.lane.b32.xlu0 %v5262, 64
      %v6331 = vpop.permute.xlu0 %6330
      %6332 = vrot.lane.b32.xlu0 %v5267, 64
      %v6333 = vpop.permute.xlu0 %6332
      %6334 = vrot.lane.b32.xlu0 %v5270, 64
      %v6335 = vpop.permute.xlu0 %6334
      %6336 = vrot.lane.b32.xlu0 %v5275, 64
      %v6337 = vpop.permute.xlu0 %6336
      %6338 = vrot.lane.b32.xlu0 %v5278, 64
      %v6339 = vpop.permute.xlu0 %6338
      %6340 = vrot.lane.b32.xlu0 %v5283, 64
      %v6341 = vpop.permute.xlu0 %6340
      %6342 = vrot.lane.b32.xlu0 %v5286, 64
      %v6343 = vpop.permute.xlu0 %6342
      %6344 = vrot.lane.b32.xlu0 %v5291, 64
      %v6345 = vpop.permute.xlu0 %6344
      %6346 = vrot.lane.b32.xlu0 %v5294, 64
      %v6347 = vpop.permute.xlu0 %6346
      %6348 = vrot.lane.b32.xlu0 %v5299, 64
      %v6349 = vpop.permute.xlu0 %6348
      %6350 = vrot.lane.b32.xlu0 %v5302, 64
      %v6351 = vpop.permute.xlu0 %6350
      %6352 = vrot.lane.b32.xlu0 %v5307, 64
      %v6353 = vpop.permute.xlu0 %6352
      %6354 = vrot.lane.b32.xlu0 %v5310, 64
      %v6355 = vpop.permute.xlu0 %6354
      %6356 = vrot.lane.b32.xlu0 %v5315, 64
      %v6357 = vpop.permute.xlu0 %6356
      %6358 = vrot.lane.b32.xlu0 %v5318, 64
      %v6359 = vpop.permute.xlu0 %6358
      %6360 = vrot.lane.b32.xlu0 %v5323, 64
      %v6361 = vpop.permute.xlu0 %6360
      %6362 = vrot.lane.b32.xlu0 %v5326, 64
      %v6363 = vpop.permute.xlu0 %6362
      %6364 = vrot.lane.b32.xlu0 %v5331, 64
      %v6365 = vpop.permute.xlu0 %6364
      %6366 = vrot.lane.b32.xlu0 %v5334, 64
      %v6367 = vpop.permute.xlu0 %6366
      %6368 = vrot.lane.b32.xlu0 %v5339, 64
      %v6369 = vpop.permute.xlu0 %6368
      %6370 = vrot.lane.b32.xlu0 %v5342, 64
      %v6371 = vpop.permute.xlu0 %6370
      %6372 = vrot.lane.b32.xlu0 %v5347, 64
      %v6373 = vpop.permute.xlu0 %6372
      %6374 = vrot.lane.b32.xlu0 %v5350, 64
      %v6375 = vpop.permute.xlu0 %6374
      %6376 = vrot.lane.b32.xlu0 %v5355, 64
      %v6377 = vpop.permute.xlu0 %6376
      %6378 = vrot.lane.b32.xlu0 %v5358, 64
      %v6379 = vpop.permute.xlu0 %6378
      %6488 = vrot.lane.b32.xlu0 %v5788, 96
      %v6489 = vpop.permute.xlu0 %6488
      %6490 = vrot.lane.b32.xlu0 %v5791, 96
      %v6491 = vpop.permute.xlu0 %6490
      %6492 = vrot.lane.b32.xlu0 %v5796, 96
      %v6493 = vpop.permute.xlu0 %6492
      %6494 = vrot.lane.b32.xlu0 %v5799, 96
      %v6495 = vpop.permute.xlu0 %6494
      %6496 = vrot.lane.b32.xlu0 %v5804, 96
      %v6497 = vpop.permute.xlu0 %6496
      %6498 = vrot.lane.b32.xlu0 %v5807, 96
      %v6499 = vpop.permute.xlu0 %6498
      %6500 = vrot.lane.b32.xlu0 %v5812, 96
      %v6501 = vpop.permute.xlu0 %6500
      %6502 = vrot.lane.b32.xlu0 %v5815, 96
      %v6503 = vpop.permute.xlu0 %6502
      %6504 = vrot.lane.b32.xlu0 %v5820, 96
      %v6505 = vpop.permute.xlu0 %6504
      %6506 = vrot.lane.b32.xlu0 %v5823, 96
      %v6507 = vpop.permute.xlu0 %6506
      %6508 = vrot.lane.b32.xlu0 %v5828, 96
      %v6509 = vpop.permute.xlu0 %6508
      %6510 = vrot.lane.b32.xlu0 %v5831, 96
      %v6511 = vpop.permute.xlu0 %6510
      %6512 = vrot.lane.b32.xlu0 %v5836, 96
      %v6513 = vpop.permute.xlu0 %6512
      %6514 = vrot.lane.b32.xlu0 %v5839, 96
      %v6515 = vpop.permute.xlu0 %6514
      %6516 = vrot.lane.b32.xlu0 %v5844, 96
      %v6517 = vpop.permute.xlu0 %6516
      %6518 = vrot.lane.b32.xlu0 %v5847, 96
      %v6519 = vpop.permute.xlu0 %6518
      %6520 = vrot.lane.b32.xlu0 %v5852, 96
      %v6521 = vpop.permute.xlu0 %6520
      %6522 = vrot.lane.b32.xlu0 %v5855, 96
      %v6523 = vpop.permute.xlu0 %6522
      %6524 = vrot.lane.b32.xlu0 %v5860, 96
      %v6525 = vpop.permute.xlu0 %6524
      %6526 = vrot.lane.b32.xlu0 %v5863, 96
      %v6527 = vpop.permute.xlu0 %6526
      %6528 = vrot.lane.b32.xlu0 %v5868, 96
      %v6529 = vpop.permute.xlu0 %6528
      %6530 = vrot.lane.b32.xlu0 %v5871, 96
      %v6531 = vpop.permute.xlu0 %6530
      %6532 = vrot.lane.b32.xlu0 %v5876, 96
      %v6533 = vpop.permute.xlu0 %6532
      %6534 = vrot.lane.b32.xlu0 %v5879, 96
      %v6535 = vpop.permute.xlu0 %6534
      %6536 = vrot.lane.b32.xlu0 %v5884, 96
      %v6537 = vpop.permute.xlu0 %6536
      %6538 = vrot.lane.b32.xlu0 %v5887, 96
      %v6539 = vpop.permute.xlu0 %6538
      %6540 = vrot.lane.b32.xlu0 %v5892, 96
      %v6541 = vpop.permute.xlu0 %6540
      %6542 = vrot.lane.b32.xlu0 %v5895, 96
      %v6543 = vpop.permute.xlu0 %6542
      %6544 = vrot.lane.b32.xlu0 %v5900, 96
      %v6545 = vpop.permute.xlu0 %6544
      %6546 = vrot.lane.b32.xlu0 %v5903, 96
      %v6547 = vpop.permute.xlu0 %6546
      %6548 = vrot.lane.b32.xlu0 %v5908, 96
      %v6549 = vpop.permute.xlu0 %6548
      %6550 = vrot.lane.b32.xlu0 %v5911, 96
      %v6551 = vpop.permute.xlu0 %6550
      %6552 = vrot.lane.b32.xlu0 %v5916, 96
      %v6553 = vpop.permute.xlu0 %6552
      %6554 = vrot.lane.b32.xlu0 %v5919, 96
      %v6555 = vpop.permute.xlu0 %6554
      %6556 = vrot.lane.b32.xlu0 %v5924, 96
      %v6557 = vpop.permute.xlu0 %6556
      %6558 = vrot.lane.b32.xlu0 %v5927, 96
      %v6559 = vpop.permute.xlu0 %6558
      %6560 = vrot.lane.b32.xlu0 %v5932, 96
      %v6561 = vpop.permute.xlu0 %6560
      %6562 = vrot.lane.b32.xlu0 %v5935, 96
      %v6563 = vpop.permute.xlu0 %6562
      %6564 = vrot.lane.b32.xlu0 %v5940, 96
      %v6565 = vpop.permute.xlu0 %6564
      %6566 = vrot.lane.b32.xlu0 %v5943, 96
      %v6567 = vpop.permute.xlu0 %6566
      %6568 = vrot.lane.b32.xlu0 %v5948, 96
      %v6569 = vpop.permute.xlu0 %6568
      %6570 = vrot.lane.b32.xlu0 %v5951, 96
      %v6571 = vpop.permute.xlu0 %6570
      %6572 = vrot.lane.b32.xlu0 %v5956, 96
      %v6573 = vpop.permute.xlu0 %6572
      %6574 = vrot.lane.b32.xlu0 %v5959, 96
      %v6575 = vpop.permute.xlu0 %6574
      %6576 = vrot.lane.b32.xlu0 %v5964, 96
      %v6577 = vpop.permute.xlu0 %6576
      %6578 = vrot.lane.b32.xlu0 %v5967, 96
      %v6579 = vpop.permute.xlu0 %6578
      %6580 = vrot.lane.b32.xlu0 %v5972, 96
      %v6581 = vpop.permute.xlu0 %6580
      %6582 = vrot.lane.b32.xlu0 %v5975, 96
      %v6583 = vpop.permute.xlu0 %6582
      %6584 = vrot.lane.b32.xlu0 %v5980, 96
      %v6585 = vpop.permute.xlu0 %6584
      %6586 = vrot.lane.b32.xlu0 %v5983, 96
      %v6587 = vpop.permute.xlu0 %6586
      %6588 = vrot.lane.b32.xlu0 %v5988, 96
      %v6589 = vpop.permute.xlu0 %6588
      %6590 = vrot.lane.b32.xlu0 %v5991, 96
      %v6591 = vpop.permute.xlu0 %6590
      %6592 = vrot.lane.b32.xlu0 %v5996, 96
      %v6593 = vpop.permute.xlu0 %6592
      %6594 = vrot.lane.b32.xlu0 %v5999, 96
      %v6595 = vpop.permute.xlu0 %6594
      %vm6650 = vcmask 261120
      %v6651 = vsel %vm6650, %v2896, %v6057
      %v6652 = vsel %vm6650, %v2899, %v6059
      %v6653 = vsel %vm6650, %v2904, %v6061
      %v6654 = vsel %vm6650, %v2907, %v6063
      %v6655 = vsel %vm6650, %v2912, %v6065
      %v6656 = vsel %vm6650, %v2915, %v6067
      %v6657 = vsel %vm6650, %v2920, %v6069
      %v6658 = vsel %vm6650, %v2923, %v6071
      %v6659 = vsel %vm6650, %v2928, %v6073
      %v6660 = vsel %vm6650, %v2931, %v6075
      %v6661 = vsel %vm6650, %v2936, %v6077
      %v6662 = vsel %vm6650, %v2939, %v6079
      %v6663 = vsel %vm6650, %v2944, %v6081
      %v6664 = vsel %vm6650, %v2947, %v6083
      %v6665 = vsel %vm6650, %v2952, %v6085
      %v6666 = vsel %vm6650, %v2955, %v6087
      %v6667 = vsel %vm6650, %v2960, %v6089
      %v6668 = vsel %vm6650, %v2963, %v6091
      %v6669 = vsel %vm6650, %v2968, %v6093
      %v6670 = vsel %vm6650, %v2971, %v6095
      %v6671 = vsel %vm6650, %v2976, %v6097
      %v6672 = vsel %vm6650, %v2979, %v6099
      %v6673 = vsel %vm6650, %v2984, %v6101
      %v6674 = vsel %vm6650, %v2987, %v6103
      %v6675 = vsel %vm6650, %v2992, %v6105
      %v6676 = vsel %vm6650, %v2995, %v6107
      %v6677 = vsel %vm6650, %v3000, %v6109
      %v6678 = vsel %vm6650, %v3003, %v6111
      %v6679 = vsel %vm6650, %v3008, %v6113
      %v6680 = vsel %vm6650, %v3011, %v6115
      %v6681 = vsel %vm6650, %v3016, %v6117
      %v6682 = vsel %vm6650, %v3019, %v6119
      %v6683 = vsel %vm6650, %v3024, %v6121
      %v6684 = vsel %vm6650, %v3027, %v6123
      %v6685 = vsel %vm6650, %v3032, %v6125
      %v6686 = vsel %vm6650, %v3035, %v6127
      %v6687 = vsel %vm6650, %v3040, %v6129
      %v6688 = vsel %vm6650, %v3043, %v6131
      %v6689 = vsel %vm6650, %v3048, %v6133
      %v6690 = vsel %vm6650, %v3051, %v6135
      %v6691 = vsel %vm6650, %v3056, %v6137
      %v6692 = vsel %vm6650, %v3059, %v6139
      %v6693 = vsel %vm6650, %v3064, %v6141
      %v6694 = vsel %vm6650, %v3067, %v6143
      %v6695 = vsel %vm6650, %v3072, %v6145
      %v6696 = vsel %vm6650, %v3075, %v6147
      %v6697 = vsel %vm6650, %v3080, %v6149
      %v6698 = vsel %vm6650, %v3083, %v6151
      %v6699 = vsel %vm6650, %v3088, %v6153
      %v6700 = vsel %vm6650, %v3091, %v6155
      %v6701 = vsel %vm6650, %v3096, %v6157
      %v6702 = vsel %vm6650, %v3099, %v6159
      %v6703 = vsel %vm6650, %v3104, %v6161
      %v6704 = vsel %vm6650, %v3107, %v6163
      %v6705 = vsel %vm425, %v6651, %v6273
      %v6706 = vsel %vm425, %v6652, %v6275
      %v6707 = vsel %vm425, %v6653, %v6277
      %v6708 = vsel %vm425, %v6654, %v6279
      %v6709 = vsel %vm425, %v6655, %v6281
      %v6710 = vsel %vm425, %v6656, %v6283
      %v6711 = vsel %vm425, %v6657, %v6285
      %v6712 = vsel %vm425, %v6658, %v6287
      %v6713 = vsel %vm425, %v6659, %v6289
      %v6714 = vsel %vm425, %v6660, %v6291
      %v6715 = vsel %vm425, %v6661, %v6293
      %v6716 = vsel %vm425, %v6662, %v6295
      %v6717 = vsel %vm425, %v6663, %v6297
      %v6718 = vsel %vm425, %v6664, %v6299
      %v6719 = vsel %vm425, %v6665, %v6301
      %v6720 = vsel %vm425, %v6666, %v6303
      %v6721 = vsel %vm425, %v6667, %v6305
      %v6722 = vsel %vm425, %v6668, %v6307
      %v6723 = vsel %vm425, %v6669, %v6309
      %v6724 = vsel %vm425, %v6670, %v6311
      %v6725 = vsel %vm425, %v6671, %v6313
      %v6726 = vsel %vm425, %v6672, %v6315
      %v6727 = vsel %vm425, %v6673, %v6317
      %v6728 = vsel %vm425, %v6674, %v6319
      %v6729 = vsel %vm425, %v6675, %v6321
      %v6730 = vsel %vm425, %v6676, %v6323
      %v6731 = vsel %vm425, %v6677, %v6325
      %v6732 = vsel %vm425, %v6678, %v6327
      %v6733 = vsel %vm425, %v6679, %v6329
      %v6734 = vsel %vm425, %v6680, %v6331
      %v6735 = vsel %vm425, %v6681, %v6333
      %v6736 = vsel %vm425, %v6682, %v6335
      %v6737 = vsel %vm425, %v6683, %v6337
      %v6738 = vsel %vm425, %v6684, %v6339
      %v6739 = vsel %vm425, %v6685, %v6341
      %v6740 = vsel %vm425, %v6686, %v6343
      %v6741 = vsel %vm425, %v6687, %v6345
      %v6742 = vsel %vm425, %v6688, %v6347
      %v6743 = vsel %vm425, %v6689, %v6349
      %v6744 = vsel %vm425, %v6690, %v6351
      %v6745 = vsel %vm425, %v6691, %v6353
      %v6746 = vsel %vm425, %v6692, %v6355
      %v6747 = vsel %vm425, %v6693, %v6357
      %v6748 = vsel %vm425, %v6694, %v6359
      %v6749 = vsel %vm425, %v6695, %v6361
      %v6750 = vsel %vm425, %v6696, %v6363
      %v6751 = vsel %vm425, %v6697, %v6365
      %v6752 = vsel %vm425, %v6698, %v6367
      %v6753 = vsel %vm425, %v6699, %v6369
      %v6754 = vsel %vm425, %v6700, %v6371
      %v6755 = vsel %vm425, %v6701, %v6373
      %v6756 = vsel %vm425, %v6702, %v6375
      %v6757 = vsel %vm425, %v6703, %v6377
      %v6758 = vsel %vm425, %v6704, %v6379
      %vm6759 = vcmask 785408
      %v6760 = vsel %vm6759, %v6705, %v6489
      %v6761 = vsel %vm6759, %v6706, %v6491
      %v6762 = vsel %vm6759, %v6707, %v6493
      %v6763 = vsel %vm6759, %v6708, %v6495
      %v6764 = vsel %vm6759, %v6709, %v6497
      %v6765 = vsel %vm6759, %v6710, %v6499
      %v6766 = vsel %vm6759, %v6711, %v6501
      %v6767 = vsel %vm6759, %v6712, %v6503
      %v6768 = vsel %vm6759, %v6713, %v6505
      %v6769 = vsel %vm6759, %v6714, %v6507
      %v6770 = vsel %vm6759, %v6715, %v6509
      %v6771 = vsel %vm6759, %v6716, %v6511
      %v6772 = vsel %vm6759, %v6717, %v6513
      %v6773 = vsel %vm6759, %v6718, %v6515
      %v6774 = vsel %vm6759, %v6719, %v6517
      %v6775 = vsel %vm6759, %v6720, %v6519
      %v6776 = vsel %vm6759, %v6721, %v6521
      %v6777 = vsel %vm6759, %v6722, %v6523
      %v6778 = vsel %vm6759, %v6723, %v6525
      %v6779 = vsel %vm6759, %v6724, %v6527
      %v6780 = vsel %vm6759, %v6725, %v6529
      %v6781 = vsel %vm6759, %v6726, %v6531
      %v6782 = vsel %vm6759, %v6727, %v6533
      %v6783 = vsel %vm6759, %v6728, %v6535
      %v6784 = vsel %vm6759, %v6729, %v6537
      %v6785 = vsel %vm6759, %v6730, %v6539
      %v6786 = vsel %vm6759, %v6731, %v6541
      %v6787 = vsel %vm6759, %v6732, %v6543
      %v6788 = vsel %vm6759, %v6733, %v6545
      %v6789 = vsel %vm6759, %v6734, %v6547
      %v6790 = vsel %vm6759, %v6735, %v6549
      %v6791 = vsel %vm6759, %v6736, %v6551
      %v6792 = vsel %vm6759, %v6737, %v6553
      %v6793 = vsel %vm6759, %v6738, %v6555
      %v6794 = vsel %vm6759, %v6739, %v6557
      %v6795 = vsel %vm6759, %v6740, %v6559
      %v6796 = vsel %vm6759, %v6741, %v6561
      %v6797 = vsel %vm6759, %v6742, %v6563
      %v6798 = vsel %vm6759, %v6743, %v6565
      %v6799 = vsel %vm6759, %v6744, %v6567
      %v6800 = vsel %vm6759, %v6745, %v6569
      %v6801 = vsel %vm6759, %v6746, %v6571
      %v6802 = vsel %vm6759, %v6747, %v6573
      %v6803 = vsel %vm6759, %v6748, %v6575
      %v6804 = vsel %vm6759, %v6749, %v6577
      %v6805 = vsel %vm6759, %v6750, %v6579
      %v6806 = vsel %vm6759, %v6751, %v6581
      %v6807 = vsel %vm6759, %v6752, %v6583
      %v6808 = vsel %vm6759, %v6753, %v6585
      %v6809 = vsel %vm6759, %v6754, %v6587
      %v6810 = vsel %vm6759, %v6755, %v6589
      %v6811 = vsel %vm6759, %v6756, %v6591
      %v6812 = vsel %vm6759, %v6757, %v6593
      %v6813 = vsel %vm6759, %v6758, %v6595
      %v6814 = vpack.c.bf16 %v6761, %v6760
      %v6815 = vpack.c.bf16 %v6763, %v6762
      %v6816 = vpack.c.bf16 %v6765, %v6764
      %v6817 = vpack.c.bf16 %v6767, %v6766
      %v6818 = vpack.c.bf16 %v6769, %v6768
      %v6819 = vpack.c.bf16 %v6771, %v6770
      %v6820 = vpack.c.bf16 %v6773, %v6772
      %v6821 = vpack.c.bf16 %v6775, %v6774
      %v6822 = vpack.c.bf16 %v6777, %v6776
      %v6823 = vpack.c.bf16 %v6779, %v6778
      %v6824 = vpack.c.bf16 %v6781, %v6780
      %v6825 = vpack.c.bf16 %v6783, %v6782
      %v6826 = vpack.c.bf16 %v6785, %v6784
      %v6827 = vpack.c.bf16 %v6787, %v6786
      %v6828 = vpack.c.bf16 %v6789, %v6788
      %v6829 = vpack.c.bf16 %v6791, %v6790
      %v6830 = vpack.c.bf16 %v6793, %v6792
      %v6831 = vpack.c.bf16 %v6795, %v6794
      %v6832 = vpack.c.bf16 %v6797, %v6796
      %v6833 = vpack.c.bf16 %v6799, %v6798
      %v6834 = vpack.c.bf16 %v6801, %v6800
      %v6835 = vpack.c.bf16 %v6803, %v6802
      %v6836 = vpack.c.bf16 %v6805, %v6804
      %v6837 = vpack.c.bf16 %v6807, %v6806
      %v6838 = vpack.c.bf16 %v6809, %v6808
      %v6839 = vpack.c.bf16 %v6811, %v6810
      %v6840 = vpack.c.bf16 %v6813, %v6812
      %v6868 = vunpack.c.l.b16 %v6814
      %v6869 = vunpack.c.h.b16 %v6814
      %v6870 = vunpack.c.l.b16 %v6815
      %v6871 = vunpack.c.h.b16 %v6815
      %v6872 = vunpack.c.l.b16 %v6816
      %v6873 = vunpack.c.h.b16 %v6816
      %v6874 = vunpack.c.l.b16 %v6817
      %v6875 = vunpack.c.h.b16 %v6817
      %v6876 = vunpack.c.l.b16 %v6818
      %v6877 = vunpack.c.h.b16 %v6818
      %v6878 = vunpack.c.l.b16 %v6819
      %v6879 = vunpack.c.h.b16 %v6819
      %v6880 = vunpack.c.l.b16 %v6820
      %v6881 = vunpack.c.h.b16 %v6820
      %v6882 = vunpack.c.l.b16 %v6821
      %v6883 = vunpack.c.h.b16 %v6821
      %v6884 = vunpack.c.l.b16 %v6822
      %v6885 = vunpack.c.h.b16 %v6822
      %v6886 = vunpack.c.l.b16 %v6823
      %v6887 = vunpack.c.h.b16 %v6823
      %v6888 = vunpack.c.l.b16 %v6824
      %v6889 = vunpack.c.h.b16 %v6824
      %v6890 = vunpack.c.l.b16 %v6825
      %v6891 = vunpack.c.h.b16 %v6825
      %v6892 = vunpack.c.l.b16 %v6826
      %v6893 = vunpack.c.h.b16 %v6826
      %v6894 = vunpack.c.l.b16 %v6827
      %v6895 = vunpack.c.h.b16 %v6827
      %v6896 = vunpack.c.l.b16 %v6828
      %v6897 = vunpack.c.h.b16 %v6828
      %v6898 = vunpack.c.l.b16 %v6829
      %v6899 = vunpack.c.h.b16 %v6829
      %v6900 = vunpack.c.l.b16 %v6830
      %v6901 = vunpack.c.h.b16 %v6830
      %v6902 = vunpack.c.l.b16 %v6831
      %v6903 = vunpack.c.h.b16 %v6831
      %v6904 = vunpack.c.l.b16 %v6832
      %v6905 = vunpack.c.h.b16 %v6832
      %v6906 = vunpack.c.l.b16 %v6833
      %v6907 = vunpack.c.h.b16 %v6833
      %v6908 = vunpack.c.l.b16 %v6834
      %v6909 = vunpack.c.h.b16 %v6834
      %v6910 = vunpack.c.l.b16 %v6835
      %v6911 = vunpack.c.h.b16 %v6835
      %v6912 = vunpack.c.l.b16 %v6836
      %v6913 = vunpack.c.h.b16 %v6836
      %v6914 = vunpack.c.l.b16 %v6837
      %v6915 = vunpack.c.h.b16 %v6837
      %v6916 = vunpack.c.l.b16 %v6838
      %v6917 = vunpack.c.h.b16 %v6838
      %v6918 = vunpack.c.l.b16 %v6839
      %v6919 = vunpack.c.h.b16 %v6839
      %v6920 = vunpack.c.l.b16 %v6840
      %v6921 = vunpack.c.h.b16 %v6840
      %v6922 = vpack.c.b16 %v6868, %v6868
      %v6923 = vpack.c.b16 %v6869, %v6869
      %v6924 = vpack.c.b16 %v6870, %v6870
      %v6925 = vpack.c.b16 %v6871, %v6871
      %v6926 = vpack.c.b16 %v6872, %v6872
      %v6927 = vpack.c.b16 %v6873, %v6873
      %v6928 = vpack.c.b16 %v6874, %v6874
      %v6929 = vpack.c.b16 %v6875, %v6875
      %v6930 = vpack.c.b16 %v6876, %v6876
      %v6931 = vpack.c.b16 %v6877, %v6877
      %v6932 = vpack.c.b16 %v6878, %v6878
      %v6933 = vpack.c.b16 %v6879, %v6879
      %v6934 = vpack.c.b16 %v6880, %v6880
      %v6935 = vpack.c.b16 %v6881, %v6881
      %v6936 = vpack.c.b16 %v6882, %v6882
      %v6937 = vpack.c.b16 %v6883, %v6883
      %v6938 = vpack.c.b16 %v6884, %v6884
      %v6939 = vpack.c.b16 %v6885, %v6885
      %v6940 = vpack.c.b16 %v6886, %v6886
      %v6941 = vpack.c.b16 %v6887, %v6887
      %v6942 = vpack.c.b16 %v6888, %v6888
      %v6943 = vpack.c.b16 %v6889, %v6889
      %v6944 = vpack.c.b16 %v6890, %v6890
      %v6945 = vpack.c.b16 %v6891, %v6891
      %v6946 = vpack.c.b16 %v6892, %v6892
      %v6947 = vpack.c.b16 %v6893, %v6893
      %v6948 = vpack.c.b16 %v6894, %v6894
      %v6949 = vpack.c.b16 %v6895, %v6895
      %v6950 = vpack.c.b16 %v6896, %v6896
      %v6951 = vpack.c.b16 %v6897, %v6897
      %v6952 = vpack.c.b16 %v6898, %v6898
      %v6953 = vpack.c.b16 %v6899, %v6899
      %v6954 = vpack.c.b16 %v6900, %v6900
      %v6955 = vpack.c.b16 %v6901, %v6901
      %v6956 = vpack.c.b16 %v6902, %v6902
      %v6957 = vpack.c.b16 %v6903, %v6903
      %v6958 = vpack.c.b16 %v6904, %v6904
      %v6959 = vpack.c.b16 %v6905, %v6905
      %v6960 = vpack.c.b16 %v6906, %v6906
      %v6961 = vpack.c.b16 %v6907, %v6907
      %v6962 = vpack.c.b16 %v6908, %v6908
      %v6963 = vpack.c.b16 %v6909, %v6909
      %v6964 = vpack.c.b16 %v6910, %v6910
      %v6965 = vpack.c.b16 %v6911, %v6911
      %v6966 = vpack.c.b16 %v6912, %v6912
      %v6967 = vpack.c.b16 %v6913, %v6913
      %v6968 = vpack.c.b16 %v6914, %v6914
      %v6969 = vpack.c.b16 %v6915, %v6915
      %v6970 = vpack.c.b16 %v6916, %v6916
      %v6971 = vpack.c.b16 %v6917, %v6917
      %v6972 = vpack.c.b16 %v6918, %v6918
      %v6973 = vpack.c.b16 %v6919, %v6919
      %v6974 = vpack.c.b16 %v6920, %v6920
      %v6975 = vpack.c.b16 %v6921, %v6921
      %7030 = vst [vmem:[%s251] sm:$0xf] %v6922
      %7031 = vst [vmem:[%s251 + $0x4] sm:$0xf] %v6923
      %7032 = vst [vmem:[%s251 + $0x8] sm:$0xf] %v6924
      %7033 = vst [vmem:[%s251 + $0xc] sm:$0xf] %v6925
      %7034 = vst [vmem:[%s251 + $0x10] sm:$0xf] %v6926
      %7035 = vst [vmem:[%s251 + $0x14] sm:$0xf] %v6927
      %7036 = vst [vmem:[%s251 + $0x18] sm:$0xf] %v6928
      %7037 = vst [vmem:[%s251 + $0x1c] sm:$0xf] %v6929
      %7038 = vst [vmem:[%s251 + $0x20] sm:$0xf] %v6930
      %7039 = vst [vmem:[%s251 + $0x24] sm:$0xf] %v6931
      %7040 = vst [vmem:[%s251 + $0x28] sm:$0xf] %v6932
      %7041 = vst [vmem:[%s251 + $0x2c] sm:$0xf] %v6933
      %7042 = vst [vmem:[%s251 + $0x30] sm:$0xf] %v6934
      %7043 = vst [vmem:[%s251 + $0x34] sm:$0xf] %v6935
      %7044 = vst [vmem:[%s251 + $0x38] sm:$0xf] %v6936
      %7045 = vst [vmem:[%s251 + $0x3c] sm:$0xf] %v6937
      %7046 = vst [vmem:[%s251 + $0x40] sm:$0xf] %v6938
      %7047 = vst [vmem:[%s251 + $0x44] sm:$0xf] %v6939
      %7048 = vst [vmem:[%s251 + $0x48] sm:$0xf] %v6940
      %7049 = vst [vmem:[%s251 + $0x4c] sm:$0xf] %v6941
      %7050 = vst [vmem:[%s251 + $0x50] sm:$0xf] %v6942
      %7051 = vst [vmem:[%s251 + $0x54] sm:$0xf] %v6943
      %7052 = vst [vmem:[%s251 + $0x58] sm:$0xf] %v6944
      %7053 = vst [vmem:[%s251 + $0x5c] sm:$0xf] %v6945
      %7054 = vst [vmem:[%s251 + $0x60] sm:$0xf] %v6946
      %7055 = vst [vmem:[%s251 + $0x64] sm:$0xf] %v6947
      %7056 = vst [vmem:[%s251 + $0x68] sm:$0xf] %v6948
      %7057 = vst [vmem:[%s251 + $0x6c] sm:$0xf] %v6949
      %7058 = vst [vmem:[%s251 + $0x70] sm:$0xf] %v6950
      %7059 = vst [vmem:[%s251 + $0x74] sm:$0xf] %v6951
      %7060 = vst [vmem:[%s251 + $0x78] sm:$0xf] %v6952
      %7061 = vst [vmem:[%s251 + $0x7c] sm:$0xf] %v6953
      %7062 = vst [vmem:[%s251 + $0x80] sm:$0xf] %v6954
      %7063 = vst [vmem:[%s251 + $0x84] sm:$0xf] %v6955
      %7064 = vst [vmem:[%s251 + $0x88] sm:$0xf] %v6956
      %7065 = vst [vmem:[%s251 + $0x8c] sm:$0xf] %v6957
      %7066 = vst [vmem:[%s251 + $0x90] sm:$0xf] %v6958
      %7067 = vst [vmem:[%s251 + $0x94] sm:$0xf] %v6959
      %7068 = vst [vmem:[%s251 + $0x98] sm:$0xf] %v6960
      %7069 = vst [vmem:[%s251 + $0x9c] sm:$0xf] %v6961
      %7070 = vst [vmem:[%s251 + $0xa0] sm:$0xf] %v6962
      %7071 = vst [vmem:[%s251 + $0xa4] sm:$0xf] %v6963
      %7072 = vst [vmem:[%s251 + $0xa8] sm:$0xf] %v6964
      %7073 = vst [vmem:[%s251 + $0xac] sm:$0xf] %v6965
      %7074 = vst [vmem:[%s251 + $0xb0] sm:$0xf] %v6966
      %7075 = vst [vmem:[%s251 + $0xb4] sm:$0xf] %v6967
      %7076 = vst [vmem:[%s251 + $0xb8] sm:$0xf] %v6968
      %7077 = vst [vmem:[%s251 + $0xbc] sm:$0xf] %v6969
      %7078 = vst [vmem:[%s251 + $0xc0] sm:$0xf] %v6970
      %7079 = vst [vmem:[%s251 + $0xc4] sm:$0xf] %v6971
      %7080 = vst [vmem:[%s251 + $0xc8] sm:$0xf] %v6972
      %7081 = vst [vmem:[%s251 + $0xcc] sm:$0xf] %v6973
      %7082 = vst [vmem:[%s251 + $0xd0] sm:$0xf] %v6974
      %7083 = vst [vmem:[%s251 + $0xd4] sm:$0xf] %v6975
      %p7084 = scmp.lt.s32.totalorder %s17, 1
      %s7085 = scalar_select %p7084, %s17, 1
      %s7086 = smul.addr %s7085, 54
      %s7087 = smul.addr %s7086, 4
      %s7088 = scalar_lea.vmem %s6, %s7087
      // Predicated region
      $region45: #{up_block_forward.5} parent=43 // pred_check
        %p7089 = pneg %p166
      $region46: #{up_block_forward.5} parent=43 // pred_check_branch
        %7091 = sbr.rel (%p7089) target = $region48
      $region47: #{up_block_forward.5} parent=43 // pred_region
        _
      $region48: #{up_block_forward.5} parent=43 // pred_fallthru
        _
    $region44: #{up_block_forward.5} parent=5 // pred_fallthru
      _
    %p7092 = scmp.le.s32.totalorder 2, %s12
    // Predicated region
    $region49: #{up_block_forward.5} parent=5 // pred_check
      %p7093 = pneg %p7092
    $region50: #{up_block_forward.5} parent=5 // pred_check_branch
      %7095 = sbr.rel (%p7093) target = $region52
    $region51: #{up_block_forward.5} parent=5 // pred_region
      %s7096 = ssub.s32 %s12, 2
      // Predicated region
      $region53: #{up_block_forward.5} parent=51 // pred_check
        %p7097 = pneg %p172
      $region54: #{up_block_forward.5} parent=51 // pred_check_branch
        %7099 = sbr.rel (%p7097) target = $region56
      $region55: #{up_block_forward.5} parent=51 // pred_region
        %p7100 = scmp.lt.s32.totalorder %s18, 1
        %s7101 = scalar_select %p7100, %s18, 1
        %s7102 = smul.addr %s7101, 54
        %s7103 = smul.addr %s7102, 4
        %s7104 = scalar_lea.vmem %s6, %s7103
      $region56: #{up_block_forward.5} parent=51 // pred_fallthru
        _
    $region52: #{up_block_forward.5} parent=5 // pred_fallthru
      _
  $region6: #{up_block_forward.5} parent=0 // loop_footer
    %s16 = sadd.s32 1, %s12
  $region7: #{up_block_forward.5} parent=0 // loop_footer_branch
    %11 = sbr.rel target = $region3
  $region8: #{up_block_forward.5} parent=0 // loop_exit
    _

</llo_original>
